<compile_context>
chip_gen: v7x
topology: tpu7x:2x2x1
jax: 0.10.0
libtpu: 0.0.40
codegen_flags: <defaults>
</compile_context>

<pallas_src>
import functools

import jax
import jax.numpy as jnp
from jax.experimental import pallas as pl
from jax.experimental.pallas import tpu as pltpu

F32 = jnp.float32
BF16 = jnp.bfloat16
CPAD = 128          # lane-dense channel padding (all matmul K/N dims are 128)
BN_EPS = 1e-5


# --------------------------------------------------------------------------
# small in-kernel helpers
# --------------------------------------------------------------------------
def _boundary_mask(n_rows, l, side):
    """(n_rows,1) f32 mask, zero at each sample's first ('l') / last ('r') row."""
    r = jax.lax.broadcasted_iota(jnp.int32, (n_rows, 1), 0)
    pos = r % l
    bad = (pos == 0) if side == 'l' else (pos == (l - 1))
    return (~bad).astype(F32)


def _shift(x, direction):
    """direction=+1: result[i] = x[i-1]; direction=-1: result[i] = x[i+1]
    (wrap-around rows are killed by the per-sample boundary masks)."""
    n = x.shape[0]
    s = 1 if direction > 0 else n - 1
    return pltpu.roll(x, s, axis=0)


def _make_kernel(cfg, B):
    blocks = cfg['blocks']
    L0 = cfg['l0']
    n_sel = sum(2 for bc in blocks if bc['stride'] != 1)

    def kernel(*refs):
        x_ref, vecs_ref, w3_ref, wsc_ref, fcw_ref, pool_ref = refs[:6]
        sel_refs = refs[6:6 + n_sel]
        o_ref = refs[-1]

        vecs = vecs_ref[...]                                   # (R, 128) f32

        def vrow(i):
            return vecs[i:i + 1, :]                            # (1, 128)

        masks = {}

        def mask(l, side, rows):
            key = (l, side)
            if key not in masks:
                masks[key] = _boundary_mask(rows, l, side)
            return masks[key]

        # ---- stem: Conv1d(1, C0, k=3, s=1, p=1) as VPU outer products + rolls
        x = x_ref[...].reshape(B * L0, 1)                      # (B*L0, 1) f32
        r0, r1, r2 = cfg['stem_rows']
        h = x * vrow(r1)
        h = h + _shift(x * vrow(r0), +1) * mask(L0, 'l', B * L0)
        h = h + _shift(x * vrow(r2), -1) * mask(L0, 'r', B * L0)

        # ---- BasicBlocks: folded BN+ReLU, K=384 im2col conv, fused shortcut
        sel_i = 0
        for bc in blocks:
            l_in, l_out, s = bc['l_in'], bc['l_out'], bc['stride']
            rows_in, rows_out = B * l_in, B * l_out
            a = jnp.maximum(h * vrow(bc['bn1_s']) + vrow(bc['bn1_b']), 0.0)

            if s == 1:
                prev = _shift(a, +1) * mask(l_in, 'l', rows_in)
                nxt = _shift(a, -1) * mask(l_in, 'r', rows_in)
                slab1 = jnp.concatenate([prev, a, nxt], axis=1)
                a_ds = a
            else:
                s_e = sel_refs[sel_i][...]                     # even rows x[2j]
                s_o = sel_refs[sel_i + 1][...]                 # odd rows  x[2j+1]
                sel_i += 2
                x_e = jnp.dot(s_e, a, preferred_element_type=F32)
                x_o = jnp.dot(s_o, a, preferred_element_type=F32)
                x_om = _shift(x_o, +1) * mask(l_out, 'l', rows_out)   # x[2j-1]
                slab1 = jnp.concatenate([x_om, x_e, x_o], axis=1)
                a_ds = x_e

            c1 = jnp.dot(slab1.astype(BF16), w3_ref[bc['w1']],
                         preferred_element_type=F32)
            p = jnp.maximum(c1 * vrow(bc['bn2_s']) + vrow(bc['bn2_b']), 0.0)
            prev = _shift(p, +1) * mask(l_out, 'l', rows_out)
            nxt = _shift(p, -1) * mask(l_out, 'r', rows_out)
            slab2 = jnp.concatenate([prev, p, nxt], axis=1)
            c2 = jnp.dot(slab2.astype(BF16), w3_ref[bc['w2']],
                         preferred_element_type=F32)

            if bc['equal']:
                sc = h                                         # identity shortcut
            else:
                sc = jnp.dot(a_ds.astype(BF16), wsc_ref[bc['wsc']],
                             preferred_element_type=F32)
            h = c2 + sc                                        # residual add

        # ---- tail: BN+ReLU -> per-sample mean pool (matmul) -> spectral FC
        hf = jnp.maximum(h * vrow(cfg['bnf_s']) + vrow(cfg['bnf_b']), 0.0)
        feat = jnp.dot(pool_ref[...], hf, preferred_element_type=F32)   # (B,128)
        logits = jnp.dot(feat.astype(BF16), fcw_ref[...],
                         preferred_element_type=F32) + vrow(cfg['fc_b'])
        o_ref[...] = logits                                    # lane-dense store
    return kernel


# --------------------------------------------------------------------------
# host-side precomputed selection / pooling matrices (depend on batch tile B)
# --------------------------------------------------------------------------
def _make_decim(B, l_in, l_out, offset):
    """(B*l_out, B*l_in) 0/1 matrix: row (b,j) selects input row (b, 2j+offset)."""
    rows, cols = B * l_out, B * l_in
    r = jnp.arange(rows)
    col = (r // l_out) * l_in + 2 * (r % l_out) + offset
    return (jnp.arange(cols)[None, :] == col[:, None]).astype(F32)


def _make_pool(B, l_f):
    """(B, B*l_f) per-sample mean-pool matrix."""
    r = jnp.arange(B)
    c = jnp.arange(B * l_f)
    return ((c[None, :] // l_f) == r[:, None]).astype(F32) / float(l_f)


def _const_spec(arr):
    nd = arr.ndim
    return pl.BlockSpec(arr.shape, lambda i, _nd=nd: (0,) * _nd)


# --------------------------------------------------------------------------
# forward wrapper
# --------------------------------------------------------------------------
def wideresnet_forward(packed, x_ncl, batch_tile=8):
    """x_ncl: (N, 1, L) like the PyTorch module.  Returns logits (N, num_classes)."""
    cfg = packed['cfg']
    n, cin, l0 = x_ncl.shape
    assert cin == 1 and l0 == cfg['l0']
    B = max(1, min(batch_tile, n))
    n_pad = ((n + B - 1) // B) * B

    x_cl = jnp.transpose(x_ncl, (0, 2, 1)).astype(F32)         # (N, L, 1)
    if n_pad != n:
        x_cl = jnp.concatenate(
            [x_cl, jnp.zeros((n_pad - n, l0, 1), F32)], axis=0)

    sels = []
    for bc in cfg['blocks']:
        if bc['stride'] != 1:
            sels.append(_make_decim(B, bc['l_in'], bc['l_out'], 0))
            sels.append(_make_decim(B, bc['l_in'], bc['l_out'], 1))
    l_f = cfg['blocks'][-1]['l_out']
    pool = _make_pool(B, l_f)

    ops = [x_cl, packed['vecs'], packed['w3'], packed['wsc'],
           packed['fcw'], pool] + sels
    specs = ([pl.BlockSpec((B, l0, 1), lambda i: (i, 0, 0))] +
             [_const_spec(a) for a in ops[1:]])

    # advisory cost estimate for the XLA scheduler
    steps = n_pad // B
    flops = 6 * B * l0 * CPAD                                   # stem (VPU)
    for bc in cfg['blocks']:
        m = B * bc['l_out']
        flops += 2 * m * (3 * CPAD) * CPAD * 2                  # conv1 + conv2
        if bc['stride'] != 1:
            flops += 2 * 2 * m * (B * bc['l_in']) * CPAD        # even/odd select
        if not bc['equal']:
            flops += 2 * m * CPAD * CPAD                        # shortcut
    flops += 2 * B * (B * l_f) * CPAD + 2 * B * CPAD * CPAD     # pool + fc
    flops *= steps
    bytes_acc = (x_cl.size * 4 + packed['vecs'].size * 4 +
                 packed['w3'].size * 2 + packed['wsc'].size * 2 +
                 packed['fcw'].size * 2 + pool.size * 4 +
                 sum(s.size for s in sels) * 4 + n_pad * CPAD * 4)

    kernel = _make_kernel(cfg, B)
    out = pl.pallas_call(
        kernel,
        grid=(steps,),
        in_specs=specs,
        out_specs=pl.BlockSpec((B, CPAD), lambda i: (i, 0)),
        out_shape=jax.ShapeDtypeStruct((n_pad, CPAD), F32),
        compiler_params=pltpu.CompilerParams(
            dimension_semantics=("parallel",)),                 # v7x: 2 TCs split batch
        cost_estimate=pl.CostEstimate(flops=int(flops), transcendentals=0,
                                      bytes_accessed=int(bytes_acc)),
    )(*ops)
    return out[:n, :cfg['num_classes']]


# --------------------------------------------------------------------------
# parameter packing: fold eval BN, pad channels to 128, bf16 weights,
# concatenate the many small operands into a few packed arrays
# --------------------------------------------------------------------------
def _fold_bn(bnp):
    scale = bnp['gamma'] / jnp.sqrt(bnp['var'] + BN_EPS)
    shift = bnp['beta'] - bnp['mean'] * scale
    return scale, shift


def _row(vec):
    c = vec.shape[0]
    assert c <= CPAD
    return jnp.zeros((CPAD,), F32).at[:c].set(vec)


def _pack_conv3(w):
    # torch (Cout, Cin, 3) -> (3*CPAD, CPAD) bf16, rows = tap*128 + ci, cols = co
    cout, cin, _ = w.shape
    assert cout <= CPAD and cin <= CPAD
    wt = jnp.transpose(w, (2, 1, 0))                            # (3, Cin, Cout)
    out = jnp.zeros((3, CPAD, CPAD), F32).at[:, :cin, :cout].set(wt)
    return out.reshape(3 * CPAD, CPAD).astype(BF16)


def _pack_conv1(w):
    cout, cin, _ = w.shape
    return (jnp.zeros((CPAD, CPAD), F32)
            .at[:cin, :cout].set(w[:, :, 0].T).astype(BF16))


def pack_params(params):
    meta = params['meta']
    l = int(meta['input_size'])
    c0 = params['conv1'].shape[0]
    assert c0 <= CPAD

    rows = []

    def add_row(v):
        rows.append(_row(v))
        return len(rows) - 1

    stem = params['conv1'][:, 0, :]                             # (C0, 3)
    stem_rows = tuple(add_row(stem[:, t]) for t in range(3))

    w3_list, wsc_list, blocks_cfg = [], [], []
    for blk in params['blocks']:
        s = int(blk['stride'])
        assert s in (1, 2)
        if s == 2:
            assert l % 2 == 0
        l_out = (l - 1) // s + 1
        s1, b1 = _fold_bn(blk['bn1'])
        s2, b2 = _fold_bn(blk['bn2'])
        bc = dict(equal=bool(blk['equal']), stride=s, l_in=l, l_out=l_out,
                  bn1_s=add_row(s1), bn1_b=add_row(b1),
                  bn2_s=add_row(s2), bn2_b=add_row(b2),
                  w1=len(w3_list), w2=len(w3_list) + 1, wsc=None)
        w3_list.append(_pack_conv3(blk['conv1']))
        w3_list.append(_pack_conv3(blk['conv2']))
        if not blk['equal']:
            bc['wsc'] = len(wsc_list)
            wsc_list.append(_pack_conv1(blk['short']))
        else:
            assert s == 1
        blocks_cfg.append(bc)
        l = l_out

    sf, bf = _fold_bn(params['bn_final'])
    nc = int(meta['num_classes'])
    cfg = dict(blocks=blocks_cfg, num_classes=nc, l0=int(meta['input_size']),
               stem_rows=stem_rows, bnf_s=add_row(sf), bnf_b=add_row(bf),
               fc_b=add_row(params['fc_b']))

    r_pad = ((len(rows) + 7) // 8) * 8
    vecs = jnp.stack(rows + [jnp.zeros((CPAD,), F32)] * (r_pad - len(rows)))

    cfeat = params['fc_w'].shape[1]
    assert cfeat <= CPAD and nc <= CPAD
    fcw = (jnp.zeros((CPAD, CPAD), F32)
           .at[:cfeat, :nc].set(params['fc_w'].T).astype(BF16))

    if not wsc_list:
        wsc_list = [jnp.zeros((CPAD, CPAD), BF16)]
    return dict(vecs=vecs, w3=jnp.stack(w3_list), wsc=jnp.stack(wsc_list),
                fcw=fcw, cfg=cfg)


# --------------------------------------------------------------------------
# deterministic parameter init (mirrors _initialize_weights, eval mode)
# --------------------------------------------------------------------------
def spectral_normalize(w, key, iters=20):
    u = jax.random.normal(key, (w.shape[0],), F32)
    u = u / (jnp.linalg.norm(u) + 1e-12)
    v = None
    for _ in range(iters):
        v = w.T @ u
        v = v / (jnp.linalg.norm(v) + 1e-12)
        u = w @ v
        u = u / (jnp.linalg.norm(u) + 1e-12)
    sigma = u @ (w @ v)
    return w / sigma


def init_params(key, depth=10, widen_factor=2, num_classes=10, input_size=32):
    assert (depth - 4) % 6 == 0
    n = (depth - 4) // 6
    nch = [16, 16 * widen_factor, 32 * widen_factor, 64 * widen_factor]
    keys = iter(jax.random.split(key, 4 + 9 * n))

    def conv_w(cout, cin, k):
        std = (2.0 / (cout * k)) ** 0.5                         # kaiming, fan_out, relu
        return std * jax.random.normal(next(keys), (cout, cin, k), F32)

    def bn(c):
        return dict(gamma=jnp.ones((c,), F32), beta=jnp.zeros((c,), F32),
                    mean=jnp.zeros((c,), F32), var=jnp.ones((c,), F32))

    params = {'conv1': conv_w(nch[0], 1, 3), 'blocks': []}
    in_planes = nch[0]
    for out_planes, stride in zip(nch[1:], (1, 2, 2)):
        for i in range(n):
            ip = in_planes if i == 0 else out_planes
            st = stride if i == 0 else 1
            blk = dict(equal=(ip == out_planes), stride=st,
                       bn1=bn(ip), conv1=conv_w(out_planes, ip, 3),
                       bn2=bn(out_planes), conv2=conv_w(out_planes, out_planes, 3))
            if ip != out_planes:
                blk['short'] = conv_w(out_planes, ip, 1)
            params['blocks'].append(blk)
        in_planes = out_planes
    params['bn_final'] = bn(nch[3])
    fc_w = 0.01 * jax.random.normal(next(keys), (num_classes, nch[3]), F32)
    params['fc_w'] = spectral_normalize(fc_w, next(keys))
    params['fc_b'] = jnp.zeros((num_classes,), F32)
    params['meta'] = dict(num_classes=num_classes, input_size=input_size)
    return params


if __name__ == "__main__":
    key = jax.random.PRNGKey(0)
    pkey, xkey = jax.random.split(key)

    # small config: depth=10 -> 1 BasicBlock per stage, widen_factor=2, L=32
    params = init_params(pkey, depth=10, widen_factor=2, num_classes=10, input_size=32)
    packed = pack_params(params)

    N, L = 16, 32                       # B=8 per grid step -> grid=2 (both v7x TCs busy)
    x = jax.random.normal(xkey, (N, 1, L), F32)   # PyTorch-style (N, C=1, L)

    fwd = jax.jit(functools.partial(wideresnet_forward, packed, batch_tile=8))
    logits = fwd(x)
    jax.block_until_ready(logits)
    assert logits.shape == (N, 10)
    assert bool(jnp.all(jnp.isfinite(logits)))
    print("KERNEL_OK")
</pallas_src>

<mosaic_0001>
module attributes {stable_mosaic.version = 11 : i64} {
  func.func @kernel(%arg0: i32, %arg1: memref<8x32x1xf32, #tpu.memory_space<vmem>>, %arg2: memref<24x128xf32, #tpu.memory_space<vmem>>, %arg3: memref<6x384x128xbf16, #tpu.memory_space<vmem>>, %arg4: memref<3x128x128xbf16, #tpu.memory_space<vmem>>, %arg5: memref<128x128xbf16, #tpu.memory_space<vmem>>, %arg6: memref<8x64xf32, #tpu.memory_space<vmem>>, %arg7: memref<128x256xf32, #tpu.memory_space<vmem>>, %arg8: memref<128x256xf32, #tpu.memory_space<vmem>>, %arg9: memref<64x128xf32, #tpu.memory_space<vmem>>, %arg10: memref<64x128xf32, #tpu.memory_space<vmem>>, %arg11: memref<8x128xf32, #tpu.memory_space<vmem>>) attributes {dimension_semantics = [#tpu.dimension_semantics<parallel>], iteration_bounds = array<i64: 2>, scalar_prefetch = 0 : i64, scratch_operands = 0 : i64, tpu.core_type = #tpu.core_type<tc>, window_params = [{transform_indices = @transform_0, window_bounds = array<i64: 8, 32, 1>}, {pipeline_mode = #tpu.pipeline_mode<synchronous>, transform_indices = @transform_1, window_bounds = array<i64: 24, 128>}, {pipeline_mode = #tpu.pipeline_mode<synchronous>, transform_indices = @transform_2, window_bounds = array<i64: 6, 384, 128>}, {pipeline_mode = #tpu.pipeline_mode<synchronous>, transform_indices = @transform_3, window_bounds = array<i64: 3, 128, 128>}, {pipeline_mode = #tpu.pipeline_mode<synchronous>, transform_indices = @transform_4, window_bounds = array<i64: 128, 128>}, {pipeline_mode = #tpu.pipeline_mode<synchronous>, transform_indices = @transform_5, window_bounds = array<i64: 8, 64>}, {pipeline_mode = #tpu.pipeline_mode<synchronous>, transform_indices = @transform_6, window_bounds = array<i64: 128, 256>}, {pipeline_mode = #tpu.pipeline_mode<synchronous>, transform_indices = @transform_7, window_bounds = array<i64: 128, 256>}, {pipeline_mode = #tpu.pipeline_mode<synchronous>, transform_indices = @transform_8, window_bounds = array<i64: 64, 128>}, {pipeline_mode = #tpu.pipeline_mode<synchronous>, transform_indices = @transform_9, window_bounds = array<i64: 64, 128>}, {transform_indices = @transform_10, window_bounds = array<i64: 8, 128>}]} {
    %c0 = arith.constant 0 : index
    %c0_0 = arith.constant 0 : index
    %0 = vector.load %arg2[%c0, %c0_0] : memref<24x128xf32, #tpu.memory_space<vmem>>, vector<24x128xf32>
    %c0_1 = arith.constant 0 : index
    %c0_2 = arith.constant 0 : index
    %c0_3 = arith.constant 0 : index
    %1 = vector.load %arg1[%c0_1, %c0_2, %c0_3] : memref<8x32x1xf32, #tpu.memory_space<vmem>>, vector<8x32x1xf32>
    %2 = vector.shape_cast %1 : vector<8x32x1xf32> to vector<256x1xf32>
    %3 = vector.extract_strided_slice %0 {offsets = [1, 0], sizes = [1, 128], strides = [1, 1]} : vector<24x128xf32> to vector<1x128xf32>
    %4 = vector.broadcast %2 : vector<256x1xf32> to vector<256x128xf32>
    %5 = vector.broadcast %3 : vector<1x128xf32> to vector<256x128xf32>
    %6 = arith.mulf %4, %5 : vector<256x128xf32>
    %7 = vector.extract_strided_slice %0 {offsets = [0, 0], sizes = [1, 128], strides = [1, 1]} : vector<24x128xf32> to vector<1x128xf32>
    %8 = vector.broadcast %2 : vector<256x1xf32> to vector<256x128xf32>
    %9 = vector.broadcast %7 : vector<1x128xf32> to vector<256x128xf32>
    %10 = arith.mulf %8, %9 : vector<256x128xf32>
    %c1_i32 = arith.constant 1 : i32
    %11 = tpu.dynamic_rotate %10 by %c1_i32 dim 0 : vector<256x128xf32>, i32 -> vector<256x128xf32>
    %12 = tpu.iota {dimensions = array<i32: 0>} : vector<256x1xi32>
    %c32_i32 = arith.constant 32 : i32
    %c0_i32 = arith.constant 0 : i32
    %13 = arith.cmpi eq, %c32_i32, %c0_i32 : i32
    %c1_i32_4 = arith.constant 1 : i32
    %14 = arith.select %13, %c1_i32_4, %c32_i32 : i32
    %15 = vector.broadcast %14 : i32 to vector<256x1xi32>
    %16 = arith.remsi %12, %15 : vector<256x1xi32>
    %c0_i32_5 = arith.constant 0 : i32
    %17 = vector.broadcast %c0_i32_5 : i32 to vector<256x1xi32>
    %18 = arith.cmpi ne, %16, %17 : vector<256x1xi32>
    %c0_i32_6 = arith.constant 0 : i32
    %19 = vector.broadcast %c0_i32_6 : i32 to vector<256x1xi32>
    %20 = arith.cmpi slt, %16, %19 : vector<256x1xi32>
    %c0_i32_7 = arith.constant 0 : i32
    %21 = arith.cmpi slt, %14, %c0_i32_7 : i32
    %22 = vector.broadcast %21 : i1 to vector<256x1xi1>
    %23 = vector.broadcast %22 : vector<256x1xi1> to vector<256x1xi1>
    %24 = arith.xori %20, %23 : vector<256x1xi1>
    %25 = arith.andi %24, %18 : vector<256x1xi1>
    %26 = vector.broadcast %14 : i32 to vector<256x1xi32>
    %27 = arith.addi %16, %26 : vector<256x1xi32>
    %28 = arith.select %25, %27, %16 : vector<256x1xi1>, vector<256x1xi32>
    %c0_i32_8 = arith.constant 0 : i32
    %29 = vector.broadcast %c0_i32_8 : i32 to vector<256x1xi32>
    %30 = arith.cmpi eq, %28, %29 : vector<256x1xi32>
    %cst = arith.constant dense<true> : vector<256x1xi1>
    %31 = arith.xori %30, %cst : vector<256x1xi1>
    %32 = arith.extui %31 : vector<256x1xi1> to vector<256x1xi32>
    %33 = arith.sitofp %32 : vector<256x1xi32> to vector<256x1xf32>
    %34 = vector.broadcast %33 : vector<256x1xf32> to vector<256x128xf32>
    %35 = arith.mulf %11, %34 : vector<256x128xf32>
    %36 = arith.addf %6, %35 : vector<256x128xf32>
    %37 = vector.extract_strided_slice %0 {offsets = [2, 0], sizes = [1, 128], strides = [1, 1]} : vector<24x128xf32> to vector<1x128xf32>
    %38 = vector.broadcast %2 : vector<256x1xf32> to vector<256x128xf32>
    %39 = vector.broadcast %37 : vector<1x128xf32> to vector<256x128xf32>
    %40 = arith.mulf %38, %39 : vector<256x128xf32>
    %c255_i32 = arith.constant 255 : i32
    %41 = tpu.dynamic_rotate %40 by %c255_i32 dim 0 : vector<256x128xf32>, i32 -> vector<256x128xf32>
    %42 = tpu.iota {dimensions = array<i32: 0>} : vector<256x1xi32>
    %c32_i32_9 = arith.constant 32 : i32
    %c0_i32_10 = arith.constant 0 : i32
    %43 = arith.cmpi eq, %c32_i32_9, %c0_i32_10 : i32
    %c1_i32_11 = arith.constant 1 : i32
    %44 = arith.select %43, %c1_i32_11, %c32_i32_9 : i32
    %45 = vector.broadcast %44 : i32 to vector<256x1xi32>
    %46 = arith.remsi %42, %45 : vector<256x1xi32>
    %c0_i32_12 = arith.constant 0 : i32
    %47 = vector.broadcast %c0_i32_12 : i32 to vector<256x1xi32>
    %48 = arith.cmpi ne, %46, %47 : vector<256x1xi32>
    %c0_i32_13 = arith.constant 0 : i32
    %49 = vector.broadcast %c0_i32_13 : i32 to vector<256x1xi32>
    %50 = arith.cmpi slt, %46, %49 : vector<256x1xi32>
    %c0_i32_14 = arith.constant 0 : i32
    %51 = arith.cmpi slt, %44, %c0_i32_14 : i32
    %52 = vector.broadcast %51 : i1 to vector<256x1xi1>
    %53 = vector.broadcast %52 : vector<256x1xi1> to vector<256x1xi1>
    %54 = arith.xori %50, %53 : vector<256x1xi1>
    %55 = arith.andi %54, %48 : vector<256x1xi1>
    %56 = vector.broadcast %44 : i32 to vector<256x1xi32>
    %57 = arith.addi %46, %56 : vector<256x1xi32>
    %58 = arith.select %55, %57, %46 : vector<256x1xi1>, vector<256x1xi32>
    %c31_i32 = arith.constant 31 : i32
    %59 = vector.broadcast %c31_i32 : i32 to vector<256x1xi32>
    %60 = arith.cmpi eq, %58, %59 : vector<256x1xi32>
    %cst_15 = arith.constant dense<true> : vector<256x1xi1>
    %61 = arith.xori %60, %cst_15 : vector<256x1xi1>
    %62 = arith.extui %61 : vector<256x1xi1> to vector<256x1xi32>
    %63 = arith.sitofp %62 : vector<256x1xi32> to vector<256x1xf32>
    %64 = vector.broadcast %63 : vector<256x1xf32> to vector<256x128xf32>
    %65 = arith.mulf %41, %64 : vector<256x128xf32>
    %66 = arith.addf %36, %65 : vector<256x128xf32>
    %67 = vector.extract_strided_slice %0 {offsets = [3, 0], sizes = [1, 128], strides = [1, 1]} : vector<24x128xf32> to vector<1x128xf32>
    %68 = vector.broadcast %67 : vector<1x128xf32> to vector<256x128xf32>
    %69 = arith.mulf %66, %68 : vector<256x128xf32>
    %70 = vector.extract_strided_slice %0 {offsets = [4, 0], sizes = [1, 128], strides = [1, 1]} : vector<24x128xf32> to vector<1x128xf32>
    %71 = vector.broadcast %70 : vector<1x128xf32> to vector<256x128xf32>
    %72 = arith.addf %69, %71 : vector<256x128xf32>
    %cst_16 = arith.constant 0.000000e+00 : f32
    %73 = vector.broadcast %cst_16 : f32 to vector<256x128xf32>
    %74 = arith.maximumf %72, %73 : vector<256x128xf32>
    %c1_i32_17 = arith.constant 1 : i32
    %75 = tpu.dynamic_rotate %74 by %c1_i32_17 dim 0 : vector<256x128xf32>, i32 -> vector<256x128xf32>
    %76 = vector.broadcast %33 : vector<256x1xf32> to vector<256x128xf32>
    %77 = arith.mulf %75, %76 : vector<256x128xf32>
    %c255_i32_18 = arith.constant 255 : i32
    %78 = tpu.dynamic_rotate %74 by %c255_i32_18 dim 0 : vector<256x128xf32>, i32 -> vector<256x128xf32>
    %79 = vector.broadcast %63 : vector<256x1xf32> to vector<256x128xf32>
    %80 = arith.mulf %78, %79 : vector<256x128xf32>
    %81 = tpu.concatenate %77, %74, %80 in 1 : vector<256x128xf32>, vector<256x128xf32>, vector<256x128xf32> -> vector<256x384xf32>
    %82 = arith.truncf %81 : vector<256x384xf32> to vector<256x384xbf16>
    %c0_19 = arith.constant 0 : index
    %c0_20 = arith.constant 0 : index
    %c0_21 = arith.constant 0 : index
    %83 = vector.load %arg3[%c0_19, %c0_20, %c0_21] : memref<6x384x128xbf16, #tpu.memory_space<vmem>>, vector<1x384x128xbf16>
    %84 = vector.shape_cast %83 : vector<1x384x128xbf16> to vector<384x128xbf16>
    %cst_22 = arith.constant dense<0.000000e+00> : vector<256x128xf32>
    %85 = tpu.matmul %82, %84, %cst_22 {dimension_numbers = #tpu.dot_dimension_numbers<[1], [0], [0], [1], [0, 0, 1, 1], [], []>} : vector<256x384xbf16>, vector<384x128xbf16>, vector<256x128xf32> -> vector<256x128xf32>
    %86 = vector.extract_strided_slice %0 {offsets = [5, 0], sizes = [1, 128], strides = [1, 1]} : vector<24x128xf32> to vector<1x128xf32>
    %87 = vector.broadcast %86 : vector<1x128xf32> to vector<256x128xf32>
    %88 = arith.mulf %85, %87 : vector<256x128xf32>
    %89 = vector.extract_strided_slice %0 {offsets = [6, 0], sizes = [1, 128], strides = [1, 1]} : vector<24x128xf32> to vector<1x128xf32>
    %90 = vector.broadcast %89 : vector<1x128xf32> to vector<256x128xf32>
    %91 = arith.addf %88, %90 : vector<256x128xf32>
    %cst_23 = arith.constant 0.000000e+00 : f32
    %92 = vector.broadcast %cst_23 : f32 to vector<256x128xf32>
    %93 = arith.maximumf %91, %92 : vector<256x128xf32>
    %c1_i32_24 = arith.constant 1 : i32
    %94 = tpu.dynamic_rotate %93 by %c1_i32_24 dim 0 : vector<256x128xf32>, i32 -> vector<256x128xf32>
    %95 = vector.broadcast %33 : vector<256x1xf32> to vector<256x128xf32>
    %96 = arith.mulf %94, %95 : vector<256x128xf32>
    %c255_i32_25 = arith.constant 255 : i32
    %97 = tpu.dynamic_rotate %93 by %c255_i32_25 dim 0 : vector<256x128xf32>, i32 -> vector<256x128xf32>
    %98 = vector.broadcast %63 : vector<256x1xf32> to vector<256x128xf32>
    %99 = arith.mulf %97, %98 : vector<256x128xf32>
    %100 = tpu.concatenate %96, %93, %99 in 1 : vector<256x128xf32>, vector<256x128xf32>, vector<256x128xf32> -> vector<256x384xf32>
    %101 = arith.truncf %100 : vector<256x384xf32> to vector<256x384xbf16>
    %c1 = arith.constant 1 : index
    %c0_26 = arith.constant 0 : index
    %c0_27 = arith.constant 0 : index
    %102 = vector.load %arg3[%c1, %c0_26, %c0_27] : memref<6x384x128xbf16, #tpu.memory_space<vmem>>, vector<1x384x128xbf16>
    %103 = vector.shape_cast %102 : vector<1x384x128xbf16> to vector<384x128xbf16>
    %cst_28 = arith.constant dense<0.000000e+00> : vector<256x128xf32>
    %104 = tpu.matmul %101, %103, %cst_28 {dimension_numbers = #tpu.dot_dimension_numbers<[1], [0], [0], [1], [0, 0, 1, 1], [], []>} : vector<256x384xbf16>, vector<384x128xbf16>, vector<256x128xf32> -> vector<256x128xf32>
    %105 = arith.truncf %74 : vector<256x128xf32> to vector<256x128xbf16>
    %c0_29 = arith.constant 0 : index
    %c0_30 = arith.constant 0 : index
    %c0_31 = arith.constant 0 : index
    %106 = vector.load %arg4[%c0_29, %c0_30, %c0_31] : memref<3x128x128xbf16, #tpu.memory_space<vmem>>, vector<1x128x128xbf16>
    %107 = vector.shape_cast %106 : vector<1x128x128xbf16> to vector<128x128xbf16>
    %cst_32 = arith.constant dense<0.000000e+00> : vector<256x128xf32>
    %108 = tpu.matmul %105, %107, %cst_32 {dimension_numbers = #tpu.dot_dimension_numbers<[1], [0], [0], [1], [0, 0, 1, 1], [], []>} : vector<256x128xbf16>, vector<128x128xbf16>, vector<256x128xf32> -> vector<256x128xf32>
    %109 = arith.addf %104, %108 : vector<256x128xf32>
    %110 = vector.extract_strided_slice %0 {offsets = [7, 0], sizes = [1, 128], strides = [1, 1]} : vector<24x128xf32> to vector<1x128xf32>
    %111 = vector.broadcast %110 : vector<1x128xf32> to vector<256x128xf32>
    %112 = arith.mulf %109, %111 : vector<256x128xf32>
    %113 = vector.extract_strided_slice %0 {offsets = [8, 0], sizes = [1, 128], strides = [1, 1]} : vector<24x128xf32> to vector<1x128xf32>
    %114 = vector.broadcast %113 : vector<1x128xf32> to vector<256x128xf32>
    %115 = arith.addf %112, %114 : vector<256x128xf32>
    %cst_33 = arith.constant 0.000000e+00 : f32
    %116 = vector.broadcast %cst_33 : f32 to vector<256x128xf32>
    %117 = arith.maximumf %115, %116 : vector<256x128xf32>
    %c0_34 = arith.constant 0 : index
    %c0_35 = arith.constant 0 : index
    %118 = vector.load %arg7[%c0_34, %c0_35] : memref<128x256xf32, #tpu.memory_space<vmem>>, vector<128x256xf32>
    %c0_36 = arith.constant 0 : index
    %c0_37 = arith.constant 0 : index
    %119 = vector.load %arg8[%c0_36, %c0_37] : memref<128x256xf32, #tpu.memory_space<vmem>>, vector<128x256xf32>
    %cst_38 = arith.constant dense<0.000000e+00> : vector<128x128xf32>
    %120 = tpu.matmul %118, %117, %cst_38 {dimension_numbers = #tpu.dot_dimension_numbers<[1], [0], [0], [1], [0, 0, 1, 1], [], []>} : vector<128x256xf32>, vector<256x128xf32>, vector<128x128xf32> -> vector<128x128xf32>
    %cst_39 = arith.constant dense<0.000000e+00> : vector<128x128xf32>
    %121 = tpu.matmul %119, %117, %cst_39 {dimension_numbers = #tpu.dot_dimension_numbers<[1], [0], [0], [1], [0, 0, 1, 1], [], []>} : vector<128x256xf32>, vector<256x128xf32>, vector<128x128xf32> -> vector<128x128xf32>
    %c1_i32_40 = arith.constant 1 : i32
    %122 = tpu.dynamic_rotate %121 by %c1_i32_40 dim 0 : vector<128x128xf32>, i32 -> vector<128x128xf32>
    %123 = tpu.iota {dimensions = array<i32: 0>} : vector<128x1xi32>
    %c16_i32 = arith.constant 16 : i32
    %c0_i32_41 = arith.constant 0 : i32
    %124 = arith.cmpi eq, %c16_i32, %c0_i32_41 : i32
    %c1_i32_42 = arith.constant 1 : i32
    %125 = arith.select %124, %c1_i32_42, %c16_i32 : i32
    %126 = vector.broadcast %125 : i32 to vector<128x1xi32>
    %127 = arith.remsi %123, %126 : vector<128x1xi32>
    %c0_i32_43 = arith.constant 0 : i32
    %128 = vector.broadcast %c0_i32_43 : i32 to vector<128x1xi32>
    %129 = arith.cmpi ne, %127, %128 : vector<128x1xi32>
    %c0_i32_44 = arith.constant 0 : i32
    %130 = vector.broadcast %c0_i32_44 : i32 to vector<128x1xi32>
    %131 = arith.cmpi slt, %127, %130 : vector<128x1xi32>
    %c0_i32_45 = arith.constant 0 : i32
    %132 = arith.cmpi slt, %125, %c0_i32_45 : i32
    %133 = vector.broadcast %132 : i1 to vector<128x1xi1>
    %134 = vector.broadcast %133 : vector<128x1xi1> to vector<128x1xi1>
    %135 = arith.xori %131, %134 : vector<128x1xi1>
    %136 = arith.andi %135, %129 : vector<128x1xi1>
    %137 = vector.broadcast %125 : i32 to vector<128x1xi32>
    %138 = arith.addi %127, %137 : vector<128x1xi32>
    %139 = arith.select %136, %138, %127 : vector<128x1xi1>, vector<128x1xi32>
    %c0_i32_46 = arith.constant 0 : i32
    %140 = vector.broadcast %c0_i32_46 : i32 to vector<128x1xi32>
    %141 = arith.cmpi eq, %139, %140 : vector<128x1xi32>
    %cst_47 = arith.constant dense<true> : vector<128x1xi1>
    %142 = arith.xori %141, %cst_47 : vector<128x1xi1>
    %143 = arith.extui %142 : vector<128x1xi1> to vector<128x1xi32>
    %144 = arith.sitofp %143 : vector<128x1xi32> to vector<128x1xf32>
    %145 = vector.broadcast %144 : vector<128x1xf32> to vector<128x128xf32>
    %146 = arith.mulf %122, %145 : vector<128x128xf32>
    %147 = tpu.concatenate %146, %120, %121 in 1 : vector<128x128xf32>, vector<128x128xf32>, vector<128x128xf32> -> vector<128x384xf32>
    %148 = arith.truncf %147 : vector<128x384xf32> to vector<128x384xbf16>
    %c2 = arith.constant 2 : index
    %c0_48 = arith.constant 0 : index
    %c0_49 = arith.constant 0 : index
    %149 = vector.load %arg3[%c2, %c0_48, %c0_49] : memref<6x384x128xbf16, #tpu.memory_space<vmem>>, vector<1x384x128xbf16>
    %150 = vector.shape_cast %149 : vector<1x384x128xbf16> to vector<384x128xbf16>
    %cst_50 = arith.constant dense<0.000000e+00> : vector<128x128xf32>
    %151 = tpu.matmul %148, %150, %cst_50 {dimension_numbers = #tpu.dot_dimension_numbers<[1], [0], [0], [1], [0, 0, 1, 1], [], []>} : vector<128x384xbf16>, vector<384x128xbf16>, vector<128x128xf32> -> vector<128x128xf32>
    %152 = vector.extract_strided_slice %0 {offsets = [9, 0], sizes = [1, 128], strides = [1, 1]} : vector<24x128xf32> to vector<1x128xf32>
    %153 = vector.broadcast %152 : vector<1x128xf32> to vector<128x128xf32>
    %154 = arith.mulf %151, %153 : vector<128x128xf32>
    %155 = vector.extract_strided_slice %0 {offsets = [10, 0], sizes = [1, 128], strides = [1, 1]} : vector<24x128xf32> to vector<1x128xf32>
    %156 = vector.broadcast %155 : vector<1x128xf32> to vector<128x128xf32>
    %157 = arith.addf %154, %156 : vector<128x128xf32>
    %cst_51 = arith.constant 0.000000e+00 : f32
    %158 = vector.broadcast %cst_51 : f32 to vector<128x128xf32>
    %159 = arith.maximumf %157, %158 : vector<128x128xf32>
    %c1_i32_52 = arith.constant 1 : i32
    %160 = tpu.dynamic_rotate %159 by %c1_i32_52 dim 0 : vector<128x128xf32>, i32 -> vector<128x128xf32>
    %161 = vector.broadcast %144 : vector<128x1xf32> to vector<128x128xf32>
    %162 = arith.mulf %160, %161 : vector<128x128xf32>
    %c127_i32 = arith.constant 127 : i32
    %163 = tpu.dynamic_rotate %159 by %c127_i32 dim 0 : vector<128x128xf32>, i32 -> vector<128x128xf32>
    %164 = tpu.iota {dimensions = array<i32: 0>} : vector<128x1xi32>
    %c16_i32_53 = arith.constant 16 : i32
    %c0_i32_54 = arith.constant 0 : i32
    %165 = arith.cmpi eq, %c16_i32_53, %c0_i32_54 : i32
    %c1_i32_55 = arith.constant 1 : i32
    %166 = arith.select %165, %c1_i32_55, %c16_i32_53 : i32
    %167 = vector.broadcast %166 : i32 to vector<128x1xi32>
    %168 = arith.remsi %164, %167 : vector<128x1xi32>
    %c0_i32_56 = arith.constant 0 : i32
    %169 = vector.broadcast %c0_i32_56 : i32 to vector<128x1xi32>
    %170 = arith.cmpi ne, %168, %169 : vector<128x1xi32>
    %c0_i32_57 = arith.constant 0 : i32
    %171 = vector.broadcast %c0_i32_57 : i32 to vector<128x1xi32>
    %172 = arith.cmpi slt, %168, %171 : vector<128x1xi32>
    %c0_i32_58 = arith.constant 0 : i32
    %173 = arith.cmpi slt, %166, %c0_i32_58 : i32
    %174 = vector.broadcast %173 : i1 to vector<128x1xi1>
    %175 = vector.broadcast %174 : vector<128x1xi1> to vector<128x1xi1>
    %176 = arith.xori %172, %175 : vector<128x1xi1>
    %177 = arith.andi %176, %170 : vector<128x1xi1>
    %178 = vector.broadcast %166 : i32 to vector<128x1xi32>
    %179 = arith.addi %168, %178 : vector<128x1xi32>
    %180 = arith.select %177, %179, %168 : vector<128x1xi1>, vector<128x1xi32>
    %c15_i32 = arith.constant 15 : i32
    %181 = vector.broadcast %c15_i32 : i32 to vector<128x1xi32>
    %182 = arith.cmpi eq, %180, %181 : vector<128x1xi32>
    %cst_59 = arith.constant dense<true> : vector<128x1xi1>
    %183 = arith.xori %182, %cst_59 : vector<128x1xi1>
    %184 = arith.extui %183 : vector<128x1xi1> to vector<128x1xi32>
    %185 = arith.sitofp %184 : vector<128x1xi32> to vector<128x1xf32>
    %186 = vector.broadcast %185 : vector<128x1xf32> to vector<128x128xf32>
    %187 = arith.mulf %163, %186 : vector<128x128xf32>
    %188 = tpu.concatenate %162, %159, %187 in 1 : vector<128x128xf32>, vector<128x128xf32>, vector<128x128xf32> -> vector<128x384xf32>
    %189 = arith.truncf %188 : vector<128x384xf32> to vector<128x384xbf16>
    %c3 = arith.constant 3 : index
    %c0_60 = arith.constant 0 : index
    %c0_61 = arith.constant 0 : index
    %190 = vector.load %arg3[%c3, %c0_60, %c0_61] : memref<6x384x128xbf16, #tpu.memory_space<vmem>>, vector<1x384x128xbf16>
    %191 = vector.shape_cast %190 : vector<1x384x128xbf16> to vector<384x128xbf16>
    %cst_62 = arith.constant dense<0.000000e+00> : vector<128x128xf32>
    %192 = tpu.matmul %189, %191, %cst_62 {dimension_numbers = #tpu.dot_dimension_numbers<[1], [0], [0], [1], [0, 0, 1, 1], [], []>} : vector<128x384xbf16>, vector<384x128xbf16>, vector<128x128xf32> -> vector<128x128xf32>
    %193 = arith.truncf %120 : vector<128x128xf32> to vector<128x128xbf16>
    %c1_63 = arith.constant 1 : index
    %c0_64 = arith.constant 0 : index
    %c0_65 = arith.constant 0 : index
    %194 = vector.load %arg4[%c1_63, %c0_64, %c0_65] : memref<3x128x128xbf16, #tpu.memory_space<vmem>>, vector<1x128x128xbf16>
    %195 = vector.shape_cast %194 : vector<1x128x128xbf16> to vector<128x128xbf16>
    %cst_66 = arith.constant dense<0.000000e+00> : vector<128x128xf32>
    %196 = tpu.matmul %193, %195, %cst_66 {dimension_numbers = #tpu.dot_dimension_numbers<[1], [0], [0], [1], [0, 0, 1, 1], [], []>} : vector<128x128xbf16>, vector<128x128xbf16>, vector<128x128xf32> -> vector<128x128xf32>
    %197 = arith.addf %192, %196 : vector<128x128xf32>
    %198 = vector.extract_strided_slice %0 {offsets = [11, 0], sizes = [1, 128], strides = [1, 1]} : vector<24x128xf32> to vector<1x128xf32>
    %199 = vector.broadcast %198 : vector<1x128xf32> to vector<128x128xf32>
    %200 = arith.mulf %197, %199 : vector<128x128xf32>
    %201 = vector.extract_strided_slice %0 {offsets = [12, 0], sizes = [1, 128], strides = [1, 1]} : vector<24x128xf32> to vector<1x128xf32>
    %202 = vector.broadcast %201 : vector<1x128xf32> to vector<128x128xf32>
    %203 = arith.addf %200, %202 : vector<128x128xf32>
    %cst_67 = arith.constant 0.000000e+00 : f32
    %204 = vector.broadcast %cst_67 : f32 to vector<128x128xf32>
    %205 = arith.maximumf %203, %204 : vector<128x128xf32>
    %c0_68 = arith.constant 0 : index
    %c0_69 = arith.constant 0 : index
    %206 = vector.load %arg9[%c0_68, %c0_69] : memref<64x128xf32, #tpu.memory_space<vmem>>, vector<64x128xf32>
    %c0_70 = arith.constant 0 : index
    %c0_71 = arith.constant 0 : index
    %207 = vector.load %arg10[%c0_70, %c0_71] : memref<64x128xf32, #tpu.memory_space<vmem>>, vector<64x128xf32>
    %cst_72 = arith.constant dense<0.000000e+00> : vector<64x128xf32>
    %208 = tpu.matmul %206, %205, %cst_72 {dimension_numbers = #tpu.dot_dimension_numbers<[1], [0], [0], [1], [0, 0, 1, 1], [], []>} : vector<64x128xf32>, vector<128x128xf32>, vector<64x128xf32> -> vector<64x128xf32>
    %cst_73 = arith.constant dense<0.000000e+00> : vector<64x128xf32>
    %209 = tpu.matmul %207, %205, %cst_73 {dimension_numbers = #tpu.dot_dimension_numbers<[1], [0], [0], [1], [0, 0, 1, 1], [], []>} : vector<64x128xf32>, vector<128x128xf32>, vector<64x128xf32> -> vector<64x128xf32>
    %c1_i32_74 = arith.constant 1 : i32
    %210 = tpu.dynamic_rotate %209 by %c1_i32_74 dim 0 : vector<64x128xf32>, i32 -> vector<64x128xf32>
    %211 = tpu.iota {dimensions = array<i32: 0>} : vector<64x1xi32>
    %c8_i32 = arith.constant 8 : i32
    %c0_i32_75 = arith.constant 0 : i32
    %212 = arith.cmpi eq, %c8_i32, %c0_i32_75 : i32
    %c1_i32_76 = arith.constant 1 : i32
    %213 = arith.select %212, %c1_i32_76, %c8_i32 : i32
    %214 = vector.broadcast %213 : i32 to vector<64x1xi32>
    %215 = arith.remsi %211, %214 : vector<64x1xi32>
    %c0_i32_77 = arith.constant 0 : i32
    %216 = vector.broadcast %c0_i32_77 : i32 to vector<64x1xi32>
    %217 = arith.cmpi ne, %215, %216 : vector<64x1xi32>
    %c0_i32_78 = arith.constant 0 : i32
    %218 = vector.broadcast %c0_i32_78 : i32 to vector<64x1xi32>
    %219 = arith.cmpi slt, %215, %218 : vector<64x1xi32>
    %c0_i32_79 = arith.constant 0 : i32
    %220 = arith.cmpi slt, %213, %c0_i32_79 : i32
    %221 = vector.broadcast %220 : i1 to vector<64x1xi1>
    %222 = vector.broadcast %221 : vector<64x1xi1> to vector<64x1xi1>
    %223 = arith.xori %219, %222 : vector<64x1xi1>
    %224 = arith.andi %223, %217 : vector<64x1xi1>
    %225 = vector.broadcast %213 : i32 to vector<64x1xi32>
    %226 = arith.addi %215, %225 : vector<64x1xi32>
    %227 = arith.select %224, %226, %215 : vector<64x1xi1>, vector<64x1xi32>
    %c0_i32_80 = arith.constant 0 : i32
    %228 = vector.broadcast %c0_i32_80 : i32 to vector<64x1xi32>
    %229 = arith.cmpi eq, %227, %228 : vector<64x1xi32>
    %cst_81 = arith.constant dense<true> : vector<64x1xi1>
    %230 = arith.xori %229, %cst_81 : vector<64x1xi1>
    %231 = arith.extui %230 : vector<64x1xi1> to vector<64x1xi32>
    %232 = arith.sitofp %231 : vector<64x1xi32> to vector<64x1xf32>
    %233 = vector.broadcast %232 : vector<64x1xf32> to vector<64x128xf32>
    %234 = arith.mulf %210, %233 : vector<64x128xf32>
    %235 = tpu.concatenate %234, %208, %209 in 1 : vector<64x128xf32>, vector<64x128xf32>, vector<64x128xf32> -> vector<64x384xf32>
    %236 = arith.truncf %235 : vector<64x384xf32> to vector<64x384xbf16>
    %c4 = arith.constant 4 : index
    %c0_82 = arith.constant 0 : index
    %c0_83 = arith.constant 0 : index
    %237 = vector.load %arg3[%c4, %c0_82, %c0_83] : memref<6x384x128xbf16, #tpu.memory_space<vmem>>, vector<1x384x128xbf16>
    %238 = vector.shape_cast %237 : vector<1x384x128xbf16> to vector<384x128xbf16>
    %cst_84 = arith.constant dense<0.000000e+00> : vector<64x128xf32>
    %239 = tpu.matmul %236, %238, %cst_84 {dimension_numbers = #tpu.dot_dimension_numbers<[1], [0], [0], [1], [0, 0, 1, 1], [], []>} : vector<64x384xbf16>, vector<384x128xbf16>, vector<64x128xf32> -> vector<64x128xf32>
    %240 = vector.extract_strided_slice %0 {offsets = [13, 0], sizes = [1, 128], strides = [1, 1]} : vector<24x128xf32> to vector<1x128xf32>
    %241 = vector.broadcast %240 : vector<1x128xf32> to vector<64x128xf32>
    %242 = arith.mulf %239, %241 : vector<64x128xf32>
    %243 = vector.extract_strided_slice %0 {offsets = [14, 0], sizes = [1, 128], strides = [1, 1]} : vector<24x128xf32> to vector<1x128xf32>
    %244 = vector.broadcast %243 : vector<1x128xf32> to vector<64x128xf32>
    %245 = arith.addf %242, %244 : vector<64x128xf32>
    %cst_85 = arith.constant 0.000000e+00 : f32
    %246 = vector.broadcast %cst_85 : f32 to vector<64x128xf32>
    %247 = arith.maximumf %245, %246 : vector<64x128xf32>
    %c1_i32_86 = arith.constant 1 : i32
    %248 = tpu.dynamic_rotate %247 by %c1_i32_86 dim 0 : vector<64x128xf32>, i32 -> vector<64x128xf32>
    %249 = vector.broadcast %232 : vector<64x1xf32> to vector<64x128xf32>
    %250 = arith.mulf %248, %249 : vector<64x128xf32>
    %c63_i32 = arith.constant 63 : i32
    %251 = tpu.dynamic_rotate %247 by %c63_i32 dim 0 : vector<64x128xf32>, i32 -> vector<64x128xf32>
    %252 = tpu.iota {dimensions = array<i32: 0>} : vector<64x1xi32>
    %c8_i32_87 = arith.constant 8 : i32
    %c0_i32_88 = arith.constant 0 : i32
    %253 = arith.cmpi eq, %c8_i32_87, %c0_i32_88 : i32
    %c1_i32_89 = arith.constant 1 : i32
    %254 = arith.select %253, %c1_i32_89, %c8_i32_87 : i32
    %255 = vector.broadcast %254 : i32 to vector<64x1xi32>
    %256 = arith.remsi %252, %255 : vector<64x1xi32>
    %c0_i32_90 = arith.constant 0 : i32
    %257 = vector.broadcast %c0_i32_90 : i32 to vector<64x1xi32>
    %258 = arith.cmpi ne, %256, %257 : vector<64x1xi32>
    %c0_i32_91 = arith.constant 0 : i32
    %259 = vector.broadcast %c0_i32_91 : i32 to vector<64x1xi32>
    %260 = arith.cmpi slt, %256, %259 : vector<64x1xi32>
    %c0_i32_92 = arith.constant 0 : i32
    %261 = arith.cmpi slt, %254, %c0_i32_92 : i32
    %262 = vector.broadcast %261 : i1 to vector<64x1xi1>
    %263 = vector.broadcast %262 : vector<64x1xi1> to vector<64x1xi1>
    %264 = arith.xori %260, %263 : vector<64x1xi1>
    %265 = arith.andi %264, %258 : vector<64x1xi1>
    %266 = vector.broadcast %254 : i32 to vector<64x1xi32>
    %267 = arith.addi %256, %266 : vector<64x1xi32>
    %268 = arith.select %265, %267, %256 : vector<64x1xi1>, vector<64x1xi32>
    %c7_i32 = arith.constant 7 : i32
    %269 = vector.broadcast %c7_i32 : i32 to vector<64x1xi32>
    %270 = arith.cmpi eq, %268, %269 : vector<64x1xi32>
    %cst_93 = arith.constant dense<true> : vector<64x1xi1>
    %271 = arith.xori %270, %cst_93 : vector<64x1xi1>
    %272 = arith.extui %271 : vector<64x1xi1> to vector<64x1xi32>
    %273 = arith.sitofp %272 : vector<64x1xi32> to vector<64x1xf32>
    %274 = vector.broadcast %273 : vector<64x1xf32> to vector<64x128xf32>
    %275 = arith.mulf %251, %274 : vector<64x128xf32>
    %276 = tpu.concatenate %250, %247, %275 in 1 : vector<64x128xf32>, vector<64x128xf32>, vector<64x128xf32> -> vector<64x384xf32>
    %277 = arith.truncf %276 : vector<64x384xf32> to vector<64x384xbf16>
    %c5 = arith.constant 5 : index
    %c0_94 = arith.constant 0 : index
    %c0_95 = arith.constant 0 : index
    %278 = vector.load %arg3[%c5, %c0_94, %c0_95] : memref<6x384x128xbf16, #tpu.memory_space<vmem>>, vector<1x384x128xbf16>
    %279 = vector.shape_cast %278 : vector<1x384x128xbf16> to vector<384x128xbf16>
    %cst_96 = arith.constant dense<0.000000e+00> : vector<64x128xf32>
    %280 = tpu.matmul %277, %279, %cst_96 {dimension_numbers = #tpu.dot_dimension_numbers<[1], [0], [0], [1], [0, 0, 1, 1], [], []>} : vector<64x384xbf16>, vector<384x128xbf16>, vector<64x128xf32> -> vector<64x128xf32>
    %281 = arith.truncf %208 : vector<64x128xf32> to vector<64x128xbf16>
    %c2_97 = arith.constant 2 : index
    %c0_98 = arith.constant 0 : index
    %c0_99 = arith.constant 0 : index
    %282 = vector.load %arg4[%c2_97, %c0_98, %c0_99] : memref<3x128x128xbf16, #tpu.memory_space<vmem>>, vector<1x128x128xbf16>
    %283 = vector.shape_cast %282 : vector<1x128x128xbf16> to vector<128x128xbf16>
    %cst_100 = arith.constant dense<0.000000e+00> : vector<64x128xf32>
    %284 = tpu.matmul %281, %283, %cst_100 {dimension_numbers = #tpu.dot_dimension_numbers<[1], [0], [0], [1], [0, 0, 1, 1], [], []>} : vector<64x128xbf16>, vector<128x128xbf16>, vector<64x128xf32> -> vector<64x128xf32>
    %285 = arith.addf %280, %284 : vector<64x128xf32>
    %286 = vector.extract_strided_slice %0 {offsets = [15, 0], sizes = [1, 128], strides = [1, 1]} : vector<24x128xf32> to vector<1x128xf32>
    %287 = vector.broadcast %286 : vector<1x128xf32> to vector<64x128xf32>
    %288 = arith.mulf %285, %287 : vector<64x128xf32>
    %289 = vector.extract_strided_slice %0 {offsets = [16, 0], sizes = [1, 128], strides = [1, 1]} : vector<24x128xf32> to vector<1x128xf32>
    %290 = vector.broadcast %289 : vector<1x128xf32> to vector<64x128xf32>
    %291 = arith.addf %288, %290 : vector<64x128xf32>
    %cst_101 = arith.constant 0.000000e+00 : f32
    %292 = vector.broadcast %cst_101 : f32 to vector<64x128xf32>
    %293 = arith.maximumf %291, %292 : vector<64x128xf32>
    %c0_102 = arith.constant 0 : index
    %c0_103 = arith.constant 0 : index
    %294 = vector.load %arg6[%c0_102, %c0_103] : memref<8x64xf32, #tpu.memory_space<vmem>>, vector<8x64xf32>
    %cst_104 = arith.constant dense<0.000000e+00> : vector<8x128xf32>
    %295 = tpu.matmul %294, %293, %cst_104 {dimension_numbers = #tpu.dot_dimension_numbers<[1], [0], [0], [1], [0, 0, 1, 1], [], []>} : vector<8x64xf32>, vector<64x128xf32>, vector<8x128xf32> -> vector<8x128xf32>
    %296 = arith.truncf %295 : vector<8x128xf32> to vector<8x128xbf16>
    %c0_105 = arith.constant 0 : index
    %c0_106 = arith.constant 0 : index
    %297 = vector.load %arg5[%c0_105, %c0_106] : memref<128x128xbf16, #tpu.memory_space<vmem>>, vector<128x128xbf16>
    %cst_107 = arith.constant dense<0.000000e+00> : vector<8x128xf32>
    %298 = tpu.matmul %296, %297, %cst_107 {dimension_numbers = #tpu.dot_dimension_numbers<[1], [0], [0], [1], [0, 0, 1, 1], [], []>} : vector<8x128xbf16>, vector<128x128xbf16>, vector<8x128xf32> -> vector<8x128xf32>
    %299 = vector.extract_strided_slice %0 {offsets = [17, 0], sizes = [1, 128], strides = [1, 1]} : vector<24x128xf32> to vector<1x128xf32>
    %300 = vector.broadcast %299 : vector<1x128xf32> to vector<8x128xf32>
    %301 = arith.addf %298, %300 : vector<8x128xf32>
    %c0_108 = arith.constant 0 : index
    %c0_109 = arith.constant 0 : index
    %302 = vector.load %arg11[%c0_108, %c0_109] : memref<8x128xf32, #tpu.memory_space<vmem>>, vector<8x128xf32>
    tpu.vector_store %arg11[%c0_108, %c0_109], %301 {strides = array<i32>} : memref<8x128xf32, #tpu.memory_space<vmem>>, vector<8x128xf32>,
    return
  }
  func.func @transform_0(%arg0: i32) -> (i32, i32, i32) {
    %c0_i32 = arith.constant 0 : i32
    %c0_i32_0 = arith.constant 0 : i32
    %c0_i32_1 = arith.constant 0 : i32
    return %arg0, %c0_i32, %c0_i32_0 : i32, i32, i32
  }
  func.func @transform_1(%arg0: i32) -> (i32, i32) {
    %c0_i32 = arith.constant 0 : i32
    %c0_i32_0 = arith.constant 0 : i32
    %c0_i32_1 = arith.constant 0 : i32
    return %c0_i32, %c0_i32_0 : i32, i32
  }
  func.func @transform_2(%arg0: i32) -> (i32, i32, i32) {
    %c0_i32 = arith.constant 0 : i32
    %c0_i32_0 = arith.constant 0 : i32
    %c0_i32_1 = arith.constant 0 : i32
    %c0_i32_2 = arith.constant 0 : i32
    return %c0_i32, %c0_i32_0, %c0_i32_1 : i32, i32, i32
  }
  func.func @transform_3(%arg0: i32) -> (i32, i32, i32) {
    %c0_i32 = arith.constant 0 : i32
    %c0_i32_0 = arith.constant 0 : i32
    %c0_i32_1 = arith.constant 0 : i32
    %c0_i32_2 = arith.constant 0 : i32
    return %c0_i32, %c0_i32_0, %c0_i32_1 : i32, i32, i32
  }
  func.func @transform_4(%arg0: i32) -> (i32, i32) {
    %c0_i32 = arith.constant 0 : i32
    %c0_i32_0 = arith.constant 0 : i32
    %c0_i32_1 = arith.constant 0 : i32
    return %c0_i32, %c0_i32_0 : i32, i32
  }
  func.func @transform_5(%arg0: i32) -> (i32, i32) {
    %c0_i32 = arith.constant 0 : i32
    %c0_i32_0 = arith.constant 0 : i32
    %c0_i32_1 = arith.constant 0 : i32
    return %c0_i32, %c0_i32_0 : i32, i32
  }
  func.func @transform_6(%arg0: i32) -> (i32, i32) {
    %c0_i32 = arith.constant 0 : i32
    %c0_i32_0 = arith.constant 0 : i32
    %c0_i32_1 = arith.constant 0 : i32
    return %c0_i32, %c0_i32_0 : i32, i32
  }
  func.func @transform_7(%arg0: i32) -> (i32, i32) {
    %c0_i32 = arith.constant 0 : i32
    %c0_i32_0 = arith.constant 0 : i32
    %c0_i32_1 = arith.constant 0 : i32
    return %c0_i32, %c0_i32_0 : i32, i32
  }
  func.func @transform_8(%arg0: i32) -> (i32, i32) {
    %c0_i32 = arith.constant 0 : i32
    %c0_i32_0 = arith.constant 0 : i32
    %c0_i32_1 = arith.constant 0 : i32
    return %c0_i32, %c0_i32_0 : i32, i32
  }
  func.func @transform_9(%arg0: i32) -> (i32, i32) {
    %c0_i32 = arith.constant 0 : i32
    %c0_i32_0 = arith.constant 0 : i32
    %c0_i32_1 = arith.constant 0 : i32
    return %c0_i32, %c0_i32_0 : i32, i32
  }
  func.func @transform_10(%arg0: i32) -> (i32, i32) {
    %c0_i32 = arith.constant 0 : i32
    %c0_i32_0 = arith.constant 0 : i32
    return %arg0, %c0_i32 : i32, i32
  }
}

</mosaic_0001>

<llo_original>
// kernel: wideresnet_forward.1
$region0: #{wideresnet_forward.1}
  #allocation0 [shape = 'u32[]', space=smem, size = 0x4, offset = 0x4, fixed_abs, tag = 'smem constant byte address 0x4 - core index']
  #allocation1 [shape = 'u32[144,128]{1,0:T(1,128)}', space=vmem, size = 0x12000, scoped, tag = 'internal scratch']
  %s0 = inlined_call_operand.vmem [shape: f32[16,32,1], index: 0, kind: input, shape index: {}]
  %s1 = inlined_call_operand.hbm [shape: f32[24,128], index: 1, kind: input, shape index: {}]
  %s2 = inlined_call_operand.vmem [shape: bf16[6,384,128], index: 2, kind: input, shape index: {}]
  %s3 = inlined_call_operand.hbm [shape: bf16[3,128,128], index: 3, kind: input, shape index: {}]
  %s4 = inlined_call_operand.vmem [shape: bf16[128,128], index: 4, kind: input, shape index: {}]
  %s5 = inlined_call_operand.vmem [shape: f32[8,64], index: 5, kind: input, shape index: {}]
  %s6 = inlined_call_operand.vmem [shape: f32[128,256], index: 6, kind: input, shape index: {}]
  %s7 = inlined_call_operand.vmem [shape: f32[128,256], index: 7, kind: input, shape index: {}]
  %s8 = inlined_call_operand.vmem [shape: f32[64,128], index: 8, kind: input, shape index: {}]
  %s9 = inlined_call_operand.vmem [shape: f32[64,128], index: 9, kind: input, shape index: {}]
  %s10 = inlined_call_operand.hbm [shape: f32[16,128], index: 10, kind: output, shape index: {}]
  %s11 = sld [smem:[#allocation0]]
  $region81: #{wideresnet_forward.1} parent=0
    _
  %s13 = ssub.s32 1, %s11
  %s14 = scalar_select 0, %s13, %s11
  $region1: #{wideresnet_forward.1} parent=0
    #allocation2 [shape = 'u8[12288]{0}', space=vmem, size = 0x3000, scoped, tag = 'input window, operand 1, single buffered']
    #allocation3 [shape = 's32[2]{0}', space=sflag, size = 0x8, scoped, tag = 'scoped memory for wideresnet_forward.1']
    #allocation4 [shape = 's32[2]{0}', space=sflag, size = 0x8, scoped, tag = 'scoped memory for wideresnet_forward.1']
    #allocation5 [shape = 'u8[98304]{0}', space=vmem, size = 0x18000, scoped, tag = 'input window, operand 3, single buffered']
    #allocation6 [shape = 's32[1]{0}', space=sflag, size = 0x4, scoped, tag = 'scoped memory for wideresnet_forward.1']
    #allocation7 [shape = 'u8[8192]{0}', space=vmem, size = 0x2000, scoped, tag = 'output window, operand 0']
    %15 = vsyncpa [#allocation3], 0
    %16 = vsyncpa [#allocation6], 0
    %17 = vsyncpa [#allocation4], 0
    %s18 = scalar_lea.sflag [#allocation4], 1
    %19 = vsyncpa %s18, 0
    loop: start=0, step=1, limit=4
    $region2: #{wideresnet_forward.1} parent=1 // loop_pre_header
      _
    $region3: #{wideresnet_forward.1} parent=1 // loop_header
      %s21 = sphi 0, %s25
      %p22 = scmp.ge.s32.totalorder %s21, 4
      %s31 = sphi 0, %s33
      %s34 = sphi 0, %s31
      %s35 = sphi 0, %s34
      %s51 = sphi 0, %s35
      %s55 = sphi 0, %s55
      %s57 = sphi 0, %s55
      %s58 = sphi 0, %s57
      %s72 = sphi 0, %s58
      %s76 = sphi 0, %s76
      %s78 = sphi 0, %s76
      %s79 = sphi 0, %s78
      %s93 = sphi 0, %s79
      %s97 = sphi 0, %s97
      %s99 = sphi 0, %s97
      %s100 = sphi 0, %s99
      %s114 = sphi 0, %s100
      %s118 = sphi 0, %s118
      %s120 = sphi 0, %s118
      %s121 = sphi 0, %s120
      %s135 = sphi 0, %s121
      %s139 = sphi 0, %s139
      %s141 = sphi 0, %s139
      %s142 = sphi 0, %s141
      %s156 = sphi 0, %s142
      %s160 = sphi 0, %s160
      %s162 = sphi 0, %s160
      %s163 = sphi 0, %s162
      %s177 = sphi 0, %s163
      %s181 = sphi 0, %s181
      %s183 = sphi 0, %s181
      %s184 = sphi 0, %s183
      %s198 = sphi 0, %s184
      %s202 = sphi 0, %s202
      %s204 = sphi 0, %s202
      %s205 = sphi 0, %s204
      %s219 = sphi 0, %s205
      %s223 = sphi 0, %s223
      %s225 = sphi 0, %s223
      %s226 = sphi 0, %s225
      %s240 = sphi 0, %s226
      %s246 = sphi 0, %s248
      %s249 = sphi 0, %s246
      %s250 = sphi 0, %s249
      %s266 = sphi 0, %s250
    $region4: #{wideresnet_forward.1} parent=1 // loop_header_branch
      %24 = sbr.rel (%p22) target = $region8
    $region5: #{wideresnet_forward.1} parent=1 // loop_body
      %s26 = ssub.s32 %s21, 1
      %s27 = ssub.s32 %s21, 2
      %s28 = sadd.s32 %s21, 1
      %s29 = ssub.s32 %s21, %s28
      %p30 = scmp.eq.s32.totalorder %s29, 0
      %s32 = sadd.s32 %s31, 1
      %s33 = scalar_select %p30, %s31, %s32
      %p36 = pneg %p30
      %p37 = scmp.eq.s32.totalorder %s21, 1
      %p38 = por %p36, %p37
      %p39 = scmp.ne.s32.totalorder %s31, %s34
      %p40 = scmp.eq.s32.totalorder %s21, 0
      %p41 = por %p39, %p40
      %p42 = scmp.ne.s32.totalorder %s31, %s34
      %p43 = scmp.eq.s32.totalorder %s26, 1
      %p44 = por %p42, %p43
      %p45 = scmp.ne.s32.totalorder %s34, %s35
      %p46 = scmp.eq.s32.totalorder %s26, 0
      %p47 = por %p45, %p46
      %p48 = scmp.ne.s32.totalorder %s34, %s35
      %p49 = scmp.eq.s32.totalorder %s27, 1
      %p50 = por %p48, %p49
      %p52 = scmp.ne.s32.totalorder %s35, %s51
      %p53 = scmp.eq.s32.totalorder %s27, 0
      %p54 = por %p52, %p53
      %s56 = sadd.s32 %s55, 1
      %p59 = scmp.eq.s32.totalorder %s21, 1
      %p60 = scmp.ne.s32.totalorder %s55, %s57
      %p61 = scmp.eq.s32.totalorder %s21, 0
      %p62 = por %p60, %p61
      %p63 = scmp.ne.s32.totalorder %s55, %s57
      %p64 = scmp.eq.s32.totalorder %s26, 1
      %p65 = por %p63, %p64
      %p66 = scmp.ne.s32.totalorder %s57, %s58
      %p67 = scmp.eq.s32.totalorder %s26, 0
      %p68 = por %p66, %p67
      %p69 = scmp.ne.s32.totalorder %s57, %s58
      %p70 = scmp.eq.s32.totalorder %s27, 1
      %p71 = por %p69, %p70
      %p73 = scmp.ne.s32.totalorder %s58, %s72
      %p74 = scmp.eq.s32.totalorder %s27, 0
      %p75 = por %p73, %p74
      %s77 = sadd.s32 %s76, 1
      %p80 = scmp.eq.s32.totalorder %s21, 1
      %p81 = scmp.ne.s32.totalorder %s76, %s78
      %p82 = scmp.eq.s32.totalorder %s21, 0
      %p83 = por %p81, %p82
      %p84 = scmp.ne.s32.totalorder %s76, %s78
      %p85 = scmp.eq.s32.totalorder %s26, 1
      %p86 = por %p84, %p85
      %p87 = scmp.ne.s32.totalorder %s78, %s79
      %p88 = scmp.eq.s32.totalorder %s26, 0
      %p89 = por %p87, %p88
      %p90 = scmp.ne.s32.totalorder %s78, %s79
      %p91 = scmp.eq.s32.totalorder %s27, 1
      %p92 = por %p90, %p91
      %p94 = scmp.ne.s32.totalorder %s79, %s93
      %p95 = scmp.eq.s32.totalorder %s27, 0
      %p96 = por %p94, %p95
      %s98 = sadd.s32 %s97, 1
      %p101 = scmp.eq.s32.totalorder %s21, 1
      %p102 = scmp.ne.s32.totalorder %s97, %s99
      %p103 = scmp.eq.s32.totalorder %s21, 0
      %p104 = por %p102, %p103
      %p105 = scmp.ne.s32.totalorder %s97, %s99
      %p106 = scmp.eq.s32.totalorder %s26, 1
      %p107 = por %p105, %p106
      %p108 = scmp.ne.s32.totalorder %s99, %s100
      %p109 = scmp.eq.s32.totalorder %s26, 0
      %p110 = por %p108, %p109
      %p111 = scmp.ne.s32.totalorder %s99, %s100
      %p112 = scmp.eq.s32.totalorder %s27, 1
      %p113 = por %p111, %p112
      %p115 = scmp.ne.s32.totalorder %s100, %s114
      %p116 = scmp.eq.s32.totalorder %s27, 0
      %p117 = por %p115, %p116
      %s119 = sadd.s32 %s118, 1
      %p122 = scmp.eq.s32.totalorder %s21, 1
      %p123 = scmp.ne.s32.totalorder %s118, %s120
      %p124 = scmp.eq.s32.totalorder %s21, 0
      %p125 = por %p123, %p124
      %p126 = scmp.ne.s32.totalorder %s118, %s120
      %p127 = scmp.eq.s32.totalorder %s26, 1
      %p128 = por %p126, %p127
      %p129 = scmp.ne.s32.totalorder %s120, %s121
      %p130 = scmp.eq.s32.totalorder %s26, 0
      %p131 = por %p129, %p130
      %p132 = scmp.ne.s32.totalorder %s120, %s121
      %p133 = scmp.eq.s32.totalorder %s27, 1
      %p134 = por %p132, %p133
      %p136 = scmp.ne.s32.totalorder %s121, %s135
      %p137 = scmp.eq.s32.totalorder %s27, 0
      %p138 = por %p136, %p137
      %s140 = sadd.s32 %s139, 1
      %p143 = scmp.eq.s32.totalorder %s21, 1
      %p144 = scmp.ne.s32.totalorder %s139, %s141
      %p145 = scmp.eq.s32.totalorder %s21, 0
      %p146 = por %p144, %p145
      %p147 = scmp.ne.s32.totalorder %s139, %s141
      %p148 = scmp.eq.s32.totalorder %s26, 1
      %p149 = por %p147, %p148
      %p150 = scmp.ne.s32.totalorder %s141, %s142
      %p151 = scmp.eq.s32.totalorder %s26, 0
      %p152 = por %p150, %p151
      %p153 = scmp.ne.s32.totalorder %s141, %s142
      %p154 = scmp.eq.s32.totalorder %s27, 1
      %p155 = por %p153, %p154
      %p157 = scmp.ne.s32.totalorder %s142, %s156
      %p158 = scmp.eq.s32.totalorder %s27, 0
      %p159 = por %p157, %p158
      %s161 = sadd.s32 %s160, 1
      %p164 = scmp.eq.s32.totalorder %s21, 1
      %p165 = scmp.ne.s32.totalorder %s160, %s162
      %p166 = scmp.eq.s32.totalorder %s21, 0
      %p167 = por %p165, %p166
      %p168 = scmp.ne.s32.totalorder %s160, %s162
      %p169 = scmp.eq.s32.totalorder %s26, 1
      %p170 = por %p168, %p169
      %p171 = scmp.ne.s32.totalorder %s162, %s163
      %p172 = scmp.eq.s32.totalorder %s26, 0
      %p173 = por %p171, %p172
      %p174 = scmp.ne.s32.totalorder %s162, %s163
      %p175 = scmp.eq.s32.totalorder %s27, 1
      %p176 = por %p174, %p175
      %p178 = scmp.ne.s32.totalorder %s163, %s177
      %p179 = scmp.eq.s32.totalorder %s27, 0
      %p180 = por %p178, %p179
      %s182 = sadd.s32 %s181, 1
      %p185 = scmp.eq.s32.totalorder %s21, 1
      %p186 = scmp.ne.s32.totalorder %s181, %s183
      %p187 = scmp.eq.s32.totalorder %s21, 0
      %p188 = por %p186, %p187
      %p189 = scmp.ne.s32.totalorder %s181, %s183
      %p190 = scmp.eq.s32.totalorder %s26, 1
      %p191 = por %p189, %p190
      %p192 = scmp.ne.s32.totalorder %s183, %s184
      %p193 = scmp.eq.s32.totalorder %s26, 0
      %p194 = por %p192, %p193
      %p195 = scmp.ne.s32.totalorder %s183, %s184
      %p196 = scmp.eq.s32.totalorder %s27, 1
      %p197 = por %p195, %p196
      %p199 = scmp.ne.s32.totalorder %s184, %s198
      %p200 = scmp.eq.s32.totalorder %s27, 0
      %p201 = por %p199, %p200
      %s203 = sadd.s32 %s202, 1
      %p206 = scmp.eq.s32.totalorder %s21, 1
      %p207 = scmp.ne.s32.totalorder %s202, %s204
      %p208 = scmp.eq.s32.totalorder %s21, 0
      %p209 = por %p207, %p208
      %p210 = scmp.ne.s32.totalorder %s202, %s204
      %p211 = scmp.eq.s32.totalorder %s26, 1
      %p212 = por %p210, %p211
      %p213 = scmp.ne.s32.totalorder %s204, %s205
      %p214 = scmp.eq.s32.totalorder %s26, 0
      %p215 = por %p213, %p214
      %p216 = scmp.ne.s32.totalorder %s204, %s205
      %p217 = scmp.eq.s32.totalorder %s27, 1
      %p218 = por %p216, %p217
      %p220 = scmp.ne.s32.totalorder %s205, %s219
      %p221 = scmp.eq.s32.totalorder %s27, 0
      %p222 = por %p220, %p221
      %s224 = sadd.s32 %s223, 1
      %p227 = scmp.eq.s32.totalorder %s21, 1
      %p228 = scmp.ne.s32.totalorder %s223, %s225
      %p229 = scmp.eq.s32.totalorder %s21, 0
      %p230 = por %p228, %p229
      %p231 = scmp.ne.s32.totalorder %s223, %s225
      %p232 = scmp.eq.s32.totalorder %s26, 1
      %p233 = por %p231, %p232
      %p234 = scmp.ne.s32.totalorder %s225, %s226
      %p235 = scmp.eq.s32.totalorder %s26, 0
      %p236 = por %p234, %p235
      %p237 = scmp.ne.s32.totalorder %s225, %s226
      %p238 = scmp.eq.s32.totalorder %s27, 1
      %p239 = por %p237, %p238
      %p241 = scmp.ne.s32.totalorder %s226, %s240
      %p242 = scmp.eq.s32.totalorder %s27, 0
      %p243 = por %p241, %p242
      %s244 = ssub.s32 %s21, %s28
      %p245 = scmp.eq.s32.totalorder %s244, 0
      %s247 = sadd.s32 %s246, 1
      %s248 = scalar_select %p245, %s246, %s247
      %p251 = pneg %p245
      %p252 = scmp.eq.s32.totalorder %s21, 1
      %p253 = por %p251, %p252
      %p254 = scmp.ne.s32.totalorder %s246, %s249
      %p255 = scmp.eq.s32.totalorder %s21, 0
      %p256 = por %p254, %p255
      %p257 = scmp.ne.s32.totalorder %s246, %s249
      %p258 = scmp.eq.s32.totalorder %s26, 1
      %p259 = por %p257, %p258
      %p260 = scmp.ne.s32.totalorder %s249, %s250
      %p261 = scmp.eq.s32.totalorder %s26, 0
      %p262 = por %p260, %p261
      %p263 = scmp.ne.s32.totalorder %s249, %s250
      %p264 = scmp.eq.s32.totalorder %s27, 1
      %p265 = por %p263, %p264
      %p267 = scmp.ne.s32.totalorder %s250, %s266
      %p268 = scmp.eq.s32.totalorder %s27, 0
      %p269 = por %p267, %p268
      %p270 = scmp.le.s32.totalorder 1, %s21
      %p271 = scmp.lt.s32.totalorder %s21, 3
      %p272 = pnand %p270, %p271
      %p273 = pneg %p272
      // Predicated region
      $region9: #{wideresnet_forward.1} parent=5 // pred_check
        _
      $region10: #{wideresnet_forward.1} parent=5 // pred_check_branch
        %275 = sbr.rel (%p272) target = $region12
      $region11: #{wideresnet_forward.1} parent=5 // pred_region
        %s276 = ssub.s32 %s21, 1
        // Predicated region
        $region13: #{wideresnet_forward.1} parent=11 // pred_check
          %p277 = pneg %p68
        $region14: #{wideresnet_forward.1} parent=11 // pred_check_branch
          %279 = sbr.rel (%p277) target = $region16
        $region15: #{wideresnet_forward.1} parent=11 // pred_region
          %s281 = ssub.s32 384, 384
          %282 = vsyncadd [#allocation3], %s281
          %s283 = sshll.u32 [#allocation2], 4
          %s284 = int_to_ptr.vmem [resolvable:$true] %s283
          %289 = dma.hbm_to_vmem [thread:$0]  %s1, 384, %s284, [#allocation3], 128, 128, 8
        $region16: #{wideresnet_forward.1} parent=11 // pred_fallthru
          _
        // Predicated region
        $region17: #{wideresnet_forward.1} parent=11 // pred_check
          %p290 = pneg %p89
        $region18: #{wideresnet_forward.1} parent=11 // pred_check_branch
          %292 = sbr.rel (%p290) target = $region20
        $region19: #{wideresnet_forward.1} parent=11 // pred_region
          _
        $region20: #{wideresnet_forward.1} parent=11 // pred_fallthru
          _
        // Predicated region
        $region21: #{wideresnet_forward.1} parent=11 // pred_check
          %p293 = pneg %p110
        $region22: #{wideresnet_forward.1} parent=11 // pred_check_branch
          %295 = sbr.rel (%p293) target = $region24
        $region23: #{wideresnet_forward.1} parent=11 // pred_region
          %s297 = ssub.s32 3072, 3072
          %298 = vsyncadd [#allocation6], %s297
          %s299 = sshll.u32 [#allocation5], 4
          %s300 = int_to_ptr.vmem [resolvable:$true] %s299
          %305 = dma.hbm_to_vmem [thread:$0]  %s3, 3072, %s300, [#allocation6], 64, 64, 4
        $region24: #{wideresnet_forward.1} parent=11 // pred_fallthru
          _
        // Predicated region
        $region25: #{wideresnet_forward.1} parent=11 // pred_check
          %p306 = pneg %p131
        $region26: #{wideresnet_forward.1} parent=11 // pred_check_branch
          %308 = sbr.rel (%p306) target = $region28
        $region27: #{wideresnet_forward.1} parent=11 // pred_region
          _
        $region28: #{wideresnet_forward.1} parent=11 // pred_fallthru
          _
        // Predicated region
        $region29: #{wideresnet_forward.1} parent=11 // pred_check
          %p309 = pneg %p152
        $region30: #{wideresnet_forward.1} parent=11 // pred_check_branch
          %311 = sbr.rel (%p309) target = $region32
        $region31: #{wideresnet_forward.1} parent=11 // pred_region
          _
        $region32: #{wideresnet_forward.1} parent=11 // pred_fallthru
          _
        // Predicated region
        $region33: #{wideresnet_forward.1} parent=11 // pred_check
          %p312 = pneg %p173
        $region34: #{wideresnet_forward.1} parent=11 // pred_check_branch
          %314 = sbr.rel (%p312) target = $region36
        $region35: #{wideresnet_forward.1} parent=11 // pred_region
          _
        $region36: #{wideresnet_forward.1} parent=11 // pred_fallthru
          _
        // Predicated region
        $region37: #{wideresnet_forward.1} parent=11 // pred_check
          %p315 = pneg %p194
        $region38: #{wideresnet_forward.1} parent=11 // pred_check_branch
          %317 = sbr.rel (%p315) target = $region40
        $region39: #{wideresnet_forward.1} parent=11 // pred_region
          _
        $region40: #{wideresnet_forward.1} parent=11 // pred_fallthru
          _
        // Predicated region
        $region41: #{wideresnet_forward.1} parent=11 // pred_check
          %p318 = pneg %p215
        $region42: #{wideresnet_forward.1} parent=11 // pred_check_branch
          %320 = sbr.rel (%p318) target = $region44
        $region43: #{wideresnet_forward.1} parent=11 // pred_region
          _
        $region44: #{wideresnet_forward.1} parent=11 // pred_fallthru
          _
        // Predicated region
        $region45: #{wideresnet_forward.1} parent=11 // pred_check
          %p321 = pneg %p236
        $region46: #{wideresnet_forward.1} parent=11 // pred_check_branch
          %323 = sbr.rel (%p321) target = $region48
        $region47: #{wideresnet_forward.1} parent=11 // pred_region
          _
        $region48: #{wideresnet_forward.1} parent=11 // pred_fallthru
          _
      $region12: #{wideresnet_forward.1} parent=5 // pred_fallthru
        _
      %p324 = scmp.lt.s32.totalorder %s21, 2
      // Predicated region
      $region49: #{wideresnet_forward.1} parent=5 // pred_check
        %p325 = pneg %p324
      $region50: #{wideresnet_forward.1} parent=5 // pred_check_branch
        %327 = sbr.rel (%p325) target = $region52
      $region51: #{wideresnet_forward.1} parent=5 // pred_region
        // Predicated region
        $region53: #{wideresnet_forward.1} parent=51 // pred_check
          %p328 = pneg %p41
        $region54: #{wideresnet_forward.1} parent=51 // pred_check_branch
          %330 = sbr.rel (%p328) target = $region56
        $region55: #{wideresnet_forward.1} parent=51 // pred_region
          %s331 = smul.u32 8, %s21
          %p332 = scmp.lt.s32.totalorder %s331, 15
          %s333 = scalar_select %p332, %s331, 15
          %s334 = smul.addr %s333, 4
          %s335 = smul.addr %s334, 8
          %s336 = scalar_lea.vmem %s0, %s335
          %s337 = smul.u32 8, %s21
        $region56: #{wideresnet_forward.1} parent=51 // pred_fallthru
          _
      $region52: #{wideresnet_forward.1} parent=5 // pred_fallthru
        _
      %p338 = scmp.le.s32.totalorder 1, %s21
      %p339 = scmp.lt.s32.totalorder %s21, 3
      %p340 = pnand %p338, %p339
      %p341 = pneg %p340
      // Predicated region
      $region57: #{wideresnet_forward.1} parent=5 // pred_check
        _
      $region58: #{wideresnet_forward.1} parent=5 // pred_check_branch
        %343 = sbr.rel (%p340) target = $region60
      $region59: #{wideresnet_forward.1} parent=5 // pred_region
        %s344 = ssub.s32 %s21, 1
        // Predicated region
        $region61: #{wideresnet_forward.1} parent=59 // pred_check
          %p345 = pneg %p68
        $region62: #{wideresnet_forward.1} parent=59 // pred_check_branch
          %347 = sbr.rel (%p345) target = $region64
        $region63: #{wideresnet_forward.1} parent=59 // pred_region
          %348 = dma.done [#allocation3], 384
        $region64: #{wideresnet_forward.1} parent=59 // pred_fallthru
          _
        // Predicated region
        $region65: #{wideresnet_forward.1} parent=59 // pred_check
          %p349 = pneg %p110
        $region66: #{wideresnet_forward.1} parent=59 // pred_check_branch
          %351 = sbr.rel (%p349) target = $region68
        $region67: #{wideresnet_forward.1} parent=59 // pred_region
          %352 = dma.done [#allocation6], 3072
        $region68: #{wideresnet_forward.1} parent=59 // pred_fallthru
          _
        %s353 = smul.u32 8, %s26
        %p354 = scmp.lt.s32.totalorder %s353, 15
        %s355 = scalar_select %p354, %s353, 15
        %s356 = smul.addr %s355, 4
        %s357 = smul.addr %s356, 8
        %s358 = scalar_lea.vmem %s0, %s357
        %p359 = pneg %p47
        %p360 = pneg %p44
        %p361 = pneg %p68
        %p362 = pneg %p65
        %p363 = pneg %p89
        %p364 = pneg %p86
        %p365 = pneg %p110
        %p366 = pneg %p107
        %p367 = pneg %p131
        %p368 = pneg %p128
        %p369 = pneg %p152
        %p370 = pneg %p149
        %p371 = pneg %p173
        %p372 = pneg %p170
        %p373 = pneg %p194
        %p374 = pneg %p191
        %p375 = pneg %p215
        %p376 = pneg %p212
        %p377 = pneg %p236
        %p378 = pneg %p233
        %p379 = pneg %p262
        %p380 = pneg %p259
        %s381 = sand.u32 %s249, 1
        %s382 = scalar_lea.sflag [#allocation4], %s381
        %s383 = sand.u32 %s249, 1
        %s384 = smul.addr %s383, 8
        %s385 = scalar_lea.vmem [#allocation7], %s384
        %s386 = smul.u32 8, %s26
        %p387 = scmp.lt.s32.totalorder %s386, 15
        %s388 = scalar_select %p387, %s386, 15
        %s389 = smul.addr %s388, 4
        %s390 = smul.addr %s389, 8
        %s391 = scalar_lea.vmem %s0, %s390
        %s392 = smul.u32 8, %s26
        %v394 = vld [vmem:[#allocation2] sm:$0xff]
        %v395 = vld [vmem:[#allocation2 + $0x8] sm:$0xff]
        %v396 = vld [vmem:[#allocation2 + $0x10] sm:$0xff]
        %v397 = vld [vmem:[%s391] sm:$0xff]
        %v398 = vld [vmem:[%s391 + $0x8] sm:$0xff]
        %v399 = vld [vmem:[%s391 + $0x10] sm:$0xff]
        %v400 = vld [vmem:[%s391 + $0x18] sm:$0xff]
        %v401 = vld [vmem:[%s391 + $0x20] sm:$0xff]
        %v402 = vld [vmem:[%s391 + $0x28] sm:$0xff]
        %v403 = vld [vmem:[%s391 + $0x30] sm:$0xff]
        %v404 = vld [vmem:[%s391 + $0x38] sm:$0xff]
        %v405 = vld [vmem:[%s391 + $0x40] sm:$0xff]
        %v406 = vld [vmem:[%s391 + $0x48] sm:$0xff]
        %v407 = vld [vmem:[%s391 + $0x50] sm:$0xff]
        %v408 = vld [vmem:[%s391 + $0x58] sm:$0xff]
        %v409 = vld [vmem:[%s391 + $0x60] sm:$0xff]
        %v410 = vld [vmem:[%s391 + $0x68] sm:$0xff]
        %v411 = vld [vmem:[%s391 + $0x70] sm:$0xff]
        %v412 = vld [vmem:[%s391 + $0x78] sm:$0xff]
        %v413 = vld [vmem:[%s391 + $0x80] sm:$0xff]
        %v414 = vld [vmem:[%s391 + $0x88] sm:$0xff]
        %v415 = vld [vmem:[%s391 + $0x90] sm:$0xff]
        %v416 = vld [vmem:[%s391 + $0x98] sm:$0xff]
        %v417 = vld [vmem:[%s391 + $0xa0] sm:$0xff]
        %v418 = vld [vmem:[%s391 + $0xa8] sm:$0xff]
        %v419 = vld [vmem:[%s391 + $0xb0] sm:$0xff]
        %v420 = vld [vmem:[%s391 + $0xb8] sm:$0xff]
        %v421 = vld [vmem:[%s391 + $0xc0] sm:$0xff]
        %v422 = vld [vmem:[%s391 + $0xc8] sm:$0xff]
        %v423 = vld [vmem:[%s391 + $0xd0] sm:$0xff]
        %v424 = vld [vmem:[%s391 + $0xd8] sm:$0xff]
        %v425 = vld [vmem:[%s391 + $0xe0] sm:$0xff]
        %v426 = vld [vmem:[%s391 + $0xe8] sm:$0xff]
        %v427 = vld [vmem:[%s391 + $0xf0] sm:$0xff]
        %v428 = vld [vmem:[%s391 + $0xf8] sm:$0xff]
        %430 = vset.pattern.permute.xlu0 0
        %431 = vperm.xlu0 %430, %v397
        %v432 = vpop.permute.xlu0 %431
        %435 = vset.pattern.permute.xlu0 0
        %436 = vperm.xlu0 %435, %v398
        %v437 = vpop.permute.xlu0 %436
        %440 = vset.pattern.permute.xlu0 0
        %441 = vperm.xlu0 %440, %v399
        %v442 = vpop.permute.xlu0 %441
        %445 = vset.pattern.permute.xlu0 0
        %446 = vperm.xlu0 %445, %v400
        %v447 = vpop.permute.xlu0 %446
        %450 = vset.pattern.permute.xlu0 0
        %451 = vperm.xlu0 %450, %v401
        %v452 = vpop.permute.xlu0 %451
        %455 = vset.pattern.permute.xlu0 0
        %456 = vperm.xlu0 %455, %v402
        %v457 = vpop.permute.xlu0 %456
        %460 = vset.pattern.permute.xlu0 0
        %461 = vperm.xlu0 %460, %v403
        %v462 = vpop.permute.xlu0 %461
        %465 = vset.pattern.permute.xlu0 0
        %466 = vperm.xlu0 %465, %v404
        %v467 = vpop.permute.xlu0 %466
        %470 = vset.pattern.permute.xlu0 0
        %471 = vperm.xlu0 %470, %v405
        %v472 = vpop.permute.xlu0 %471
        %475 = vset.pattern.permute.xlu0 0
        %476 = vperm.xlu0 %475, %v406
        %v477 = vpop.permute.xlu0 %476
        %480 = vset.pattern.permute.xlu0 0
        %481 = vperm.xlu0 %480, %v407
        %v482 = vpop.permute.xlu0 %481
        %485 = vset.pattern.permute.xlu0 0
        %486 = vperm.xlu0 %485, %v408
        %v487 = vpop.permute.xlu0 %486
        %490 = vset.pattern.permute.xlu0 0
        %491 = vperm.xlu0 %490, %v409
        %v492 = vpop.permute.xlu0 %491
        %495 = vset.pattern.permute.xlu0 0
        %496 = vperm.xlu0 %495, %v410
        %v497 = vpop.permute.xlu0 %496
        %500 = vset.pattern.permute.xlu0 0
        %501 = vperm.xlu0 %500, %v411
        %v502 = vpop.permute.xlu0 %501
        %505 = vset.pattern.permute.xlu0 0
        %506 = vperm.xlu0 %505, %v412
        %v507 = vpop.permute.xlu0 %506
        %510 = vset.pattern.permute.xlu0 0
        %511 = vperm.xlu0 %510, %v413
        %v512 = vpop.permute.xlu0 %511
        %515 = vset.pattern.permute.xlu0 0
        %516 = vperm.xlu0 %515, %v414
        %v517 = vpop.permute.xlu0 %516
        %520 = vset.pattern.permute.xlu0 0
        %521 = vperm.xlu0 %520, %v415
        %v522 = vpop.permute.xlu0 %521
        %525 = vset.pattern.permute.xlu0 0
        %526 = vperm.xlu0 %525, %v416
        %v527 = vpop.permute.xlu0 %526
        %530 = vset.pattern.permute.xlu0 0
        %531 = vperm.xlu0 %530, %v417
        %v532 = vpop.permute.xlu0 %531
        %535 = vset.pattern.permute.xlu0 0
        %536 = vperm.xlu0 %535, %v418
        %v537 = vpop.permute.xlu0 %536
        %540 = vset.pattern.permute.xlu0 0
        %541 = vperm.xlu0 %540, %v419
        %v542 = vpop.permute.xlu0 %541
        %545 = vset.pattern.permute.xlu0 0
        %546 = vperm.xlu0 %545, %v420
        %v547 = vpop.permute.xlu0 %546
        %550 = vset.pattern.permute.xlu0 0
        %551 = vperm.xlu0 %550, %v421
        %v552 = vpop.permute.xlu0 %551
        %555 = vset.pattern.permute.xlu0 0
        %556 = vperm.xlu0 %555, %v422
        %v557 = vpop.permute.xlu0 %556
        %560 = vset.pattern.permute.xlu0 0
        %561 = vperm.xlu0 %560, %v423
        %v562 = vpop.permute.xlu0 %561
        %565 = vset.pattern.permute.xlu0 0
        %566 = vperm.xlu0 %565, %v424
        %v567 = vpop.permute.xlu0 %566
        %570 = vset.pattern.permute.xlu0 0
        %571 = vperm.xlu0 %570, %v425
        %v572 = vpop.permute.xlu0 %571
        %575 = vset.pattern.permute.xlu0 0
        %576 = vperm.xlu0 %575, %v426
        %v577 = vpop.permute.xlu0 %576
        %580 = vset.pattern.permute.xlu0 0
        %581 = vperm.xlu0 %580, %v427
        %v582 = vpop.permute.xlu0 %581
        %585 = vset.pattern.permute.xlu0 0
        %586 = vperm.xlu0 %585, %v428
        %v587 = vpop.permute.xlu0 %586
        %v589 = vlaneseq
        %v590 = vshrl.u32 %v589, 7
        %v591 = vsub.s32 1, %v590
        %v592 = vrot.slane %v394, %v591
        %v593 = vmul.f32 %v432, %v592
        %v594 = vmul.f32 %v437, %v592
        %v595 = vmul.f32 %v442, %v592
        %v596 = vmul.f32 %v447, %v592
        %v597 = vmul.f32 %v452, %v592
        %v598 = vmul.f32 %v457, %v592
        %v599 = vmul.f32 %v462, %v592
        %v600 = vmul.f32 %v467, %v592
        %v601 = vmul.f32 %v472, %v592
        %v602 = vmul.f32 %v477, %v592
        %v603 = vmul.f32 %v482, %v592
        %v604 = vmul.f32 %v487, %v592
        %v605 = vmul.f32 %v492, %v592
        %v606 = vmul.f32 %v497, %v592
        %v607 = vmul.f32 %v502, %v592
        %v608 = vmul.f32 %v507, %v592
        %v609 = vmul.f32 %v512, %v592
        %v610 = vmul.f32 %v517, %v592
        %v611 = vmul.f32 %v522, %v592
        %v612 = vmul.f32 %v527, %v592
        %v613 = vmul.f32 %v532, %v592
        %v614 = vmul.f32 %v537, %v592
        %v615 = vmul.f32 %v542, %v592
        %v616 = vmul.f32 %v547, %v592
        %v617 = vmul.f32 %v552, %v592
        %v618 = vmul.f32 %v557, %v592
        %v619 = vmul.f32 %v562, %v592
        %v620 = vmul.f32 %v567, %v592
        %v621 = vmul.f32 %v572, %v592
        %v622 = vmul.f32 %v577, %v592
        %v623 = vmul.f32 %v582, %v592
        %v624 = vmul.f32 %v587, %v592
        %v625 = vlaneseq
        %v626 = vshrl.u32 %v625, 7
        %v627 = vsub.s32 0, %v626
        %v628 = vrot.slane %v394, %v627
        %v629 = vmul.f32 %v432, %v628
        %v630 = vmul.f32 %v437, %v628
        %v631 = vmul.f32 %v442, %v628
        %v632 = vmul.f32 %v447, %v628
        %v633 = vmul.f32 %v452, %v628
        %v634 = vmul.f32 %v457, %v628
        %v635 = vmul.f32 %v462, %v628
        %v636 = vmul.f32 %v467, %v628
        %v637 = vmul.f32 %v472, %v628
        %v638 = vmul.f32 %v477, %v628
        %v639 = vmul.f32 %v482, %v628
        %v640 = vmul.f32 %v487, %v628
        %v641 = vmul.f32 %v492, %v628
        %v642 = vmul.f32 %v497, %v628
        %v643 = vmul.f32 %v502, %v628
        %v644 = vmul.f32 %v507, %v628
        %v645 = vmul.f32 %v512, %v628
        %v646 = vmul.f32 %v517, %v628
        %v647 = vmul.f32 %v522, %v628
        %v648 = vmul.f32 %v527, %v628
        %v649 = vmul.f32 %v532, %v628
        %v650 = vmul.f32 %v537, %v628
        %v651 = vmul.f32 %v542, %v628
        %v652 = vmul.f32 %v547, %v628
        %v653 = vmul.f32 %v552, %v628
        %v654 = vmul.f32 %v557, %v628
        %v655 = vmul.f32 %v562, %v628
        %v656 = vmul.f32 %v567, %v628
        %v657 = vmul.f32 %v572, %v628
        %v658 = vmul.f32 %v577, %v628
        %v659 = vmul.f32 %v582, %v628
        %v660 = vmul.f32 %v587, %v628
        %v661 = vrot.slane %v629, 7
        %v662 = vrot.slane %v630, 7
        %v663 = vrot.slane %v631, 7
        %v664 = vrot.slane %v632, 7
        %v665 = vrot.slane %v633, 7
        %v666 = vrot.slane %v634, 7
        %v667 = vrot.slane %v635, 7
        %v668 = vrot.slane %v636, 7
        %v669 = vrot.slane %v637, 7
        %v670 = vrot.slane %v638, 7
        %v671 = vrot.slane %v639, 7
        %v672 = vrot.slane %v640, 7
        %v673 = vrot.slane %v641, 7
        %v674 = vrot.slane %v642, 7
        %v675 = vrot.slane %v643, 7
        %v676 = vrot.slane %v644, 7
        %v677 = vrot.slane %v645, 7
        %v678 = vrot.slane %v646, 7
        %v679 = vrot.slane %v647, 7
        %v680 = vrot.slane %v648, 7
        %v681 = vrot.slane %v649, 7
        %v682 = vrot.slane %v650, 7
        %v683 = vrot.slane %v651, 7
        %v684 = vrot.slane %v652, 7
        %v685 = vrot.slane %v653, 7
        %v686 = vrot.slane %v654, 7
        %v687 = vrot.slane %v655, 7
        %v688 = vrot.slane %v656, 7
        %v689 = vrot.slane %v657, 7
        %v690 = vrot.slane %v658, 7
        %v691 = vrot.slane %v659, 7
        %v692 = vrot.slane %v660, 7
        %v693 = vlaneseq
        %v694 = vshrl.u32 %v693, 7
        %vm695 = vcmp.lt.s32.totalorder %v694, 1
        %v696 = vsel %vm695, %v691, %v692
        %v697 = vsel %vm695, %v690, %v691
        %v698 = vsel %vm695, %v689, %v690
        %v699 = vsel %vm695, %v688, %v689
        %v700 = vsel %vm695, %v687, %v688
        %v701 = vsel %vm695, %v686, %v687
        %v702 = vsel %vm695, %v685, %v686
        %v703 = vsel %vm695, %v684, %v685
        %v704 = vsel %vm695, %v683, %v684
        %v705 = vsel %vm695, %v682, %v683
        %v706 = vsel %vm695, %v681, %v682
        %v707 = vsel %vm695, %v680, %v681
        %v708 = vsel %vm695, %v679, %v680
        %v709 = vsel %vm695, %v678, %v679
        %v710 = vsel %vm695, %v677, %v678
        %v711 = vsel %vm695, %v676, %v677
        %v712 = vsel %vm695, %v675, %v676
        %v713 = vsel %vm695, %v674, %v675
        %v714 = vsel %vm695, %v673, %v674
        %v715 = vsel %vm695, %v672, %v673
        %v716 = vsel %vm695, %v671, %v672
        %v717 = vsel %vm695, %v670, %v671
        %v718 = vsel %vm695, %v669, %v670
        %v719 = vsel %vm695, %v668, %v669
        %v720 = vsel %vm695, %v667, %v668
        %v721 = vsel %vm695, %v666, %v667
        %v722 = vsel %vm695, %v665, %v666
        %v723 = vsel %vm695, %v664, %v665
        %v724 = vsel %vm695, %v663, %v664
        %v725 = vsel %vm695, %v662, %v663
        %v726 = vsel %vm695, %v661, %v662
        %v727 = vsel %vm695, %v692, %v661
        %v728 = vadd.s32 %v694, 8
        %v729 = vadd.s32 %v694, 16
        %v730 = vadd.s32 %v694, 24
        %v731 = vadd.s32 %v694, 32
        %v732 = vadd.s32 %v694, 40
        %v733 = vadd.s32 %v694, 48
        %v734 = vadd.s32 %v694, 56
        %v735 = vadd.s32 %v694, 64
        %v736 = vadd.s32 %v694, 72
        %v737 = vadd.s32 %v694, 80
        %v738 = vadd.s32 %v694, 88
        %v739 = vadd.s32 %v694, 96
        %v740 = vadd.s32 %v694, 104
        %v741 = vadd.s32 %v694, 112
        %v742 = vadd.s32 %v694, 120
        %v743 = vadd.s32 %v694, 128
        %v744 = vadd.s32 %v694, 136
        %v745 = vadd.s32 %v694, 144
        %v746 = vadd.s32 %v694, 152
        %v747 = vadd.s32 %v694, 160
        %v748 = vadd.s32 %v694, 168
        %v749 = vadd.s32 %v694, 176
        %v750 = vadd.s32 %v694, 184
        %v751 = vadd.s32 %v694, 192
        %v752 = vadd.s32 %v694, 200
        %v753 = vadd.s32 %v694, 208
        %v754 = vadd.s32 %v694, 216
        %v755 = vadd.s32 %v694, 224
        %v756 = vadd.s32 %v694, 232
        %v757 = vadd.s32 %v694, 240
        %v758 = vadd.s32 %v694, 248
        %vm759 = vcmp.lt.s32.totalorder %v694, 0
        %v760 = vsub.s32 0, %v694
        %v761 = vsel %vm759, %v760, %v694
        %v762 = vshrl.u32 %v761, 5
        %v763 = vand.u32 %v761, 31
        %v764 = vsub.s32 0, %v763
        %v765 = vsel %vm759, %v764, %v763
        %vm766 = vcmp.lt.s32.totalorder %v728, 0
        %v767 = vsub.s32 0, %v728
        %v768 = vsel %vm766, %v767, %v728
        %v769 = vshrl.u32 %v768, 5
        %v770 = vand.u32 %v768, 31
        %v771 = vsub.s32 0, %v770
        %v772 = vsel %vm766, %v771, %v770
        %vm773 = vcmp.lt.s32.totalorder %v729, 0
        %v774 = vsub.s32 0, %v729
        %v775 = vsel %vm773, %v774, %v729
        %v776 = vshrl.u32 %v775, 5
        %v777 = vand.u32 %v775, 31
        %v778 = vsub.s32 0, %v777
        %v779 = vsel %vm773, %v778, %v777
        %vm780 = vcmp.lt.s32.totalorder %v730, 0
        %v781 = vsub.s32 0, %v730
        %v782 = vsel %vm780, %v781, %v730
        %v783 = vshrl.u32 %v782, 5
        %v784 = vand.u32 %v782, 31
        %v785 = vsub.s32 0, %v784
        %v786 = vsel %vm780, %v785, %v784
        %vm787 = vcmp.lt.s32.totalorder %v731, 0
        %v788 = vsub.s32 0, %v731
        %v789 = vsel %vm787, %v788, %v731
        %v790 = vshrl.u32 %v789, 5
        %v791 = vand.u32 %v789, 31
        %v792 = vsub.s32 0, %v791
        %v793 = vsel %vm787, %v792, %v791
        %vm794 = vcmp.lt.s32.totalorder %v732, 0
        %v795 = vsub.s32 0, %v732
        %v796 = vsel %vm794, %v795, %v732
        %v797 = vshrl.u32 %v796, 5
        %v798 = vand.u32 %v796, 31
        %v799 = vsub.s32 0, %v798
        %v800 = vsel %vm794, %v799, %v798
        %vm801 = vcmp.lt.s32.totalorder %v733, 0
        %v802 = vsub.s32 0, %v733
        %v803 = vsel %vm801, %v802, %v733
        %v804 = vshrl.u32 %v803, 5
        %v805 = vand.u32 %v803, 31
        %v806 = vsub.s32 0, %v805
        %v807 = vsel %vm801, %v806, %v805
        %vm808 = vcmp.lt.s32.totalorder %v734, 0
        %v809 = vsub.s32 0, %v734
        %v810 = vsel %vm808, %v809, %v734
        %v811 = vshrl.u32 %v810, 5
        %v812 = vand.u32 %v810, 31
        %v813 = vsub.s32 0, %v812
        %v814 = vsel %vm808, %v813, %v812
        %vm815 = vcmp.lt.s32.totalorder %v735, 0
        %v816 = vsub.s32 0, %v735
        %v817 = vsel %vm815, %v816, %v735
        %v818 = vshrl.u32 %v817, 5
        %v819 = vand.u32 %v817, 31
        %v820 = vsub.s32 0, %v819
        %v821 = vsel %vm815, %v820, %v819
        %vm822 = vcmp.lt.s32.totalorder %v736, 0
        %v823 = vsub.s32 0, %v736
        %v824 = vsel %vm822, %v823, %v736
        %v825 = vshrl.u32 %v824, 5
        %v826 = vand.u32 %v824, 31
        %v827 = vsub.s32 0, %v826
        %v828 = vsel %vm822, %v827, %v826
        %vm829 = vcmp.lt.s32.totalorder %v737, 0
        %v830 = vsub.s32 0, %v737
        %v831 = vsel %vm829, %v830, %v737
        %v832 = vshrl.u32 %v831, 5
        %v833 = vand.u32 %v831, 31
        %v834 = vsub.s32 0, %v833
        %v835 = vsel %vm829, %v834, %v833
        %vm836 = vcmp.lt.s32.totalorder %v738, 0
        %v837 = vsub.s32 0, %v738
        %v838 = vsel %vm836, %v837, %v738
        %v839 = vshrl.u32 %v838, 5
        %v840 = vand.u32 %v838, 31
        %v841 = vsub.s32 0, %v840
        %v842 = vsel %vm836, %v841, %v840
        %vm843 = vcmp.lt.s32.totalorder %v739, 0
        %v844 = vsub.s32 0, %v739
        %v845 = vsel %vm843, %v844, %v739
        %v846 = vshrl.u32 %v845, 5
        %v847 = vand.u32 %v845, 31
        %v848 = vsub.s32 0, %v847
        %v849 = vsel %vm843, %v848, %v847
        %vm850 = vcmp.lt.s32.totalorder %v740, 0
        %v851 = vsub.s32 0, %v740
        %v852 = vsel %vm850, %v851, %v740
        %v853 = vshrl.u32 %v852, 5
        %v854 = vand.u32 %v852, 31
        %v855 = vsub.s32 0, %v854
        %v856 = vsel %vm850, %v855, %v854
        %vm857 = vcmp.lt.s32.totalorder %v741, 0
        %v858 = vsub.s32 0, %v741
        %v859 = vsel %vm857, %v858, %v741
        %v860 = vshrl.u32 %v859, 5
        %v861 = vand.u32 %v859, 31
        %v862 = vsub.s32 0, %v861
        %v863 = vsel %vm857, %v862, %v861
        %vm864 = vcmp.lt.s32.totalorder %v742, 0
        %v865 = vsub.s32 0, %v742
        %v866 = vsel %vm864, %v865, %v742
        %v867 = vshrl.u32 %v866, 5
        %v868 = vand.u32 %v866, 31
        %v869 = vsub.s32 0, %v868
        %v870 = vsel %vm864, %v869, %v868
        %vm871 = vcmp.lt.s32.totalorder %v743, 0
        %v872 = vsub.s32 0, %v743
        %v873 = vsel %vm871, %v872, %v743
        %v874 = vshrl.u32 %v873, 5
        %v875 = vand.u32 %v873, 31
        %v876 = vsub.s32 0, %v875
        %v877 = vsel %vm871, %v876, %v875
        %vm878 = vcmp.lt.s32.totalorder %v744, 0
        %v879 = vsub.s32 0, %v744
        %v880 = vsel %vm878, %v879, %v744
        %v881 = vshrl.u32 %v880, 5
        %v882 = vand.u32 %v880, 31
        %v883 = vsub.s32 0, %v882
        %v884 = vsel %vm878, %v883, %v882
        %vm885 = vcmp.lt.s32.totalorder %v745, 0
        %v886 = vsub.s32 0, %v745
        %v887 = vsel %vm885, %v886, %v745
        %v888 = vshrl.u32 %v887, 5
        %v889 = vand.u32 %v887, 31
        %v890 = vsub.s32 0, %v889
        %v891 = vsel %vm885, %v890, %v889
        %vm892 = vcmp.lt.s32.totalorder %v746, 0
        %v893 = vsub.s32 0, %v746
        %v894 = vsel %vm892, %v893, %v746
        %v895 = vshrl.u32 %v894, 5
        %v896 = vand.u32 %v894, 31
        %v897 = vsub.s32 0, %v896
        %v898 = vsel %vm892, %v897, %v896
        %vm899 = vcmp.lt.s32.totalorder %v747, 0
        %v900 = vsub.s32 0, %v747
        %v901 = vsel %vm899, %v900, %v747
        %v902 = vshrl.u32 %v901, 5
        %v903 = vand.u32 %v901, 31
        %v904 = vsub.s32 0, %v903
        %v905 = vsel %vm899, %v904, %v903
        %vm906 = vcmp.lt.s32.totalorder %v748, 0
        %v907 = vsub.s32 0, %v748
        %v908 = vsel %vm906, %v907, %v748
        %v909 = vshrl.u32 %v908, 5
        %v910 = vand.u32 %v908, 31
        %v911 = vsub.s32 0, %v910
        %v912 = vsel %vm906, %v911, %v910
        %vm913 = vcmp.lt.s32.totalorder %v749, 0
        %v914 = vsub.s32 0, %v749
        %v915 = vsel %vm913, %v914, %v749
        %v916 = vshrl.u32 %v915, 5
        %v917 = vand.u32 %v915, 31
        %v918 = vsub.s32 0, %v917
        %v919 = vsel %vm913, %v918, %v917
        %vm920 = vcmp.lt.s32.totalorder %v750, 0
        %v921 = vsub.s32 0, %v750
        %v922 = vsel %vm920, %v921, %v750
        %v923 = vshrl.u32 %v922, 5
        %v924 = vand.u32 %v922, 31
        %v925 = vsub.s32 0, %v924
        %v926 = vsel %vm920, %v925, %v924
        %vm927 = vcmp.lt.s32.totalorder %v751, 0
        %v928 = vsub.s32 0, %v751
        %v929 = vsel %vm927, %v928, %v751
        %v930 = vshrl.u32 %v929, 5
        %v931 = vand.u32 %v929, 31
        %v932 = vsub.s32 0, %v931
        %v933 = vsel %vm927, %v932, %v931
        %vm934 = vcmp.lt.s32.totalorder %v752, 0
        %v935 = vsub.s32 0, %v752
        %v936 = vsel %vm934, %v935, %v752
        %v937 = vshrl.u32 %v936, 5
        %v938 = vand.u32 %v936, 31
        %v939 = vsub.s32 0, %v938
        %v940 = vsel %vm934, %v939, %v938
        %vm941 = vcmp.lt.s32.totalorder %v753, 0
        %v942 = vsub.s32 0, %v753
        %v943 = vsel %vm941, %v942, %v753
        %v944 = vshrl.u32 %v943, 5
        %v945 = vand.u32 %v943, 31
        %v946 = vsub.s32 0, %v945
        %v947 = vsel %vm941, %v946, %v945
        %vm948 = vcmp.lt.s32.totalorder %v754, 0
        %v949 = vsub.s32 0, %v754
        %v950 = vsel %vm948, %v949, %v754
        %v951 = vshrl.u32 %v950, 5
        %v952 = vand.u32 %v950, 31
        %v953 = vsub.s32 0, %v952
        %v954 = vsel %vm948, %v953, %v952
        %vm955 = vcmp.lt.s32.totalorder %v755, 0
        %v956 = vsub.s32 0, %v755
        %v957 = vsel %vm955, %v956, %v755
        %v958 = vshrl.u32 %v957, 5
        %v959 = vand.u32 %v957, 31
        %v960 = vsub.s32 0, %v959
        %v961 = vsel %vm955, %v960, %v959
        %vm962 = vcmp.lt.s32.totalorder %v756, 0
        %v963 = vsub.s32 0, %v756
        %v964 = vsel %vm962, %v963, %v756
        %v965 = vshrl.u32 %v964, 5
        %v966 = vand.u32 %v964, 31
        %v967 = vsub.s32 0, %v966
        %v968 = vsel %vm962, %v967, %v966
        %vm969 = vcmp.lt.s32.totalorder %v757, 0
        %v970 = vsub.s32 0, %v757
        %v971 = vsel %vm969, %v970, %v757
        %v972 = vshrl.u32 %v971, 5
        %v973 = vand.u32 %v971, 31
        %v974 = vsub.s32 0, %v973
        %v975 = vsel %vm969, %v974, %v973
        %vm976 = vcmp.lt.s32.totalorder %v758, 0
        %v977 = vsub.s32 0, %v758
        %v978 = vsel %vm976, %v977, %v758
        %v979 = vshrl.u32 %v978, 5
        %v980 = vand.u32 %v978, 31
        %v981 = vsub.s32 0, %v980
        %v982 = vsel %vm976, %v981, %v980
        %vm983 = vcmp.ne.s32.totalorder %v765, 0
        %vm984 = vcmp.ne.s32.totalorder %v772, 0
        %vm985 = vcmp.ne.s32.totalorder %v779, 0
        %vm986 = vcmp.ne.s32.totalorder %v786, 0
        %vm987 = vcmp.ne.s32.totalorder %v793, 0
        %vm988 = vcmp.ne.s32.totalorder %v800, 0
        %vm989 = vcmp.ne.s32.totalorder %v807, 0
        %vm990 = vcmp.ne.s32.totalorder %v814, 0
        %vm991 = vcmp.ne.s32.totalorder %v821, 0
        %vm992 = vcmp.ne.s32.totalorder %v828, 0
        %vm993 = vcmp.ne.s32.totalorder %v835, 0
        %vm994 = vcmp.ne.s32.totalorder %v842, 0
        %vm995 = vcmp.ne.s32.totalorder %v849, 0
        %vm996 = vcmp.ne.s32.totalorder %v856, 0
        %vm997 = vcmp.ne.s32.totalorder %v863, 0
        %vm998 = vcmp.ne.s32.totalorder %v870, 0
        %vm999 = vcmp.ne.s32.totalorder %v877, 0
        %vm1000 = vcmp.ne.s32.totalorder %v884, 0
        %vm1001 = vcmp.ne.s32.totalorder %v891, 0
        %vm1002 = vcmp.ne.s32.totalorder %v898, 0
        %vm1003 = vcmp.ne.s32.totalorder %v905, 0
        %vm1004 = vcmp.ne.s32.totalorder %v912, 0
        %vm1005 = vcmp.ne.s32.totalorder %v919, 0
        %vm1006 = vcmp.ne.s32.totalorder %v926, 0
        %vm1007 = vcmp.ne.s32.totalorder %v933, 0
        %vm1008 = vcmp.ne.s32.totalorder %v940, 0
        %vm1009 = vcmp.ne.s32.totalorder %v947, 0
        %vm1010 = vcmp.ne.s32.totalorder %v954, 0
        %vm1011 = vcmp.ne.s32.totalorder %v961, 0
        %vm1012 = vcmp.ne.s32.totalorder %v968, 0
        %vm1013 = vcmp.ne.s32.totalorder %v975, 0
        %vm1014 = vcmp.ne.s32.totalorder %v982, 0
        %vm1015 = vcmp.lt.s32.totalorder %v765, 0
        %vm1016 = vcmp.lt.s32.totalorder %v772, 0
        %vm1017 = vcmp.lt.s32.totalorder %v779, 0
        %vm1018 = vcmp.lt.s32.totalorder %v786, 0
        %vm1019 = vcmp.lt.s32.totalorder %v793, 0
        %vm1020 = vcmp.lt.s32.totalorder %v800, 0
        %vm1021 = vcmp.lt.s32.totalorder %v807, 0
        %vm1022 = vcmp.lt.s32.totalorder %v814, 0
        %vm1023 = vcmp.lt.s32.totalorder %v821, 0
        %vm1024 = vcmp.lt.s32.totalorder %v828, 0
        %vm1025 = vcmp.lt.s32.totalorder %v835, 0
        %vm1026 = vcmp.lt.s32.totalorder %v842, 0
        %vm1027 = vcmp.lt.s32.totalorder %v849, 0
        %vm1028 = vcmp.lt.s32.totalorder %v856, 0
        %vm1029 = vcmp.lt.s32.totalorder %v863, 0
        %vm1030 = vcmp.lt.s32.totalorder %v870, 0
        %vm1031 = vcmp.lt.s32.totalorder %v877, 0
        %vm1032 = vcmp.lt.s32.totalorder %v884, 0
        %vm1033 = vcmp.lt.s32.totalorder %v891, 0
        %vm1034 = vcmp.lt.s32.totalorder %v898, 0
        %vm1035 = vcmp.lt.s32.totalorder %v905, 0
        %vm1036 = vcmp.lt.s32.totalorder %v912, 0
        %vm1037 = vcmp.lt.s32.totalorder %v919, 0
        %vm1038 = vcmp.lt.s32.totalorder %v926, 0
        %vm1039 = vcmp.lt.s32.totalorder %v933, 0
        %vm1040 = vcmp.lt.s32.totalorder %v940, 0
        %vm1041 = vcmp.lt.s32.totalorder %v947, 0
        %vm1042 = vcmp.lt.s32.totalorder %v954, 0
        %vm1043 = vcmp.lt.s32.totalorder %v961, 0
        %vm1044 = vcmp.lt.s32.totalorder %v968, 0
        %vm1045 = vcmp.lt.s32.totalorder %v975, 0
        %vm1046 = vcmp.lt.s32.totalorder %v982, 0
        %vm1047 = vmand %vm1015, %vm983
        %vm1048 = vmand %vm1016, %vm984
        %vm1049 = vmand %vm1017, %vm985
        %vm1050 = vmand %vm1018, %vm986
        %vm1051 = vmand %vm1019, %vm987
        %vm1052 = vmand %vm1020, %vm988
        %vm1053 = vmand %vm1021, %vm989
        %vm1054 = vmand %vm1022, %vm990
        %vm1055 = vmand %vm1023, %vm991
        %vm1056 = vmand %vm1024, %vm992
        %vm1057 = vmand %vm1025, %vm993
        %vm1058 = vmand %vm1026, %vm994
        %vm1059 = vmand %vm1027, %vm995
        %vm1060 = vmand %vm1028, %vm996
        %vm1061 = vmand %vm1029, %vm997
        %vm1062 = vmand %vm1030, %vm998
        %vm1063 = vmand %vm1031, %vm999
        %vm1064 = vmand %vm1032, %vm1000
        %vm1065 = vmand %vm1033, %vm1001
        %vm1066 = vmand %vm1034, %vm1002
        %vm1067 = vmand %vm1035, %vm1003
        %vm1068 = vmand %vm1036, %vm1004
        %vm1069 = vmand %vm1037, %vm1005
        %vm1070 = vmand %vm1038, %vm1006
        %vm1071 = vmand %vm1039, %vm1007
        %vm1072 = vmand %vm1040, %vm1008
        %vm1073 = vmand %vm1041, %vm1009
        %vm1074 = vmand %vm1042, %vm1010
        %vm1075 = vmand %vm1043, %vm1011
        %vm1076 = vmand %vm1044, %vm1012
        %vm1077 = vmand %vm1045, %vm1013
        %vm1078 = vmand %vm1046, %vm1014
        %v1079 = vadd.s32 %v765, 32
        %v1080 = vadd.s32 %v772, 32
        %v1081 = vadd.s32 %v779, 32
        %v1082 = vadd.s32 %v786, 32
        %v1083 = vadd.s32 %v793, 32
        %v1084 = vadd.s32 %v800, 32
        %v1085 = vadd.s32 %v807, 32
        %v1086 = vadd.s32 %v814, 32
        %v1087 = vadd.s32 %v821, 32
        %v1088 = vadd.s32 %v828, 32
        %v1089 = vadd.s32 %v835, 32
        %v1090 = vadd.s32 %v842, 32
        %v1091 = vadd.s32 %v849, 32
        %v1092 = vadd.s32 %v856, 32
        %v1093 = vadd.s32 %v863, 32
        %v1094 = vadd.s32 %v870, 32
        %v1095 = vadd.s32 %v877, 32
        %v1096 = vadd.s32 %v884, 32
        %v1097 = vadd.s32 %v891, 32
        %v1098 = vadd.s32 %v898, 32
        %v1099 = vadd.s32 %v905, 32
        %v1100 = vadd.s32 %v912, 32
        %v1101 = vadd.s32 %v919, 32
        %v1102 = vadd.s32 %v926, 32
        %v1103 = vadd.s32 %v933, 32
        %v1104 = vadd.s32 %v940, 32
        %v1105 = vadd.s32 %v947, 32
        %v1106 = vadd.s32 %v954, 32
        %v1107 = vadd.s32 %v961, 32
        %v1108 = vadd.s32 %v968, 32
        %v1109 = vadd.s32 %v975, 32
        %v1110 = vadd.s32 %v982, 32
        %v1111 = vsel %vm1047, %v1079, %v765
        %v1112 = vsel %vm1048, %v1080, %v772
        %v1113 = vsel %vm1049, %v1081, %v779
        %v1114 = vsel %vm1050, %v1082, %v786
        %v1115 = vsel %vm1051, %v1083, %v793
        %v1116 = vsel %vm1052, %v1084, %v800
        %v1117 = vsel %vm1053, %v1085, %v807
        %v1118 = vsel %vm1054, %v1086, %v814
        %v1119 = vsel %vm1055, %v1087, %v821
        %v1120 = vsel %vm1056, %v1088, %v828
        %v1121 = vsel %vm1057, %v1089, %v835
        %v1122 = vsel %vm1058, %v1090, %v842
        %v1123 = vsel %vm1059, %v1091, %v849
        %v1124 = vsel %vm1060, %v1092, %v856
        %v1125 = vsel %vm1061, %v1093, %v863
        %v1126 = vsel %vm1062, %v1094, %v870
        %v1127 = vsel %vm1063, %v1095, %v877
        %v1128 = vsel %vm1064, %v1096, %v884
        %v1129 = vsel %vm1065, %v1097, %v891
        %v1130 = vsel %vm1066, %v1098, %v898
        %v1131 = vsel %vm1067, %v1099, %v905
        %v1132 = vsel %vm1068, %v1100, %v912
        %v1133 = vsel %vm1069, %v1101, %v919
        %v1134 = vsel %vm1070, %v1102, %v926
        %v1135 = vsel %vm1071, %v1103, %v933
        %v1136 = vsel %vm1072, %v1104, %v940
        %v1137 = vsel %vm1073, %v1105, %v947
        %v1138 = vsel %vm1074, %v1106, %v954
        %v1139 = vsel %vm1075, %v1107, %v961
        %v1140 = vsel %vm1076, %v1108, %v968
        %v1141 = vsel %vm1077, %v1109, %v975
        %v1142 = vsel %vm1078, %v1110, %v982
        %vm1143 = vcmp.eq.s32.totalorder %v1111, 0
        %vm1144 = vcmp.eq.s32.totalorder %v1112, 0
        %vm1145 = vcmp.eq.s32.totalorder %v1113, 0
        %vm1146 = vcmp.eq.s32.totalorder %v1114, 0
        %vm1147 = vcmp.eq.s32.totalorder %v1115, 0
        %vm1148 = vcmp.eq.s32.totalorder %v1116, 0
        %vm1149 = vcmp.eq.s32.totalorder %v1117, 0
        %vm1150 = vcmp.eq.s32.totalorder %v1118, 0
        %vm1151 = vcmp.eq.s32.totalorder %v1119, 0
        %vm1152 = vcmp.eq.s32.totalorder %v1120, 0
        %vm1153 = vcmp.eq.s32.totalorder %v1121, 0
        %vm1154 = vcmp.eq.s32.totalorder %v1122, 0
        %vm1155 = vcmp.eq.s32.totalorder %v1123, 0
        %vm1156 = vcmp.eq.s32.totalorder %v1124, 0
        %vm1157 = vcmp.eq.s32.totalorder %v1125, 0
        %vm1158 = vcmp.eq.s32.totalorder %v1126, 0
        %vm1159 = vcmp.eq.s32.totalorder %v1127, 0
        %vm1160 = vcmp.eq.s32.totalorder %v1128, 0
        %vm1161 = vcmp.eq.s32.totalorder %v1129, 0
        %vm1162 = vcmp.eq.s32.totalorder %v1130, 0
        %vm1163 = vcmp.eq.s32.totalorder %v1131, 0
        %vm1164 = vcmp.eq.s32.totalorder %v1132, 0
        %vm1165 = vcmp.eq.s32.totalorder %v1133, 0
        %vm1166 = vcmp.eq.s32.totalorder %v1134, 0
        %vm1167 = vcmp.eq.s32.totalorder %v1135, 0
        %vm1168 = vcmp.eq.s32.totalorder %v1136, 0
        %vm1169 = vcmp.eq.s32.totalorder %v1137, 0
        %vm1170 = vcmp.eq.s32.totalorder %v1138, 0
        %vm1171 = vcmp.eq.s32.totalorder %v1139, 0
        %vm1172 = vcmp.eq.s32.totalorder %v1140, 0
        %vm1173 = vcmp.eq.s32.totalorder %v1141, 0
        %vm1174 = vcmp.eq.s32.totalorder %v1142, 0
        %vm1175 = vmxor %vm1143, 1
        %vm1176 = vmxor %vm1144, 1
        %vm1177 = vmxor %vm1145, 1
        %vm1178 = vmxor %vm1146, 1
        %vm1179 = vmxor %vm1147, 1
        %vm1180 = vmxor %vm1148, 1
        %vm1181 = vmxor %vm1149, 1
        %vm1182 = vmxor %vm1150, 1
        %vm1183 = vmxor %vm1151, 1
        %vm1184 = vmxor %vm1152, 1
        %vm1185 = vmxor %vm1153, 1
        %vm1186 = vmxor %vm1154, 1
        %vm1187 = vmxor %vm1155, 1
        %vm1188 = vmxor %vm1156, 1
        %vm1189 = vmxor %vm1157, 1
        %vm1190 = vmxor %vm1158, 1
        %vm1191 = vmxor %vm1159, 1
        %vm1192 = vmxor %vm1160, 1
        %vm1193 = vmxor %vm1161, 1
        %vm1194 = vmxor %vm1162, 1
        %vm1195 = vmxor %vm1163, 1
        %vm1196 = vmxor %vm1164, 1
        %vm1197 = vmxor %vm1165, 1
        %vm1198 = vmxor %vm1166, 1
        %vm1199 = vmxor %vm1167, 1
        %vm1200 = vmxor %vm1168, 1
        %vm1201 = vmxor %vm1169, 1
        %vm1202 = vmxor %vm1170, 1
        %vm1203 = vmxor %vm1171, 1
        %vm1204 = vmxor %vm1172, 1
        %vm1205 = vmxor %vm1173, 1
        %vm1206 = vmxor %vm1174, 1
        %v1207 = vsel %vm1175, 1, 0
        %v1208 = vsel %vm1176, 1, 0
        %v1209 = vsel %vm1177, 1, 0
        %v1210 = vsel %vm1178, 1, 0
        %v1211 = vsel %vm1179, 1, 0
        %v1212 = vsel %vm1180, 1, 0
        %v1213 = vsel %vm1181, 1, 0
        %v1214 = vsel %vm1182, 1, 0
        %v1215 = vsel %vm1183, 1, 0
        %v1216 = vsel %vm1184, 1, 0
        %v1217 = vsel %vm1185, 1, 0
        %v1218 = vsel %vm1186, 1, 0
        %v1219 = vsel %vm1187, 1, 0
        %v1220 = vsel %vm1188, 1, 0
        %v1221 = vsel %vm1189, 1, 0
        %v1222 = vsel %vm1190, 1, 0
        %v1223 = vsel %vm1191, 1, 0
        %v1224 = vsel %vm1192, 1, 0
        %v1225 = vsel %vm1193, 1, 0
        %v1226 = vsel %vm1194, 1, 0
        %v1227 = vsel %vm1195, 1, 0
        %v1228 = vsel %vm1196, 1, 0
        %v1229 = vsel %vm1197, 1, 0
        %v1230 = vsel %vm1198, 1, 0
        %v1231 = vsel %vm1199, 1, 0
        %v1232 = vsel %vm1200, 1, 0
        %v1233 = vsel %vm1201, 1, 0
        %v1234 = vsel %vm1202, 1, 0
        %v1235 = vsel %vm1203, 1, 0
        %v1236 = vsel %vm1204, 1, 0
        %v1237 = vsel %vm1205, 1, 0
        %v1238 = vsel %vm1206, 1, 0
        %v1239 = vcvt.s32.f32 %v1207
        %v1240 = vcvt.s32.f32 %v1208
        %v1241 = vcvt.s32.f32 %v1209
        %v1242 = vcvt.s32.f32 %v1210
        %v1243 = vcvt.s32.f32 %v1211
        %v1244 = vcvt.s32.f32 %v1212
        %v1245 = vcvt.s32.f32 %v1213
        %v1246 = vcvt.s32.f32 %v1214
        %v1247 = vcvt.s32.f32 %v1215
        %v1248 = vcvt.s32.f32 %v1216
        %v1249 = vcvt.s32.f32 %v1217
        %v1250 = vcvt.s32.f32 %v1218
        %v1251 = vcvt.s32.f32 %v1219
        %v1252 = vcvt.s32.f32 %v1220
        %v1253 = vcvt.s32.f32 %v1221
        %v1254 = vcvt.s32.f32 %v1222
        %v1255 = vcvt.s32.f32 %v1223
        %v1256 = vcvt.s32.f32 %v1224
        %v1257 = vcvt.s32.f32 %v1225
        %v1258 = vcvt.s32.f32 %v1226
        %v1259 = vcvt.s32.f32 %v1227
        %v1260 = vcvt.s32.f32 %v1228
        %v1261 = vcvt.s32.f32 %v1229
        %v1262 = vcvt.s32.f32 %v1230
        %v1263 = vcvt.s32.f32 %v1231
        %v1264 = vcvt.s32.f32 %v1232
        %v1265 = vcvt.s32.f32 %v1233
        %v1266 = vcvt.s32.f32 %v1234
        %v1267 = vcvt.s32.f32 %v1235
        %v1268 = vcvt.s32.f32 %v1236
        %v1269 = vcvt.s32.f32 %v1237
        %v1270 = vcvt.s32.f32 %v1238
        %v1271 = vmul.f32 %v727, %v1239
        %v1272 = vmul.f32 %v726, %v1240
        %v1273 = vmul.f32 %v725, %v1241
        %v1274 = vmul.f32 %v724, %v1242
        %v1275 = vmul.f32 %v723, %v1243
        %v1276 = vmul.f32 %v722, %v1244
        %v1277 = vmul.f32 %v721, %v1245
        %v1278 = vmul.f32 %v720, %v1246
        %v1279 = vmul.f32 %v719, %v1247
        %v1280 = vmul.f32 %v718, %v1248
        %v1281 = vmul.f32 %v717, %v1249
        %v1282 = vmul.f32 %v716, %v1250
        %v1283 = vmul.f32 %v715, %v1251
        %v1284 = vmul.f32 %v714, %v1252
        %v1285 = vmul.f32 %v713, %v1253
        %v1286 = vmul.f32 %v712, %v1254
        %v1287 = vmul.f32 %v711, %v1255
        %v1288 = vmul.f32 %v710, %v1256
        %v1289 = vmul.f32 %v709, %v1257
        %v1290 = vmul.f32 %v708, %v1258
        %v1291 = vmul.f32 %v707, %v1259
        %v1292 = vmul.f32 %v706, %v1260
        %v1293 = vmul.f32 %v705, %v1261
        %v1294 = vmul.f32 %v704, %v1262
        %v1295 = vmul.f32 %v703, %v1263
        %v1296 = vmul.f32 %v702, %v1264
        %v1297 = vmul.f32 %v701, %v1265
        %v1298 = vmul.f32 %v700, %v1266
        %v1299 = vmul.f32 %v699, %v1267
        %v1300 = vmul.f32 %v698, %v1268
        %v1301 = vmul.f32 %v697, %v1269
        %v1302 = vmul.f32 %v696, %v1270
        %v1303 = vadd.f32 %v593, %v1271
        %v1304 = vadd.f32 %v594, %v1272
        %v1305 = vadd.f32 %v595, %v1273
        %v1306 = vadd.f32 %v596, %v1274
        %v1307 = vadd.f32 %v597, %v1275
        %v1308 = vadd.f32 %v598, %v1276
        %v1309 = vadd.f32 %v599, %v1277
        %v1310 = vadd.f32 %v600, %v1278
        %v1311 = vadd.f32 %v601, %v1279
        %v1312 = vadd.f32 %v602, %v1280
        %v1313 = vadd.f32 %v603, %v1281
        %v1314 = vadd.f32 %v604, %v1282
        %v1315 = vadd.f32 %v605, %v1283
        %v1316 = vadd.f32 %v606, %v1284
        %v1317 = vadd.f32 %v607, %v1285
        %v1318 = vadd.f32 %v608, %v1286
        %v1319 = vadd.f32 %v609, %v1287
        %v1320 = vadd.f32 %v610, %v1288
        %v1321 = vadd.f32 %v611, %v1289
        %v1322 = vadd.f32 %v612, %v1290
        %v1323 = vadd.f32 %v613, %v1291
        %v1324 = vadd.f32 %v614, %v1292
        %v1325 = vadd.f32 %v615, %v1293
        %v1326 = vadd.f32 %v616, %v1294
        %v1327 = vadd.f32 %v617, %v1295
        %v1328 = vadd.f32 %v618, %v1296
        %v1329 = vadd.f32 %v619, %v1297
        %v1330 = vadd.f32 %v620, %v1298
        %v1331 = vadd.f32 %v621, %v1299
        %v1332 = vadd.f32 %v622, %v1300
        %v1333 = vadd.f32 %v623, %v1301
        %v1334 = vadd.f32 %v624, %v1302
        %v1335 = vlaneseq
        %v1336 = vshrl.u32 %v1335, 7
        %v1337 = vsub.s32 2, %v1336
        %v1338 = vrot.slane %v394, %v1337
        %v1339 = vmul.f32 %v432, %v1338
        %v1340 = vmul.f32 %v437, %v1338
        %v1341 = vmul.f32 %v442, %v1338
        %v1342 = vmul.f32 %v447, %v1338
        %v1343 = vmul.f32 %v452, %v1338
        %v1344 = vmul.f32 %v457, %v1338
        %v1345 = vmul.f32 %v462, %v1338
        %v1346 = vmul.f32 %v467, %v1338
        %v1347 = vmul.f32 %v472, %v1338
        %v1348 = vmul.f32 %v477, %v1338
        %v1349 = vmul.f32 %v482, %v1338
        %v1350 = vmul.f32 %v487, %v1338
        %v1351 = vmul.f32 %v492, %v1338
        %v1352 = vmul.f32 %v497, %v1338
        %v1353 = vmul.f32 %v502, %v1338
        %v1354 = vmul.f32 %v507, %v1338
        %v1355 = vmul.f32 %v512, %v1338
        %v1356 = vmul.f32 %v517, %v1338
        %v1357 = vmul.f32 %v522, %v1338
        %v1358 = vmul.f32 %v527, %v1338
        %v1359 = vmul.f32 %v532, %v1338
        %v1360 = vmul.f32 %v537, %v1338
        %v1361 = vmul.f32 %v542, %v1338
        %v1362 = vmul.f32 %v547, %v1338
        %v1363 = vmul.f32 %v552, %v1338
        %v1364 = vmul.f32 %v557, %v1338
        %v1365 = vmul.f32 %v562, %v1338
        %v1366 = vmul.f32 %v567, %v1338
        %v1367 = vmul.f32 %v572, %v1338
        %v1368 = vmul.f32 %v577, %v1338
        %v1369 = vmul.f32 %v582, %v1338
        %v1370 = vmul.f32 %v587, %v1338
        %v1371 = vrot.slane %v1339, 1
        %v1372 = vrot.slane %v1340, 1
        %v1373 = vrot.slane %v1341, 1
        %v1374 = vrot.slane %v1342, 1
        %v1375 = vrot.slane %v1343, 1
        %v1376 = vrot.slane %v1344, 1
        %v1377 = vrot.slane %v1345, 1
        %v1378 = vrot.slane %v1346, 1
        %v1379 = vrot.slane %v1347, 1
        %v1380 = vrot.slane %v1348, 1
        %v1381 = vrot.slane %v1349, 1
        %v1382 = vrot.slane %v1350, 1
        %v1383 = vrot.slane %v1351, 1
        %v1384 = vrot.slane %v1352, 1
        %v1385 = vrot.slane %v1353, 1
        %v1386 = vrot.slane %v1354, 1
        %v1387 = vrot.slane %v1355, 1
        %v1388 = vrot.slane %v1356, 1
        %v1389 = vrot.slane %v1357, 1
        %v1390 = vrot.slane %v1358, 1
        %v1391 = vrot.slane %v1359, 1
        %v1392 = vrot.slane %v1360, 1
        %v1393 = vrot.slane %v1361, 1
        %v1394 = vrot.slane %v1362, 1
        %v1395 = vrot.slane %v1363, 1
        %v1396 = vrot.slane %v1364, 1
        %v1397 = vrot.slane %v1365, 1
        %v1398 = vrot.slane %v1366, 1
        %v1399 = vrot.slane %v1367, 1
        %v1400 = vrot.slane %v1368, 1
        %v1401 = vrot.slane %v1369, 1
        %v1402 = vrot.slane %v1370, 1
        %vm1403 = vcmp.lt.s32.totalorder %v694, 7
        %v1404 = vsel %vm1403, %v1401, %v1402
        %v1405 = vsel %vm1403, %v1400, %v1401
        %v1406 = vsel %vm1403, %v1399, %v1400
        %v1407 = vsel %vm1403, %v1398, %v1399
        %v1408 = vsel %vm1403, %v1397, %v1398
        %v1409 = vsel %vm1403, %v1396, %v1397
        %v1410 = vsel %vm1403, %v1395, %v1396
        %v1411 = vsel %vm1403, %v1394, %v1395
        %v1412 = vsel %vm1403, %v1393, %v1394
        %v1413 = vsel %vm1403, %v1392, %v1393
        %v1414 = vsel %vm1403, %v1391, %v1392
        %v1415 = vsel %vm1403, %v1390, %v1391
        %v1416 = vsel %vm1403, %v1389, %v1390
        %v1417 = vsel %vm1403, %v1388, %v1389
        %v1418 = vsel %vm1403, %v1387, %v1388
        %v1419 = vsel %vm1403, %v1386, %v1387
        %v1420 = vsel %vm1403, %v1385, %v1386
        %v1421 = vsel %vm1403, %v1384, %v1385
        %v1422 = vsel %vm1403, %v1383, %v1384
        %v1423 = vsel %vm1403, %v1382, %v1383
        %v1424 = vsel %vm1403, %v1381, %v1382
        %v1425 = vsel %vm1403, %v1380, %v1381
        %v1426 = vsel %vm1403, %v1379, %v1380
        %v1427 = vsel %vm1403, %v1378, %v1379
        %v1428 = vsel %vm1403, %v1377, %v1378
        %v1429 = vsel %vm1403, %v1376, %v1377
        %v1430 = vsel %vm1403, %v1375, %v1376
        %v1431 = vsel %vm1403, %v1374, %v1375
        %v1432 = vsel %vm1403, %v1373, %v1374
        %v1433 = vsel %vm1403, %v1372, %v1373
        %v1434 = vsel %vm1403, %v1371, %v1372
        %v1435 = vsel %vm1403, %v1402, %v1371
        %vm1436 = vcmp.eq.s32.totalorder %v1111, 31
        %vm1437 = vcmp.eq.s32.totalorder %v1112, 31
        %vm1438 = vcmp.eq.s32.totalorder %v1113, 31
        %vm1439 = vcmp.eq.s32.totalorder %v1114, 31
        %vm1440 = vcmp.eq.s32.totalorder %v1115, 31
        %vm1441 = vcmp.eq.s32.totalorder %v1116, 31
        %vm1442 = vcmp.eq.s32.totalorder %v1117, 31
        %vm1443 = vcmp.eq.s32.totalorder %v1118, 31
        %vm1444 = vcmp.eq.s32.totalorder %v1119, 31
        %vm1445 = vcmp.eq.s32.totalorder %v1120, 31
        %vm1446 = vcmp.eq.s32.totalorder %v1121, 31
        %vm1447 = vcmp.eq.s32.totalorder %v1122, 31
        %vm1448 = vcmp.eq.s32.totalorder %v1123, 31
        %vm1449 = vcmp.eq.s32.totalorder %v1124, 31
        %vm1450 = vcmp.eq.s32.totalorder %v1125, 31
        %vm1451 = vcmp.eq.s32.totalorder %v1126, 31
        %vm1452 = vcmp.eq.s32.totalorder %v1127, 31
        %vm1453 = vcmp.eq.s32.totalorder %v1128, 31
        %vm1454 = vcmp.eq.s32.totalorder %v1129, 31
        %vm1455 = vcmp.eq.s32.totalorder %v1130, 31
        %vm1456 = vcmp.eq.s32.totalorder %v1131, 31
        %vm1457 = vcmp.eq.s32.totalorder %v1132, 31
        %vm1458 = vcmp.eq.s32.totalorder %v1133, 31
        %vm1459 = vcmp.eq.s32.totalorder %v1134, 31
        %vm1460 = vcmp.eq.s32.totalorder %v1135, 31
        %vm1461 = vcmp.eq.s32.totalorder %v1136, 31
        %vm1462 = vcmp.eq.s32.totalorder %v1137, 31
        %vm1463 = vcmp.eq.s32.totalorder %v1138, 31
        %vm1464 = vcmp.eq.s32.totalorder %v1139, 31
        %vm1465 = vcmp.eq.s32.totalorder %v1140, 31
        %vm1466 = vcmp.eq.s32.totalorder %v1141, 31
        %vm1467 = vcmp.eq.s32.totalorder %v1142, 31
        %vm1468 = vmxor %vm1436, 1
        %vm1469 = vmxor %vm1437, 1
        %vm1470 = vmxor %vm1438, 1
        %vm1471 = vmxor %vm1439, 1
        %vm1472 = vmxor %vm1440, 1
        %vm1473 = vmxor %vm1441, 1
        %vm1474 = vmxor %vm1442, 1
        %vm1475 = vmxor %vm1443, 1
        %vm1476 = vmxor %vm1444, 1
        %vm1477 = vmxor %vm1445, 1
        %vm1478 = vmxor %vm1446, 1
        %vm1479 = vmxor %vm1447, 1
        %vm1480 = vmxor %vm1448, 1
        %vm1481 = vmxor %vm1449, 1
        %vm1482 = vmxor %vm1450, 1
        %vm1483 = vmxor %vm1451, 1
        %vm1484 = vmxor %vm1452, 1
        %vm1485 = vmxor %vm1453, 1
        %vm1486 = vmxor %vm1454, 1
        %vm1487 = vmxor %vm1455, 1
        %vm1488 = vmxor %vm1456, 1
        %vm1489 = vmxor %vm1457, 1
        %vm1490 = vmxor %vm1458, 1
        %vm1491 = vmxor %vm1459, 1
        %vm1492 = vmxor %vm1460, 1
        %vm1493 = vmxor %vm1461, 1
        %vm1494 = vmxor %vm1462, 1
        %vm1495 = vmxor %vm1463, 1
        %vm1496 = vmxor %vm1464, 1
        %vm1497 = vmxor %vm1465, 1
        %vm1498 = vmxor %vm1466, 1
        %vm1499 = vmxor %vm1467, 1
        %v1500 = vsel %vm1468, 1, 0
        %v1501 = vsel %vm1469, 1, 0
        %v1502 = vsel %vm1470, 1, 0
        %v1503 = vsel %vm1471, 1, 0
        %v1504 = vsel %vm1472, 1, 0
        %v1505 = vsel %vm1473, 1, 0
        %v1506 = vsel %vm1474, 1, 0
        %v1507 = vsel %vm1475, 1, 0
        %v1508 = vsel %vm1476, 1, 0
        %v1509 = vsel %vm1477, 1, 0
        %v1510 = vsel %vm1478, 1, 0
        %v1511 = vsel %vm1479, 1, 0
        %v1512 = vsel %vm1480, 1, 0
        %v1513 = vsel %vm1481, 1, 0
        %v1514 = vsel %vm1482, 1, 0
        %v1515 = vsel %vm1483, 1, 0
        %v1516 = vsel %vm1484, 1, 0
        %v1517 = vsel %vm1485, 1, 0
        %v1518 = vsel %vm1486, 1, 0
        %v1519 = vsel %vm1487, 1, 0
        %v1520 = vsel %vm1488, 1, 0
        %v1521 = vsel %vm1489, 1, 0
        %v1522 = vsel %vm1490, 1, 0
        %v1523 = vsel %vm1491, 1, 0
        %v1524 = vsel %vm1492, 1, 0
        %v1525 = vsel %vm1493, 1, 0
        %v1526 = vsel %vm1494, 1, 0
        %v1527 = vsel %vm1495, 1, 0
        %v1528 = vsel %vm1496, 1, 0
        %v1529 = vsel %vm1497, 1, 0
        %v1530 = vsel %vm1498, 1, 0
        %v1531 = vsel %vm1499, 1, 0
        %v1532 = vcvt.s32.f32 %v1500
        %v1533 = vcvt.s32.f32 %v1501
        %v1534 = vcvt.s32.f32 %v1502
        %v1535 = vcvt.s32.f32 %v1503
        %v1536 = vcvt.s32.f32 %v1504
        %v1537 = vcvt.s32.f32 %v1505
        %v1538 = vcvt.s32.f32 %v1506
        %v1539 = vcvt.s32.f32 %v1507
        %v1540 = vcvt.s32.f32 %v1508
        %v1541 = vcvt.s32.f32 %v1509
        %v1542 = vcvt.s32.f32 %v1510
        %v1543 = vcvt.s32.f32 %v1511
        %v1544 = vcvt.s32.f32 %v1512
        %v1545 = vcvt.s32.f32 %v1513
        %v1546 = vcvt.s32.f32 %v1514
        %v1547 = vcvt.s32.f32 %v1515
        %v1548 = vcvt.s32.f32 %v1516
        %v1549 = vcvt.s32.f32 %v1517
        %v1550 = vcvt.s32.f32 %v1518
        %v1551 = vcvt.s32.f32 %v1519
        %v1552 = vcvt.s32.f32 %v1520
        %v1553 = vcvt.s32.f32 %v1521
        %v1554 = vcvt.s32.f32 %v1522
        %v1555 = vcvt.s32.f32 %v1523
        %v1556 = vcvt.s32.f32 %v1524
        %v1557 = vcvt.s32.f32 %v1525
        %v1558 = vcvt.s32.f32 %v1526
        %v1559 = vcvt.s32.f32 %v1527
        %v1560 = vcvt.s32.f32 %v1528
        %v1561 = vcvt.s32.f32 %v1529
        %v1562 = vcvt.s32.f32 %v1530
        %v1563 = vcvt.s32.f32 %v1531
        %v1564 = vmul.f32 %v1434, %v1532
        %v1565 = vmul.f32 %v1433, %v1533
        %v1566 = vmul.f32 %v1432, %v1534
        %v1567 = vmul.f32 %v1431, %v1535
        %v1568 = vmul.f32 %v1430, %v1536
        %v1569 = vmul.f32 %v1429, %v1537
        %v1570 = vmul.f32 %v1428, %v1538
        %v1571 = vmul.f32 %v1427, %v1539
        %v1572 = vmul.f32 %v1426, %v1540
        %v1573 = vmul.f32 %v1425, %v1541
        %v1574 = vmul.f32 %v1424, %v1542
        %v1575 = vmul.f32 %v1423, %v1543
        %v1576 = vmul.f32 %v1422, %v1544
        %v1577 = vmul.f32 %v1421, %v1545
        %v1578 = vmul.f32 %v1420, %v1546
        %v1579 = vmul.f32 %v1419, %v1547
        %v1580 = vmul.f32 %v1418, %v1548
        %v1581 = vmul.f32 %v1417, %v1549
        %v1582 = vmul.f32 %v1416, %v1550
        %v1583 = vmul.f32 %v1415, %v1551
        %v1584 = vmul.f32 %v1414, %v1552
        %v1585 = vmul.f32 %v1413, %v1553
        %v1586 = vmul.f32 %v1412, %v1554
        %v1587 = vmul.f32 %v1411, %v1555
        %v1588 = vmul.f32 %v1410, %v1556
        %v1589 = vmul.f32 %v1409, %v1557
        %v1590 = vmul.f32 %v1408, %v1558
        %v1591 = vmul.f32 %v1407, %v1559
        %v1592 = vmul.f32 %v1406, %v1560
        %v1593 = vmul.f32 %v1405, %v1561
        %v1594 = vmul.f32 %v1404, %v1562
        %v1595 = vmul.f32 %v1435, %v1563
        %v1596 = vadd.f32 %v1303, %v1564
        %v1597 = vadd.f32 %v1304, %v1565
        %v1598 = vadd.f32 %v1305, %v1566
        %v1599 = vadd.f32 %v1306, %v1567
        %v1600 = vadd.f32 %v1307, %v1568
        %v1601 = vadd.f32 %v1308, %v1569
        %v1602 = vadd.f32 %v1309, %v1570
        %v1603 = vadd.f32 %v1310, %v1571
        %v1604 = vadd.f32 %v1311, %v1572
        %v1605 = vadd.f32 %v1312, %v1573
        %v1606 = vadd.f32 %v1313, %v1574
        %v1607 = vadd.f32 %v1314, %v1575
        %v1608 = vadd.f32 %v1315, %v1576
        %v1609 = vadd.f32 %v1316, %v1577
        %v1610 = vadd.f32 %v1317, %v1578
        %v1611 = vadd.f32 %v1318, %v1579
        %v1612 = vadd.f32 %v1319, %v1580
        %v1613 = vadd.f32 %v1320, %v1581
        %v1614 = vadd.f32 %v1321, %v1582
        %v1615 = vadd.f32 %v1322, %v1583
        %v1616 = vadd.f32 %v1323, %v1584
        %v1617 = vadd.f32 %v1324, %v1585
        %v1618 = vadd.f32 %v1325, %v1586
        %v1619 = vadd.f32 %v1326, %v1587
        %v1620 = vadd.f32 %v1327, %v1588
        %v1621 = vadd.f32 %v1328, %v1589
        %v1622 = vadd.f32 %v1329, %v1590
        %v1623 = vadd.f32 %v1330, %v1591
        %v1624 = vadd.f32 %v1331, %v1592
        %v1625 = vadd.f32 %v1332, %v1593
        %v1626 = vadd.f32 %v1333, %v1594
        %v1627 = vadd.f32 %v1334, %v1595
        %v1628 = vlaneseq
        %v1629 = vshrl.u32 %v1628, 7
        %v1630 = vsub.s32 3, %v1629
        %v1631 = vrot.slane %v394, %v1630
        %v1632 = vmul.f32 %v1596, %v1631
        %v1633 = vmul.f32 %v1597, %v1631
        %v1634 = vmul.f32 %v1598, %v1631
        %v1635 = vmul.f32 %v1599, %v1631
        %v1636 = vmul.f32 %v1600, %v1631
        %v1637 = vmul.f32 %v1601, %v1631
        %v1638 = vmul.f32 %v1602, %v1631
        %v1639 = vmul.f32 %v1603, %v1631
        %v1640 = vmul.f32 %v1604, %v1631
        %v1641 = vmul.f32 %v1605, %v1631
        %v1642 = vmul.f32 %v1606, %v1631
        %v1643 = vmul.f32 %v1607, %v1631
        %v1644 = vmul.f32 %v1608, %v1631
        %v1645 = vmul.f32 %v1609, %v1631
        %v1646 = vmul.f32 %v1610, %v1631
        %v1647 = vmul.f32 %v1611, %v1631
        %v1648 = vmul.f32 %v1612, %v1631
        %v1649 = vmul.f32 %v1613, %v1631
        %v1650 = vmul.f32 %v1614, %v1631
        %v1651 = vmul.f32 %v1615, %v1631
        %v1652 = vmul.f32 %v1616, %v1631
        %v1653 = vmul.f32 %v1617, %v1631
        %v1654 = vmul.f32 %v1618, %v1631
        %v1655 = vmul.f32 %v1619, %v1631
        %v1656 = vmul.f32 %v1620, %v1631
        %v1657 = vmul.f32 %v1621, %v1631
        %v1658 = vmul.f32 %v1622, %v1631
        %v1659 = vmul.f32 %v1623, %v1631
        %v1660 = vmul.f32 %v1624, %v1631
        %v1661 = vmul.f32 %v1625, %v1631
        %v1662 = vmul.f32 %v1626, %v1631
        %v1663 = vmul.f32 %v1627, %v1631
        %v1664 = vlaneseq
        %v1665 = vshrl.u32 %v1664, 7
        %v1666 = vsub.s32 4, %v1665
        %v1667 = vrot.slane %v394, %v1666
        %v1668 = vadd.f32 %v1632, %v1667
        %v1669 = vadd.f32 %v1633, %v1667
        %v1670 = vadd.f32 %v1634, %v1667
        %v1671 = vadd.f32 %v1635, %v1667
        %v1672 = vadd.f32 %v1636, %v1667
        %v1673 = vadd.f32 %v1637, %v1667
        %v1674 = vadd.f32 %v1638, %v1667
        %v1675 = vadd.f32 %v1639, %v1667
        %v1676 = vadd.f32 %v1640, %v1667
        %v1677 = vadd.f32 %v1641, %v1667
        %v1678 = vadd.f32 %v1642, %v1667
        %v1679 = vadd.f32 %v1643, %v1667
        %v1680 = vadd.f32 %v1644, %v1667
        %v1681 = vadd.f32 %v1645, %v1667
        %v1682 = vadd.f32 %v1646, %v1667
        %v1683 = vadd.f32 %v1647, %v1667
        %v1684 = vadd.f32 %v1648, %v1667
        %v1685 = vadd.f32 %v1649, %v1667
        %v1686 = vadd.f32 %v1650, %v1667
        %v1687 = vadd.f32 %v1651, %v1667
        %v1688 = vadd.f32 %v1652, %v1667
        %v1689 = vadd.f32 %v1653, %v1667
        %v1690 = vadd.f32 %v1654, %v1667
        %v1691 = vadd.f32 %v1655, %v1667
        %v1692 = vadd.f32 %v1656, %v1667
        %v1693 = vadd.f32 %v1657, %v1667
        %v1694 = vadd.f32 %v1658, %v1667
        %v1695 = vadd.f32 %v1659, %v1667
        %v1696 = vadd.f32 %v1660, %v1667
        %v1697 = vadd.f32 %v1661, %v1667
        %v1698 = vadd.f32 %v1662, %v1667
        %v1699 = vadd.f32 %v1663, %v1667
        %v1700 = vmax.f32 %v1668, 0.0
        %v1701 = vmax.f32 %v1669, 0.0
        %v1702 = vmax.f32 %v1670, 0.0
        %v1703 = vmax.f32 %v1671, 0.0
        %v1704 = vmax.f32 %v1672, 0.0
        %v1705 = vmax.f32 %v1673, 0.0
        %v1706 = vmax.f32 %v1674, 0.0
        %v1707 = vmax.f32 %v1675, 0.0
        %v1708 = vmax.f32 %v1676, 0.0
        %v1709 = vmax.f32 %v1677, 0.0
        %v1710 = vmax.f32 %v1678, 0.0
        %v1711 = vmax.f32 %v1679, 0.0
        %v1712 = vmax.f32 %v1680, 0.0
        %v1713 = vmax.f32 %v1681, 0.0
        %v1714 = vmax.f32 %v1682, 0.0
        %v1715 = vmax.f32 %v1683, 0.0
        %v1716 = vmax.f32 %v1684, 0.0
        %v1717 = vmax.f32 %v1685, 0.0
        %v1718 = vmax.f32 %v1686, 0.0
        %v1719 = vmax.f32 %v1687, 0.0
        %v1720 = vmax.f32 %v1688, 0.0
        %v1721 = vmax.f32 %v1689, 0.0
        %v1722 = vmax.f32 %v1690, 0.0
        %v1723 = vmax.f32 %v1691, 0.0
        %v1724 = vmax.f32 %v1692, 0.0
        %v1725 = vmax.f32 %v1693, 0.0
        %v1726 = vmax.f32 %v1694, 0.0
        %v1727 = vmax.f32 %v1695, 0.0
        %v1728 = vmax.f32 %v1696, 0.0
        %v1729 = vmax.f32 %v1697, 0.0
        %v1730 = vmax.f32 %v1698, 0.0
        %v1731 = vmax.f32 %v1699, 0.0
        %v1732 = vrot.slane %v1700, 7
        %v1733 = vrot.slane %v1701, 7
        %v1734 = vrot.slane %v1702, 7
        %v1735 = vrot.slane %v1703, 7
        %v1736 = vrot.slane %v1704, 7
        %v1737 = vrot.slane %v1705, 7
        %v1738 = vrot.slane %v1706, 7
        %v1739 = vrot.slane %v1707, 7
        %v1740 = vrot.slane %v1708, 7
        %v1741 = vrot.slane %v1709, 7
        %v1742 = vrot.slane %v1710, 7
        %v1743 = vrot.slane %v1711, 7
        %v1744 = vrot.slane %v1712, 7
        %v1745 = vrot.slane %v1713, 7
        %v1746 = vrot.slane %v1714, 7
        %v1747 = vrot.slane %v1715, 7
        %v1748 = vrot.slane %v1716, 7
        %v1749 = vrot.slane %v1717, 7
        %v1750 = vrot.slane %v1718, 7
        %v1751 = vrot.slane %v1719, 7
        %v1752 = vrot.slane %v1720, 7
        %v1753 = vrot.slane %v1721, 7
        %v1754 = vrot.slane %v1722, 7
        %v1755 = vrot.slane %v1723, 7
        %v1756 = vrot.slane %v1724, 7
        %v1757 = vrot.slane %v1725, 7
        %v1758 = vrot.slane %v1726, 7
        %v1759 = vrot.slane %v1727, 7
        %v1760 = vrot.slane %v1728, 7
        %v1761 = vrot.slane %v1729, 7
        %v1762 = vrot.slane %v1730, 7
        %v1763 = vrot.slane %v1731, 7
        %v1764 = vsel %vm695, %v1762, %v1763
        %v1765 = vsel %vm695, %v1761, %v1762
        %v1766 = vsel %vm695, %v1760, %v1761
        %v1767 = vsel %vm695, %v1759, %v1760
        %v1768 = vsel %vm695, %v1758, %v1759
        %v1769 = vsel %vm695, %v1757, %v1758
        %v1770 = vsel %vm695, %v1756, %v1757
        %v1771 = vsel %vm695, %v1755, %v1756
        %v1772 = vsel %vm695, %v1754, %v1755
        %v1773 = vsel %vm695, %v1753, %v1754
        %v1774 = vsel %vm695, %v1752, %v1753
        %v1775 = vsel %vm695, %v1751, %v1752
        %v1776 = vsel %vm695, %v1750, %v1751
        %v1777 = vsel %vm695, %v1749, %v1750
        %v1778 = vsel %vm695, %v1748, %v1749
        %v1779 = vsel %vm695, %v1747, %v1748
        %v1780 = vsel %vm695, %v1746, %v1747
        %v1781 = vsel %vm695, %v1745, %v1746
        %v1782 = vsel %vm695, %v1744, %v1745
        %v1783 = vsel %vm695, %v1743, %v1744
        %v1784 = vsel %vm695, %v1742, %v1743
        %v1785 = vsel %vm695, %v1741, %v1742
        %v1786 = vsel %vm695, %v1740, %v1741
        %v1787 = vsel %vm695, %v1739, %v1740
        %v1788 = vsel %vm695, %v1738, %v1739
        %v1789 = vsel %vm695, %v1737, %v1738
        %v1790 = vsel %vm695, %v1736, %v1737
        %v1791 = vsel %vm695, %v1735, %v1736
        %v1792 = vsel %vm695, %v1734, %v1735
        %v1793 = vsel %vm695, %v1733, %v1734
        %v1794 = vsel %vm695, %v1732, %v1733
        %v1795 = vsel %vm695, %v1763, %v1732
        %v1796 = vmul.f32 %v1795, %v1239
        %v1797 = vmul.f32 %v1794, %v1240
        %v1798 = vmul.f32 %v1793, %v1241
        %v1799 = vmul.f32 %v1792, %v1242
        %v1800 = vmul.f32 %v1791, %v1243
        %v1801 = vmul.f32 %v1790, %v1244
        %v1802 = vmul.f32 %v1789, %v1245
        %v1803 = vmul.f32 %v1788, %v1246
        %v1804 = vmul.f32 %v1787, %v1247
        %v1805 = vmul.f32 %v1786, %v1248
        %v1806 = vmul.f32 %v1785, %v1249
        %v1807 = vmul.f32 %v1784, %v1250
        %v1808 = vmul.f32 %v1783, %v1251
        %v1809 = vmul.f32 %v1782, %v1252
        %v1810 = vmul.f32 %v1781, %v1253
        %v1811 = vmul.f32 %v1780, %v1254
        %v1812 = vmul.f32 %v1779, %v1255
        %v1813 = vmul.f32 %v1778, %v1256
        %v1814 = vmul.f32 %v1777, %v1257
        %v1815 = vmul.f32 %v1776, %v1258
        %v1816 = vmul.f32 %v1775, %v1259
        %v1817 = vmul.f32 %v1774, %v1260
        %v1818 = vmul.f32 %v1773, %v1261
        %v1819 = vmul.f32 %v1772, %v1262
        %v1820 = vmul.f32 %v1771, %v1263
        %v1821 = vmul.f32 %v1770, %v1264
        %v1822 = vmul.f32 %v1769, %v1265
        %v1823 = vmul.f32 %v1768, %v1266
        %v1824 = vmul.f32 %v1767, %v1267
        %v1825 = vmul.f32 %v1766, %v1268
        %v1826 = vmul.f32 %v1765, %v1269
        %v1827 = vmul.f32 %v1764, %v1270
        %v1828 = vrot.slane %v1700, 1
        %v1829 = vrot.slane %v1701, 1
        %v1830 = vrot.slane %v1702, 1
        %v1831 = vrot.slane %v1703, 1
        %v1832 = vrot.slane %v1704, 1
        %v1833 = vrot.slane %v1705, 1
        %v1834 = vrot.slane %v1706, 1
        %v1835 = vrot.slane %v1707, 1
        %v1836 = vrot.slane %v1708, 1
        %v1837 = vrot.slane %v1709, 1
        %v1838 = vrot.slane %v1710, 1
        %v1839 = vrot.slane %v1711, 1
        %v1840 = vrot.slane %v1712, 1
        %v1841 = vrot.slane %v1713, 1
        %v1842 = vrot.slane %v1714, 1
        %v1843 = vrot.slane %v1715, 1
        %v1844 = vrot.slane %v1716, 1
        %v1845 = vrot.slane %v1717, 1
        %v1846 = vrot.slane %v1718, 1
        %v1847 = vrot.slane %v1719, 1
        %v1848 = vrot.slane %v1720, 1
        %v1849 = vrot.slane %v1721, 1
        %v1850 = vrot.slane %v1722, 1
        %v1851 = vrot.slane %v1723, 1
        %v1852 = vrot.slane %v1724, 1
        %v1853 = vrot.slane %v1725, 1
        %v1854 = vrot.slane %v1726, 1
        %v1855 = vrot.slane %v1727, 1
        %v1856 = vrot.slane %v1728, 1
        %v1857 = vrot.slane %v1729, 1
        %v1858 = vrot.slane %v1730, 1
        %v1859 = vrot.slane %v1731, 1
        %v1860 = vsel %vm1403, %v1858, %v1859
        %v1861 = vsel %vm1403, %v1857, %v1858
        %v1862 = vsel %vm1403, %v1856, %v1857
        %v1863 = vsel %vm1403, %v1855, %v1856
        %v1864 = vsel %vm1403, %v1854, %v1855
        %v1865 = vsel %vm1403, %v1853, %v1854
        %v1866 = vsel %vm1403, %v1852, %v1853
        %v1867 = vsel %vm1403, %v1851, %v1852
        %v1868 = vsel %vm1403, %v1850, %v1851
        %v1869 = vsel %vm1403, %v1849, %v1850
        %v1870 = vsel %vm1403, %v1848, %v1849
        %v1871 = vsel %vm1403, %v1847, %v1848
        %v1872 = vsel %vm1403, %v1846, %v1847
        %v1873 = vsel %vm1403, %v1845, %v1846
        %v1874 = vsel %vm1403, %v1844, %v1845
        %v1875 = vsel %vm1403, %v1843, %v1844
        %v1876 = vsel %vm1403, %v1842, %v1843
        %v1877 = vsel %vm1403, %v1841, %v1842
        %v1878 = vsel %vm1403, %v1840, %v1841
        %v1879 = vsel %vm1403, %v1839, %v1840
        %v1880 = vsel %vm1403, %v1838, %v1839
        %v1881 = vsel %vm1403, %v1837, %v1838
        %v1882 = vsel %vm1403, %v1836, %v1837
        %v1883 = vsel %vm1403, %v1835, %v1836
        %v1884 = vsel %vm1403, %v1834, %v1835
        %v1885 = vsel %vm1403, %v1833, %v1834
        %v1886 = vsel %vm1403, %v1832, %v1833
        %v1887 = vsel %vm1403, %v1831, %v1832
        %v1888 = vsel %vm1403, %v1830, %v1831
        %v1889 = vsel %vm1403, %v1829, %v1830
        %v1890 = vsel %vm1403, %v1828, %v1829
        %v1891 = vsel %vm1403, %v1859, %v1828
        %v1892 = vmul.f32 %v1890, %v1532
        %v1893 = vmul.f32 %v1889, %v1533
        %v1894 = vmul.f32 %v1888, %v1534
        %v1895 = vmul.f32 %v1887, %v1535
        %v1896 = vmul.f32 %v1886, %v1536
        %v1897 = vmul.f32 %v1885, %v1537
        %v1898 = vmul.f32 %v1884, %v1538
        %v1899 = vmul.f32 %v1883, %v1539
        %v1900 = vmul.f32 %v1882, %v1540
        %v1901 = vmul.f32 %v1881, %v1541
        %v1902 = vmul.f32 %v1880, %v1542
        %v1903 = vmul.f32 %v1879, %v1543
        %v1904 = vmul.f32 %v1878, %v1544
        %v1905 = vmul.f32 %v1877, %v1545
        %v1906 = vmul.f32 %v1876, %v1546
        %v1907 = vmul.f32 %v1875, %v1547
        %v1908 = vmul.f32 %v1874, %v1548
        %v1909 = vmul.f32 %v1873, %v1549
        %v1910 = vmul.f32 %v1872, %v1550
        %v1911 = vmul.f32 %v1871, %v1551
        %v1912 = vmul.f32 %v1870, %v1552
        %v1913 = vmul.f32 %v1869, %v1553
        %v1914 = vmul.f32 %v1868, %v1554
        %v1915 = vmul.f32 %v1867, %v1555
        %v1916 = vmul.f32 %v1866, %v1556
        %v1917 = vmul.f32 %v1865, %v1557
        %v1918 = vmul.f32 %v1864, %v1558
        %v1919 = vmul.f32 %v1863, %v1559
        %v1920 = vmul.f32 %v1862, %v1560
        %v1921 = vmul.f32 %v1861, %v1561
        %v1922 = vmul.f32 %v1860, %v1562
        %v1923 = vmul.f32 %v1891, %v1563
        %v1924 = vpack.c.bf16 %v1797, %v1796
        %v1925 = vpack.c.bf16 %v1701, %v1700
        %v1926 = vpack.c.bf16 %v1893, %v1892
        %v1927 = vpack.c.bf16 %v1799, %v1798
        %v1928 = vpack.c.bf16 %v1703, %v1702
        %v1929 = vpack.c.bf16 %v1895, %v1894
        %v1930 = vpack.c.bf16 %v1801, %v1800
        %v1931 = vpack.c.bf16 %v1705, %v1704
        %v1932 = vpack.c.bf16 %v1897, %v1896
        %v1933 = vpack.c.bf16 %v1803, %v1802
        %v1934 = vpack.c.bf16 %v1707, %v1706
        %v1935 = vpack.c.bf16 %v1899, %v1898
        %v1936 = vpack.c.bf16 %v1805, %v1804
        %v1937 = vpack.c.bf16 %v1709, %v1708
        %v1938 = vpack.c.bf16 %v1901, %v1900
        %v1939 = vpack.c.bf16 %v1807, %v1806
        %v1940 = vpack.c.bf16 %v1711, %v1710
        %v1941 = vpack.c.bf16 %v1903, %v1902
        %v1942 = vpack.c.bf16 %v1809, %v1808
        %v1943 = vpack.c.bf16 %v1713, %v1712
        %v1944 = vpack.c.bf16 %v1905, %v1904
        %v1945 = vpack.c.bf16 %v1811, %v1810
        %v1946 = vpack.c.bf16 %v1715, %v1714
        %v1947 = vpack.c.bf16 %v1907, %v1906
        %v1948 = vpack.c.bf16 %v1813, %v1812
        %v1949 = vpack.c.bf16 %v1717, %v1716
        %v1950 = vpack.c.bf16 %v1909, %v1908
        %v1951 = vpack.c.bf16 %v1815, %v1814
        %v1952 = vpack.c.bf16 %v1719, %v1718
        %v1953 = vpack.c.bf16 %v1911, %v1910
        %v1954 = vpack.c.bf16 %v1817, %v1816
        %v1955 = vpack.c.bf16 %v1721, %v1720
        %v1956 = vpack.c.bf16 %v1913, %v1912
        %v1957 = vpack.c.bf16 %v1819, %v1818
        %v1958 = vpack.c.bf16 %v1723, %v1722
        %v1959 = vpack.c.bf16 %v1915, %v1914
        %v1960 = vpack.c.bf16 %v1821, %v1820
        %v1961 = vpack.c.bf16 %v1725, %v1724
        %v1962 = vpack.c.bf16 %v1917, %v1916
        %v1963 = vpack.c.bf16 %v1823, %v1822
        %v1964 = vpack.c.bf16 %v1727, %v1726
        %v1965 = vpack.c.bf16 %v1919, %v1918
        %v1966 = vpack.c.bf16 %v1825, %v1824
        %v1967 = vpack.c.bf16 %v1729, %v1728
        %v1968 = vpack.c.bf16 %v1921, %v1920
        %v1969 = vpack.c.bf16 %v1827, %v1826
        %v1970 = vpack.c.bf16 %v1731, %v1730
        %v1971 = vpack.c.bf16 %v1923, %v1922
        %v1972 = vld [vmem:[%s2] sm:$0xf]
        %v1973 = vld [vmem:[%s2 + $0x4] sm:$0xf]
        %v1974 = vld [vmem:[%s2 + $0x8] sm:$0xf]
        %v1975 = vld [vmem:[%s2 + $0xc] sm:$0xf]
        %v1976 = vld [vmem:[%s2 + $0x10] sm:$0xf]
        %v1977 = vld [vmem:[%s2 + $0x14] sm:$0xf]
        %v1978 = vld [vmem:[%s2 + $0x18] sm:$0xf]
        %v1979 = vld [vmem:[%s2 + $0x1c] sm:$0xf]
        %v1980 = vld [vmem:[%s2 + $0x20] sm:$0xf]
        %v1981 = vld [vmem:[%s2 + $0x24] sm:$0xf]
        %v1982 = vld [vmem:[%s2 + $0x28] sm:$0xf]
        %v1983 = vld [vmem:[%s2 + $0x2c] sm:$0xf]
        %v1984 = vld [vmem:[%s2 + $0x30] sm:$0xf]
        %v1985 = vld [vmem:[%s2 + $0x34] sm:$0xf]
        %v1986 = vld [vmem:[%s2 + $0x38] sm:$0xf]
        %v1987 = vld [vmem:[%s2 + $0x3c] sm:$0xf]
        %v1988 = vld [vmem:[%s2 + $0x40] sm:$0xf]
        %v1989 = vld [vmem:[%s2 + $0x44] sm:$0xf]
        %v1990 = vld [vmem:[%s2 + $0x48] sm:$0xf]
        %v1991 = vld [vmem:[%s2 + $0x4c] sm:$0xf]
        %v1992 = vld [vmem:[%s2 + $0x50] sm:$0xf]
        %v1993 = vld [vmem:[%s2 + $0x54] sm:$0xf]
        %v1994 = vld [vmem:[%s2 + $0x58] sm:$0xf]
        %v1995 = vld [vmem:[%s2 + $0x5c] sm:$0xf]
        %v1996 = vld [vmem:[%s2 + $0x60] sm:$0xf]
        %v1997 = vld [vmem:[%s2 + $0x64] sm:$0xf]
        %v1998 = vld [vmem:[%s2 + $0x68] sm:$0xf]
        %v1999 = vld [vmem:[%s2 + $0x6c] sm:$0xf]
        %v2000 = vld [vmem:[%s2 + $0x70] sm:$0xf]
        %v2001 = vld [vmem:[%s2 + $0x74] sm:$0xf]
        %v2002 = vld [vmem:[%s2 + $0x78] sm:$0xf]
        %v2003 = vld [vmem:[%s2 + $0x7c] sm:$0xf]
        %v2004 = vld [vmem:[%s2 + $0x80] sm:$0xf]
        %v2005 = vld [vmem:[%s2 + $0x84] sm:$0xf]
        %v2006 = vld [vmem:[%s2 + $0x88] sm:$0xf]
        %v2007 = vld [vmem:[%s2 + $0x8c] sm:$0xf]
        %v2008 = vld [vmem:[%s2 + $0x90] sm:$0xf]
        %v2009 = vld [vmem:[%s2 + $0x94] sm:$0xf]
        %v2010 = vld [vmem:[%s2 + $0x98] sm:$0xf]
        %v2011 = vld [vmem:[%s2 + $0x9c] sm:$0xf]
        %v2012 = vld [vmem:[%s2 + $0xa0] sm:$0xf]
        %v2013 = vld [vmem:[%s2 + $0xa4] sm:$0xf]
        %v2014 = vld [vmem:[%s2 + $0xa8] sm:$0xf]
        %v2015 = vld [vmem:[%s2 + $0xac] sm:$0xf]
        %v2016 = vld [vmem:[%s2 + $0xb0] sm:$0xf]
        %v2017 = vld [vmem:[%s2 + $0xb4] sm:$0xf]
        %v2018 = vld [vmem:[%s2 + $0xb8] sm:$0xf]
        %v2019 = vld [vmem:[%s2 + $0xbc] sm:$0xf]
        %v2068 = vunpack.c.l.b16 %v1972
        %v2069 = vunpack.c.l.b16 %v1973
        %v2070 = vunpack.c.l.b16 %v1974
        %v2071 = vunpack.c.l.b16 %v1975
        %v2072 = vunpack.c.l.b16 %v1976
        %v2073 = vunpack.c.l.b16 %v1977
        %v2074 = vunpack.c.l.b16 %v1978
        %v2075 = vunpack.c.l.b16 %v1979
        %v2076 = vunpack.c.l.b16 %v1980
        %v2077 = vunpack.c.l.b16 %v1981
        %v2078 = vunpack.c.l.b16 %v1982
        %v2079 = vunpack.c.l.b16 %v1983
        %v2080 = vunpack.c.l.b16 %v1984
        %v2081 = vunpack.c.l.b16 %v1985
        %v2082 = vunpack.c.l.b16 %v1986
        %v2083 = vunpack.c.l.b16 %v1987
        %v2084 = vunpack.c.l.b16 %v1988
        %v2085 = vunpack.c.l.b16 %v1989
        %v2086 = vunpack.c.l.b16 %v1990
        %v2087 = vunpack.c.l.b16 %v1991
        %v2088 = vunpack.c.l.b16 %v1992
        %v2089 = vunpack.c.l.b16 %v1993
        %v2090 = vunpack.c.l.b16 %v1994
        %v2091 = vunpack.c.l.b16 %v1995
        %v2092 = vunpack.c.l.b16 %v1996
        %v2093 = vunpack.c.l.b16 %v1997
        %v2094 = vunpack.c.l.b16 %v1998
        %v2095 = vunpack.c.l.b16 %v1999
        %v2096 = vunpack.c.l.b16 %v2000
        %v2097 = vunpack.c.l.b16 %v2001
        %v2098 = vunpack.c.l.b16 %v2002
        %v2099 = vunpack.c.l.b16 %v2003
        %v2100 = vunpack.c.l.b16 %v2004
        %v2101 = vunpack.c.l.b16 %v2005
        %v2102 = vunpack.c.l.b16 %v2006
        %v2103 = vunpack.c.l.b16 %v2007
        %v2104 = vunpack.c.l.b16 %v2008
        %v2105 = vunpack.c.l.b16 %v2009
        %v2106 = vunpack.c.l.b16 %v2010
        %v2107 = vunpack.c.l.b16 %v2011
        %v2108 = vunpack.c.l.b16 %v2012
        %v2109 = vunpack.c.l.b16 %v2013
        %v2110 = vunpack.c.l.b16 %v2014
        %v2111 = vunpack.c.l.b16 %v2015
        %v2112 = vunpack.c.l.b16 %v2016
        %v2113 = vunpack.c.l.b16 %v2017
        %v2114 = vunpack.c.l.b16 %v2018
        %v2115 = vunpack.c.l.b16 %v2019
        %v2116 = vpack.c.b16 %v2069, %v2068
        %v2117 = vpack.c.b16 %v2071, %v2070
        %v2118 = vpack.c.b16 %v2073, %v2072
        %v2119 = vpack.c.b16 %v2075, %v2074
        %v2120 = vpack.c.b16 %v2077, %v2076
        %v2121 = vpack.c.b16 %v2079, %v2078
        %v2122 = vpack.c.b16 %v2081, %v2080
        %v2123 = vpack.c.b16 %v2083, %v2082
        %v2124 = vpack.c.b16 %v2085, %v2084
        %v2125 = vpack.c.b16 %v2087, %v2086
        %v2126 = vpack.c.b16 %v2089, %v2088
        %v2127 = vpack.c.b16 %v2091, %v2090
        %v2128 = vpack.c.b16 %v2093, %v2092
        %v2129 = vpack.c.b16 %v2095, %v2094
        %v2130 = vpack.c.b16 %v2097, %v2096
        %v2131 = vpack.c.b16 %v2099, %v2098
        %v2132 = vpack.c.b16 %v2101, %v2100
        %v2133 = vpack.c.b16 %v2103, %v2102
        %v2134 = vpack.c.b16 %v2105, %v2104
        %v2135 = vpack.c.b16 %v2107, %v2106
        %v2136 = vpack.c.b16 %v2109, %v2108
        %v2137 = vpack.c.b16 %v2111, %v2110
        %v2138 = vpack.c.b16 %v2113, %v2112
        %v2139 = vpack.c.b16 %v2115, %v2114
        %2164 = vmatprep.subr.bf16.mxu0 0
        %2165 = vmatpush1.bf16.msra.mxu0 %v2116
        %2166 = vmatprep.subr.bf16.mxu0 0
        %2167 = vmatpush1.bf16.msra.mxu0 %v2117
        %2168 = vmatprep.subr.bf16.mxu0 0
        %2169 = vmatpush1.bf16.msra.mxu0 %v2118
        %2170 = vmatprep.subr.bf16.mxu0 0
        %2171 = vmatpush1.bf16.msra.mxu0 %v2119
        %2172 = vmatprep.subr.bf16.mxu0 0
        %2173 = vmatpush1.bf16.msra.mxu0 %v2120
        %2174 = vmatprep.subr.bf16.mxu0 0
        %2175 = vmatpush1.bf16.msra.mxu0 %v2121
        %2176 = vmatprep.subr.bf16.mxu0 0
        %2177 = vmatpush1.bf16.msra.mxu0 %v2122
        %2178 = vmatprep.subr.bf16.mxu0 0
        %2179 = vmatpush1.bf16.msra.mxu0 %v2123
        %2180 = vmatprep.subr.bf16.mxu0 0
        %2181 = vmatpush1.bf16.msra.mxu0 %v2124
        %2182 = vmatprep.subr.bf16.mxu0 0
        %2183 = vmatpush1.bf16.msra.mxu0 %v2125
        %2184 = vmatprep.subr.bf16.mxu0 0
        %2185 = vmatpush1.bf16.msra.mxu0 %v2126
        %2186 = vmatprep.subr.bf16.mxu0 0
        %2187 = vmatpush1.bf16.msra.mxu0 %v2127
        %2188 = vmatprep.subr.bf16.mxu0 0
        %2189 = vmatpush1.bf16.msra.mxu0 %v2128
        %2190 = vmatprep.subr.bf16.mxu0 0
        %2191 = vmatpush1.bf16.msra.mxu0 %v2129
        %2192 = vmatprep.subr.bf16.mxu0 0
        %2193 = vmatpush1.bf16.msra.mxu0 %v2130
        %2194 = vmatprep.subr.bf16.mxu0 0
        %2195 = vmatpush1.bf16.msra.mxu0 %v2131
        %2196 = vmatprep.mubr.bf16.mxu0 %v1925
        %2197 = vmatmul.mubr.bf16.gmra.mrb[0].mxu0 %v1924
        %v2198 = vpop.f32.mrb[0].mxu0
        %v2199 = vadd.f32 0.0, %v2198
        %v2200 = vpop.f32.mrb[0].mxu0
        %v2201 = vpop.f32.mrb[0].mxu0
        %v2202 = vadd.f32 0.0, %v2201
        %v2203 = vpop.f32.mrb[0].mxu0
        %2204 = vmatprep.mubr.bf16.mxu0 %v1928
        %2205 = vmatmul.mubr.bf16.gmra.mrb[0].mxu0 %v1927
        %v2206 = vpop.f32.mrb[0].mxu0
        %v2207 = vadd.f32 0.0, %v2206
        %v2208 = vpop.f32.mrb[0].mxu0
        %v2209 = vpop.f32.mrb[0].mxu0
        %v2210 = vadd.f32 0.0, %v2209
        %v2211 = vpop.f32.mrb[0].mxu0
        %2212 = vmatprep.mubr.bf16.mxu0 %v1931
        %2213 = vmatmul.mubr.bf16.gmra.mrb[0].mxu0 %v1930
        %v2214 = vpop.f32.mrb[0].mxu0
        %v2215 = vadd.f32 0.0, %v2214
        %v2216 = vpop.f32.mrb[0].mxu0
        %v2217 = vpop.f32.mrb[0].mxu0
        %v2218 = vadd.f32 0.0, %v2217
        %v2219 = vpop.f32.mrb[0].mxu0
        %2220 = vmatprep.mubr.bf16.mxu0 %v1934
        %2221 = vmatmul.mubr.bf16.gmra.mrb[0].mxu0 %v1933
        %v2222 = vpop.f32.mrb[0].mxu0
        %v2223 = vadd.f32 0.0, %v2222
        %v2224 = vpop.f32.mrb[0].mxu0
        %v2225 = vpop.f32.mrb[0].mxu0
        %v2226 = vadd.f32 0.0, %v2225
        %v2227 = vpop.f32.mrb[0].mxu0
        %2228 = vmatprep.mubr.bf16.mxu0 %v1937
        %2229 = vmatmul.mubr.bf16.gmra.mrb[0].mxu0 %v1936
        %v2230 = vpop.f32.mrb[0].mxu0
        %v2231 = vadd.f32 0.0, %v2230
        %v2232 = vpop.f32.mrb[0].mxu0
        %v2233 = vpop.f32.mrb[0].mxu0
        %v2234 = vadd.f32 0.0, %v2233
        %v2235 = vpop.f32.mrb[0].mxu0
        %2236 = vmatprep.mubr.bf16.mxu0 %v1940
        %2237 = vmatmul.mubr.bf16.gmra.mrb[0].mxu0 %v1939
        %v2238 = vpop.f32.mrb[0].mxu0
        %v2239 = vadd.f32 0.0, %v2238
        %v2240 = vpop.f32.mrb[0].mxu0
        %v2241 = vpop.f32.mrb[0].mxu0
        %v2242 = vadd.f32 0.0, %v2241
        %v2243 = vpop.f32.mrb[0].mxu0
        %2244 = vmatprep.mubr.bf16.mxu0 %v1943
        %2245 = vmatmul.mubr.bf16.gmra.mrb[0].mxu0 %v1942
        %v2246 = vpop.f32.mrb[0].mxu0
        %v2247 = vadd.f32 0.0, %v2246
        %v2248 = vpop.f32.mrb[0].mxu0
        %v2249 = vpop.f32.mrb[0].mxu0
        %v2250 = vadd.f32 0.0, %v2249
        %v2251 = vpop.f32.mrb[0].mxu0
        %2252 = vmatprep.mubr.bf16.mxu0 %v1946
        %2253 = vmatmul.mubr.bf16.gmra.mrb[0].mxu0 %v1945
        %v2254 = vpop.f32.mrb[0].mxu0
        %v2255 = vadd.f32 0.0, %v2254
        %v2256 = vpop.f32.mrb[0].mxu0
        %v2257 = vpop.f32.mrb[0].mxu0
        %v2258 = vadd.f32 0.0, %v2257
        %v2259 = vpop.f32.mrb[0].mxu0
        %2260 = vmatprep.mubr.bf16.mxu0 %v1949
        %2261 = vmatmul.mubr.bf16.gmra.mrb[0].mxu0 %v1948
        %v2262 = vpop.f32.mrb[0].mxu0
        %v2263 = vadd.f32 0.0, %v2262
        %v2264 = vpop.f32.mrb[0].mxu0
        %v2265 = vpop.f32.mrb[0].mxu0
        %v2266 = vadd.f32 0.0, %v2265
        %v2267 = vpop.f32.mrb[0].mxu0
        %2268 = vmatprep.mubr.bf16.mxu0 %v1952
        %2269 = vmatmul.mubr.bf16.gmra.mrb[0].mxu0 %v1951
        %v2270 = vpop.f32.mrb[0].mxu0
        %v2271 = vadd.f32 0.0, %v2270
        %v2272 = vpop.f32.mrb[0].mxu0
        %v2273 = vpop.f32.mrb[0].mxu0
        %v2274 = vadd.f32 0.0, %v2273
        %v2275 = vpop.f32.mrb[0].mxu0
        %2276 = vmatprep.mubr.bf16.mxu0 %v1955
        %2277 = vmatmul.mubr.bf16.gmra.mrb[0].mxu0 %v1954
        %v2278 = vpop.f32.mrb[0].mxu0
        %v2279 = vadd.f32 0.0, %v2278
        %v2280 = vpop.f32.mrb[0].mxu0
        %v2281 = vpop.f32.mrb[0].mxu0
        %v2282 = vadd.f32 0.0, %v2281
        %v2283 = vpop.f32.mrb[0].mxu0
        %2284 = vmatprep.mubr.bf16.mxu0 %v1958
        %2285 = vmatmul.mubr.bf16.gmra.mrb[0].mxu0 %v1957
        %v2286 = vpop.f32.mrb[0].mxu0
        %v2287 = vadd.f32 0.0, %v2286
        %v2288 = vpop.f32.mrb[0].mxu0
        %v2289 = vpop.f32.mrb[0].mxu0
        %v2290 = vadd.f32 0.0, %v2289
        %v2291 = vpop.f32.mrb[0].mxu0
        %2292 = vmatprep.mubr.bf16.mxu0 %v1961
        %2293 = vmatmul.mubr.bf16.gmra.mrb[0].mxu0 %v1960
        %v2294 = vpop.f32.mrb[0].mxu0
        %v2295 = vadd.f32 0.0, %v2294
        %v2296 = vpop.f32.mrb[0].mxu0
        %v2297 = vpop.f32.mrb[0].mxu0
        %v2298 = vadd.f32 0.0, %v2297
        %v2299 = vpop.f32.mrb[0].mxu0
        %2300 = vmatprep.mubr.bf16.mxu0 %v1964
        %2301 = vmatmul.mubr.bf16.gmra.mrb[0].mxu0 %v1963
        %v2302 = vpop.f32.mrb[0].mxu0
        %v2303 = vadd.f32 0.0, %v2302
        %v2304 = vpop.f32.mrb[0].mxu0
        %v2305 = vpop.f32.mrb[0].mxu0
        %v2306 = vadd.f32 0.0, %v2305
        %v2307 = vpop.f32.mrb[0].mxu0
        %2308 = vmatprep.mubr.bf16.mxu0 %v1967
        %2309 = vmatmul.mubr.bf16.gmra.mrb[0].mxu0 %v1966
        %v2310 = vpop.f32.mrb[0].mxu0
        %v2311 = vadd.f32 0.0, %v2310
        %v2312 = vpop.f32.mrb[0].mxu0
        %v2313 = vpop.f32.mrb[0].mxu0
        %v2314 = vadd.f32 0.0, %v2313
        %v2315 = vpop.f32.mrb[0].mxu0
        %2316 = vmatprep.mubr.bf16.mxu0 %v1970
        %2317 = vmatmul.mubr.bf16.gmra.mrb[0].mxu0 %v1969
        %v2318 = vpop.f32.mrb[0].mxu0
        %v2319 = vadd.f32 0.0, %v2318
        %v2320 = vpop.f32.mrb[0].mxu0
        %v2321 = vpop.f32.mrb[0].mxu0
        %v2322 = vadd.f32 0.0, %v2321
        %v2323 = vpop.f32.mrb[0].mxu0
        %2324 = vdwg.mxu0
        %2325 = vmatprep.subr.bf16.mxu0 0
        %2326 = vmatpush1.bf16.msra.mxu0 %v2132
        %2327 = vmatprep.subr.bf16.mxu0 0
        %2328 = vmatpush1.bf16.msra.mxu0 %v2133
        %2329 = vmatprep.subr.bf16.mxu0 0
        %2330 = vmatpush1.bf16.msra.mxu0 %v2134
        %2331 = vmatprep.subr.bf16.mxu0 0
        %2332 = vmatpush1.bf16.msra.mxu0 %v2135
        %2333 = vmatprep.subr.bf16.mxu0 0
        %2334 = vmatpush1.bf16.msra.mxu0 %v2136
        %2335 = vmatprep.subr.bf16.mxu0 0
        %2336 = vmatpush1.bf16.msra.mxu0 %v2137
        %2337 = vmatprep.subr.bf16.mxu0 0
        %2338 = vmatpush1.bf16.msra.mxu0 %v2138
        %2339 = vmatprep.subr.bf16.mxu0 0
        %2340 = vmatpush1.bf16.msra.mxu0 %v2139
        %2341 = vmatprep.subr.bf16.mxu0 0
        %2342 = vmatpush1.bf16.msra.mxu0 0
        %2343 = vmatprep.subr.bf16.mxu0 0
        %2344 = vmatpush1.bf16.msra.mxu0 0
        %2345 = vmatprep.subr.bf16.mxu0 0
        %2346 = vmatpush1.bf16.msra.mxu0 0
        %2347 = vmatprep.subr.bf16.mxu0 0
        %2348 = vmatpush1.bf16.msra.mxu0 0
        %2349 = vmatprep.subr.bf16.mxu0 0
        %2350 = vmatpush1.bf16.msra.mxu0 0
        %2351 = vmatprep.subr.bf16.mxu0 0
        %2352 = vmatpush1.bf16.msra.mxu0 0
        %2353 = vmatprep.subr.bf16.mxu0 0
        %2354 = vmatpush1.bf16.msra.mxu0 0
        %2355 = vmatprep.subr.bf16.mxu0 0
        %2356 = vmatpush1.bf16.msra.mxu0 0
        %2357 = vmatprep.mubr.bf16.mxu0 0
        %2358 = vmatmul.mubr.bf16.gmra.mrb[0].mxu0 %v1926
        %v2359 = vpop.f32.mrb[0].mxu0
        %v2360 = vadd.f32 %v2199, %v2359
        %v2361 = vpop.f32.mrb[0].mxu0
        %v2362 = vpop.f32.mrb[0].mxu0
        %v2363 = vadd.f32 %v2202, %v2362
        %v2364 = vpop.f32.mrb[0].mxu0
        %2365 = vmatprep.mubr.bf16.mxu0 0
        %2366 = vmatmul.mubr.bf16.gmra.mrb[0].mxu0 %v1929
        %v2367 = vpop.f32.mrb[0].mxu0
        %v2368 = vadd.f32 %v2207, %v2367
        %v2369 = vpop.f32.mrb[0].mxu0
        %v2370 = vpop.f32.mrb[0].mxu0
        %v2371 = vadd.f32 %v2210, %v2370
        %v2372 = vpop.f32.mrb[0].mxu0
        %2373 = vmatprep.mubr.bf16.mxu0 0
        %2374 = vmatmul.mubr.bf16.gmra.mrb[0].mxu0 %v1932
        %v2375 = vpop.f32.mrb[0].mxu0
        %v2376 = vadd.f32 %v2215, %v2375
        %v2377 = vpop.f32.mrb[0].mxu0
        %v2378 = vpop.f32.mrb[0].mxu0
        %v2379 = vadd.f32 %v2218, %v2378
        %v2380 = vpop.f32.mrb[0].mxu0
        %2381 = vmatprep.mubr.bf16.mxu0 0
        %2382 = vmatmul.mubr.bf16.gmra.mrb[0].mxu0 %v1935
        %v2383 = vpop.f32.mrb[0].mxu0
        %v2384 = vadd.f32 %v2223, %v2383
        %v2385 = vpop.f32.mrb[0].mxu0
        %v2386 = vpop.f32.mrb[0].mxu0
        %v2387 = vadd.f32 %v2226, %v2386
        %v2388 = vpop.f32.mrb[0].mxu0
        %2389 = vmatprep.mubr.bf16.mxu0 0
        %2390 = vmatmul.mubr.bf16.gmra.mrb[0].mxu0 %v1938
        %v2391 = vpop.f32.mrb[0].mxu0
        %v2392 = vadd.f32 %v2231, %v2391
        %v2393 = vpop.f32.mrb[0].mxu0
        %v2394 = vpop.f32.mrb[0].mxu0
        %v2395 = vadd.f32 %v2234, %v2394
        %v2396 = vpop.f32.mrb[0].mxu0
        %2397 = vmatprep.mubr.bf16.mxu0 0
        %2398 = vmatmul.mubr.bf16.gmra.mrb[0].mxu0 %v1941
        %v2399 = vpop.f32.mrb[0].mxu0
        %v2400 = vadd.f32 %v2239, %v2399
        %v2401 = vpop.f32.mrb[0].mxu0
        %v2402 = vpop.f32.mrb[0].mxu0
        %v2403 = vadd.f32 %v2242, %v2402
        %v2404 = vpop.f32.mrb[0].mxu0
        %2405 = vmatprep.mubr.bf16.mxu0 0
        %2406 = vmatmul.mubr.bf16.gmra.mrb[0].mxu0 %v1944
        %v2407 = vpop.f32.mrb[0].mxu0
        %v2408 = vadd.f32 %v2247, %v2407
        %v2409 = vpop.f32.mrb[0].mxu0
        %v2410 = vpop.f32.mrb[0].mxu0
        %v2411 = vadd.f32 %v2250, %v2410
        %v2412 = vpop.f32.mrb[0].mxu0
        %2413 = vmatprep.mubr.bf16.mxu0 0
        %2414 = vmatmul.mubr.bf16.gmra.mrb[0].mxu0 %v1947
        %v2415 = vpop.f32.mrb[0].mxu0
        %v2416 = vadd.f32 %v2255, %v2415
        %v2417 = vpop.f32.mrb[0].mxu0
        %v2418 = vpop.f32.mrb[0].mxu0
        %v2419 = vadd.f32 %v2258, %v2418
        %v2420 = vpop.f32.mrb[0].mxu0
        %2421 = vmatprep.mubr.bf16.mxu0 0
        %2422 = vmatmul.mubr.bf16.gmra.mrb[0].mxu0 %v1950
        %v2423 = vpop.f32.mrb[0].mxu0
        %v2424 = vadd.f32 %v2263, %v2423
        %v2425 = vpop.f32.mrb[0].mxu0
        %v2426 = vpop.f32.mrb[0].mxu0
        %v2427 = vadd.f32 %v2266, %v2426
        %v2428 = vpop.f32.mrb[0].mxu0
        %2429 = vmatprep.mubr.bf16.mxu0 0
        %2430 = vmatmul.mubr.bf16.gmra.mrb[0].mxu0 %v1953
        %v2431 = vpop.f32.mrb[0].mxu0
        %v2432 = vadd.f32 %v2271, %v2431
        %v2433 = vpop.f32.mrb[0].mxu0
        %v2434 = vpop.f32.mrb[0].mxu0
        %v2435 = vadd.f32 %v2274, %v2434
        %v2436 = vpop.f32.mrb[0].mxu0
        %2437 = vmatprep.mubr.bf16.mxu0 0
        %2438 = vmatmul.mubr.bf16.gmra.mrb[0].mxu0 %v1956
        %v2439 = vpop.f32.mrb[0].mxu0
        %v2440 = vadd.f32 %v2279, %v2439
        %v2441 = vpop.f32.mrb[0].mxu0
        %v2442 = vpop.f32.mrb[0].mxu0
        %v2443 = vadd.f32 %v2282, %v2442
        %v2444 = vpop.f32.mrb[0].mxu0
        %2445 = vmatprep.mubr.bf16.mxu0 0
        %2446 = vmatmul.mubr.bf16.gmra.mrb[0].mxu0 %v1959
        %v2447 = vpop.f32.mrb[0].mxu0
        %v2448 = vadd.f32 %v2287, %v2447
        %v2449 = vpop.f32.mrb[0].mxu0
        %v2450 = vpop.f32.mrb[0].mxu0
        %v2451 = vadd.f32 %v2290, %v2450
        %v2452 = vpop.f32.mrb[0].mxu0
        %2453 = vmatprep.mubr.bf16.mxu0 0
        %2454 = vmatmul.mubr.bf16.gmra.mrb[0].mxu0 %v1962
        %v2455 = vpop.f32.mrb[0].mxu0
        %v2456 = vadd.f32 %v2295, %v2455
        %v2457 = vpop.f32.mrb[0].mxu0
        %v2458 = vpop.f32.mrb[0].mxu0
        %v2459 = vadd.f32 %v2298, %v2458
        %v2460 = vpop.f32.mrb[0].mxu0
        %2461 = vmatprep.mubr.bf16.mxu0 0
        %2462 = vmatmul.mubr.bf16.gmra.mrb[0].mxu0 %v1965
        %v2463 = vpop.f32.mrb[0].mxu0
        %v2464 = vadd.f32 %v2303, %v2463
        %v2465 = vpop.f32.mrb[0].mxu0
        %v2466 = vpop.f32.mrb[0].mxu0
        %v2467 = vadd.f32 %v2306, %v2466
        %v2468 = vpop.f32.mrb[0].mxu0
        %2469 = vmatprep.mubr.bf16.mxu0 0
        %2470 = vmatmul.mubr.bf16.gmra.mrb[0].mxu0 %v1968
        %v2471 = vpop.f32.mrb[0].mxu0
        %v2472 = vadd.f32 %v2311, %v2471
        %v2473 = vpop.f32.mrb[0].mxu0
        %v2474 = vpop.f32.mrb[0].mxu0
        %v2475 = vadd.f32 %v2314, %v2474
        %v2476 = vpop.f32.mrb[0].mxu0
        %2477 = vmatprep.mubr.bf16.mxu0 0
        %2478 = vmatmul.mubr.bf16.gmra.mrb[0].mxu0 %v1971
        %v2479 = vpop.f32.mrb[0].mxu0
        %v2480 = vadd.f32 %v2319, %v2479
        %v2481 = vpop.f32.mrb[0].mxu0
        %v2482 = vpop.f32.mrb[0].mxu0
        %v2483 = vadd.f32 %v2322, %v2482
        %v2484 = vpop.f32.mrb[0].mxu0
        %2485 = vdwg.mxu0
        %v2486 = vlaneseq
        %v2487 = vshrl.u32 %v2486, 7
        %v2488 = vsub.s32 5, %v2487
        %v2489 = vrot.slane %v394, %v2488
        %v2490 = vmul.f32 %v2360, %v2489
        %v2491 = vmul.f32 %v2363, %v2489
        %v2492 = vmul.f32 %v2368, %v2489
        %v2493 = vmul.f32 %v2371, %v2489
        %v2494 = vmul.f32 %v2376, %v2489
        %v2495 = vmul.f32 %v2379, %v2489
        %v2496 = vmul.f32 %v2384, %v2489
        %v2497 = vmul.f32 %v2387, %v2489
        %v2498 = vmul.f32 %v2392, %v2489
        %v2499 = vmul.f32 %v2395, %v2489
        %v2500 = vmul.f32 %v2400, %v2489
        %v2501 = vmul.f32 %v2403, %v2489
        %v2502 = vmul.f32 %v2408, %v2489
        %v2503 = vmul.f32 %v2411, %v2489
        %v2504 = vmul.f32 %v2416, %v2489
        %v2505 = vmul.f32 %v2419, %v2489
        %v2506 = vmul.f32 %v2424, %v2489
        %v2507 = vmul.f32 %v2427, %v2489
        %v2508 = vmul.f32 %v2432, %v2489
        %v2509 = vmul.f32 %v2435, %v2489
        %v2510 = vmul.f32 %v2440, %v2489
        %v2511 = vmul.f32 %v2443, %v2489
        %v2512 = vmul.f32 %v2448, %v2489
        %v2513 = vmul.f32 %v2451, %v2489
        %v2514 = vmul.f32 %v2456, %v2489
        %v2515 = vmul.f32 %v2459, %v2489
        %v2516 = vmul.f32 %v2464, %v2489
        %v2517 = vmul.f32 %v2467, %v2489
        %v2518 = vmul.f32 %v2472, %v2489
        %v2519 = vmul.f32 %v2475, %v2489
        %v2520 = vmul.f32 %v2480, %v2489
        %v2521 = vmul.f32 %v2483, %v2489
        %v2522 = vlaneseq
        %v2523 = vshrl.u32 %v2522, 7
        %v2524 = vsub.s32 6, %v2523
        %v2525 = vrot.slane %v394, %v2524
        %v2526 = vadd.f32 %v2490, %v2525
        %v2527 = vadd.f32 %v2491, %v2525
        %v2528 = vadd.f32 %v2492, %v2525
        %v2529 = vadd.f32 %v2493, %v2525
        %v2530 = vadd.f32 %v2494, %v2525
        %v2531 = vadd.f32 %v2495, %v2525
        %v2532 = vadd.f32 %v2496, %v2525
        %v2533 = vadd.f32 %v2497, %v2525
        %v2534 = vadd.f32 %v2498, %v2525
        %v2535 = vadd.f32 %v2499, %v2525
        %v2536 = vadd.f32 %v2500, %v2525
        %v2537 = vadd.f32 %v2501, %v2525
        %v2538 = vadd.f32 %v2502, %v2525
        %v2539 = vadd.f32 %v2503, %v2525
        %v2540 = vadd.f32 %v2504, %v2525
        %v2541 = vadd.f32 %v2505, %v2525
        %v2542 = vadd.f32 %v2506, %v2525
        %v2543 = vadd.f32 %v2507, %v2525
        %v2544 = vadd.f32 %v2508, %v2525
        %v2545 = vadd.f32 %v2509, %v2525
        %v2546 = vadd.f32 %v2510, %v2525
        %v2547 = vadd.f32 %v2511, %v2525
        %v2548 = vadd.f32 %v2512, %v2525
        %v2549 = vadd.f32 %v2513, %v2525
        %v2550 = vadd.f32 %v2514, %v2525
        %v2551 = vadd.f32 %v2515, %v2525
        %v2552 = vadd.f32 %v2516, %v2525
        %v2553 = vadd.f32 %v2517, %v2525
        %v2554 = vadd.f32 %v2518, %v2525
        %v2555 = vadd.f32 %v2519, %v2525
        %v2556 = vadd.f32 %v2520, %v2525
        %v2557 = vadd.f32 %v2521, %v2525
        %v2558 = vmax.f32 %v2526, 0.0
        %v2559 = vmax.f32 %v2527, 0.0
        %v2560 = vmax.f32 %v2528, 0.0
        %v2561 = vmax.f32 %v2529, 0.0
        %v2562 = vmax.f32 %v2530, 0.0
        %v2563 = vmax.f32 %v2531, 0.0
        %v2564 = vmax.f32 %v2532, 0.0
        %v2565 = vmax.f32 %v2533, 0.0
        %v2566 = vmax.f32 %v2534, 0.0
        %v2567 = vmax.f32 %v2535, 0.0
        %v2568 = vmax.f32 %v2536, 0.0
        %v2569 = vmax.f32 %v2537, 0.0
        %v2570 = vmax.f32 %v2538, 0.0
        %v2571 = vmax.f32 %v2539, 0.0
        %v2572 = vmax.f32 %v2540, 0.0
        %v2573 = vmax.f32 %v2541, 0.0
        %v2574 = vmax.f32 %v2542, 0.0
        %v2575 = vmax.f32 %v2543, 0.0
        %v2576 = vmax.f32 %v2544, 0.0
        %v2577 = vmax.f32 %v2545, 0.0
        %v2578 = vmax.f32 %v2546, 0.0
        %v2579 = vmax.f32 %v2547, 0.0
        %v2580 = vmax.f32 %v2548, 0.0
        %v2581 = vmax.f32 %v2549, 0.0
        %v2582 = vmax.f32 %v2550, 0.0
        %v2583 = vmax.f32 %v2551, 0.0
        %v2584 = vmax.f32 %v2552, 0.0
        %v2585 = vmax.f32 %v2553, 0.0
        %v2586 = vmax.f32 %v2554, 0.0
        %v2587 = vmax.f32 %v2555, 0.0
        %v2588 = vmax.f32 %v2556, 0.0
        %v2589 = vmax.f32 %v2557, 0.0
        %v2590 = vrot.slane %v2558, 7
        %v2591 = vrot.slane %v2559, 7
        %v2592 = vrot.slane %v2560, 7
        %v2593 = vrot.slane %v2561, 7
        %v2594 = vrot.slane %v2562, 7
        %v2595 = vrot.slane %v2563, 7
        %v2596 = vrot.slane %v2564, 7
        %v2597 = vrot.slane %v2565, 7
        %v2598 = vrot.slane %v2566, 7
        %v2599 = vrot.slane %v2567, 7
        %v2600 = vrot.slane %v2568, 7
        %v2601 = vrot.slane %v2569, 7
        %v2602 = vrot.slane %v2570, 7
        %v2603 = vrot.slane %v2571, 7
        %v2604 = vrot.slane %v2572, 7
        %v2605 = vrot.slane %v2573, 7
        %v2606 = vrot.slane %v2574, 7
        %v2607 = vrot.slane %v2575, 7
        %v2608 = vrot.slane %v2576, 7
        %v2609 = vrot.slane %v2577, 7
        %v2610 = vrot.slane %v2578, 7
        %v2611 = vrot.slane %v2579, 7
        %v2612 = vrot.slane %v2580, 7
        %v2613 = vrot.slane %v2581, 7
        %v2614 = vrot.slane %v2582, 7
        %v2615 = vrot.slane %v2583, 7
        %v2616 = vrot.slane %v2584, 7
        %v2617 = vrot.slane %v2585, 7
        %v2618 = vrot.slane %v2586, 7
        %v2619 = vrot.slane %v2587, 7
        %v2620 = vrot.slane %v2588, 7
        %v2621 = vrot.slane %v2589, 7
        %v2622 = vsel %vm695, %v2620, %v2621
        %v2623 = vsel %vm695, %v2619, %v2620
        %v2624 = vsel %vm695, %v2618, %v2619
        %v2625 = vsel %vm695, %v2617, %v2618
        %v2626 = vsel %vm695, %v2616, %v2617
        %v2627 = vsel %vm695, %v2615, %v2616
        %v2628 = vsel %vm695, %v2614, %v2615
        %v2629 = vsel %vm695, %v2613, %v2614
        %v2630 = vsel %vm695, %v2612, %v2613
        %v2631 = vsel %vm695, %v2611, %v2612
        %v2632 = vsel %vm695, %v2610, %v2611
        %v2633 = vsel %vm695, %v2609, %v2610
        %v2634 = vsel %vm695, %v2608, %v2609
        %v2635 = vsel %vm695, %v2607, %v2608
        %v2636 = vsel %vm695, %v2606, %v2607
        %v2637 = vsel %vm695, %v2605, %v2606
        %v2638 = vsel %vm695, %v2604, %v2605
        %v2639 = vsel %vm695, %v2603, %v2604
        %v2640 = vsel %vm695, %v2602, %v2603
        %v2641 = vsel %vm695, %v2601, %v2602
        %v2642 = vsel %vm695, %v2600, %v2601
        %v2643 = vsel %vm695, %v2599, %v2600
        %v2644 = vsel %vm695, %v2598, %v2599
        %v2645 = vsel %vm695, %v2597, %v2598
        %v2646 = vsel %vm695, %v2596, %v2597
        %v2647 = vsel %vm695, %v2595, %v2596
        %v2648 = vsel %vm695, %v2594, %v2595
        %v2649 = vsel %vm695, %v2593, %v2594
        %v2650 = vsel %vm695, %v2592, %v2593
        %v2651 = vsel %vm695, %v2591, %v2592
        %v2652 = vsel %vm695, %v2590, %v2591
        %v2653 = vsel %vm695, %v2621, %v2590
        %v2654 = vmul.f32 %v2653, %v1239
        %v2655 = vmul.f32 %v2652, %v1240
        %v2656 = vmul.f32 %v2651, %v1241
        %v2657 = vmul.f32 %v2650, %v1242
        %v2658 = vmul.f32 %v2649, %v1243
        %v2659 = vmul.f32 %v2648, %v1244
        %v2660 = vmul.f32 %v2647, %v1245
        %v2661 = vmul.f32 %v2646, %v1246
        %v2662 = vmul.f32 %v2645, %v1247
        %v2663 = vmul.f32 %v2644, %v1248
        %v2664 = vmul.f32 %v2643, %v1249
        %v2665 = vmul.f32 %v2642, %v1250
        %v2666 = vmul.f32 %v2641, %v1251
        %v2667 = vmul.f32 %v2640, %v1252
        %v2668 = vmul.f32 %v2639, %v1253
        %v2669 = vmul.f32 %v2638, %v1254
        %v2670 = vmul.f32 %v2637, %v1255
        %v2671 = vmul.f32 %v2636, %v1256
        %v2672 = vmul.f32 %v2635, %v1257
        %v2673 = vmul.f32 %v2634, %v1258
        %v2674 = vmul.f32 %v2633, %v1259
        %v2675 = vmul.f32 %v2632, %v1260
        %v2676 = vmul.f32 %v2631, %v1261
        %v2677 = vmul.f32 %v2630, %v1262
        %v2678 = vmul.f32 %v2629, %v1263
        %v2679 = vmul.f32 %v2628, %v1264
        %v2680 = vmul.f32 %v2627, %v1265
        %v2681 = vmul.f32 %v2626, %v1266
        %v2682 = vmul.f32 %v2625, %v1267
        %v2683 = vmul.f32 %v2624, %v1268
        %v2684 = vmul.f32 %v2623, %v1269
        %v2685 = vmul.f32 %v2622, %v1270
        %v2686 = vrot.slane %v2558, 1
        %v2687 = vrot.slane %v2559, 1
        %v2688 = vrot.slane %v2560, 1
        %v2689 = vrot.slane %v2561, 1
        %v2690 = vrot.slane %v2562, 1
        %v2691 = vrot.slane %v2563, 1
        %v2692 = vrot.slane %v2564, 1
        %v2693 = vrot.slane %v2565, 1
        %v2694 = vrot.slane %v2566, 1
        %v2695 = vrot.slane %v2567, 1
        %v2696 = vrot.slane %v2568, 1
        %v2697 = vrot.slane %v2569, 1
        %v2698 = vrot.slane %v2570, 1
        %v2699 = vrot.slane %v2571, 1
        %v2700 = vrot.slane %v2572, 1
        %v2701 = vrot.slane %v2573, 1
        %v2702 = vrot.slane %v2574, 1
        %v2703 = vrot.slane %v2575, 1
        %v2704 = vrot.slane %v2576, 1
        %v2705 = vrot.slane %v2577, 1
        %v2706 = vrot.slane %v2578, 1
        %v2707 = vrot.slane %v2579, 1
        %v2708 = vrot.slane %v2580, 1
        %v2709 = vrot.slane %v2581, 1
        %v2710 = vrot.slane %v2582, 1
        %v2711 = vrot.slane %v2583, 1
        %v2712 = vrot.slane %v2584, 1
        %v2713 = vrot.slane %v2585, 1
        %v2714 = vrot.slane %v2586, 1
        %v2715 = vrot.slane %v2587, 1
        %v2716 = vrot.slane %v2588, 1
        %v2717 = vrot.slane %v2589, 1
        %v2718 = vsel %vm1403, %v2716, %v2717
        %v2719 = vsel %vm1403, %v2715, %v2716
        %v2720 = vsel %vm1403, %v2714, %v2715
        %v2721 = vsel %vm1403, %v2713, %v2714
        %v2722 = vsel %vm1403, %v2712, %v2713
        %v2723 = vsel %vm1403, %v2711, %v2712
        %v2724 = vsel %vm1403, %v2710, %v2711
        %v2725 = vsel %vm1403, %v2709, %v2710
        %v2726 = vsel %vm1403, %v2708, %v2709
        %v2727 = vsel %vm1403, %v2707, %v2708
        %v2728 = vsel %vm1403, %v2706, %v2707
        %v2729 = vsel %vm1403, %v2705, %v2706
        %v2730 = vsel %vm1403, %v2704, %v2705
        %v2731 = vsel %vm1403, %v2703, %v2704
        %v2732 = vsel %vm1403, %v2702, %v2703
        %v2733 = vsel %vm1403, %v2701, %v2702
        %v2734 = vsel %vm1403, %v2700, %v2701
        %v2735 = vsel %vm1403, %v2699, %v2700
        %v2736 = vsel %vm1403, %v2698, %v2699
        %v2737 = vsel %vm1403, %v2697, %v2698
        %v2738 = vsel %vm1403, %v2696, %v2697
        %v2739 = vsel %vm1403, %v2695, %v2696
        %v2740 = vsel %vm1403, %v2694, %v2695
        %v2741 = vsel %vm1403, %v2693, %v2694
        %v2742 = vsel %vm1403, %v2692, %v2693
        %v2743 = vsel %vm1403, %v2691, %v2692
        %v2744 = vsel %vm1403, %v2690, %v2691
        %v2745 = vsel %vm1403, %v2689, %v2690
        %v2746 = vsel %vm1403, %v2688, %v2689
        %v2747 = vsel %vm1403, %v2687, %v2688
        %v2748 = vsel %vm1403, %v2686, %v2687
        %v2749 = vsel %vm1403, %v2717, %v2686
        %v2750 = vmul.f32 %v2748, %v1532
        %v2751 = vmul.f32 %v2747, %v1533
        %v2752 = vmul.f32 %v2746, %v1534
        %v2753 = vmul.f32 %v2745, %v1535
        %v2754 = vmul.f32 %v2744, %v1536
        %v2755 = vmul.f32 %v2743, %v1537
        %v2756 = vmul.f32 %v2742, %v1538
        %v2757 = vmul.f32 %v2741, %v1539
        %v2758 = vmul.f32 %v2740, %v1540
        %v2759 = vmul.f32 %v2739, %v1541
        %v2760 = vmul.f32 %v2738, %v1542
        %v2761 = vmul.f32 %v2737, %v1543
        %v2762 = vmul.f32 %v2736, %v1544
        %v2763 = vmul.f32 %v2735, %v1545
        %v2764 = vmul.f32 %v2734, %v1546
        %v2765 = vmul.f32 %v2733, %v1547
        %v2766 = vmul.f32 %v2732, %v1548
        %v2767 = vmul.f32 %v2731, %v1549
        %v2768 = vmul.f32 %v2730, %v1550
        %v2769 = vmul.f32 %v2729, %v1551
        %v2770 = vmul.f32 %v2728, %v1552
        %v2771 = vmul.f32 %v2727, %v1553
        %v2772 = vmul.f32 %v2726, %v1554
        %v2773 = vmul.f32 %v2725, %v1555
        %v2774 = vmul.f32 %v2724, %v1556
        %v2775 = vmul.f32 %v2723, %v1557
        %v2776 = vmul.f32 %v2722, %v1558
        %v2777 = vmul.f32 %v2721, %v1559
        %v2778 = vmul.f32 %v2720, %v1560
        %v2779 = vmul.f32 %v2719, %v1561
        %v2780 = vmul.f32 %v2718, %v1562
        %v2781 = vmul.f32 %v2749, %v1563
        %v2782 = vpack.c.bf16 %v2655, %v2654
        %v2783 = vpack.c.bf16 %v2559, %v2558
        %v2784 = vpack.c.bf16 %v2751, %v2750
        %v2785 = vpack.c.bf16 %v2657, %v2656
        %v2786 = vpack.c.bf16 %v2561, %v2560
        %v2787 = vpack.c.bf16 %v2753, %v2752
        %v2788 = vpack.c.bf16 %v2659, %v2658
        %v2789 = vpack.c.bf16 %v2563, %v2562
        %v2790 = vpack.c.bf16 %v2755, %v2754
        %v2791 = vpack.c.bf16 %v2661, %v2660
        %v2792 = vpack.c.bf16 %v2565, %v2564
        %v2793 = vpack.c.bf16 %v2757, %v2756
        %v2794 = vpack.c.bf16 %v2663, %v2662
        %v2795 = vpack.c.bf16 %v2567, %v2566
        %v2796 = vpack.c.bf16 %v2759, %v2758
        %v2797 = vpack.c.bf16 %v2665, %v2664
        %v2798 = vpack.c.bf16 %v2569, %v2568
        %v2799 = vpack.c.bf16 %v2761, %v2760
        %v2800 = vpack.c.bf16 %v2667, %v2666
        %v2801 = vpack.c.bf16 %v2571, %v2570
        %v2802 = vpack.c.bf16 %v2763, %v2762
        %v2803 = vpack.c.bf16 %v2669, %v2668
        %v2804 = vpack.c.bf16 %v2573, %v2572
        %v2805 = vpack.c.bf16 %v2765, %v2764
        %v2806 = vpack.c.bf16 %v2671, %v2670
        %v2807 = vpack.c.bf16 %v2575, %v2574
        %v2808 = vpack.c.bf16 %v2767, %v2766
        %v2809 = vpack.c.bf16 %v2673, %v2672
        %v2810 = vpack.c.bf16 %v2577, %v2576
        %v2811 = vpack.c.bf16 %v2769, %v2768
        %v2812 = vpack.c.bf16 %v2675, %v2674
        %v2813 = vpack.c.bf16 %v2579, %v2578
        %v2814 = vpack.c.bf16 %v2771, %v2770
        %v2815 = vpack.c.bf16 %v2677, %v2676
        %v2816 = vpack.c.bf16 %v2581, %v2580
        %v2817 = vpack.c.bf16 %v2773, %v2772
        %v2818 = vpack.c.bf16 %v2679, %v2678
        %v2819 = vpack.c.bf16 %v2583, %v2582
        %v2820 = vpack.c.bf16 %v2775, %v2774
        %v2821 = vpack.c.bf16 %v2681, %v2680
        %v2822 = vpack.c.bf16 %v2585, %v2584
        %v2823 = vpack.c.bf16 %v2777, %v2776
        %v2824 = vpack.c.bf16 %v2683, %v2682
        %v2825 = vpack.c.bf16 %v2587, %v2586
        %v2826 = vpack.c.bf16 %v2779, %v2778
        %v2827 = vpack.c.bf16 %v2685, %v2684
        %v2828 = vpack.c.bf16 %v2589, %v2588
        %v2829 = vpack.c.bf16 %v2781, %v2780
        %s2830 = scalar_lea.vmem %s2, 192
        %v2831 = vld [vmem:[%s2830] sm:$0xf]
        %v2832 = vld [vmem:[%s2830 + $0x4] sm:$0xf]
        %v2833 = vld [vmem:[%s2830 + $0x8] sm:$0xf]
        %v2834 = vld [vmem:[%s2830 + $0xc] sm:$0xf]
        %v2835 = vld [vmem:[%s2830 + $0x10] sm:$0xf]
        %v2836 = vld [vmem:[%s2830 + $0x14] sm:$0xf]
        %v2837 = vld [vmem:[%s2830 + $0x18] sm:$0xf]
        %v2838 = vld [vmem:[%s2830 + $0x1c] sm:$0xf]
        %v2839 = vld [vmem:[%s2830 + $0x20] sm:$0xf]
        %v2840 = vld [vmem:[%s2830 + $0x24] sm:$0xf]
        %v2841 = vld [vmem:[%s2830 + $0x28] sm:$0xf]
        %v2842 = vld [vmem:[%s2830 + $0x2c] sm:$0xf]
        %v2843 = vld [vmem:[%s2830 + $0x30] sm:$0xf]
        %v2844 = vld [vmem:[%s2830 + $0x34] sm:$0xf]
        %v2845 = vld [vmem:[%s2830 + $0x38] sm:$0xf]
        %v2846 = vld [vmem:[%s2830 + $0x3c] sm:$0xf]
        %v2847 = vld [vmem:[%s2830 + $0x40] sm:$0xf]
        %v2848 = vld [vmem:[%s2830 + $0x44] sm:$0xf]
        %v2849 = vld [vmem:[%s2830 + $0x48] sm:$0xf]
        %v2850 = vld [vmem:[%s2830 + $0x4c] sm:$0xf]
        %v2851 = vld [vmem:[%s2830 + $0x50] sm:$0xf]
        %v2852 = vld [vmem:[%s2830 + $0x54] sm:$0xf]
        %v2853 = vld [vmem:[%s2830 + $0x58] sm:$0xf]
        %v2854 = vld [vmem:[%s2830 + $0x5c] sm:$0xf]
        %v2855 = vld [vmem:[%s2830 + $0x60] sm:$0xf]
        %v2856 = vld [vmem:[%s2830 + $0x64] sm:$0xf]
        %v2857 = vld [vmem:[%s2830 + $0x68] sm:$0xf]
        %v2858 = vld [vmem:[%s2830 + $0x6c] sm:$0xf]
        %v2859 = vld [vmem:[%s2830 + $0x70] sm:$0xf]
        %v2860 = vld [vmem:[%s2830 + $0x74] sm:$0xf]
        %v2861 = vld [vmem:[%s2830 + $0x78] sm:$0xf]
        %v2862 = vld [vmem:[%s2830 + $0x7c] sm:$0xf]
        %v2863 = vld [vmem:[%s2830 + $0x80] sm:$0xf]
        %v2864 = vld [vmem:[%s2830 + $0x84] sm:$0xf]
        %v2865 = vld [vmem:[%s2830 + $0x88] sm:$0xf]
        %v2866 = vld [vmem:[%s2830 + $0x8c] sm:$0xf]
        %v2867 = vld [vmem:[%s2830 + $0x90] sm:$0xf]
        %v2868 = vld [vmem:[%s2830 + $0x94] sm:$0xf]
        %v2869 = vld [vmem:[%s2830 + $0x98] sm:$0xf]
        %v2870 = vld [vmem:[%s2830 + $0x9c] sm:$0xf]
        %v2871 = vld [vmem:[%s2830 + $0xa0] sm:$0xf]
        %v2872 = vld [vmem:[%s2830 + $0xa4] sm:$0xf]
        %v2873 = vld [vmem:[%s2830 + $0xa8] sm:$0xf]
        %v2874 = vld [vmem:[%s2830 + $0xac] sm:$0xf]
        %v2875 = vld [vmem:[%s2830 + $0xb0] sm:$0xf]
        %v2876 = vld [vmem:[%s2830 + $0xb4] sm:$0xf]
        %v2877 = vld [vmem:[%s2830 + $0xb8] sm:$0xf]
        %v2878 = vld [vmem:[%s2830 + $0xbc] sm:$0xf]
        %v2879 = vld [vmem:[#allocation5] sm:$0xf]
        %v2880 = vld [vmem:[#allocation5 + $0x4] sm:$0xf]
        %v2881 = vld [vmem:[#allocation5 + $0x8] sm:$0xf]
        %v2882 = vld [vmem:[#allocation5 + $0xc] sm:$0xf]
        %v2883 = vld [vmem:[#allocation5 + $0x10] sm:$0xf]
        %v2884 = vld [vmem:[#allocation5 + $0x14] sm:$0xf]
        %v2885 = vld [vmem:[#allocation5 + $0x18] sm:$0xf]
        %v2886 = vld [vmem:[#allocation5 + $0x1c] sm:$0xf]
        %v2887 = vld [vmem:[#allocation5 + $0x20] sm:$0xf]
        %v2888 = vld [vmem:[#allocation5 + $0x24] sm:$0xf]
        %v2889 = vld [vmem:[#allocation5 + $0x28] sm:$0xf]
        %v2890 = vld [vmem:[#allocation5 + $0x2c] sm:$0xf]
        %v2891 = vld [vmem:[#allocation5 + $0x30] sm:$0xf]
        %v2892 = vld [vmem:[#allocation5 + $0x34] sm:$0xf]
        %v2893 = vld [vmem:[#allocation5 + $0x38] sm:$0xf]
        %v2894 = vld [vmem:[#allocation5 + $0x3c] sm:$0xf]
        %v2911 = vunpack.c.l.b16 %v2879
        %v2912 = vunpack.c.l.b16 %v2880
        %v2913 = vunpack.c.l.b16 %v2881
        %v2914 = vunpack.c.l.b16 %v2882
        %v2915 = vunpack.c.l.b16 %v2883
        %v2916 = vunpack.c.l.b16 %v2884
        %v2917 = vunpack.c.l.b16 %v2885
        %v2918 = vunpack.c.l.b16 %v2886
        %v2919 = vunpack.c.l.b16 %v2887
        %v2920 = vunpack.c.l.b16 %v2888
        %v2921 = vunpack.c.l.b16 %v2889
        %v2922 = vunpack.c.l.b16 %v2890
        %v2923 = vunpack.c.l.b16 %v2891
        %v2924 = vunpack.c.l.b16 %v2892
        %v2925 = vunpack.c.l.b16 %v2893
        %v2926 = vunpack.c.l.b16 %v2894
        %v2927 = vpack.c.b16 %v2912, %v2911
        %v2928 = vpack.c.b16 %v2914, %v2913
        %v2929 = vpack.c.b16 %v2916, %v2915
        %v2930 = vpack.c.b16 %v2918, %v2917
        %v2931 = vpack.c.b16 %v2920, %v2919
        %v2932 = vpack.c.b16 %v2922, %v2921
        %v2933 = vpack.c.b16 %v2924, %v2923
        %v2934 = vpack.c.b16 %v2926, %v2925
        %2943 = vmatprep.subr.bf16.mxu0 0
        %2944 = vmatpush1.bf16.msra.mxu0 %v2927
        %2945 = vmatprep.subr.bf16.mxu0 0
        %2946 = vmatpush1.bf16.msra.mxu0 %v2928
        %2947 = vmatprep.subr.bf16.mxu0 0
        %2948 = vmatpush1.bf16.msra.mxu0 %v2929
        %2949 = vmatprep.subr.bf16.mxu0 0
        %2950 = vmatpush1.bf16.msra.mxu0 %v2930
        %2951 = vmatprep.subr.bf16.mxu0 0
        %2952 = vmatpush1.bf16.msra.mxu0 %v2931
        %2953 = vmatprep.subr.bf16.mxu0 0
        %2954 = vmatpush1.bf16.msra.mxu0 %v2932
        %2955 = vmatprep.subr.bf16.mxu0 0
        %2956 = vmatpush1.bf16.msra.mxu0 %v2933
        %2957 = vmatprep.subr.bf16.mxu0 0
        %2958 = vmatpush1.bf16.msra.mxu0 %v2934
        %2959 = vmatprep.subr.bf16.mxu0 0
        %2960 = vmatpush1.bf16.msra.mxu0 0
        %2961 = vmatprep.subr.bf16.mxu0 0
        %2962 = vmatpush1.bf16.msra.mxu0 0
        %2963 = vmatprep.subr.bf16.mxu0 0
        %2964 = vmatpush1.bf16.msra.mxu0 0
        %2965 = vmatprep.subr.bf16.mxu0 0
        %2966 = vmatpush1.bf16.msra.mxu0 0
        %2967 = vmatprep.subr.bf16.mxu0 0
        %2968 = vmatpush1.bf16.msra.mxu0 0
        %2969 = vmatprep.subr.bf16.mxu0 0
        %2970 = vmatpush1.bf16.msra.mxu0 0
        %2971 = vmatprep.subr.bf16.mxu0 0
        %2972 = vmatpush1.bf16.msra.mxu0 0
        %2973 = vmatprep.subr.bf16.mxu0 0
        %2974 = vmatpush1.bf16.msra.mxu0 0
        %2975 = vmatprep.mubr.bf16.mxu0 0
        %2976 = vmatmul.mubr.bf16.gmra.mrb[0].mxu0 %v1925
        %v2977 = vpop.f32.mrb[0].mxu0
        %v2978 = vadd.f32 0.0, %v2977
        %v2979 = vpop.f32.mrb[0].mxu0
        %v2980 = vpop.f32.mrb[0].mxu0
        %v2981 = vadd.f32 0.0, %v2980
        %v2982 = vpop.f32.mrb[0].mxu0
        %2983 = vmatprep.mubr.bf16.mxu0 0
        %2984 = vmatmul.mubr.bf16.gmra.mrb[0].mxu0 %v1928
        %v2985 = vpop.f32.mrb[0].mxu0
        %v2986 = vadd.f32 0.0, %v2985
        %v2987 = vpop.f32.mrb[0].mxu0
        %v2988 = vpop.f32.mrb[0].mxu0
        %v2989 = vadd.f32 0.0, %v2988
        %v2990 = vpop.f32.mrb[0].mxu0
        %2991 = vmatprep.mubr.bf16.mxu0 0
        %2992 = vmatmul.mubr.bf16.gmra.mrb[0].mxu0 %v1931
        %v2993 = vpop.f32.mrb[0].mxu0
        %v2994 = vadd.f32 0.0, %v2993
        %v2995 = vpop.f32.mrb[0].mxu0
        %v2996 = vpop.f32.mrb[0].mxu0
        %v2997 = vadd.f32 0.0, %v2996
        %v2998 = vpop.f32.mrb[0].mxu0
        %2999 = vmatprep.mubr.bf16.mxu0 0
        %3000 = vmatmul.mubr.bf16.gmra.mrb[0].mxu0 %v1934
        %v3001 = vpop.f32.mrb[0].mxu0
        %v3002 = vadd.f32 0.0, %v3001
        %v3003 = vpop.f32.mrb[0].mxu0
        %v3004 = vpop.f32.mrb[0].mxu0
        %v3005 = vadd.f32 0.0, %v3004
        %v3006 = vpop.f32.mrb[0].mxu0
        %3007 = vmatprep.mubr.bf16.mxu0 0
        %3008 = vmatmul.mubr.bf16.gmra.mrb[0].mxu0 %v1937
        %v3009 = vpop.f32.mrb[0].mxu0
        %v3010 = vadd.f32 0.0, %v3009
        %v3011 = vpop.f32.mrb[0].mxu0
        %v3012 = vpop.f32.mrb[0].mxu0
        %v3013 = vadd.f32 0.0, %v3012
        %v3014 = vpop.f32.mrb[0].mxu0
        %3015 = vmatprep.mubr.bf16.mxu0 0
        %3016 = vmatmul.mubr.bf16.gmra.mrb[0].mxu0 %v1940
        %v3017 = vpop.f32.mrb[0].mxu0
        %v3018 = vadd.f32 0.0, %v3017
        %v3019 = vpop.f32.mrb[0].mxu0
        %v3020 = vpop.f32.mrb[0].mxu0
        %v3021 = vadd.f32 0.0, %v3020
        %v3022 = vpop.f32.mrb[0].mxu0
        %3023 = vmatprep.mubr.bf16.mxu0 0
        %3024 = vmatmul.mubr.bf16.gmra.mrb[0].mxu0 %v1943
        %v3025 = vpop.f32.mrb[0].mxu0
        %v3026 = vadd.f32 0.0, %v3025
        %v3027 = vpop.f32.mrb[0].mxu0
        %v3028 = vpop.f32.mrb[0].mxu0
        %v3029 = vadd.f32 0.0, %v3028
        %v3030 = vpop.f32.mrb[0].mxu0
        %3031 = vmatprep.mubr.bf16.mxu0 0
        %3032 = vmatmul.mubr.bf16.gmra.mrb[0].mxu0 %v1946
        %v3033 = vpop.f32.mrb[0].mxu0
        %v3034 = vadd.f32 0.0, %v3033
        %v3035 = vpop.f32.mrb[0].mxu0
        %v3036 = vpop.f32.mrb[0].mxu0
        %v3037 = vadd.f32 0.0, %v3036
        %v3038 = vpop.f32.mrb[0].mxu0
        %3039 = vmatprep.mubr.bf16.mxu0 0
        %3040 = vmatmul.mubr.bf16.gmra.mrb[0].mxu0 %v1949
        %v3041 = vpop.f32.mrb[0].mxu0
        %v3042 = vadd.f32 0.0, %v3041
        %v3043 = vpop.f32.mrb[0].mxu0
        %v3044 = vpop.f32.mrb[0].mxu0
        %v3045 = vadd.f32 0.0, %v3044
        %v3046 = vpop.f32.mrb[0].mxu0
        %3047 = vmatprep.mubr.bf16.mxu0 0
        %3048 = vmatmul.mubr.bf16.gmra.mrb[0].mxu0 %v1952
        %v3049 = vpop.f32.mrb[0].mxu0
        %v3050 = vadd.f32 0.0, %v3049
        %v3051 = vpop.f32.mrb[0].mxu0
        %v3052 = vpop.f32.mrb[0].mxu0
        %v3053 = vadd.f32 0.0, %v3052
        %v3054 = vpop.f32.mrb[0].mxu0
        %3055 = vmatprep.mubr.bf16.mxu0 0
        %3056 = vmatmul.mubr.bf16.gmra.mrb[0].mxu0 %v1955
        %v3057 = vpop.f32.mrb[0].mxu0
        %v3058 = vadd.f32 0.0, %v3057
        %v3059 = vpop.f32.mrb[0].mxu0
        %v3060 = vpop.f32.mrb[0].mxu0
        %v3061 = vadd.f32 0.0, %v3060
        %v3062 = vpop.f32.mrb[0].mxu0
        %3063 = vmatprep.mubr.bf16.mxu0 0
        %3064 = vmatmul.mubr.bf16.gmra.mrb[0].mxu0 %v1958
        %v3065 = vpop.f32.mrb[0].mxu0
        %v3066 = vadd.f32 0.0, %v3065
        %v3067 = vpop.f32.mrb[0].mxu0
        %v3068 = vpop.f32.mrb[0].mxu0
        %v3069 = vadd.f32 0.0, %v3068
        %v3070 = vpop.f32.mrb[0].mxu0
        %3071 = vmatprep.mubr.bf16.mxu0 0
        %3072 = vmatmul.mubr.bf16.gmra.mrb[0].mxu0 %v1961
        %v3073 = vpop.f32.mrb[0].mxu0
        %v3074 = vadd.f32 0.0, %v3073
        %v3075 = vpop.f32.mrb[0].mxu0
        %v3076 = vpop.f32.mrb[0].mxu0
        %v3077 = vadd.f32 0.0, %v3076
        %v3078 = vpop.f32.mrb[0].mxu0
        %3079 = vmatprep.mubr.bf16.mxu0 0
        %3080 = vmatmul.mubr.bf16.gmra.mrb[0].mxu0 %v1964
        %v3081 = vpop.f32.mrb[0].mxu0
        %v3082 = vadd.f32 0.0, %v3081
        %v3083 = vpop.f32.mrb[0].mxu0
        %v3084 = vpop.f32.mrb[0].mxu0
        %v3085 = vadd.f32 0.0, %v3084
        %v3086 = vpop.f32.mrb[0].mxu0
        %3087 = vmatprep.mubr.bf16.mxu0 0
        %3088 = vmatmul.mubr.bf16.gmra.mrb[0].mxu0 %v1967
        %v3089 = vpop.f32.mrb[0].mxu0
        %v3090 = vadd.f32 0.0, %v3089
        %v3091 = vpop.f32.mrb[0].mxu0
        %v3092 = vpop.f32.mrb[0].mxu0
        %v3093 = vadd.f32 0.0, %v3092
        %v3094 = vpop.f32.mrb[0].mxu0
        %3095 = vmatprep.mubr.bf16.mxu0 0
        %3096 = vmatmul.mubr.bf16.gmra.mrb[0].mxu0 %v1970
        %v3097 = vpop.f32.mrb[0].mxu0
        %v3098 = vadd.f32 0.0, %v3097
        %v3099 = vpop.f32.mrb[0].mxu0
        %v3100 = vpop.f32.mrb[0].mxu0
        %v3101 = vadd.f32 0.0, %v3100
        %v3102 = vpop.f32.mrb[0].mxu0
        %3103 = vdwg.mxu0
        %v3152 = vunpack.c.l.b16 %v2831
        %v3153 = vunpack.c.l.b16 %v2832
        %v3154 = vunpack.c.l.b16 %v2833
        %v3155 = vunpack.c.l.b16 %v2834
        %v3156 = vunpack.c.l.b16 %v2835
        %v3157 = vunpack.c.l.b16 %v2836
        %v3158 = vunpack.c.l.b16 %v2837
        %v3159 = vunpack.c.l.b16 %v2838
        %v3160 = vunpack.c.l.b16 %v2839
        %v3161 = vunpack.c.l.b16 %v2840
        %v3162 = vunpack.c.l.b16 %v2841
        %v3163 = vunpack.c.l.b16 %v2842
        %v3164 = vunpack.c.l.b16 %v2843
        %v3165 = vunpack.c.l.b16 %v2844
        %v3166 = vunpack.c.l.b16 %v2845
        %v3167 = vunpack.c.l.b16 %v2846
        %v3168 = vunpack.c.l.b16 %v2847
        %v3169 = vunpack.c.l.b16 %v2848
        %v3170 = vunpack.c.l.b16 %v2849
        %v3171 = vunpack.c.l.b16 %v2850
        %v3172 = vunpack.c.l.b16 %v2851
        %v3173 = vunpack.c.l.b16 %v2852
        %v3174 = vunpack.c.l.b16 %v2853
        %v3175 = vunpack.c.l.b16 %v2854
        %v3176 = vunpack.c.l.b16 %v2855
        %v3177 = vunpack.c.l.b16 %v2856
        %v3178 = vunpack.c.l.b16 %v2857
        %v3179 = vunpack.c.l.b16 %v2858
        %v3180 = vunpack.c.l.b16 %v2859
        %v3181 = vunpack.c.l.b16 %v2860
        %v3182 = vunpack.c.l.b16 %v2861
        %v3183 = vunpack.c.l.b16 %v2862
        %v3184 = vunpack.c.l.b16 %v2863
        %v3185 = vunpack.c.l.b16 %v2864
        %v3186 = vunpack.c.l.b16 %v2865
        %v3187 = vunpack.c.l.b16 %v2866
        %v3188 = vunpack.c.l.b16 %v2867
        %v3189 = vunpack.c.l.b16 %v2868
        %v3190 = vunpack.c.l.b16 %v2869
        %v3191 = vunpack.c.l.b16 %v2870
        %v3192 = vunpack.c.l.b16 %v2871
        %v3193 = vunpack.c.l.b16 %v2872
        %v3194 = vunpack.c.l.b16 %v2873
        %v3195 = vunpack.c.l.b16 %v2874
        %v3196 = vunpack.c.l.b16 %v2875
        %v3197 = vunpack.c.l.b16 %v2876
        %v3198 = vunpack.c.l.b16 %v2877
        %v3199 = vunpack.c.l.b16 %v2878
        %v3200 = vpack.c.b16 %v3153, %v3152
        %v3201 = vpack.c.b16 %v3155, %v3154
        %v3202 = vpack.c.b16 %v3157, %v3156
        %v3203 = vpack.c.b16 %v3159, %v3158
        %v3204 = vpack.c.b16 %v3161, %v3160
        %v3205 = vpack.c.b16 %v3163, %v3162
        %v3206 = vpack.c.b16 %v3165, %v3164
        %v3207 = vpack.c.b16 %v3167, %v3166
        %v3208 = vpack.c.b16 %v3169, %v3168
        %v3209 = vpack.c.b16 %v3171, %v3170
        %v3210 = vpack.c.b16 %v3173, %v3172
        %v3211 = vpack.c.b16 %v3175, %v3174
        %v3212 = vpack.c.b16 %v3177, %v3176
        %v3213 = vpack.c.b16 %v3179, %v3178
        %v3214 = vpack.c.b16 %v3181, %v3180
        %v3215 = vpack.c.b16 %v3183, %v3182
        %v3216 = vpack.c.b16 %v3185, %v3184
        %v3217 = vpack.c.b16 %v3187, %v3186
        %v3218 = vpack.c.b16 %v3189, %v3188
        %v3219 = vpack.c.b16 %v3191, %v3190
        %v3220 = vpack.c.b16 %v3193, %v3192
        %v3221 = vpack.c.b16 %v3195, %v3194
        %v3222 = vpack.c.b16 %v3197, %v3196
        %v3223 = vpack.c.b16 %v3199, %v3198
        %3248 = vmatprep.subr.bf16.mxu0 0
        %3249 = vmatpush1.bf16.msra.mxu0 %v3200
        %3250 = vmatprep.subr.bf16.mxu0 0
        %3251 = vmatpush1.bf16.msra.mxu0 %v3201
        %3252 = vmatprep.subr.bf16.mxu0 0
        %3253 = vmatpush1.bf16.msra.mxu0 %v3202
        %3254 = vmatprep.subr.bf16.mxu0 0
        %3255 = vmatpush1.bf16.msra.mxu0 %v3203
        %3256 = vmatprep.subr.bf16.mxu0 0
        %3257 = vmatpush1.bf16.msra.mxu0 %v3204
        %3258 = vmatprep.subr.bf16.mxu0 0
        %3259 = vmatpush1.bf16.msra.mxu0 %v3205
        %3260 = vmatprep.subr.bf16.mxu0 0
        %3261 = vmatpush1.bf16.msra.mxu0 %v3206
        %3262 = vmatprep.subr.bf16.mxu0 0
        %3263 = vmatpush1.bf16.msra.mxu0 %v3207
        %3264 = vmatprep.subr.bf16.mxu0 0
        %3265 = vmatpush1.bf16.msra.mxu0 %v3208
        %3266 = vmatprep.subr.bf16.mxu0 0
        %3267 = vmatpush1.bf16.msra.mxu0 %v3209
        %3268 = vmatprep.subr.bf16.mxu0 0
        %3269 = vmatpush1.bf16.msra.mxu0 %v3210
        %3270 = vmatprep.subr.bf16.mxu0 0
        %3271 = vmatpush1.bf16.msra.mxu0 %v3211
        %3272 = vmatprep.subr.bf16.mxu0 0
        %3273 = vmatpush1.bf16.msra.mxu0 %v3212
        %3274 = vmatprep.subr.bf16.mxu0 0
        %3275 = vmatpush1.bf16.msra.mxu0 %v3213
        %3276 = vmatprep.subr.bf16.mxu0 0
        %3277 = vmatpush1.bf16.msra.mxu0 %v3214
        %3278 = vmatprep.subr.bf16.mxu0 0
        %3279 = vmatpush1.bf16.msra.mxu0 %v3215
        %3280 = vmatprep.mubr.bf16.mxu0 %v2783
        %3281 = vmatmul.mubr.bf16.gmra.mrb[0].mxu0 %v2782
        %v3282 = vpop.f32.mrb[0].mxu0
        %v3283 = vadd.f32 %v2978, %v3282
        %v3284 = vpop.f32.mrb[0].mxu0
        %v3285 = vpop.f32.mrb[0].mxu0
        %v3286 = vadd.f32 %v2981, %v3285
        %v3287 = vpop.f32.mrb[0].mxu0
        %3288 = vmatprep.mubr.bf16.mxu0 %v2786
        %3289 = vmatmul.mubr.bf16.gmra.mrb[0].mxu0 %v2785
        %v3290 = vpop.f32.mrb[0].mxu0
        %v3291 = vadd.f32 %v2986, %v3290
        %v3292 = vpop.f32.mrb[0].mxu0
        %v3293 = vpop.f32.mrb[0].mxu0
        %v3294 = vadd.f32 %v2989, %v3293
        %v3295 = vpop.f32.mrb[0].mxu0
        %3296 = vmatprep.mubr.bf16.mxu0 %v2789
        %3297 = vmatmul.mubr.bf16.gmra.mrb[0].mxu0 %v2788
        %v3298 = vpop.f32.mrb[0].mxu0
        %v3299 = vadd.f32 %v2994, %v3298
        %v3300 = vpop.f32.mrb[0].mxu0
        %v3301 = vpop.f32.mrb[0].mxu0
        %v3302 = vadd.f32 %v2997, %v3301
        %v3303 = vpop.f32.mrb[0].mxu0
        %3304 = vmatprep.mubr.bf16.mxu0 %v2792
        %3305 = vmatmul.mubr.bf16.gmra.mrb[0].mxu0 %v2791
        %v3306 = vpop.f32.mrb[0].mxu0
        %v3307 = vadd.f32 %v3002, %v3306
        %v3308 = vpop.f32.mrb[0].mxu0
        %v3309 = vpop.f32.mrb[0].mxu0
        %v3310 = vadd.f32 %v3005, %v3309
        %v3311 = vpop.f32.mrb[0].mxu0
        %3312 = vmatprep.mubr.bf16.mxu0 %v2795
        %3313 = vmatmul.mubr.bf16.gmra.mrb[0].mxu0 %v2794
        %v3314 = vpop.f32.mrb[0].mxu0
        %v3315 = vadd.f32 %v3010, %v3314
        %v3316 = vpop.f32.mrb[0].mxu0
        %v3317 = vpop.f32.mrb[0].mxu0
        %v3318 = vadd.f32 %v3013, %v3317
        %v3319 = vpop.f32.mrb[0].mxu0
        %3320 = vmatprep.mubr.bf16.mxu0 %v2798
        %3321 = vmatmul.mubr.bf16.gmra.mrb[0].mxu0 %v2797
        %v3322 = vpop.f32.mrb[0].mxu0
        %v3323 = vadd.f32 %v3018, %v3322
        %v3324 = vpop.f32.mrb[0].mxu0
        %v3325 = vpop.f32.mrb[0].mxu0
        %v3326 = vadd.f32 %v3021, %v3325
        %v3327 = vpop.f32.mrb[0].mxu0
        %3328 = vmatprep.mubr.bf16.mxu0 %v2801
        %3329 = vmatmul.mubr.bf16.gmra.mrb[0].mxu0 %v2800
        %v3330 = vpop.f32.mrb[0].mxu0
        %v3331 = vadd.f32 %v3026, %v3330
        %v3332 = vpop.f32.mrb[0].mxu0
        %v3333 = vpop.f32.mrb[0].mxu0
        %v3334 = vadd.f32 %v3029, %v3333
        %v3335 = vpop.f32.mrb[0].mxu0
        %3336 = vmatprep.mubr.bf16.mxu0 %v2804
        %3337 = vmatmul.mubr.bf16.gmra.mrb[0].mxu0 %v2803
        %v3338 = vpop.f32.mrb[0].mxu0
        %v3339 = vadd.f32 %v3034, %v3338
        %v3340 = vpop.f32.mrb[0].mxu0
        %v3341 = vpop.f32.mrb[0].mxu0
        %v3342 = vadd.f32 %v3037, %v3341
        %v3343 = vpop.f32.mrb[0].mxu0
        %3344 = vmatprep.mubr.bf16.mxu0 %v2807
        %3345 = vmatmul.mubr.bf16.gmra.mrb[0].mxu0 %v2806
        %v3346 = vpop.f32.mrb[0].mxu0
        %v3347 = vadd.f32 %v3042, %v3346
        %v3348 = vpop.f32.mrb[0].mxu0
        %v3349 = vpop.f32.mrb[0].mxu0
        %v3350 = vadd.f32 %v3045, %v3349
        %v3351 = vpop.f32.mrb[0].mxu0
        %3352 = vmatprep.mubr.bf16.mxu0 %v2810
        %3353 = vmatmul.mubr.bf16.gmra.mrb[0].mxu0 %v2809
        %v3354 = vpop.f32.mrb[0].mxu0
        %v3355 = vadd.f32 %v3050, %v3354
        %v3356 = vpop.f32.mrb[0].mxu0
        %v3357 = vpop.f32.mrb[0].mxu0
        %v3358 = vadd.f32 %v3053, %v3357
        %v3359 = vpop.f32.mrb[0].mxu0
        %3360 = vmatprep.mubr.bf16.mxu0 %v2813
        %3361 = vmatmul.mubr.bf16.gmra.mrb[0].mxu0 %v2812
        %v3362 = vpop.f32.mrb[0].mxu0
        %v3363 = vadd.f32 %v3058, %v3362
        %v3364 = vpop.f32.mrb[0].mxu0
        %v3365 = vpop.f32.mrb[0].mxu0
        %v3366 = vadd.f32 %v3061, %v3365
        %v3367 = vpop.f32.mrb[0].mxu0
        %3368 = vmatprep.mubr.bf16.mxu0 %v2816
        %3369 = vmatmul.mubr.bf16.gmra.mrb[0].mxu0 %v2815
        %v3370 = vpop.f32.mrb[0].mxu0
        %v3371 = vadd.f32 %v3066, %v3370
        %v3372 = vpop.f32.mrb[0].mxu0
        %v3373 = vpop.f32.mrb[0].mxu0
        %v3374 = vadd.f32 %v3069, %v3373
        %v3375 = vpop.f32.mrb[0].mxu0
        %3376 = vmatprep.mubr.bf16.mxu0 %v2819
        %3377 = vmatmul.mubr.bf16.gmra.mrb[0].mxu0 %v2818
        %v3378 = vpop.f32.mrb[0].mxu0
        %v3379 = vadd.f32 %v3074, %v3378
        %v3380 = vpop.f32.mrb[0].mxu0
        %v3381 = vpop.f32.mrb[0].mxu0
        %v3382 = vadd.f32 %v3077, %v3381
        %v3383 = vpop.f32.mrb[0].mxu0
        %3384 = vmatprep.mubr.bf16.mxu0 %v2822
        %3385 = vmatmul.mubr.bf16.gmra.mrb[0].mxu0 %v2821
        %v3386 = vpop.f32.mrb[0].mxu0
        %v3387 = vadd.f32 %v3082, %v3386
        %v3388 = vpop.f32.mrb[0].mxu0
        %v3389 = vpop.f32.mrb[0].mxu0
        %v3390 = vadd.f32 %v3085, %v3389
        %v3391 = vpop.f32.mrb[0].mxu0
        %3392 = vmatprep.mubr.bf16.mxu0 %v2825
        %3393 = vmatmul.mubr.bf16.gmra.mrb[0].mxu0 %v2824
        %v3394 = vpop.f32.mrb[0].mxu0
        %v3395 = vadd.f32 %v3090, %v3394
        %v3396 = vpop.f32.mrb[0].mxu0
        %v3397 = vpop.f32.mrb[0].mxu0
        %v3398 = vadd.f32 %v3093, %v3397
        %v3399 = vpop.f32.mrb[0].mxu0
        %3400 = vmatprep.mubr.bf16.mxu0 %v2828
        %3401 = vmatmul.mubr.bf16.gmra.mrb[0].mxu0 %v2827
        %v3402 = vpop.f32.mrb[0].mxu0
        %v3403 = vadd.f32 %v3098, %v3402
        %v3404 = vpop.f32.mrb[0].mxu0
        %v3405 = vpop.f32.mrb[0].mxu0
        %v3406 = vadd.f32 %v3101, %v3405
        %v3407 = vpop.f32.mrb[0].mxu0
        %3408 = vdwg.mxu0
        %3409 = vmatprep.subr.bf16.mxu0 0
        %3410 = vmatpush1.bf16.msra.mxu0 %v3216
        %3411 = vmatprep.subr.bf16.mxu0 0
        %3412 = vmatpush1.bf16.msra.mxu0 %v3217
        %3413 = vmatprep.subr.bf16.mxu0 0
        %3414 = vmatpush1.bf16.msra.mxu0 %v3218
        %3415 = vmatprep.subr.bf16.mxu0 0
        %3416 = vmatpush1.bf16.msra.mxu0 %v3219
        %3417 = vmatprep.subr.bf16.mxu0 0
        %3418 = vmatpush1.bf16.msra.mxu0 %v3220
        %3419 = vmatprep.subr.bf16.mxu0 0
        %3420 = vmatpush1.bf16.msra.mxu0 %v3221
        %3421 = vmatprep.subr.bf16.mxu0 0
        %3422 = vmatpush1.bf16.msra.mxu0 %v3222
        %3423 = vmatprep.subr.bf16.mxu0 0
        %3424 = vmatpush1.bf16.msra.mxu0 %v3223
        %3425 = vmatprep.subr.bf16.mxu0 0
        %3426 = vmatpush1.bf16.msra.mxu0 0
        %3427 = vmatprep.subr.bf16.mxu0 0
        %3428 = vmatpush1.bf16.msra.mxu0 0
        %3429 = vmatprep.subr.bf16.mxu0 0
        %3430 = vmatpush1.bf16.msra.mxu0 0
        %3431 = vmatprep.subr.bf16.mxu0 0
        %3432 = vmatpush1.bf16.msra.mxu0 0
        %3433 = vmatprep.subr.bf16.mxu0 0
        %3434 = vmatpush1.bf16.msra.mxu0 0
        %3435 = vmatprep.subr.bf16.mxu0 0
        %3436 = vmatpush1.bf16.msra.mxu0 0
        %3437 = vmatprep.subr.bf16.mxu0 0
        %3438 = vmatpush1.bf16.msra.mxu0 0
        %3439 = vmatprep.subr.bf16.mxu0 0
        %3440 = vmatpush1.bf16.msra.mxu0 0
        %3441 = vmatprep.mubr.bf16.mxu0 0
        %3442 = vmatmul.mubr.bf16.gmra.mrb[0].mxu0 %v2784
        %v3443 = vpop.f32.mrb[0].mxu0
        %v3444 = vadd.f32 %v3283, %v3443
        %v3445 = vpop.f32.mrb[0].mxu0
        %v3446 = vpop.f32.mrb[0].mxu0
        %v3447 = vadd.f32 %v3286, %v3446
        %v3448 = vpop.f32.mrb[0].mxu0
        %3449 = vmatprep.mubr.bf16.mxu0 0
        %3450 = vmatmul.mubr.bf16.gmra.mrb[0].mxu0 %v2787
        %v3451 = vpop.f32.mrb[0].mxu0
        %v3452 = vadd.f32 %v3291, %v3451
        %v3453 = vpop.f32.mrb[0].mxu0
        %v3454 = vpop.f32.mrb[0].mxu0
        %v3455 = vadd.f32 %v3294, %v3454
        %v3456 = vpop.f32.mrb[0].mxu0
        %3457 = vmatprep.mubr.bf16.mxu0 0
        %3458 = vmatmul.mubr.bf16.gmra.mrb[0].mxu0 %v2790
        %v3459 = vpop.f32.mrb[0].mxu0
        %v3460 = vadd.f32 %v3299, %v3459
        %v3461 = vpop.f32.mrb[0].mxu0
        %v3462 = vpop.f32.mrb[0].mxu0
        %v3463 = vadd.f32 %v3302, %v3462
        %v3464 = vpop.f32.mrb[0].mxu0
        %3465 = vmatprep.mubr.bf16.mxu0 0
        %3466 = vmatmul.mubr.bf16.gmra.mrb[0].mxu0 %v2793
        %v3467 = vpop.f32.mrb[0].mxu0
        %v3468 = vadd.f32 %v3307, %v3467
        %v3469 = vpop.f32.mrb[0].mxu0
        %v3470 = vpop.f32.mrb[0].mxu0
        %v3471 = vadd.f32 %v3310, %v3470
        %v3472 = vpop.f32.mrb[0].mxu0
        %3473 = vmatprep.mubr.bf16.mxu0 0
        %3474 = vmatmul.mubr.bf16.gmra.mrb[0].mxu0 %v2796
        %v3475 = vpop.f32.mrb[0].mxu0
        %v3476 = vadd.f32 %v3315, %v3475
        %v3477 = vpop.f32.mrb[0].mxu0
        %v3478 = vpop.f32.mrb[0].mxu0
        %v3479 = vadd.f32 %v3318, %v3478
        %v3480 = vpop.f32.mrb[0].mxu0
        %3481 = vmatprep.mubr.bf16.mxu0 0
        %3482 = vmatmul.mubr.bf16.gmra.mrb[0].mxu0 %v2799
        %v3483 = vpop.f32.mrb[0].mxu0
        %v3484 = vadd.f32 %v3323, %v3483
        %v3485 = vpop.f32.mrb[0].mxu0
        %v3486 = vpop.f32.mrb[0].mxu0
        %v3487 = vadd.f32 %v3326, %v3486
        %v3488 = vpop.f32.mrb[0].mxu0
        %3489 = vmatprep.mubr.bf16.mxu0 0
        %3490 = vmatmul.mubr.bf16.gmra.mrb[0].mxu0 %v2802
        %v3491 = vpop.f32.mrb[0].mxu0
        %v3492 = vadd.f32 %v3331, %v3491
        %v3493 = vpop.f32.mrb[0].mxu0
        %v3494 = vpop.f32.mrb[0].mxu0
        %v3495 = vadd.f32 %v3334, %v3494
        %v3496 = vpop.f32.mrb[0].mxu0
        %3497 = vmatprep.mubr.bf16.mxu0 0
        %3498 = vmatmul.mubr.bf16.gmra.mrb[0].mxu0 %v2805
        %v3499 = vpop.f32.mrb[0].mxu0
        %v3500 = vadd.f32 %v3339, %v3499
        %v3501 = vpop.f32.mrb[0].mxu0
        %v3502 = vpop.f32.mrb[0].mxu0
        %v3503 = vadd.f32 %v3342, %v3502
        %v3504 = vpop.f32.mrb[0].mxu0
        %3505 = vmatprep.mubr.bf16.mxu0 0
        %3506 = vmatmul.mubr.bf16.gmra.mrb[0].mxu0 %v2808
        %v3507 = vpop.f32.mrb[0].mxu0
        %v3508 = vadd.f32 %v3347, %v3507
        %v3509 = vpop.f32.mrb[0].mxu0
        %v3510 = vpop.f32.mrb[0].mxu0
        %v3511 = vadd.f32 %v3350, %v3510
        %v3512 = vpop.f32.mrb[0].mxu0
        %3513 = vmatprep.mubr.bf16.mxu0 0
        %3514 = vmatmul.mubr.bf16.gmra.mrb[0].mxu0 %v2811
        %v3515 = vpop.f32.mrb[0].mxu0
        %v3516 = vadd.f32 %v3355, %v3515
        %v3517 = vpop.f32.mrb[0].mxu0
        %v3518 = vpop.f32.mrb[0].mxu0
        %v3519 = vadd.f32 %v3358, %v3518
        %v3520 = vpop.f32.mrb[0].mxu0
        %3521 = vmatprep.mubr.bf16.mxu0 0
        %3522 = vmatmul.mubr.bf16.gmra.mrb[0].mxu0 %v2814
        %v3523 = vpop.f32.mrb[0].mxu0
        %v3524 = vadd.f32 %v3363, %v3523
        %v3525 = vpop.f32.mrb[0].mxu0
        %v3526 = vpop.f32.mrb[0].mxu0
        %v3527 = vadd.f32 %v3366, %v3526
        %v3528 = vpop.f32.mrb[0].mxu0
        %3529 = vmatprep.mubr.bf16.mxu0 0
        %3530 = vmatmul.mubr.bf16.gmra.mrb[0].mxu0 %v2817
        %v3531 = vpop.f32.mrb[0].mxu0
        %v3532 = vadd.f32 %v3371, %v3531
        %v3533 = vpop.f32.mrb[0].mxu0
        %v3534 = vpop.f32.mrb[0].mxu0
        %v3535 = vadd.f32 %v3374, %v3534
        %v3536 = vpop.f32.mrb[0].mxu0
        %3537 = vmatprep.mubr.bf16.mxu0 0
        %3538 = vmatmul.mubr.bf16.gmra.mrb[0].mxu0 %v2820
        %v3539 = vpop.f32.mrb[0].mxu0
        %v3540 = vadd.f32 %v3379, %v3539
        %v3541 = vpop.f32.mrb[0].mxu0
        %v3542 = vpop.f32.mrb[0].mxu0
        %v3543 = vadd.f32 %v3382, %v3542
        %v3544 = vpop.f32.mrb[0].mxu0
        %3545 = vmatprep.mubr.bf16.mxu0 0
        %3546 = vmatmul.mubr.bf16.gmra.mrb[0].mxu0 %v2823
        %v3547 = vpop.f32.mrb[0].mxu0
        %v3548 = vadd.f32 %v3387, %v3547
        %v3549 = vpop.f32.mrb[0].mxu0
        %v3550 = vpop.f32.mrb[0].mxu0
        %v3551 = vadd.f32 %v3390, %v3550
        %v3552 = vpop.f32.mrb[0].mxu0
        %3553 = vmatprep.mubr.bf16.mxu0 0
        %3554 = vmatmul.mubr.bf16.gmra.mrb[0].mxu0 %v2826
        %v3555 = vpop.f32.mrb[0].mxu0
        %v3556 = vadd.f32 %v3395, %v3555
        %v3557 = vpop.f32.mrb[0].mxu0
        %v3558 = vpop.f32.mrb[0].mxu0
        %v3559 = vadd.f32 %v3398, %v3558
        %v3560 = vpop.f32.mrb[0].mxu0
        %3561 = vmatprep.mubr.bf16.mxu0 0
        %3562 = vmatmul.mubr.bf16.gmra.mrb[0].mxu0 %v2829
        %v3563 = vpop.f32.mrb[0].mxu0
        %v3564 = vadd.f32 %v3403, %v3563
        %v3565 = vpop.f32.mrb[0].mxu0
        %v3566 = vpop.f32.mrb[0].mxu0
        %v3567 = vadd.f32 %v3406, %v3566
        %v3568 = vpop.f32.mrb[0].mxu0
        %3569 = vdwg.mxu0
        %v3570 = vlaneseq
        %v3571 = vshrl.u32 %v3570, 7
        %v3572 = vsub.s32 7, %v3571
        %v3573 = vrot.slane %v394, %v3572
        %v3574 = vmul.f32 %v3444, %v3573
        %v3575 = vmul.f32 %v3447, %v3573
        %v3576 = vmul.f32 %v3452, %v3573
        %v3577 = vmul.f32 %v3455, %v3573
        %v3578 = vmul.f32 %v3460, %v3573
        %v3579 = vmul.f32 %v3463, %v3573
        %v3580 = vmul.f32 %v3468, %v3573
        %v3581 = vmul.f32 %v3471, %v3573
        %v3582 = vmul.f32 %v3476, %v3573
        %v3583 = vmul.f32 %v3479, %v3573
        %v3584 = vmul.f32 %v3484, %v3573
        %v3585 = vmul.f32 %v3487, %v3573
        %v3586 = vmul.f32 %v3492, %v3573
        %v3587 = vmul.f32 %v3495, %v3573
        %v3588 = vmul.f32 %v3500, %v3573
        %v3589 = vmul.f32 %v3503, %v3573
        %v3590 = vmul.f32 %v3508, %v3573
        %v3591 = vmul.f32 %v3511, %v3573
        %v3592 = vmul.f32 %v3516, %v3573
        %v3593 = vmul.f32 %v3519, %v3573
        %v3594 = vmul.f32 %v3524, %v3573
        %v3595 = vmul.f32 %v3527, %v3573
        %v3596 = vmul.f32 %v3532, %v3573
        %v3597 = vmul.f32 %v3535, %v3573
        %v3598 = vmul.f32 %v3540, %v3573
        %v3599 = vmul.f32 %v3543, %v3573
        %v3600 = vmul.f32 %v3548, %v3573
        %v3601 = vmul.f32 %v3551, %v3573
        %v3602 = vmul.f32 %v3556, %v3573
        %v3603 = vmul.f32 %v3559, %v3573
        %v3604 = vmul.f32 %v3564, %v3573
        %v3605 = vmul.f32 %v3567, %v3573
        %v3606 = vlaneseq
        %v3607 = vshrl.u32 %v3606, 7
        %v3608 = vsub.s32 0, %v3607
        %v3609 = vrot.slane %v395, %v3608
        %v3610 = vadd.f32 %v3574, %v3609
        %v3611 = vadd.f32 %v3575, %v3609
        %v3612 = vadd.f32 %v3576, %v3609
        %v3613 = vadd.f32 %v3577, %v3609
        %v3614 = vadd.f32 %v3578, %v3609
        %v3615 = vadd.f32 %v3579, %v3609
        %v3616 = vadd.f32 %v3580, %v3609
        %v3617 = vadd.f32 %v3581, %v3609
        %v3618 = vadd.f32 %v3582, %v3609
        %v3619 = vadd.f32 %v3583, %v3609
        %v3620 = vadd.f32 %v3584, %v3609
        %v3621 = vadd.f32 %v3585, %v3609
        %v3622 = vadd.f32 %v3586, %v3609
        %v3623 = vadd.f32 %v3587, %v3609
        %v3624 = vadd.f32 %v3588, %v3609
        %v3625 = vadd.f32 %v3589, %v3609
        %v3626 = vadd.f32 %v3590, %v3609
        %v3627 = vadd.f32 %v3591, %v3609
        %v3628 = vadd.f32 %v3592, %v3609
        %v3629 = vadd.f32 %v3593, %v3609
        %v3630 = vadd.f32 %v3594, %v3609
        %v3631 = vadd.f32 %v3595, %v3609
        %v3632 = vadd.f32 %v3596, %v3609
        %v3633 = vadd.f32 %v3597, %v3609
        %v3634 = vadd.f32 %v3598, %v3609
        %v3635 = vadd.f32 %v3599, %v3609
        %v3636 = vadd.f32 %v3600, %v3609
        %v3637 = vadd.f32 %v3601, %v3609
        %v3638 = vadd.f32 %v3602, %v3609
        %v3639 = vadd.f32 %v3603, %v3609
        %v3640 = vadd.f32 %v3604, %v3609
        %v3641 = vadd.f32 %v3605, %v3609
        %v3642 = vmax.f32 %v3610, 0.0
        %v3643 = vmax.f32 %v3611, 0.0
        %v3644 = vmax.f32 %v3612, 0.0
        %v3645 = vmax.f32 %v3613, 0.0
        %v3646 = vmax.f32 %v3614, 0.0
        %v3647 = vmax.f32 %v3615, 0.0
        %v3648 = vmax.f32 %v3616, 0.0
        %v3649 = vmax.f32 %v3617, 0.0
        %v3650 = vmax.f32 %v3618, 0.0
        %v3651 = vmax.f32 %v3619, 0.0
        %v3652 = vmax.f32 %v3620, 0.0
        %v3653 = vmax.f32 %v3621, 0.0
        %v3654 = vmax.f32 %v3622, 0.0
        %v3655 = vmax.f32 %v3623, 0.0
        %v3656 = vmax.f32 %v3624, 0.0
        %v3657 = vmax.f32 %v3625, 0.0
        %v3658 = vmax.f32 %v3626, 0.0
        %v3659 = vmax.f32 %v3627, 0.0
        %v3660 = vmax.f32 %v3628, 0.0
        %v3661 = vmax.f32 %v3629, 0.0
        %v3662 = vmax.f32 %v3630, 0.0
        %v3663 = vmax.f32 %v3631, 0.0
        %v3664 = vmax.f32 %v3632, 0.0
        %v3665 = vmax.f32 %v3633, 0.0
        %v3666 = vmax.f32 %v3634, 0.0
        %v3667 = vmax.f32 %v3635, 0.0
        %v3668 = vmax.f32 %v3636, 0.0
        %v3669 = vmax.f32 %v3637, 0.0
        %v3670 = vmax.f32 %v3638, 0.0
        %v3671 = vmax.f32 %v3639, 0.0
        %v3672 = vmax.f32 %v3640, 0.0
        %v3673 = vmax.f32 %v3641, 0.0
        %v3674 = vld [vmem:[%s6] sm:$0xff]
        %v3675 = vld [vmem:[%s6 + $0x8] sm:$0xff]
        %v3676 = vld [vmem:[%s6 + $0x10] sm:$0xff]
        %v3677 = vld [vmem:[%s6 + $0x18] sm:$0xff]
        %v3678 = vld [vmem:[%s6 + $0x20] sm:$0xff]
        %v3679 = vld [vmem:[%s6 + $0x28] sm:$0xff]
        %v3680 = vld [vmem:[%s6 + $0x30] sm:$0xff]
        %v3681 = vld [vmem:[%s6 + $0x38] sm:$0xff]
        %v3682 = vld [vmem:[%s6 + $0x40] sm:$0xff]
        %v3683 = vld [vmem:[%s6 + $0x48] sm:$0xff]
        %v3684 = vld [vmem:[%s6 + $0x50] sm:$0xff]
        %v3685 = vld [vmem:[%s6 + $0x58] sm:$0xff]
        %v3686 = vld [vmem:[%s6 + $0x60] sm:$0xff]
        %v3687 = vld [vmem:[%s6 + $0x68] sm:$0xff]
        %v3688 = vld [vmem:[%s6 + $0x70] sm:$0xff]
        %v3689 = vld [vmem:[%s6 + $0x78] sm:$0xff]
        %v3690 = vld [vmem:[%s6 + $0x80] sm:$0xff]
        %v3691 = vld [vmem:[%s6 + $0x88] sm:$0xff]
        %v3692 = vld [vmem:[%s6 + $0x90] sm:$0xff]
        %v3693 = vld [vmem:[%s6 + $0x98] sm:$0xff]
        %v3694 = vld [vmem:[%s6 + $0xa0] sm:$0xff]
        %v3695 = vld [vmem:[%s6 + $0xa8] sm:$0xff]
        %v3696 = vld [vmem:[%s6 + $0xb0] sm:$0xff]
        %v3697 = vld [vmem:[%s6 + $0xb8] sm:$0xff]
        %v3698 = vld [vmem:[%s6 + $0xc0] sm:$0xff]
        %v3699 = vld [vmem:[%s6 + $0xc8] sm:$0xff]
        %v3700 = vld [vmem:[%s6 + $0xd0] sm:$0xff]
        %v3701 = vld [vmem:[%s6 + $0xd8] sm:$0xff]
        %v3702 = vld [vmem:[%s6 + $0xe0] sm:$0xff]
        %v3703 = vld [vmem:[%s6 + $0xe8] sm:$0xff]
        %v3704 = vld [vmem:[%s6 + $0xf0] sm:$0xff]
        %v3705 = vld [vmem:[%s6 + $0xf8] sm:$0xff]
        %v3706 = vld [vmem:[%s7] sm:$0xff]
        %v3707 = vld [vmem:[%s7 + $0x8] sm:$0xff]
        %v3708 = vld [vmem:[%s7 + $0x10] sm:$0xff]
        %v3709 = vld [vmem:[%s7 + $0x18] sm:$0xff]
        %v3710 = vld [vmem:[%s7 + $0x20] sm:$0xff]
        %v3711 = vld [vmem:[%s7 + $0x28] sm:$0xff]
        %v3712 = vld [vmem:[%s7 + $0x30] sm:$0xff]
        %v3713 = vld [vmem:[%s7 + $0x38] sm:$0xff]
        %v3714 = vld [vmem:[%s7 + $0x40] sm:$0xff]
        %v3715 = vld [vmem:[%s7 + $0x48] sm:$0xff]
        %v3716 = vld [vmem:[%s7 + $0x50] sm:$0xff]
        %v3717 = vld [vmem:[%s7 + $0x58] sm:$0xff]
        %v3718 = vld [vmem:[%s7 + $0x60] sm:$0xff]
        %v3719 = vld [vmem:[%s7 + $0x68] sm:$0xff]
        %v3720 = vld [vmem:[%s7 + $0x70] sm:$0xff]
        %v3721 = vld [vmem:[%s7 + $0x78] sm:$0xff]
        %v3722 = vld [vmem:[%s7 + $0x80] sm:$0xff]
        %v3723 = vld [vmem:[%s7 + $0x88] sm:$0xff]
        %v3724 = vld [vmem:[%s7 + $0x90] sm:$0xff]
        %v3725 = vld [vmem:[%s7 + $0x98] sm:$0xff]
        %v3726 = vld [vmem:[%s7 + $0xa0] sm:$0xff]
        %v3727 = vld [vmem:[%s7 + $0xa8] sm:$0xff]
        %v3728 = vld [vmem:[%s7 + $0xb0] sm:$0xff]
        %v3729 = vld [vmem:[%s7 + $0xb8] sm:$0xff]
        %v3730 = vld [vmem:[%s7 + $0xc0] sm:$0xff]
        %v3731 = vld [vmem:[%s7 + $0xc8] sm:$0xff]
        %v3732 = vld [vmem:[%s7 + $0xd0] sm:$0xff]
        %v3733 = vld [vmem:[%s7 + $0xd8] sm:$0xff]
        %v3734 = vld [vmem:[%s7 + $0xe0] sm:$0xff]
        %v3735 = vld [vmem:[%s7 + $0xe8] sm:$0xff]
        %v3736 = vld [vmem:[%s7 + $0xf0] sm:$0xff]
        %v3737 = vld [vmem:[%s7 + $0xf8] sm:$0xff]
        %3738 = vmatprep.subr.mxu0 0.0
        %3739 = vmatpush1.msra.mxu0 %v3642
        %3740 = vmatprep.subr.mxu0 0.0
        %3741 = vmatpush1.msra.mxu0 %v3643
        %3742 = vmatprep.subr.mxu0 0.0
        %3743 = vmatpush1.msra.mxu0 %v3644
        %3744 = vmatprep.subr.mxu0 0.0
        %3745 = vmatpush1.msra.mxu0 %v3645
        %3746 = vmatprep.subr.mxu0 0.0
        %3747 = vmatpush1.msra.mxu0 %v3646
        %3748 = vmatprep.subr.mxu0 0.0
        %3749 = vmatpush1.msra.mxu0 %v3647
        %3750 = vmatprep.subr.mxu0 0.0
        %3751 = vmatpush1.msra.mxu0 %v3648
        %3752 = vmatprep.subr.mxu0 0.0
        %3753 = vmatpush1.msra.mxu0 %v3649
        %3754 = vmatprep.subr.mxu0 0.0
        %3755 = vmatpush1.msra.mxu0 %v3650
        %3756 = vmatprep.subr.mxu0 0.0
        %3757 = vmatpush1.msra.mxu0 %v3651
        %3758 = vmatprep.subr.mxu0 0.0
        %3759 = vmatpush1.msra.mxu0 %v3652
        %3760 = vmatprep.subr.mxu0 0.0
        %3761 = vmatpush1.msra.mxu0 %v3653
        %3762 = vmatprep.subr.mxu0 0.0
        %3763 = vmatpush1.msra.mxu0 %v3654
        %3764 = vmatprep.subr.mxu0 0.0
        %3765 = vmatpush1.msra.mxu0 %v3655
        %3766 = vmatprep.subr.mxu0 0.0
        %3767 = vmatpush1.msra.mxu0 %v3656
        %3768 = vmatprep.subr.mxu0 0.0
        %3769 = vmatpush1.msra.mxu0 %v3657
        %3770 = vmatprep.subr.mxu0 0.0
        %3771 = vmatpush1.msra.mxu0 %v3658
        %3772 = vmatprep.subr.mxu0 0.0
        %3773 = vmatpush1.msra.mxu0 %v3659
        %3774 = vmatprep.subr.mxu0 0.0
        %3775 = vmatpush1.msra.mxu0 %v3660
        %3776 = vmatprep.subr.mxu0 0.0
        %3777 = vmatpush1.msra.mxu0 %v3661
        %3778 = vmatprep.subr.mxu0 0.0
        %3779 = vmatpush1.msra.mxu0 %v3662
        %3780 = vmatprep.subr.mxu0 0.0
        %3781 = vmatpush1.msra.mxu0 %v3663
        %3782 = vmatprep.subr.mxu0 0.0
        %3783 = vmatpush1.msra.mxu0 %v3664
        %3784 = vmatprep.subr.mxu0 0.0
        %3785 = vmatpush1.msra.mxu0 %v3665
        %3786 = vmatprep.subr.mxu0 0.0
        %3787 = vmatpush1.msra.mxu0 %v3666
        %3788 = vmatprep.subr.mxu0 0.0
        %3789 = vmatpush1.msra.mxu0 %v3667
        %3790 = vmatprep.subr.mxu0 0.0
        %3791 = vmatpush1.msra.mxu0 %v3668
        %3792 = vmatprep.subr.mxu0 0.0
        %3793 = vmatpush1.msra.mxu0 %v3669
        %3794 = vmatprep.subr.mxu0 0.0
        %3795 = vmatpush1.msra.mxu0 %v3670
        %3796 = vmatprep.subr.mxu0 0.0
        %3797 = vmatpush1.msra.mxu0 %v3671
        %3798 = vmatprep.subr.mxu0 0.0
        %3799 = vmatpush1.msra.mxu0 %v3672
        %3800 = vmatprep.subr.mxu0 0.0
        %3801 = vmatpush1.msra.mxu0 %v3673
        %3802 = vmatprep.mubr.f32.mxu0 %v3675
        %3803 = vmatmul.mubr.f32.gmra.mrb[0].mxu0 %v3674
        %v3804 = vpop.f32.mrb[0].mxu0
        %v3805 = vadd.f32 0.0, %v3804
        %v3806 = vpop.f32.mrb[0].mxu0
        %3807 = vmatprep.mubr.f32.mxu0 %v3677
        %3808 = vmatmul.mubr.f32.gmra.mrb[0].mxu0 %v3676
        %v3809 = vpop.f32.mrb[0].mxu0
        %v3810 = vadd.f32 0.0, %v3809
        %v3811 = vpop.f32.mrb[0].mxu0
        %3812 = vmatprep.mubr.f32.mxu0 %v3679
        %3813 = vmatmul.mubr.f32.gmra.mrb[0].mxu0 %v3678
        %v3814 = vpop.f32.mrb[0].mxu0
        %v3815 = vadd.f32 0.0, %v3814
        %v3816 = vpop.f32.mrb[0].mxu0
        %3817 = vmatprep.mubr.f32.mxu0 %v3681
        %3818 = vmatmul.mubr.f32.gmra.mrb[0].mxu0 %v3680
        %v3819 = vpop.f32.mrb[0].mxu0
        %v3820 = vadd.f32 0.0, %v3819
        %v3821 = vpop.f32.mrb[0].mxu0
        %3822 = vmatprep.mubr.f32.mxu0 %v3683
        %3823 = vmatmul.mubr.f32.gmra.mrb[0].mxu0 %v3682
        %v3824 = vpop.f32.mrb[0].mxu0
        %v3825 = vadd.f32 0.0, %v3824
        %v3826 = vpop.f32.mrb[0].mxu0
        %3827 = vmatprep.mubr.f32.mxu0 %v3685
        %3828 = vmatmul.mubr.f32.gmra.mrb[0].mxu0 %v3684
        %v3829 = vpop.f32.mrb[0].mxu0
        %v3830 = vadd.f32 0.0, %v3829
        %v3831 = vpop.f32.mrb[0].mxu0
        %3832 = vmatprep.mubr.f32.mxu0 %v3687
        %3833 = vmatmul.mubr.f32.gmra.mrb[0].mxu0 %v3686
        %v3834 = vpop.f32.mrb[0].mxu0
        %v3835 = vadd.f32 0.0, %v3834
        %v3836 = vpop.f32.mrb[0].mxu0
        %3837 = vmatprep.mubr.f32.mxu0 %v3689
        %3838 = vmatmul.mubr.f32.gmra.mrb[0].mxu0 %v3688
        %v3839 = vpop.f32.mrb[0].mxu0
        %v3840 = vadd.f32 0.0, %v3839
        %v3841 = vpop.f32.mrb[0].mxu0
        %3842 = vmatprep.mubr.f32.mxu0 %v3691
        %3843 = vmatmul.mubr.f32.gmra.mrb[0].mxu0 %v3690
        %v3844 = vpop.f32.mrb[0].mxu0
        %v3845 = vadd.f32 0.0, %v3844
        %v3846 = vpop.f32.mrb[0].mxu0
        %3847 = vmatprep.mubr.f32.mxu0 %v3693
        %3848 = vmatmul.mubr.f32.gmra.mrb[0].mxu0 %v3692
        %v3849 = vpop.f32.mrb[0].mxu0
        %v3850 = vadd.f32 0.0, %v3849
        %v3851 = vpop.f32.mrb[0].mxu0
        %3852 = vmatprep.mubr.f32.mxu0 %v3695
        %3853 = vmatmul.mubr.f32.gmra.mrb[0].mxu0 %v3694
        %v3854 = vpop.f32.mrb[0].mxu0
        %v3855 = vadd.f32 0.0, %v3854
        %v3856 = vpop.f32.mrb[0].mxu0
        %3857 = vmatprep.mubr.f32.mxu0 %v3697
        %3858 = vmatmul.mubr.f32.gmra.mrb[0].mxu0 %v3696
        %v3859 = vpop.f32.mrb[0].mxu0
        %v3860 = vadd.f32 0.0, %v3859
        %v3861 = vpop.f32.mrb[0].mxu0
        %3862 = vmatprep.mubr.f32.mxu0 %v3699
        %3863 = vmatmul.mubr.f32.gmra.mrb[0].mxu0 %v3698
        %v3864 = vpop.f32.mrb[0].mxu0
        %v3865 = vadd.f32 0.0, %v3864
        %v3866 = vpop.f32.mrb[0].mxu0
        %3867 = vmatprep.mubr.f32.mxu0 %v3701
        %3868 = vmatmul.mubr.f32.gmra.mrb[0].mxu0 %v3700
        %v3869 = vpop.f32.mrb[0].mxu0
        %v3870 = vadd.f32 0.0, %v3869
        %v3871 = vpop.f32.mrb[0].mxu0
        %3872 = vmatprep.mubr.f32.mxu0 %v3703
        %3873 = vmatmul.mubr.f32.gmra.mrb[0].mxu0 %v3702
        %v3874 = vpop.f32.mrb[0].mxu0
        %v3875 = vadd.f32 0.0, %v3874
        %v3876 = vpop.f32.mrb[0].mxu0
        %3877 = vmatprep.mubr.f32.mxu0 %v3705
        %3878 = vmatmul.mubr.f32.gmra.mrb[0].mxu0 %v3704
        %v3879 = vpop.f32.mrb[0].mxu0
        %v3880 = vadd.f32 0.0, %v3879
        %v3881 = vpop.f32.mrb[0].mxu0
        %3882 = vdwg.mxu0
        %3883 = vmatprep.subr.mxu0 0.0
        %3884 = vmatpush1.msra.mxu0 %v3642
        %3885 = vmatprep.subr.mxu0 0.0
        %3886 = vmatpush1.msra.mxu0 %v3643
        %3887 = vmatprep.subr.mxu0 0.0
        %3888 = vmatpush1.msra.mxu0 %v3644
        %3889 = vmatprep.subr.mxu0 0.0
        %3890 = vmatpush1.msra.mxu0 %v3645
        %3891 = vmatprep.subr.mxu0 0.0
        %3892 = vmatpush1.msra.mxu0 %v3646
        %3893 = vmatprep.subr.mxu0 0.0
        %3894 = vmatpush1.msra.mxu0 %v3647
        %3895 = vmatprep.subr.mxu0 0.0
        %3896 = vmatpush1.msra.mxu0 %v3648
        %3897 = vmatprep.subr.mxu0 0.0
        %3898 = vmatpush1.msra.mxu0 %v3649
        %3899 = vmatprep.subr.mxu0 0.0
        %3900 = vmatpush1.msra.mxu0 %v3650
        %3901 = vmatprep.subr.mxu0 0.0
        %3902 = vmatpush1.msra.mxu0 %v3651
        %3903 = vmatprep.subr.mxu0 0.0
        %3904 = vmatpush1.msra.mxu0 %v3652
        %3905 = vmatprep.subr.mxu0 0.0
        %3906 = vmatpush1.msra.mxu0 %v3653
        %3907 = vmatprep.subr.mxu0 0.0
        %3908 = vmatpush1.msra.mxu0 %v3654
        %3909 = vmatprep.subr.mxu0 0.0
        %3910 = vmatpush1.msra.mxu0 %v3655
        %3911 = vmatprep.subr.mxu0 0.0
        %3912 = vmatpush1.msra.mxu0 %v3656
        %3913 = vmatprep.subr.mxu0 0.0
        %3914 = vmatpush1.msra.mxu0 %v3657
        %3915 = vmatprep.subr.mxu0 0.0
        %3916 = vmatpush1.msra.mxu0 %v3658
        %3917 = vmatprep.subr.mxu0 0.0
        %3918 = vmatpush1.msra.mxu0 %v3659
        %3919 = vmatprep.subr.mxu0 0.0
        %3920 = vmatpush1.msra.mxu0 %v3660
        %3921 = vmatprep.subr.mxu0 0.0
        %3922 = vmatpush1.msra.mxu0 %v3661
        %3923 = vmatprep.subr.mxu0 0.0
        %3924 = vmatpush1.msra.mxu0 %v3662
        %3925 = vmatprep.subr.mxu0 0.0
        %3926 = vmatpush1.msra.mxu0 %v3663
        %3927 = vmatprep.subr.mxu0 0.0
        %3928 = vmatpush1.msra.mxu0 %v3664
        %3929 = vmatprep.subr.mxu0 0.0
        %3930 = vmatpush1.msra.mxu0 %v3665
        %3931 = vmatprep.subr.mxu0 0.0
        %3932 = vmatpush1.msra.mxu0 %v3666
        %3933 = vmatprep.subr.mxu0 0.0
        %3934 = vmatpush1.msra.mxu0 %v3667
        %3935 = vmatprep.subr.mxu0 0.0
        %3936 = vmatpush1.msra.mxu0 %v3668
        %3937 = vmatprep.subr.mxu0 0.0
        %3938 = vmatpush1.msra.mxu0 %v3669
        %3939 = vmatprep.subr.mxu0 0.0
        %3940 = vmatpush1.msra.mxu0 %v3670
        %3941 = vmatprep.subr.mxu0 0.0
        %3942 = vmatpush1.msra.mxu0 %v3671
        %3943 = vmatprep.subr.mxu0 0.0
        %3944 = vmatpush1.msra.mxu0 %v3672
        %3945 = vmatprep.subr.mxu0 0.0
        %3946 = vmatpush1.msra.mxu0 %v3673
        %3947 = vmatprep.mubr.f32.mxu0 %v3707
        %3948 = vmatmul.mubr.f32.gmra.mrb[0].mxu0 %v3706
        %v3949 = vpop.f32.mrb[0].mxu0
        %v3950 = vadd.f32 0.0, %v3949
        %v3951 = vpop.f32.mrb[0].mxu0
        %3952 = vmatprep.mubr.f32.mxu0 %v3709
        %3953 = vmatmul.mubr.f32.gmra.mrb[0].mxu0 %v3708
        %v3954 = vpop.f32.mrb[0].mxu0
        %v3955 = vadd.f32 0.0, %v3954
        %v3956 = vpop.f32.mrb[0].mxu0
        %3957 = vmatprep.mubr.f32.mxu0 %v3711
        %3958 = vmatmul.mubr.f32.gmra.mrb[0].mxu0 %v3710
        %v3959 = vpop.f32.mrb[0].mxu0
        %v3960 = vadd.f32 0.0, %v3959
        %v3961 = vpop.f32.mrb[0].mxu0
        %3962 = vmatprep.mubr.f32.mxu0 %v3713
        %3963 = vmatmul.mubr.f32.gmra.mrb[0].mxu0 %v3712
        %v3964 = vpop.f32.mrb[0].mxu0
        %v3965 = vadd.f32 0.0, %v3964
        %v3966 = vpop.f32.mrb[0].mxu0
        %3967 = vmatprep.mubr.f32.mxu0 %v3715
        %3968 = vmatmul.mubr.f32.gmra.mrb[0].mxu0 %v3714
        %v3969 = vpop.f32.mrb[0].mxu0
        %v3970 = vadd.f32 0.0, %v3969
        %v3971 = vpop.f32.mrb[0].mxu0
        %3972 = vmatprep.mubr.f32.mxu0 %v3717
        %3973 = vmatmul.mubr.f32.gmra.mrb[0].mxu0 %v3716
        %v3974 = vpop.f32.mrb[0].mxu0
        %v3975 = vadd.f32 0.0, %v3974
        %v3976 = vpop.f32.mrb[0].mxu0
        %3977 = vmatprep.mubr.f32.mxu0 %v3719
        %3978 = vmatmul.mubr.f32.gmra.mrb[0].mxu0 %v3718
        %v3979 = vpop.f32.mrb[0].mxu0
        %v3980 = vadd.f32 0.0, %v3979
        %v3981 = vpop.f32.mrb[0].mxu0
        %3982 = vmatprep.mubr.f32.mxu0 %v3721
        %3983 = vmatmul.mubr.f32.gmra.mrb[0].mxu0 %v3720
        %v3984 = vpop.f32.mrb[0].mxu0
        %v3985 = vadd.f32 0.0, %v3984
        %v3986 = vpop.f32.mrb[0].mxu0
        %3987 = vmatprep.mubr.f32.mxu0 %v3723
        %3988 = vmatmul.mubr.f32.gmra.mrb[0].mxu0 %v3722
        %v3989 = vpop.f32.mrb[0].mxu0
        %v3990 = vadd.f32 0.0, %v3989
        %v3991 = vpop.f32.mrb[0].mxu0
        %3992 = vmatprep.mubr.f32.mxu0 %v3725
        %3993 = vmatmul.mubr.f32.gmra.mrb[0].mxu0 %v3724
        %v3994 = vpop.f32.mrb[0].mxu0
        %v3995 = vadd.f32 0.0, %v3994
        %v3996 = vpop.f32.mrb[0].mxu0
        %3997 = vmatprep.mubr.f32.mxu0 %v3727
        %3998 = vmatmul.mubr.f32.gmra.mrb[0].mxu0 %v3726
        %v3999 = vpop.f32.mrb[0].mxu0
        %v4000 = vadd.f32 0.0, %v3999
        %v4001 = vpop.f32.mrb[0].mxu0
        %4002 = vmatprep.mubr.f32.mxu0 %v3729
        %4003 = vmatmul.mubr.f32.gmra.mrb[0].mxu0 %v3728
        %v4004 = vpop.f32.mrb[0].mxu0
        %v4005 = vadd.f32 0.0, %v4004
        %v4006 = vpop.f32.mrb[0].mxu0
        %4007 = vmatprep.mubr.f32.mxu0 %v3731
        %4008 = vmatmul.mubr.f32.gmra.mrb[0].mxu0 %v3730
        %v4009 = vpop.f32.mrb[0].mxu0
        %v4010 = vadd.f32 0.0, %v4009
        %v4011 = vpop.f32.mrb[0].mxu0
        %4012 = vmatprep.mubr.f32.mxu0 %v3733
        %4013 = vmatmul.mubr.f32.gmra.mrb[0].mxu0 %v3732
        %v4014 = vpop.f32.mrb[0].mxu0
        %v4015 = vadd.f32 0.0, %v4014
        %v4016 = vpop.f32.mrb[0].mxu0
        %4017 = vmatprep.mubr.f32.mxu0 %v3735
        %4018 = vmatmul.mubr.f32.gmra.mrb[0].mxu0 %v3734
        %v4019 = vpop.f32.mrb[0].mxu0
        %v4020 = vadd.f32 0.0, %v4019
        %v4021 = vpop.f32.mrb[0].mxu0
        %4022 = vmatprep.mubr.f32.mxu0 %v3737
        %4023 = vmatmul.mubr.f32.gmra.mrb[0].mxu0 %v3736
        %v4024 = vpop.f32.mrb[0].mxu0
        %v4025 = vadd.f32 0.0, %v4024
        %v4026 = vpop.f32.mrb[0].mxu0
        %4027 = vdwg.mxu0
        %v4028 = vrot.slane %v3950, 7
        %v4029 = vrot.slane %v3955, 7
        %v4030 = vrot.slane %v3960, 7
        %v4031 = vrot.slane %v3965, 7
        %v4032 = vrot.slane %v3970, 7
        %v4033 = vrot.slane %v3975, 7
        %v4034 = vrot.slane %v3980, 7
        %v4035 = vrot.slane %v3985, 7
        %v4036 = vrot.slane %v3990, 7
        %v4037 = vrot.slane %v3995, 7
        %v4038 = vrot.slane %v4000, 7
        %v4039 = vrot.slane %v4005, 7
        %v4040 = vrot.slane %v4010, 7
        %v4041 = vrot.slane %v4015, 7
        %v4042 = vrot.slane %v4020, 7
        %v4043 = vrot.slane %v4025, 7
        %v4044 = vsel %vm695, %v4042, %v4043
        %v4045 = vsel %vm695, %v4041, %v4042
        %v4046 = vsel %vm695, %v4040, %v4041
        %v4047 = vsel %vm695, %v4039, %v4040
        %v4048 = vsel %vm695, %v4038, %v4039
        %v4049 = vsel %vm695, %v4037, %v4038
        %v4050 = vsel %vm695, %v4036, %v4037
        %v4051 = vsel %vm695, %v4035, %v4036
        %v4052 = vsel %vm695, %v4034, %v4035
        %v4053 = vsel %vm695, %v4033, %v4034
        %v4054 = vsel %vm695, %v4032, %v4033
        %v4055 = vsel %vm695, %v4031, %v4032
        %v4056 = vsel %vm695, %v4030, %v4031
        %v4057 = vsel %vm695, %v4029, %v4030
        %v4058 = vsel %vm695, %v4028, %v4029
        %v4059 = vsel %vm695, %v4043, %v4028
        %vm4060 = vcmp.lt.s32.totalorder %v694, 0
        %v4061 = vsub.s32 0, %v694
        %v4062 = vsel %vm4060, %v4061, %v694
        %v4063 = vshrl.u32 %v4062, 4
        %v4064 = vand.u32 %v4062, 15
        %v4065 = vsub.s32 0, %v4064
        %v4066 = vsel %vm4060, %v4065, %v4064
        %vm4067 = vcmp.lt.s32.totalorder %v728, 0
        %v4068 = vsub.s32 0, %v728
        %v4069 = vsel %vm4067, %v4068, %v728
        %v4070 = vshrl.u32 %v4069, 4
        %v4071 = vand.u32 %v4069, 15
        %v4072 = vsub.s32 0, %v4071
        %v4073 = vsel %vm4067, %v4072, %v4071
        %vm4074 = vcmp.lt.s32.totalorder %v729, 0
        %v4075 = vsub.s32 0, %v729
        %v4076 = vsel %vm4074, %v4075, %v729
        %v4077 = vshrl.u32 %v4076, 4
        %v4078 = vand.u32 %v4076, 15
        %v4079 = vsub.s32 0, %v4078
        %v4080 = vsel %vm4074, %v4079, %v4078
        %vm4081 = vcmp.lt.s32.totalorder %v730, 0
        %v4082 = vsub.s32 0, %v730
        %v4083 = vsel %vm4081, %v4082, %v730
        %v4084 = vshrl.u32 %v4083, 4
        %v4085 = vand.u32 %v4083, 15
        %v4086 = vsub.s32 0, %v4085
        %v4087 = vsel %vm4081, %v4086, %v4085
        %vm4088 = vcmp.lt.s32.totalorder %v731, 0
        %v4089 = vsub.s32 0, %v731
        %v4090 = vsel %vm4088, %v4089, %v731
        %v4091 = vshrl.u32 %v4090, 4
        %v4092 = vand.u32 %v4090, 15
        %v4093 = vsub.s32 0, %v4092
        %v4094 = vsel %vm4088, %v4093, %v4092
        %vm4095 = vcmp.lt.s32.totalorder %v732, 0
        %v4096 = vsub.s32 0, %v732
        %v4097 = vsel %vm4095, %v4096, %v732
        %v4098 = vshrl.u32 %v4097, 4
        %v4099 = vand.u32 %v4097, 15
        %v4100 = vsub.s32 0, %v4099
        %v4101 = vsel %vm4095, %v4100, %v4099
        %vm4102 = vcmp.lt.s32.totalorder %v733, 0
        %v4103 = vsub.s32 0, %v733
        %v4104 = vsel %vm4102, %v4103, %v733
        %v4105 = vshrl.u32 %v4104, 4
        %v4106 = vand.u32 %v4104, 15
        %v4107 = vsub.s32 0, %v4106
        %v4108 = vsel %vm4102, %v4107, %v4106
        %vm4109 = vcmp.lt.s32.totalorder %v734, 0
        %v4110 = vsub.s32 0, %v734
        %v4111 = vsel %vm4109, %v4110, %v734
        %v4112 = vshrl.u32 %v4111, 4
        %v4113 = vand.u32 %v4111, 15
        %v4114 = vsub.s32 0, %v4113
        %v4115 = vsel %vm4109, %v4114, %v4113
        %vm4116 = vcmp.lt.s32.totalorder %v735, 0
        %v4117 = vsub.s32 0, %v735
        %v4118 = vsel %vm4116, %v4117, %v735
        %v4119 = vshrl.u32 %v4118, 4
        %v4120 = vand.u32 %v4118, 15
        %v4121 = vsub.s32 0, %v4120
        %v4122 = vsel %vm4116, %v4121, %v4120
        %vm4123 = vcmp.lt.s32.totalorder %v736, 0
        %v4124 = vsub.s32 0, %v736
        %v4125 = vsel %vm4123, %v4124, %v736
        %v4126 = vshrl.u32 %v4125, 4
        %v4127 = vand.u32 %v4125, 15
        %v4128 = vsub.s32 0, %v4127
        %v4129 = vsel %vm4123, %v4128, %v4127
        %vm4130 = vcmp.lt.s32.totalorder %v737, 0
        %v4131 = vsub.s32 0, %v737
        %v4132 = vsel %vm4130, %v4131, %v737
        %v4133 = vshrl.u32 %v4132, 4
        %v4134 = vand.u32 %v4132, 15
        %v4135 = vsub.s32 0, %v4134
        %v4136 = vsel %vm4130, %v4135, %v4134
        %vm4137 = vcmp.lt.s32.totalorder %v738, 0
        %v4138 = vsub.s32 0, %v738
        %v4139 = vsel %vm4137, %v4138, %v738
        %v4140 = vshrl.u32 %v4139, 4
        %v4141 = vand.u32 %v4139, 15
        %v4142 = vsub.s32 0, %v4141
        %v4143 = vsel %vm4137, %v4142, %v4141
        %vm4144 = vcmp.lt.s32.totalorder %v739, 0
        %v4145 = vsub.s32 0, %v739
        %v4146 = vsel %vm4144, %v4145, %v739
        %v4147 = vshrl.u32 %v4146, 4
        %v4148 = vand.u32 %v4146, 15
        %v4149 = vsub.s32 0, %v4148
        %v4150 = vsel %vm4144, %v4149, %v4148
        %vm4151 = vcmp.lt.s32.totalorder %v740, 0
        %v4152 = vsub.s32 0, %v740
        %v4153 = vsel %vm4151, %v4152, %v740
        %v4154 = vshrl.u32 %v4153, 4
        %v4155 = vand.u32 %v4153, 15
        %v4156 = vsub.s32 0, %v4155
        %v4157 = vsel %vm4151, %v4156, %v4155
        %vm4158 = vcmp.lt.s32.totalorder %v741, 0
        %v4159 = vsub.s32 0, %v741
        %v4160 = vsel %vm4158, %v4159, %v741
        %v4161 = vshrl.u32 %v4160, 4
        %v4162 = vand.u32 %v4160, 15
        %v4163 = vsub.s32 0, %v4162
        %v4164 = vsel %vm4158, %v4163, %v4162
        %vm4165 = vcmp.lt.s32.totalorder %v742, 0
        %v4166 = vsub.s32 0, %v742
        %v4167 = vsel %vm4165, %v4166, %v742
        %v4168 = vshrl.u32 %v4167, 4
        %v4169 = vand.u32 %v4167, 15
        %v4170 = vsub.s32 0, %v4169
        %v4171 = vsel %vm4165, %v4170, %v4169
        %vm4172 = vcmp.ne.s32.totalorder %v4066, 0
        %vm4173 = vcmp.ne.s32.totalorder %v4073, 0
        %vm4174 = vcmp.ne.s32.totalorder %v4080, 0
        %vm4175 = vcmp.ne.s32.totalorder %v4087, 0
        %vm4176 = vcmp.ne.s32.totalorder %v4094, 0
        %vm4177 = vcmp.ne.s32.totalorder %v4101, 0
        %vm4178 = vcmp.ne.s32.totalorder %v4108, 0
        %vm4179 = vcmp.ne.s32.totalorder %v4115, 0
        %vm4180 = vcmp.ne.s32.totalorder %v4122, 0
        %vm4181 = vcmp.ne.s32.totalorder %v4129, 0
        %vm4182 = vcmp.ne.s32.totalorder %v4136, 0
        %vm4183 = vcmp.ne.s32.totalorder %v4143, 0
        %vm4184 = vcmp.ne.s32.totalorder %v4150, 0
        %vm4185 = vcmp.ne.s32.totalorder %v4157, 0
        %vm4186 = vcmp.ne.s32.totalorder %v4164, 0
        %vm4187 = vcmp.ne.s32.totalorder %v4171, 0
        %vm4188 = vcmp.lt.s32.totalorder %v4066, 0
        %vm4189 = vcmp.lt.s32.totalorder %v4073, 0
        %vm4190 = vcmp.lt.s32.totalorder %v4080, 0
        %vm4191 = vcmp.lt.s32.totalorder %v4087, 0
        %vm4192 = vcmp.lt.s32.totalorder %v4094, 0
        %vm4193 = vcmp.lt.s32.totalorder %v4101, 0
        %vm4194 = vcmp.lt.s32.totalorder %v4108, 0
        %vm4195 = vcmp.lt.s32.totalorder %v4115, 0
        %vm4196 = vcmp.lt.s32.totalorder %v4122, 0
        %vm4197 = vcmp.lt.s32.totalorder %v4129, 0
        %vm4198 = vcmp.lt.s32.totalorder %v4136, 0
        %vm4199 = vcmp.lt.s32.totalorder %v4143, 0
        %vm4200 = vcmp.lt.s32.totalorder %v4150, 0
        %vm4201 = vcmp.lt.s32.totalorder %v4157, 0
        %vm4202 = vcmp.lt.s32.totalorder %v4164, 0
        %vm4203 = vcmp.lt.s32.totalorder %v4171, 0
        %vm4204 = vmand %vm4188, %vm4172
        %vm4205 = vmand %vm4189, %vm4173
        %vm4206 = vmand %vm4190, %vm4174
        %vm4207 = vmand %vm4191, %vm4175
        %vm4208 = vmand %vm4192, %vm4176
        %vm4209 = vmand %vm4193, %vm4177
        %vm4210 = vmand %vm4194, %vm4178
        %vm4211 = vmand %vm4195, %vm4179
        %vm4212 = vmand %vm4196, %vm4180
        %vm4213 = vmand %vm4197, %vm4181
        %vm4214 = vmand %vm4198, %vm4182
        %vm4215 = vmand %vm4199, %vm4183
        %vm4216 = vmand %vm4200, %vm4184
        %vm4217 = vmand %vm4201, %vm4185
        %vm4218 = vmand %vm4202, %vm4186
        %vm4219 = vmand %vm4203, %vm4187
        %v4220 = vadd.s32 %v4066, 16
        %v4221 = vadd.s32 %v4073, 16
        %v4222 = vadd.s32 %v4080, 16
        %v4223 = vadd.s32 %v4087, 16
        %v4224 = vadd.s32 %v4094, 16
        %v4225 = vadd.s32 %v4101, 16
        %v4226 = vadd.s32 %v4108, 16
        %v4227 = vadd.s32 %v4115, 16
        %v4228 = vadd.s32 %v4122, 16
        %v4229 = vadd.s32 %v4129, 16
        %v4230 = vadd.s32 %v4136, 16
        %v4231 = vadd.s32 %v4143, 16
        %v4232 = vadd.s32 %v4150, 16
        %v4233 = vadd.s32 %v4157, 16
        %v4234 = vadd.s32 %v4164, 16
        %v4235 = vadd.s32 %v4171, 16
        %v4236 = vsel %vm4204, %v4220, %v4066
        %v4237 = vsel %vm4205, %v4221, %v4073
        %v4238 = vsel %vm4206, %v4222, %v4080
        %v4239 = vsel %vm4207, %v4223, %v4087
        %v4240 = vsel %vm4208, %v4224, %v4094
        %v4241 = vsel %vm4209, %v4225, %v4101
        %v4242 = vsel %vm4210, %v4226, %v4108
        %v4243 = vsel %vm4211, %v4227, %v4115
        %v4244 = vsel %vm4212, %v4228, %v4122
        %v4245 = vsel %vm4213, %v4229, %v4129
        %v4246 = vsel %vm4214, %v4230, %v4136
        %v4247 = vsel %vm4215, %v4231, %v4143
        %v4248 = vsel %vm4216, %v4232, %v4150
        %v4249 = vsel %vm4217, %v4233, %v4157
        %v4250 = vsel %vm4218, %v4234, %v4164
        %v4251 = vsel %vm4219, %v4235, %v4171
        %vm4252 = vcmp.eq.s32.totalorder %v4236, 0
        %vm4253 = vcmp.eq.s32.totalorder %v4237, 0
        %vm4254 = vcmp.eq.s32.totalorder %v4238, 0
        %vm4255 = vcmp.eq.s32.totalorder %v4239, 0
        %vm4256 = vcmp.eq.s32.totalorder %v4240, 0
        %vm4257 = vcmp.eq.s32.totalorder %v4241, 0
        %vm4258 = vcmp.eq.s32.totalorder %v4242, 0
        %vm4259 = vcmp.eq.s32.totalorder %v4243, 0
        %vm4260 = vcmp.eq.s32.totalorder %v4244, 0
        %vm4261 = vcmp.eq.s32.totalorder %v4245, 0
        %vm4262 = vcmp.eq.s32.totalorder %v4246, 0
        %vm4263 = vcmp.eq.s32.totalorder %v4247, 0
        %vm4264 = vcmp.eq.s32.totalorder %v4248, 0
        %vm4265 = vcmp.eq.s32.totalorder %v4249, 0
        %vm4266 = vcmp.eq.s32.totalorder %v4250, 0
        %vm4267 = vcmp.eq.s32.totalorder %v4251, 0
        %vm4268 = vmxor %vm4252, 1
        %vm4269 = vmxor %vm4253, 1
        %vm4270 = vmxor %vm4254, 1
        %vm4271 = vmxor %vm4255, 1
        %vm4272 = vmxor %vm4256, 1
        %vm4273 = vmxor %vm4257, 1
        %vm4274 = vmxor %vm4258, 1
        %vm4275 = vmxor %vm4259, 1
        %vm4276 = vmxor %vm4260, 1
        %vm4277 = vmxor %vm4261, 1
        %vm4278 = vmxor %vm4262, 1
        %vm4279 = vmxor %vm4263, 1
        %vm4280 = vmxor %vm4264, 1
        %vm4281 = vmxor %vm4265, 1
        %vm4282 = vmxor %vm4266, 1
        %vm4283 = vmxor %vm4267, 1
        %v4284 = vsel %vm4268, 1, 0
        %v4285 = vsel %vm4269, 1, 0
        %v4286 = vsel %vm4270, 1, 0
        %v4287 = vsel %vm4271, 1, 0
        %v4288 = vsel %vm4272, 1, 0
        %v4289 = vsel %vm4273, 1, 0
        %v4290 = vsel %vm4274, 1, 0
        %v4291 = vsel %vm4275, 1, 0
        %v4292 = vsel %vm4276, 1, 0
        %v4293 = vsel %vm4277, 1, 0
        %v4294 = vsel %vm4278, 1, 0
        %v4295 = vsel %vm4279, 1, 0
        %v4296 = vsel %vm4280, 1, 0
        %v4297 = vsel %vm4281, 1, 0
        %v4298 = vsel %vm4282, 1, 0
        %v4299 = vsel %vm4283, 1, 0
        %v4300 = vcvt.s32.f32 %v4284
        %v4301 = vcvt.s32.f32 %v4285
        %v4302 = vcvt.s32.f32 %v4286
        %v4303 = vcvt.s32.f32 %v4287
        %v4304 = vcvt.s32.f32 %v4288
        %v4305 = vcvt.s32.f32 %v4289
        %v4306 = vcvt.s32.f32 %v4290
        %v4307 = vcvt.s32.f32 %v4291
        %v4308 = vcvt.s32.f32 %v4292
        %v4309 = vcvt.s32.f32 %v4293
        %v4310 = vcvt.s32.f32 %v4294
        %v4311 = vcvt.s32.f32 %v4295
        %v4312 = vcvt.s32.f32 %v4296
        %v4313 = vcvt.s32.f32 %v4297
        %v4314 = vcvt.s32.f32 %v4298
        %v4315 = vcvt.s32.f32 %v4299
        %v4316 = vmul.f32 %v4059, %v4300
        %v4317 = vmul.f32 %v4058, %v4301
        %v4318 = vmul.f32 %v4057, %v4302
        %v4319 = vmul.f32 %v4056, %v4303
        %v4320 = vmul.f32 %v4055, %v4304
        %v4321 = vmul.f32 %v4054, %v4305
        %v4322 = vmul.f32 %v4053, %v4306
        %v4323 = vmul.f32 %v4052, %v4307
        %v4324 = vmul.f32 %v4051, %v4308
        %v4325 = vmul.f32 %v4050, %v4309
        %v4326 = vmul.f32 %v4049, %v4310
        %v4327 = vmul.f32 %v4048, %v4311
        %v4328 = vmul.f32 %v4047, %v4312
        %v4329 = vmul.f32 %v4046, %v4313
        %v4330 = vmul.f32 %v4045, %v4314
        %v4331 = vmul.f32 %v4044, %v4315
        %v4332 = vpack.c.bf16 %v4317, %v4316
        %v4333 = vpack.c.bf16 %v3810, %v3805
        %v4334 = vpack.c.bf16 %v3955, %v3950
        %v4335 = vpack.c.bf16 %v4319, %v4318
        %v4336 = vpack.c.bf16 %v3820, %v3815
        %v4337 = vpack.c.bf16 %v3965, %v3960
        %v4338 = vpack.c.bf16 %v4321, %v4320
        %v4339 = vpack.c.bf16 %v3830, %v3825
        %v4340 = vpack.c.bf16 %v3975, %v3970
        %v4341 = vpack.c.bf16 %v4323, %v4322
        %v4342 = vpack.c.bf16 %v3840, %v3835
        %v4343 = vpack.c.bf16 %v3985, %v3980
        %v4344 = vpack.c.bf16 %v4325, %v4324
        %v4345 = vpack.c.bf16 %v3850, %v3845
        %v4346 = vpack.c.bf16 %v3995, %v3990
        %v4347 = vpack.c.bf16 %v4327, %v4326
        %v4348 = vpack.c.bf16 %v3860, %v3855
        %v4349 = vpack.c.bf16 %v4005, %v4000
        %v4350 = vpack.c.bf16 %v4329, %v4328
        %v4351 = vpack.c.bf16 %v3870, %v3865
        %v4352 = vpack.c.bf16 %v4015, %v4010
        %v4353 = vpack.c.bf16 %v4331, %v4330
        %v4354 = vpack.c.bf16 %v3880, %v3875
        %v4355 = vpack.c.bf16 %v4025, %v4020
        %s4356 = scalar_lea.vmem %s2, 384
        %v4357 = vld [vmem:[%s4356] sm:$0xf]
        %v4358 = vld [vmem:[%s4356 + $0x4] sm:$0xf]
        %v4359 = vld [vmem:[%s4356 + $0x8] sm:$0xf]
        %v4360 = vld [vmem:[%s4356 + $0xc] sm:$0xf]
        %v4361 = vld [vmem:[%s4356 + $0x10] sm:$0xf]
        %v4362 = vld [vmem:[%s4356 + $0x14] sm:$0xf]
        %v4363 = vld [vmem:[%s4356 + $0x18] sm:$0xf]
        %v4364 = vld [vmem:[%s4356 + $0x1c] sm:$0xf]
        %v4365 = vld [vmem:[%s4356 + $0x20] sm:$0xf]
        %v4366 = vld [vmem:[%s4356 + $0x24] sm:$0xf]
        %v4367 = vld [vmem:[%s4356 + $0x28] sm:$0xf]
        %v4368 = vld [vmem:[%s4356 + $0x2c] sm:$0xf]
        %v4369 = vld [vmem:[%s4356 + $0x30] sm:$0xf]
        %v4370 = vld [vmem:[%s4356 + $0x34] sm:$0xf]
        %v4371 = vld [vmem:[%s4356 + $0x38] sm:$0xf]
        %v4372 = vld [vmem:[%s4356 + $0x3c] sm:$0xf]
        %v4373 = vld [vmem:[%s4356 + $0x40] sm:$0xf]
        %v4374 = vld [vmem:[%s4356 + $0x44] sm:$0xf]
        %v4375 = vld [vmem:[%s4356 + $0x48] sm:$0xf]
        %v4376 = vld [vmem:[%s4356 + $0x4c] sm:$0xf]
        %v4377 = vld [vmem:[%s4356 + $0x50] sm:$0xf]
        %v4378 = vld [vmem:[%s4356 + $0x54] sm:$0xf]
        %v4379 = vld [vmem:[%s4356 + $0x58] sm:$0xf]
        %v4380 = vld [vmem:[%s4356 + $0x5c] sm:$0xf]
        %v4381 = vld [vmem:[%s4356 + $0x60] sm:$0xf]
        %v4382 = vld [vmem:[%s4356 + $0x64] sm:$0xf]
        %v4383 = vld [vmem:[%s4356 + $0x68] sm:$0xf]
        %v4384 = vld [vmem:[%s4356 + $0x6c] sm:$0xf]
        %v4385 = vld [vmem:[%s4356 + $0x70] sm:$0xf]
        %v4386 = vld [vmem:[%s4356 + $0x74] sm:$0xf]
        %v4387 = vld [vmem:[%s4356 + $0x78] sm:$0xf]
        %v4388 = vld [vmem:[%s4356 + $0x7c] sm:$0xf]
        %v4389 = vld [vmem:[%s4356 + $0x80] sm:$0xf]
        %v4390 = vld [vmem:[%s4356 + $0x84] sm:$0xf]
        %v4391 = vld [vmem:[%s4356 + $0x88] sm:$0xf]
        %v4392 = vld [vmem:[%s4356 + $0x8c] sm:$0xf]
        %v4393 = vld [vmem:[%s4356 + $0x90] sm:$0xf]
        %v4394 = vld [vmem:[%s4356 + $0x94] sm:$0xf]
        %v4395 = vld [vmem:[%s4356 + $0x98] sm:$0xf]
        %v4396 = vld [vmem:[%s4356 + $0x9c] sm:$0xf]
        %v4397 = vld [vmem:[%s4356 + $0xa0] sm:$0xf]
        %v4398 = vld [vmem:[%s4356 + $0xa4] sm:$0xf]
        %v4399 = vld [vmem:[%s4356 + $0xa8] sm:$0xf]
        %v4400 = vld [vmem:[%s4356 + $0xac] sm:$0xf]
        %v4401 = vld [vmem:[%s4356 + $0xb0] sm:$0xf]
        %v4402 = vld [vmem:[%s4356 + $0xb4] sm:$0xf]
        %v4403 = vld [vmem:[%s4356 + $0xb8] sm:$0xf]
        %v4404 = vld [vmem:[%s4356 + $0xbc] sm:$0xf]
        %v4453 = vunpack.c.l.b16 %v4357
        %v4454 = vunpack.c.l.b16 %v4358
        %v4455 = vunpack.c.l.b16 %v4359
        %v4456 = vunpack.c.l.b16 %v4360
        %v4457 = vunpack.c.l.b16 %v4361
        %v4458 = vunpack.c.l.b16 %v4362
        %v4459 = vunpack.c.l.b16 %v4363
        %v4460 = vunpack.c.l.b16 %v4364
        %v4461 = vunpack.c.l.b16 %v4365
        %v4462 = vunpack.c.l.b16 %v4366
        %v4463 = vunpack.c.l.b16 %v4367
        %v4464 = vunpack.c.l.b16 %v4368
        %v4465 = vunpack.c.l.b16 %v4369
        %v4466 = vunpack.c.l.b16 %v4370
        %v4467 = vunpack.c.l.b16 %v4371
        %v4468 = vunpack.c.l.b16 %v4372
        %v4469 = vunpack.c.l.b16 %v4373
        %v4470 = vunpack.c.l.b16 %v4374
        %v4471 = vunpack.c.l.b16 %v4375
        %v4472 = vunpack.c.l.b16 %v4376
        %v4473 = vunpack.c.l.b16 %v4377
        %v4474 = vunpack.c.l.b16 %v4378
        %v4475 = vunpack.c.l.b16 %v4379
        %v4476 = vunpack.c.l.b16 %v4380
        %v4477 = vunpack.c.l.b16 %v4381
        %v4478 = vunpack.c.l.b16 %v4382
        %v4479 = vunpack.c.l.b16 %v4383
        %v4480 = vunpack.c.l.b16 %v4384
        %v4481 = vunpack.c.l.b16 %v4385
        %v4482 = vunpack.c.l.b16 %v4386
        %v4483 = vunpack.c.l.b16 %v4387
        %v4484 = vunpack.c.l.b16 %v4388
        %v4485 = vunpack.c.l.b16 %v4389
        %v4486 = vunpack.c.l.b16 %v4390
        %v4487 = vunpack.c.l.b16 %v4391
        %v4488 = vunpack.c.l.b16 %v4392
        %v4489 = vunpack.c.l.b16 %v4393
        %v4490 = vunpack.c.l.b16 %v4394
        %v4491 = vunpack.c.l.b16 %v4395
        %v4492 = vunpack.c.l.b16 %v4396
        %v4493 = vunpack.c.l.b16 %v4397
        %v4494 = vunpack.c.l.b16 %v4398
        %v4495 = vunpack.c.l.b16 %v4399
        %v4496 = vunpack.c.l.b16 %v4400
        %v4497 = vunpack.c.l.b16 %v4401
        %v4498 = vunpack.c.l.b16 %v4402
        %v4499 = vunpack.c.l.b16 %v4403
        %v4500 = vunpack.c.l.b16 %v4404
        %v4501 = vpack.c.b16 %v4454, %v4453
        %v4502 = vpack.c.b16 %v4456, %v4455
        %v4503 = vpack.c.b16 %v4458, %v4457
        %v4504 = vpack.c.b16 %v4460, %v4459
        %v4505 = vpack.c.b16 %v4462, %v4461
        %v4506 = vpack.c.b16 %v4464, %v4463
        %v4507 = vpack.c.b16 %v4466, %v4465
        %v4508 = vpack.c.b16 %v4468, %v4467
        %v4509 = vpack.c.b16 %v4470, %v4469
        %v4510 = vpack.c.b16 %v4472, %v4471
        %v4511 = vpack.c.b16 %v4474, %v4473
        %v4512 = vpack.c.b16 %v4476, %v4475
        %v4513 = vpack.c.b16 %v4478, %v4477
        %v4514 = vpack.c.b16 %v4480, %v4479
        %v4515 = vpack.c.b16 %v4482, %v4481
        %v4516 = vpack.c.b16 %v4484, %v4483
        %v4517 = vpack.c.b16 %v4486, %v4485
        %v4518 = vpack.c.b16 %v4488, %v4487
        %v4519 = vpack.c.b16 %v4490, %v4489
        %v4520 = vpack.c.b16 %v4492, %v4491
        %v4521 = vpack.c.b16 %v4494, %v4493
        %v4522 = vpack.c.b16 %v4496, %v4495
        %v4523 = vpack.c.b16 %v4498, %v4497
        %v4524 = vpack.c.b16 %v4500, %v4499
        %4549 = vmatprep.subr.bf16.mxu0 0
        %4550 = vmatpush1.bf16.msra.mxu0 %v4501
        %4551 = vmatprep.subr.bf16.mxu0 0
        %4552 = vmatpush1.bf16.msra.mxu0 %v4502
        %4553 = vmatprep.subr.bf16.mxu0 0
        %4554 = vmatpush1.bf16.msra.mxu0 %v4503
        %4555 = vmatprep.subr.bf16.mxu0 0
        %4556 = vmatpush1.bf16.msra.mxu0 %v4504
        %4557 = vmatprep.subr.bf16.mxu0 0
        %4558 = vmatpush1.bf16.msra.mxu0 %v4505
        %4559 = vmatprep.subr.bf16.mxu0 0
        %4560 = vmatpush1.bf16.msra.mxu0 %v4506
        %4561 = vmatprep.subr.bf16.mxu0 0
        %4562 = vmatpush1.bf16.msra.mxu0 %v4507
        %4563 = vmatprep.subr.bf16.mxu0 0
        %4564 = vmatpush1.bf16.msra.mxu0 %v4508
        %4565 = vmatprep.subr.bf16.mxu0 0
        %4566 = vmatpush1.bf16.msra.mxu0 %v4509
        %4567 = vmatprep.subr.bf16.mxu0 0
        %4568 = vmatpush1.bf16.msra.mxu0 %v4510
        %4569 = vmatprep.subr.bf16.mxu0 0
        %4570 = vmatpush1.bf16.msra.mxu0 %v4511
        %4571 = vmatprep.subr.bf16.mxu0 0
        %4572 = vmatpush1.bf16.msra.mxu0 %v4512
        %4573 = vmatprep.subr.bf16.mxu0 0
        %4574 = vmatpush1.bf16.msra.mxu0 %v4513
        %4575 = vmatprep.subr.bf16.mxu0 0
        %4576 = vmatpush1.bf16.msra.mxu0 %v4514
        %4577 = vmatprep.subr.bf16.mxu0 0
        %4578 = vmatpush1.bf16.msra.mxu0 %v4515
        %4579 = vmatprep.subr.bf16.mxu0 0
        %4580 = vmatpush1.bf16.msra.mxu0 %v4516
        %4581 = vmatprep.mubr.bf16.mxu0 %v4333
        %4582 = vmatmul.mubr.bf16.gmra.mrb[0].mxu0 %v4332
        %v4583 = vpop.f32.mrb[0].mxu0
        %v4584 = vadd.f32 0.0, %v4583
        %v4585 = vpop.f32.mrb[0].mxu0
        %v4586 = vpop.f32.mrb[0].mxu0
        %v4587 = vadd.f32 0.0, %v4586
        %v4588 = vpop.f32.mrb[0].mxu0
        %4589 = vmatprep.mubr.bf16.mxu0 %v4336
        %4590 = vmatmul.mubr.bf16.gmra.mrb[0].mxu0 %v4335
        %v4591 = vpop.f32.mrb[0].mxu0
        %v4592 = vadd.f32 0.0, %v4591
        %v4593 = vpop.f32.mrb[0].mxu0
        %v4594 = vpop.f32.mrb[0].mxu0
        %v4595 = vadd.f32 0.0, %v4594
        %v4596 = vpop.f32.mrb[0].mxu0
        %4597 = vmatprep.mubr.bf16.mxu0 %v4339
        %4598 = vmatmul.mubr.bf16.gmra.mrb[0].mxu0 %v4338
        %v4599 = vpop.f32.mrb[0].mxu0
        %v4600 = vadd.f32 0.0, %v4599
        %v4601 = vpop.f32.mrb[0].mxu0
        %v4602 = vpop.f32.mrb[0].mxu0
        %v4603 = vadd.f32 0.0, %v4602
        %v4604 = vpop.f32.mrb[0].mxu0
        %4605 = vmatprep.mubr.bf16.mxu0 %v4342
        %4606 = vmatmul.mubr.bf16.gmra.mrb[0].mxu0 %v4341
        %v4607 = vpop.f32.mrb[0].mxu0
        %v4608 = vadd.f32 0.0, %v4607
        %v4609 = vpop.f32.mrb[0].mxu0
        %v4610 = vpop.f32.mrb[0].mxu0
        %v4611 = vadd.f32 0.0, %v4610
        %v4612 = vpop.f32.mrb[0].mxu0
        %4613 = vmatprep.mubr.bf16.mxu0 %v4345
        %4614 = vmatmul.mubr.bf16.gmra.mrb[0].mxu0 %v4344
        %v4615 = vpop.f32.mrb[0].mxu0
        %v4616 = vadd.f32 0.0, %v4615
        %v4617 = vpop.f32.mrb[0].mxu0
        %v4618 = vpop.f32.mrb[0].mxu0
        %v4619 = vadd.f32 0.0, %v4618
        %v4620 = vpop.f32.mrb[0].mxu0
        %4621 = vmatprep.mubr.bf16.mxu0 %v4348
        %4622 = vmatmul.mubr.bf16.gmra.mrb[0].mxu0 %v4347
        %v4623 = vpop.f32.mrb[0].mxu0
        %v4624 = vadd.f32 0.0, %v4623
        %v4625 = vpop.f32.mrb[0].mxu0
        %v4626 = vpop.f32.mrb[0].mxu0
        %v4627 = vadd.f32 0.0, %v4626
        %v4628 = vpop.f32.mrb[0].mxu0
        %4629 = vmatprep.mubr.bf16.mxu0 %v4351
        %4630 = vmatmul.mubr.bf16.gmra.mrb[0].mxu0 %v4350
        %v4631 = vpop.f32.mrb[0].mxu0
        %v4632 = vadd.f32 0.0, %v4631
        %v4633 = vpop.f32.mrb[0].mxu0
        %v4634 = vpop.f32.mrb[0].mxu0
        %v4635 = vadd.f32 0.0, %v4634
        %v4636 = vpop.f32.mrb[0].mxu0
        %4637 = vmatprep.mubr.bf16.mxu0 %v4354
        %4638 = vmatmul.mubr.bf16.gmra.mrb[0].mxu0 %v4353
        %v4639 = vpop.f32.mrb[0].mxu0
        %v4640 = vadd.f32 0.0, %v4639
        %v4641 = vpop.f32.mrb[0].mxu0
        %v4642 = vpop.f32.mrb[0].mxu0
        %v4643 = vadd.f32 0.0, %v4642
        %v4644 = vpop.f32.mrb[0].mxu0
        %4645 = vdwg.mxu0
        %4646 = vmatprep.subr.bf16.mxu0 0
        %4647 = vmatpush1.bf16.msra.mxu0 %v4517
        %4648 = vmatprep.subr.bf16.mxu0 0
        %4649 = vmatpush1.bf16.msra.mxu0 %v4518
        %4650 = vmatprep.subr.bf16.mxu0 0
        %4651 = vmatpush1.bf16.msra.mxu0 %v4519
        %4652 = vmatprep.subr.bf16.mxu0 0
        %4653 = vmatpush1.bf16.msra.mxu0 %v4520
        %4654 = vmatprep.subr.bf16.mxu0 0
        %4655 = vmatpush1.bf16.msra.mxu0 %v4521
        %4656 = vmatprep.subr.bf16.mxu0 0
        %4657 = vmatpush1.bf16.msra.mxu0 %v4522
        %4658 = vmatprep.subr.bf16.mxu0 0
        %4659 = vmatpush1.bf16.msra.mxu0 %v4523
        %4660 = vmatprep.subr.bf16.mxu0 0
        %4661 = vmatpush1.bf16.msra.mxu0 %v4524
        %4662 = vmatprep.subr.bf16.mxu0 0
        %4663 = vmatpush1.bf16.msra.mxu0 0
        %4664 = vmatprep.subr.bf16.mxu0 0
        %4665 = vmatpush1.bf16.msra.mxu0 0
        %4666 = vmatprep.subr.bf16.mxu0 0
        %4667 = vmatpush1.bf16.msra.mxu0 0
        %4668 = vmatprep.subr.bf16.mxu0 0
        %4669 = vmatpush1.bf16.msra.mxu0 0
        %4670 = vmatprep.subr.bf16.mxu0 0
        %4671 = vmatpush1.bf16.msra.mxu0 0
        %4672 = vmatprep.subr.bf16.mxu0 0
        %4673 = vmatpush1.bf16.msra.mxu0 0
        %4674 = vmatprep.subr.bf16.mxu0 0
        %4675 = vmatpush1.bf16.msra.mxu0 0
        %4676 = vmatprep.subr.bf16.mxu0 0
        %4677 = vmatpush1.bf16.msra.mxu0 0
        %4678 = vmatprep.mubr.bf16.mxu0 0
        %4679 = vmatmul.mubr.bf16.gmra.mrb[0].mxu0 %v4334
        %v4680 = vpop.f32.mrb[0].mxu0
        %v4681 = vadd.f32 %v4584, %v4680
        %v4682 = vpop.f32.mrb[0].mxu0
        %v4683 = vpop.f32.mrb[0].mxu0
        %v4684 = vadd.f32 %v4587, %v4683
        %v4685 = vpop.f32.mrb[0].mxu0
        %4686 = vmatprep.mubr.bf16.mxu0 0
        %4687 = vmatmul.mubr.bf16.gmra.mrb[0].mxu0 %v4337
        %v4688 = vpop.f32.mrb[0].mxu0
        %v4689 = vadd.f32 %v4592, %v4688
        %v4690 = vpop.f32.mrb[0].mxu0
        %v4691 = vpop.f32.mrb[0].mxu0
        %v4692 = vadd.f32 %v4595, %v4691
        %v4693 = vpop.f32.mrb[0].mxu0
        %4694 = vmatprep.mubr.bf16.mxu0 0
        %4695 = vmatmul.mubr.bf16.gmra.mrb[0].mxu0 %v4340
        %v4696 = vpop.f32.mrb[0].mxu0
        %v4697 = vadd.f32 %v4600, %v4696
        %v4698 = vpop.f32.mrb[0].mxu0
        %v4699 = vpop.f32.mrb[0].mxu0
        %v4700 = vadd.f32 %v4603, %v4699
        %v4701 = vpop.f32.mrb[0].mxu0
        %4702 = vmatprep.mubr.bf16.mxu0 0
        %4703 = vmatmul.mubr.bf16.gmra.mrb[0].mxu0 %v4343
        %v4704 = vpop.f32.mrb[0].mxu0
        %v4705 = vadd.f32 %v4608, %v4704
        %v4706 = vpop.f32.mrb[0].mxu0
        %v4707 = vpop.f32.mrb[0].mxu0
        %v4708 = vadd.f32 %v4611, %v4707
        %v4709 = vpop.f32.mrb[0].mxu0
        %4710 = vmatprep.mubr.bf16.mxu0 0
        %4711 = vmatmul.mubr.bf16.gmra.mrb[0].mxu0 %v4346
        %v4712 = vpop.f32.mrb[0].mxu0
        %v4713 = vadd.f32 %v4616, %v4712
        %v4714 = vpop.f32.mrb[0].mxu0
        %v4715 = vpop.f32.mrb[0].mxu0
        %v4716 = vadd.f32 %v4619, %v4715
        %v4717 = vpop.f32.mrb[0].mxu0
        %4718 = vmatprep.mubr.bf16.mxu0 0
        %4719 = vmatmul.mubr.bf16.gmra.mrb[0].mxu0 %v4349
        %v4720 = vpop.f32.mrb[0].mxu0
        %v4721 = vadd.f32 %v4624, %v4720
        %v4722 = vpop.f32.mrb[0].mxu0
        %v4723 = vpop.f32.mrb[0].mxu0
        %v4724 = vadd.f32 %v4627, %v4723
        %v4725 = vpop.f32.mrb[0].mxu0
        %4726 = vmatprep.mubr.bf16.mxu0 0
        %4727 = vmatmul.mubr.bf16.gmra.mrb[0].mxu0 %v4352
        %v4728 = vpop.f32.mrb[0].mxu0
        %v4729 = vadd.f32 %v4632, %v4728
        %v4730 = vpop.f32.mrb[0].mxu0
        %v4731 = vpop.f32.mrb[0].mxu0
        %v4732 = vadd.f32 %v4635, %v4731
        %v4733 = vpop.f32.mrb[0].mxu0
        %4734 = vmatprep.mubr.bf16.mxu0 0
        %4735 = vmatmul.mubr.bf16.gmra.mrb[0].mxu0 %v4355
        %v4736 = vpop.f32.mrb[0].mxu0
        %v4737 = vadd.f32 %v4640, %v4736
        %v4738 = vpop.f32.mrb[0].mxu0
        %v4739 = vpop.f32.mrb[0].mxu0
        %v4740 = vadd.f32 %v4643, %v4739
        %v4741 = vpop.f32.mrb[0].mxu0
        %4742 = vdwg.mxu0
        %v4743 = vlaneseq
        %v4744 = vshrl.u32 %v4743, 7
        %v4745 = vsub.s32 1, %v4744
        %v4746 = vrot.slane %v395, %v4745
        %v4747 = vmul.f32 %v4681, %v4746
        %v4748 = vmul.f32 %v4684, %v4746
        %v4749 = vmul.f32 %v4689, %v4746
        %v4750 = vmul.f32 %v4692, %v4746
        %v4751 = vmul.f32 %v4697, %v4746
        %v4752 = vmul.f32 %v4700, %v4746
        %v4753 = vmul.f32 %v4705, %v4746
        %v4754 = vmul.f32 %v4708, %v4746
        %v4755 = vmul.f32 %v4713, %v4746
        %v4756 = vmul.f32 %v4716, %v4746
        %v4757 = vmul.f32 %v4721, %v4746
        %v4758 = vmul.f32 %v4724, %v4746
        %v4759 = vmul.f32 %v4729, %v4746
        %v4760 = vmul.f32 %v4732, %v4746
        %v4761 = vmul.f32 %v4737, %v4746
        %v4762 = vmul.f32 %v4740, %v4746
        %v4763 = vlaneseq
        %v4764 = vshrl.u32 %v4763, 7
        %v4765 = vsub.s32 2, %v4764
        %v4766 = vrot.slane %v395, %v4765
        %v4767 = vadd.f32 %v4747, %v4766
        %v4768 = vadd.f32 %v4748, %v4766
        %v4769 = vadd.f32 %v4749, %v4766
        %v4770 = vadd.f32 %v4750, %v4766
        %v4771 = vadd.f32 %v4751, %v4766
        %v4772 = vadd.f32 %v4752, %v4766
        %v4773 = vadd.f32 %v4753, %v4766
        %v4774 = vadd.f32 %v4754, %v4766
        %v4775 = vadd.f32 %v4755, %v4766
        %v4776 = vadd.f32 %v4756, %v4766
        %v4777 = vadd.f32 %v4757, %v4766
        %v4778 = vadd.f32 %v4758, %v4766
        %v4779 = vadd.f32 %v4759, %v4766
        %v4780 = vadd.f32 %v4760, %v4766
        %v4781 = vadd.f32 %v4761, %v4766
        %v4782 = vadd.f32 %v4762, %v4766
        %v4783 = vmax.f32 %v4767, 0.0
        %v4784 = vmax.f32 %v4768, 0.0
        %v4785 = vmax.f32 %v4769, 0.0
        %v4786 = vmax.f32 %v4770, 0.0
        %v4787 = vmax.f32 %v4771, 0.0
        %v4788 = vmax.f32 %v4772, 0.0
        %v4789 = vmax.f32 %v4773, 0.0
        %v4790 = vmax.f32 %v4774, 0.0
        %v4791 = vmax.f32 %v4775, 0.0
        %v4792 = vmax.f32 %v4776, 0.0
        %v4793 = vmax.f32 %v4777, 0.0
        %v4794 = vmax.f32 %v4778, 0.0
        %v4795 = vmax.f32 %v4779, 0.0
        %v4796 = vmax.f32 %v4780, 0.0
        %v4797 = vmax.f32 %v4781, 0.0
        %v4798 = vmax.f32 %v4782, 0.0
        %v4799 = vrot.slane %v4783, 7
        %v4800 = vrot.slane %v4784, 7
        %v4801 = vrot.slane %v4785, 7
        %v4802 = vrot.slane %v4786, 7
        %v4803 = vrot.slane %v4787, 7
        %v4804 = vrot.slane %v4788, 7
        %v4805 = vrot.slane %v4789, 7
        %v4806 = vrot.slane %v4790, 7
        %v4807 = vrot.slane %v4791, 7
        %v4808 = vrot.slane %v4792, 7
        %v4809 = vrot.slane %v4793, 7
        %v4810 = vrot.slane %v4794, 7
        %v4811 = vrot.slane %v4795, 7
        %v4812 = vrot.slane %v4796, 7
        %v4813 = vrot.slane %v4797, 7
        %v4814 = vrot.slane %v4798, 7
        %v4815 = vsel %vm695, %v4813, %v4814
        %v4816 = vsel %vm695, %v4812, %v4813
        %v4817 = vsel %vm695, %v4811, %v4812
        %v4818 = vsel %vm695, %v4810, %v4811
        %v4819 = vsel %vm695, %v4809, %v4810
        %v4820 = vsel %vm695, %v4808, %v4809
        %v4821 = vsel %vm695, %v4807, %v4808
        %v4822 = vsel %vm695, %v4806, %v4807
        %v4823 = vsel %vm695, %v4805, %v4806
        %v4824 = vsel %vm695, %v4804, %v4805
        %v4825 = vsel %vm695, %v4803, %v4804
        %v4826 = vsel %vm695, %v4802, %v4803
        %v4827 = vsel %vm695, %v4801, %v4802
        %v4828 = vsel %vm695, %v4800, %v4801
        %v4829 = vsel %vm695, %v4799, %v4800
        %v4830 = vsel %vm695, %v4814, %v4799
        %v4831 = vmul.f32 %v4830, %v4300
        %v4832 = vmul.f32 %v4829, %v4301
        %v4833 = vmul.f32 %v4828, %v4302
        %v4834 = vmul.f32 %v4827, %v4303
        %v4835 = vmul.f32 %v4826, %v4304
        %v4836 = vmul.f32 %v4825, %v4305
        %v4837 = vmul.f32 %v4824, %v4306
        %v4838 = vmul.f32 %v4823, %v4307
        %v4839 = vmul.f32 %v4822, %v4308
        %v4840 = vmul.f32 %v4821, %v4309
        %v4841 = vmul.f32 %v4820, %v4310
        %v4842 = vmul.f32 %v4819, %v4311
        %v4843 = vmul.f32 %v4818, %v4312
        %v4844 = vmul.f32 %v4817, %v4313
        %v4845 = vmul.f32 %v4816, %v4314
        %v4846 = vmul.f32 %v4815, %v4315
        %v4847 = vrot.slane %v4783, 1
        %v4848 = vrot.slane %v4784, 1
        %v4849 = vrot.slane %v4785, 1
        %v4850 = vrot.slane %v4786, 1
        %v4851 = vrot.slane %v4787, 1
        %v4852 = vrot.slane %v4788, 1
        %v4853 = vrot.slane %v4789, 1
        %v4854 = vrot.slane %v4790, 1
        %v4855 = vrot.slane %v4791, 1
        %v4856 = vrot.slane %v4792, 1
        %v4857 = vrot.slane %v4793, 1
        %v4858 = vrot.slane %v4794, 1
        %v4859 = vrot.slane %v4795, 1
        %v4860 = vrot.slane %v4796, 1
        %v4861 = vrot.slane %v4797, 1
        %v4862 = vrot.slane %v4798, 1
        %v4863 = vsel %vm1403, %v4861, %v4862
        %v4864 = vsel %vm1403, %v4860, %v4861
        %v4865 = vsel %vm1403, %v4859, %v4860
        %v4866 = vsel %vm1403, %v4858, %v4859
        %v4867 = vsel %vm1403, %v4857, %v4858
        %v4868 = vsel %vm1403, %v4856, %v4857
        %v4869 = vsel %vm1403, %v4855, %v4856
        %v4870 = vsel %vm1403, %v4854, %v4855
        %v4871 = vsel %vm1403, %v4853, %v4854
        %v4872 = vsel %vm1403, %v4852, %v4853
        %v4873 = vsel %vm1403, %v4851, %v4852
        %v4874 = vsel %vm1403, %v4850, %v4851
        %v4875 = vsel %vm1403, %v4849, %v4850
        %v4876 = vsel %vm1403, %v4848, %v4849
        %v4877 = vsel %vm1403, %v4847, %v4848
        %v4878 = vsel %vm1403, %v4862, %v4847
        %vm4879 = vcmp.eq.s32.totalorder %v4236, 15
        %vm4880 = vcmp.eq.s32.totalorder %v4237, 15
        %vm4881 = vcmp.eq.s32.totalorder %v4238, 15
        %vm4882 = vcmp.eq.s32.totalorder %v4239, 15
        %vm4883 = vcmp.eq.s32.totalorder %v4240, 15
        %vm4884 = vcmp.eq.s32.totalorder %v4241, 15
        %vm4885 = vcmp.eq.s32.totalorder %v4242, 15
        %vm4886 = vcmp.eq.s32.totalorder %v4243, 15
        %vm4887 = vcmp.eq.s32.totalorder %v4244, 15
        %vm4888 = vcmp.eq.s32.totalorder %v4245, 15
        %vm4889 = vcmp.eq.s32.totalorder %v4246, 15
        %vm4890 = vcmp.eq.s32.totalorder %v4247, 15
        %vm4891 = vcmp.eq.s32.totalorder %v4248, 15
        %vm4892 = vcmp.eq.s32.totalorder %v4249, 15
        %vm4893 = vcmp.eq.s32.totalorder %v4250, 15
        %vm4894 = vcmp.eq.s32.totalorder %v4251, 15
        %vm4895 = vmxor %vm4879, 1
        %vm4896 = vmxor %vm4880, 1
        %vm4897 = vmxor %vm4881, 1
        %vm4898 = vmxor %vm4882, 1
        %vm4899 = vmxor %vm4883, 1
        %vm4900 = vmxor %vm4884, 1
        %vm4901 = vmxor %vm4885, 1
        %vm4902 = vmxor %vm4886, 1
        %vm4903 = vmxor %vm4887, 1
        %vm4904 = vmxor %vm4888, 1
        %vm4905 = vmxor %vm4889, 1
        %vm4906 = vmxor %vm4890, 1
        %vm4907 = vmxor %vm4891, 1
        %vm4908 = vmxor %vm4892, 1
        %vm4909 = vmxor %vm4893, 1
        %vm4910 = vmxor %vm4894, 1
        %v4911 = vsel %vm4895, 1, 0
        %v4912 = vsel %vm4896, 1, 0
        %v4913 = vsel %vm4897, 1, 0
        %v4914 = vsel %vm4898, 1, 0
        %v4915 = vsel %vm4899, 1, 0
        %v4916 = vsel %vm4900, 1, 0
        %v4917 = vsel %vm4901, 1, 0
        %v4918 = vsel %vm4902, 1, 0
        %v4919 = vsel %vm4903, 1, 0
        %v4920 = vsel %vm4904, 1, 0
        %v4921 = vsel %vm4905, 1, 0
        %v4922 = vsel %vm4906, 1, 0
        %v4923 = vsel %vm4907, 1, 0
        %v4924 = vsel %vm4908, 1, 0
        %v4925 = vsel %vm4909, 1, 0
        %v4926 = vsel %vm4910, 1, 0
        %v4927 = vcvt.s32.f32 %v4911
        %v4928 = vcvt.s32.f32 %v4912
        %v4929 = vcvt.s32.f32 %v4913
        %v4930 = vcvt.s32.f32 %v4914
        %v4931 = vcvt.s32.f32 %v4915
        %v4932 = vcvt.s32.f32 %v4916
        %v4933 = vcvt.s32.f32 %v4917
        %v4934 = vcvt.s32.f32 %v4918
        %v4935 = vcvt.s32.f32 %v4919
        %v4936 = vcvt.s32.f32 %v4920
        %v4937 = vcvt.s32.f32 %v4921
        %v4938 = vcvt.s32.f32 %v4922
        %v4939 = vcvt.s32.f32 %v4923
        %v4940 = vcvt.s32.f32 %v4924
        %v4941 = vcvt.s32.f32 %v4925
        %v4942 = vcvt.s32.f32 %v4926
        %v4943 = vmul.f32 %v4877, %v4927
        %v4944 = vmul.f32 %v4876, %v4928
        %v4945 = vmul.f32 %v4875, %v4929
        %v4946 = vmul.f32 %v4874, %v4930
        %v4947 = vmul.f32 %v4873, %v4931
        %v4948 = vmul.f32 %v4872, %v4932
        %v4949 = vmul.f32 %v4871, %v4933
        %v4950 = vmul.f32 %v4870, %v4934
        %v4951 = vmul.f32 %v4869, %v4935
        %v4952 = vmul.f32 %v4868, %v4936
        %v4953 = vmul.f32 %v4867, %v4937
        %v4954 = vmul.f32 %v4866, %v4938
        %v4955 = vmul.f32 %v4865, %v4939
        %v4956 = vmul.f32 %v4864, %v4940
        %v4957 = vmul.f32 %v4863, %v4941
        %v4958 = vmul.f32 %v4878, %v4942
        %v4959 = vpack.c.bf16 %v4832, %v4831
        %v4960 = vpack.c.bf16 %v4784, %v4783
        %v4961 = vpack.c.bf16 %v4944, %v4943
        %v4962 = vpack.c.bf16 %v4834, %v4833
        %v4963 = vpack.c.bf16 %v4786, %v4785
        %v4964 = vpack.c.bf16 %v4946, %v4945
        %v4965 = vpack.c.bf16 %v4836, %v4835
        %v4966 = vpack.c.bf16 %v4788, %v4787
        %v4967 = vpack.c.bf16 %v4948, %v4947
        %v4968 = vpack.c.bf16 %v4838, %v4837
        %v4969 = vpack.c.bf16 %v4790, %v4789
        %v4970 = vpack.c.bf16 %v4950, %v4949
        %v4971 = vpack.c.bf16 %v4840, %v4839
        %v4972 = vpack.c.bf16 %v4792, %v4791
        %v4973 = vpack.c.bf16 %v4952, %v4951
        %v4974 = vpack.c.bf16 %v4842, %v4841
        %v4975 = vpack.c.bf16 %v4794, %v4793
        %v4976 = vpack.c.bf16 %v4954, %v4953
        %v4977 = vpack.c.bf16 %v4844, %v4843
        %v4978 = vpack.c.bf16 %v4796, %v4795
        %v4979 = vpack.c.bf16 %v4956, %v4955
        %v4980 = vpack.c.bf16 %v4846, %v4845
        %v4981 = vpack.c.bf16 %v4798, %v4797
        %v4982 = vpack.c.bf16 %v4958, %v4957
        %s4983 = scalar_lea.vmem %s2, 576
        %v4984 = vld [vmem:[%s4983] sm:$0xf]
        %v4985 = vld [vmem:[%s4983 + $0x4] sm:$0xf]
        %v4986 = vld [vmem:[%s4983 + $0x8] sm:$0xf]
        %v4987 = vld [vmem:[%s4983 + $0xc] sm:$0xf]
        %v4988 = vld [vmem:[%s4983 + $0x10] sm:$0xf]
        %v4989 = vld [vmem:[%s4983 + $0x14] sm:$0xf]
        %v4990 = vld [vmem:[%s4983 + $0x18] sm:$0xf]
        %v4991 = vld [vmem:[%s4983 + $0x1c] sm:$0xf]
        %v4992 = vld [vmem:[%s4983 + $0x20] sm:$0xf]
        %v4993 = vld [vmem:[%s4983 + $0x24] sm:$0xf]
        %v4994 = vld [vmem:[%s4983 + $0x28] sm:$0xf]
        %v4995 = vld [vmem:[%s4983 + $0x2c] sm:$0xf]
        %v4996 = vld [vmem:[%s4983 + $0x30] sm:$0xf]
        %v4997 = vld [vmem:[%s4983 + $0x34] sm:$0xf]
        %v4998 = vld [vmem:[%s4983 + $0x38] sm:$0xf]
        %v4999 = vld [vmem:[%s4983 + $0x3c] sm:$0xf]
        %v5000 = vld [vmem:[%s4983 + $0x40] sm:$0xf]
        %v5001 = vld [vmem:[%s4983 + $0x44] sm:$0xf]
        %v5002 = vld [vmem:[%s4983 + $0x48] sm:$0xf]
        %v5003 = vld [vmem:[%s4983 + $0x4c] sm:$0xf]
        %v5004 = vld [vmem:[%s4983 + $0x50] sm:$0xf]
        %v5005 = vld [vmem:[%s4983 + $0x54] sm:$0xf]
        %v5006 = vld [vmem:[%s4983 + $0x58] sm:$0xf]
        %v5007 = vld [vmem:[%s4983 + $0x5c] sm:$0xf]
        %v5008 = vld [vmem:[%s4983 + $0x60] sm:$0xf]
        %v5009 = vld [vmem:[%s4983 + $0x64] sm:$0xf]
        %v5010 = vld [vmem:[%s4983 + $0x68] sm:$0xf]
        %v5011 = vld [vmem:[%s4983 + $0x6c] sm:$0xf]
        %v5012 = vld [vmem:[%s4983 + $0x70] sm:$0xf]
        %v5013 = vld [vmem:[%s4983 + $0x74] sm:$0xf]
        %v5014 = vld [vmem:[%s4983 + $0x78] sm:$0xf]
        %v5015 = vld [vmem:[%s4983 + $0x7c] sm:$0xf]
        %v5016 = vld [vmem:[%s4983 + $0x80] sm:$0xf]
        %v5017 = vld [vmem:[%s4983 + $0x84] sm:$0xf]
        %v5018 = vld [vmem:[%s4983 + $0x88] sm:$0xf]
        %v5019 = vld [vmem:[%s4983 + $0x8c] sm:$0xf]
        %v5020 = vld [vmem:[%s4983 + $0x90] sm:$0xf]
        %v5021 = vld [vmem:[%s4983 + $0x94] sm:$0xf]
        %v5022 = vld [vmem:[%s4983 + $0x98] sm:$0xf]
        %v5023 = vld [vmem:[%s4983 + $0x9c] sm:$0xf]
        %v5024 = vld [vmem:[%s4983 + $0xa0] sm:$0xf]
        %v5025 = vld [vmem:[%s4983 + $0xa4] sm:$0xf]
        %v5026 = vld [vmem:[%s4983 + $0xa8] sm:$0xf]
        %v5027 = vld [vmem:[%s4983 + $0xac] sm:$0xf]
        %v5028 = vld [vmem:[%s4983 + $0xb0] sm:$0xf]
        %v5029 = vld [vmem:[%s4983 + $0xb4] sm:$0xf]
        %v5030 = vld [vmem:[%s4983 + $0xb8] sm:$0xf]
        %v5031 = vld [vmem:[%s4983 + $0xbc] sm:$0xf]
        %s5032 = scalar_lea.vmem [#allocation5], 64
        %v5033 = vld [vmem:[%s5032] sm:$0xf]
        %v5034 = vld [vmem:[%s5032 + $0x4] sm:$0xf]
        %v5035 = vld [vmem:[%s5032 + $0x8] sm:$0xf]
        %v5036 = vld [vmem:[%s5032 + $0xc] sm:$0xf]
        %v5037 = vld [vmem:[%s5032 + $0x10] sm:$0xf]
        %v5038 = vld [vmem:[%s5032 + $0x14] sm:$0xf]
        %v5039 = vld [vmem:[%s5032 + $0x18] sm:$0xf]
        %v5040 = vld [vmem:[%s5032 + $0x1c] sm:$0xf]
        %v5041 = vld [vmem:[%s5032 + $0x20] sm:$0xf]
        %v5042 = vld [vmem:[%s5032 + $0x24] sm:$0xf]
        %v5043 = vld [vmem:[%s5032 + $0x28] sm:$0xf]
        %v5044 = vld [vmem:[%s5032 + $0x2c] sm:$0xf]
        %v5045 = vld [vmem:[%s5032 + $0x30] sm:$0xf]
        %v5046 = vld [vmem:[%s5032 + $0x34] sm:$0xf]
        %v5047 = vld [vmem:[%s5032 + $0x38] sm:$0xf]
        %v5048 = vld [vmem:[%s5032 + $0x3c] sm:$0xf]
        %v5065 = vunpack.c.l.b16 %v5033
        %v5066 = vunpack.c.l.b16 %v5034
        %v5067 = vunpack.c.l.b16 %v5035
        %v5068 = vunpack.c.l.b16 %v5036
        %v5069 = vunpack.c.l.b16 %v5037
        %v5070 = vunpack.c.l.b16 %v5038
        %v5071 = vunpack.c.l.b16 %v5039
        %v5072 = vunpack.c.l.b16 %v5040
        %v5073 = vunpack.c.l.b16 %v5041
        %v5074 = vunpack.c.l.b16 %v5042
        %v5075 = vunpack.c.l.b16 %v5043
        %v5076 = vunpack.c.l.b16 %v5044
        %v5077 = vunpack.c.l.b16 %v5045
        %v5078 = vunpack.c.l.b16 %v5046
        %v5079 = vunpack.c.l.b16 %v5047
        %v5080 = vunpack.c.l.b16 %v5048
        %v5081 = vpack.c.b16 %v5066, %v5065
        %v5082 = vpack.c.b16 %v5068, %v5067
        %v5083 = vpack.c.b16 %v5070, %v5069
        %v5084 = vpack.c.b16 %v5072, %v5071
        %v5085 = vpack.c.b16 %v5074, %v5073
        %v5086 = vpack.c.b16 %v5076, %v5075
        %v5087 = vpack.c.b16 %v5078, %v5077
        %v5088 = vpack.c.b16 %v5080, %v5079
        %5097 = vmatprep.subr.bf16.mxu0 0
        %5098 = vmatpush1.bf16.msra.mxu0 %v5081
        %5099 = vmatprep.subr.bf16.mxu0 0
        %5100 = vmatpush1.bf16.msra.mxu0 %v5082
        %5101 = vmatprep.subr.bf16.mxu0 0
        %5102 = vmatpush1.bf16.msra.mxu0 %v5083
        %5103 = vmatprep.subr.bf16.mxu0 0
        %5104 = vmatpush1.bf16.msra.mxu0 %v5084
        %5105 = vmatprep.subr.bf16.mxu0 0
        %5106 = vmatpush1.bf16.msra.mxu0 %v5085
        %5107 = vmatprep.subr.bf16.mxu0 0
        %5108 = vmatpush1.bf16.msra.mxu0 %v5086
        %5109 = vmatprep.subr.bf16.mxu0 0
        %5110 = vmatpush1.bf16.msra.mxu0 %v5087
        %5111 = vmatprep.subr.bf16.mxu0 0
        %5112 = vmatpush1.bf16.msra.mxu0 %v5088
        %5113 = vmatprep.subr.bf16.mxu0 0
        %5114 = vmatpush1.bf16.msra.mxu0 0
        %5115 = vmatprep.subr.bf16.mxu0 0
        %5116 = vmatpush1.bf16.msra.mxu0 0
        %5117 = vmatprep.subr.bf16.mxu0 0
        %5118 = vmatpush1.bf16.msra.mxu0 0
        %5119 = vmatprep.subr.bf16.mxu0 0
        %5120 = vmatpush1.bf16.msra.mxu0 0
        %5121 = vmatprep.subr.bf16.mxu0 0
        %5122 = vmatpush1.bf16.msra.mxu0 0
        %5123 = vmatprep.subr.bf16.mxu0 0
        %5124 = vmatpush1.bf16.msra.mxu0 0
        %5125 = vmatprep.subr.bf16.mxu0 0
        %5126 = vmatpush1.bf16.msra.mxu0 0
        %5127 = vmatprep.subr.bf16.mxu0 0
        %5128 = vmatpush1.bf16.msra.mxu0 0
        %5129 = vmatprep.mubr.bf16.mxu0 0
        %5130 = vmatmul.mubr.bf16.gmra.mrb[0].mxu0 %v4333
        %v5131 = vpop.f32.mrb[0].mxu0
        %v5132 = vadd.f32 0.0, %v5131
        %v5133 = vpop.f32.mrb[0].mxu0
        %v5134 = vpop.f32.mrb[0].mxu0
        %v5135 = vadd.f32 0.0, %v5134
        %v5136 = vpop.f32.mrb[0].mxu0
        %5137 = vmatprep.mubr.bf16.mxu0 0
        %5138 = vmatmul.mubr.bf16.gmra.mrb[0].mxu0 %v4336
        %v5139 = vpop.f32.mrb[0].mxu0
        %v5140 = vadd.f32 0.0, %v5139
        %v5141 = vpop.f32.mrb[0].mxu0
        %v5142 = vpop.f32.mrb[0].mxu0
        %v5143 = vadd.f32 0.0, %v5142
        %v5144 = vpop.f32.mrb[0].mxu0
        %5145 = vmatprep.mubr.bf16.mxu0 0
        %5146 = vmatmul.mubr.bf16.gmra.mrb[0].mxu0 %v4339
        %v5147 = vpop.f32.mrb[0].mxu0
        %v5148 = vadd.f32 0.0, %v5147
        %v5149 = vpop.f32.mrb[0].mxu0
        %v5150 = vpop.f32.mrb[0].mxu0
        %v5151 = vadd.f32 0.0, %v5150
        %v5152 = vpop.f32.mrb[0].mxu0
        %5153 = vmatprep.mubr.bf16.mxu0 0
        %5154 = vmatmul.mubr.bf16.gmra.mrb[0].mxu0 %v4342
        %v5155 = vpop.f32.mrb[0].mxu0
        %v5156 = vadd.f32 0.0, %v5155
        %v5157 = vpop.f32.mrb[0].mxu0
        %v5158 = vpop.f32.mrb[0].mxu0
        %v5159 = vadd.f32 0.0, %v5158
        %v5160 = vpop.f32.mrb[0].mxu0
        %5161 = vmatprep.mubr.bf16.mxu0 0
        %5162 = vmatmul.mubr.bf16.gmra.mrb[0].mxu0 %v4345
        %v5163 = vpop.f32.mrb[0].mxu0
        %v5164 = vadd.f32 0.0, %v5163
        %v5165 = vpop.f32.mrb[0].mxu0
        %v5166 = vpop.f32.mrb[0].mxu0
        %v5167 = vadd.f32 0.0, %v5166
        %v5168 = vpop.f32.mrb[0].mxu0
        %5169 = vmatprep.mubr.bf16.mxu0 0
        %5170 = vmatmul.mubr.bf16.gmra.mrb[0].mxu0 %v4348
        %v5171 = vpop.f32.mrb[0].mxu0
        %v5172 = vadd.f32 0.0, %v5171
        %v5173 = vpop.f32.mrb[0].mxu0
        %v5174 = vpop.f32.mrb[0].mxu0
        %v5175 = vadd.f32 0.0, %v5174
        %v5176 = vpop.f32.mrb[0].mxu0
        %5177 = vmatprep.mubr.bf16.mxu0 0
        %5178 = vmatmul.mubr.bf16.gmra.mrb[0].mxu0 %v4351
        %v5179 = vpop.f32.mrb[0].mxu0
        %v5180 = vadd.f32 0.0, %v5179
        %v5181 = vpop.f32.mrb[0].mxu0
        %v5182 = vpop.f32.mrb[0].mxu0
        %v5183 = vadd.f32 0.0, %v5182
        %v5184 = vpop.f32.mrb[0].mxu0
        %5185 = vmatprep.mubr.bf16.mxu0 0
        %5186 = vmatmul.mubr.bf16.gmra.mrb[0].mxu0 %v4354
        %v5187 = vpop.f32.mrb[0].mxu0
        %v5188 = vadd.f32 0.0, %v5187
        %v5189 = vpop.f32.mrb[0].mxu0
        %v5190 = vpop.f32.mrb[0].mxu0
        %v5191 = vadd.f32 0.0, %v5190
        %v5192 = vpop.f32.mrb[0].mxu0
        %5193 = vdwg.mxu0
        %v5242 = vunpack.c.l.b16 %v4984
        %v5243 = vunpack.c.l.b16 %v4985
        %v5244 = vunpack.c.l.b16 %v4986
        %v5245 = vunpack.c.l.b16 %v4987
        %v5246 = vunpack.c.l.b16 %v4988
        %v5247 = vunpack.c.l.b16 %v4989
        %v5248 = vunpack.c.l.b16 %v4990
        %v5249 = vunpack.c.l.b16 %v4991
        %v5250 = vunpack.c.l.b16 %v4992
        %v5251 = vunpack.c.l.b16 %v4993
        %v5252 = vunpack.c.l.b16 %v4994
        %v5253 = vunpack.c.l.b16 %v4995
        %v5254 = vunpack.c.l.b16 %v4996
        %v5255 = vunpack.c.l.b16 %v4997
        %v5256 = vunpack.c.l.b16 %v4998
        %v5257 = vunpack.c.l.b16 %v4999
        %v5258 = vunpack.c.l.b16 %v5000
        %v5259 = vunpack.c.l.b16 %v5001
        %v5260 = vunpack.c.l.b16 %v5002
        %v5261 = vunpack.c.l.b16 %v5003
        %v5262 = vunpack.c.l.b16 %v5004
        %v5263 = vunpack.c.l.b16 %v5005
        %v5264 = vunpack.c.l.b16 %v5006
        %v5265 = vunpack.c.l.b16 %v5007
        %v5266 = vunpack.c.l.b16 %v5008
        %v5267 = vunpack.c.l.b16 %v5009
        %v5268 = vunpack.c.l.b16 %v5010
        %v5269 = vunpack.c.l.b16 %v5011
        %v5270 = vunpack.c.l.b16 %v5012
        %v5271 = vunpack.c.l.b16 %v5013
        %v5272 = vunpack.c.l.b16 %v5014
        %v5273 = vunpack.c.l.b16 %v5015
        %v5274 = vunpack.c.l.b16 %v5016
        %v5275 = vunpack.c.l.b16 %v5017
        %v5276 = vunpack.c.l.b16 %v5018
        %v5277 = vunpack.c.l.b16 %v5019
        %v5278 = vunpack.c.l.b16 %v5020
        %v5279 = vunpack.c.l.b16 %v5021
        %v5280 = vunpack.c.l.b16 %v5022
        %v5281 = vunpack.c.l.b16 %v5023
        %v5282 = vunpack.c.l.b16 %v5024
        %v5283 = vunpack.c.l.b16 %v5025
        %v5284 = vunpack.c.l.b16 %v5026
        %v5285 = vunpack.c.l.b16 %v5027
        %v5286 = vunpack.c.l.b16 %v5028
        %v5287 = vunpack.c.l.b16 %v5029
        %v5288 = vunpack.c.l.b16 %v5030
        %v5289 = vunpack.c.l.b16 %v5031
        %v5290 = vpack.c.b16 %v5243, %v5242
        %v5291 = vpack.c.b16 %v5245, %v5244
        %v5292 = vpack.c.b16 %v5247, %v5246
        %v5293 = vpack.c.b16 %v5249, %v5248
        %v5294 = vpack.c.b16 %v5251, %v5250
        %v5295 = vpack.c.b16 %v5253, %v5252
        %v5296 = vpack.c.b16 %v5255, %v5254
        %v5297 = vpack.c.b16 %v5257, %v5256
        %v5298 = vpack.c.b16 %v5259, %v5258
        %v5299 = vpack.c.b16 %v5261, %v5260
        %v5300 = vpack.c.b16 %v5263, %v5262
        %v5301 = vpack.c.b16 %v5265, %v5264
        %v5302 = vpack.c.b16 %v5267, %v5266
        %v5303 = vpack.c.b16 %v5269, %v5268
        %v5304 = vpack.c.b16 %v5271, %v5270
        %v5305 = vpack.c.b16 %v5273, %v5272
        %v5306 = vpack.c.b16 %v5275, %v5274
        %v5307 = vpack.c.b16 %v5277, %v5276
        %v5308 = vpack.c.b16 %v5279, %v5278
        %v5309 = vpack.c.b16 %v5281, %v5280
        %v5310 = vpack.c.b16 %v5283, %v5282
        %v5311 = vpack.c.b16 %v5285, %v5284
        %v5312 = vpack.c.b16 %v5287, %v5286
        %v5313 = vpack.c.b16 %v5289, %v5288
        %5338 = vmatprep.subr.bf16.mxu0 0
        %5339 = vmatpush1.bf16.msra.mxu0 %v5290
        %5340 = vmatprep.subr.bf16.mxu0 0
        %5341 = vmatpush1.bf16.msra.mxu0 %v5291
        %5342 = vmatprep.subr.bf16.mxu0 0
        %5343 = vmatpush1.bf16.msra.mxu0 %v5292
        %5344 = vmatprep.subr.bf16.mxu0 0
        %5345 = vmatpush1.bf16.msra.mxu0 %v5293
        %5346 = vmatprep.subr.bf16.mxu0 0
        %5347 = vmatpush1.bf16.msra.mxu0 %v5294
        %5348 = vmatprep.subr.bf16.mxu0 0
        %5349 = vmatpush1.bf16.msra.mxu0 %v5295
        %5350 = vmatprep.subr.bf16.mxu0 0
        %5351 = vmatpush1.bf16.msra.mxu0 %v5296
        %5352 = vmatprep.subr.bf16.mxu0 0
        %5353 = vmatpush1.bf16.msra.mxu0 %v5297
        %5354 = vmatprep.subr.bf16.mxu0 0
        %5355 = vmatpush1.bf16.msra.mxu0 %v5298
        %5356 = vmatprep.subr.bf16.mxu0 0
        %5357 = vmatpush1.bf16.msra.mxu0 %v5299
        %5358 = vmatprep.subr.bf16.mxu0 0
        %5359 = vmatpush1.bf16.msra.mxu0 %v5300
        %5360 = vmatprep.subr.bf16.mxu0 0
        %5361 = vmatpush1.bf16.msra.mxu0 %v5301
        %5362 = vmatprep.subr.bf16.mxu0 0
        %5363 = vmatpush1.bf16.msra.mxu0 %v5302
        %5364 = vmatprep.subr.bf16.mxu0 0
        %5365 = vmatpush1.bf16.msra.mxu0 %v5303
        %5366 = vmatprep.subr.bf16.mxu0 0
        %5367 = vmatpush1.bf16.msra.mxu0 %v5304
        %5368 = vmatprep.subr.bf16.mxu0 0
        %5369 = vmatpush1.bf16.msra.mxu0 %v5305
        %5370 = vmatprep.mubr.bf16.mxu0 %v4960
        %5371 = vmatmul.mubr.bf16.gmra.mrb[0].mxu0 %v4959
        %v5372 = vpop.f32.mrb[0].mxu0
        %v5373 = vadd.f32 %v5132, %v5372
        %v5374 = vpop.f32.mrb[0].mxu0
        %v5375 = vpop.f32.mrb[0].mxu0
        %v5376 = vadd.f32 %v5135, %v5375
        %v5377 = vpop.f32.mrb[0].mxu0
        %5378 = vmatprep.mubr.bf16.mxu0 %v4963
        %5379 = vmatmul.mubr.bf16.gmra.mrb[0].mxu0 %v4962
        %v5380 = vpop.f32.mrb[0].mxu0
        %v5381 = vadd.f32 %v5140, %v5380
        %v5382 = vpop.f32.mrb[0].mxu0
        %v5383 = vpop.f32.mrb[0].mxu0
        %v5384 = vadd.f32 %v5143, %v5383
        %v5385 = vpop.f32.mrb[0].mxu0
        %5386 = vmatprep.mubr.bf16.mxu0 %v4966
        %5387 = vmatmul.mubr.bf16.gmra.mrb[0].mxu0 %v4965
        %v5388 = vpop.f32.mrb[0].mxu0
        %v5389 = vadd.f32 %v5148, %v5388
        %v5390 = vpop.f32.mrb[0].mxu0
        %v5391 = vpop.f32.mrb[0].mxu0
        %v5392 = vadd.f32 %v5151, %v5391
        %v5393 = vpop.f32.mrb[0].mxu0
        %5394 = vmatprep.mubr.bf16.mxu0 %v4969
        %5395 = vmatmul.mubr.bf16.gmra.mrb[0].mxu0 %v4968
        %v5396 = vpop.f32.mrb[0].mxu0
        %v5397 = vadd.f32 %v5156, %v5396
        %v5398 = vpop.f32.mrb[0].mxu0
        %v5399 = vpop.f32.mrb[0].mxu0
        %v5400 = vadd.f32 %v5159, %v5399
        %v5401 = vpop.f32.mrb[0].mxu0
        %5402 = vmatprep.mubr.bf16.mxu0 %v4972
        %5403 = vmatmul.mubr.bf16.gmra.mrb[0].mxu0 %v4971
        %v5404 = vpop.f32.mrb[0].mxu0
        %v5405 = vadd.f32 %v5164, %v5404
        %v5406 = vpop.f32.mrb[0].mxu0
        %v5407 = vpop.f32.mrb[0].mxu0
        %v5408 = vadd.f32 %v5167, %v5407
        %v5409 = vpop.f32.mrb[0].mxu0
        %5410 = vmatprep.mubr.bf16.mxu0 %v4975
        %5411 = vmatmul.mubr.bf16.gmra.mrb[0].mxu0 %v4974
        %v5412 = vpop.f32.mrb[0].mxu0
        %v5413 = vadd.f32 %v5172, %v5412
        %v5414 = vpop.f32.mrb[0].mxu0
        %v5415 = vpop.f32.mrb[0].mxu0
        %v5416 = vadd.f32 %v5175, %v5415
        %v5417 = vpop.f32.mrb[0].mxu0
        %5418 = vmatprep.mubr.bf16.mxu0 %v4978
        %5419 = vmatmul.mubr.bf16.gmra.mrb[0].mxu0 %v4977
        %v5420 = vpop.f32.mrb[0].mxu0
        %v5421 = vadd.f32 %v5180, %v5420
        %v5422 = vpop.f32.mrb[0].mxu0
        %v5423 = vpop.f32.mrb[0].mxu0
        %v5424 = vadd.f32 %v5183, %v5423
        %v5425 = vpop.f32.mrb[0].mxu0
        %5426 = vmatprep.mubr.bf16.mxu0 %v4981
        %5427 = vmatmul.mubr.bf16.gmra.mrb[0].mxu0 %v4980
        %v5428 = vpop.f32.mrb[0].mxu0
        %v5429 = vadd.f32 %v5188, %v5428
        %v5430 = vpop.f32.mrb[0].mxu0
        %v5431 = vpop.f32.mrb[0].mxu0
        %v5432 = vadd.f32 %v5191, %v5431
        %v5433 = vpop.f32.mrb[0].mxu0
        %5434 = vdwg.mxu0
        %5435 = vmatprep.subr.bf16.mxu0 0
        %5436 = vmatpush1.bf16.msra.mxu0 %v5306
        %5437 = vmatprep.subr.bf16.mxu0 0
        %5438 = vmatpush1.bf16.msra.mxu0 %v5307
        %5439 = vmatprep.subr.bf16.mxu0 0
        %5440 = vmatpush1.bf16.msra.mxu0 %v5308
        %5441 = vmatprep.subr.bf16.mxu0 0
        %5442 = vmatpush1.bf16.msra.mxu0 %v5309
        %5443 = vmatprep.subr.bf16.mxu0 0
        %5444 = vmatpush1.bf16.msra.mxu0 %v5310
        %5445 = vmatprep.subr.bf16.mxu0 0
        %5446 = vmatpush1.bf16.msra.mxu0 %v5311
        %5447 = vmatprep.subr.bf16.mxu0 0
        %5448 = vmatpush1.bf16.msra.mxu0 %v5312
        %5449 = vmatprep.subr.bf16.mxu0 0
        %5450 = vmatpush1.bf16.msra.mxu0 %v5313
        %5451 = vmatprep.subr.bf16.mxu0 0
        %5452 = vmatpush1.bf16.msra.mxu0 0
        %5453 = vmatprep.subr.bf16.mxu0 0
        %5454 = vmatpush1.bf16.msra.mxu0 0
        %5455 = vmatprep.subr.bf16.mxu0 0
        %5456 = vmatpush1.bf16.msra.mxu0 0
        %5457 = vmatprep.subr.bf16.mxu0 0
        %5458 = vmatpush1.bf16.msra.mxu0 0
        %5459 = vmatprep.subr.bf16.mxu0 0
        %5460 = vmatpush1.bf16.msra.mxu0 0
        %5461 = vmatprep.subr.bf16.mxu0 0
        %5462 = vmatpush1.bf16.msra.mxu0 0
        %5463 = vmatprep.subr.bf16.mxu0 0
        %5464 = vmatpush1.bf16.msra.mxu0 0
        %5465 = vmatprep.subr.bf16.mxu0 0
        %5466 = vmatpush1.bf16.msra.mxu0 0
        %5467 = vmatprep.mubr.bf16.mxu0 0
        %5468 = vmatmul.mubr.bf16.gmra.mrb[0].mxu0 %v4961
        %v5469 = vpop.f32.mrb[0].mxu0
        %v5470 = vadd.f32 %v5373, %v5469
        %v5471 = vpop.f32.mrb[0].mxu0
        %v5472 = vpop.f32.mrb[0].mxu0
        %v5473 = vadd.f32 %v5376, %v5472
        %v5474 = vpop.f32.mrb[0].mxu0
        %5475 = vmatprep.mubr.bf16.mxu0 0
        %5476 = vmatmul.mubr.bf16.gmra.mrb[0].mxu0 %v4964
        %v5477 = vpop.f32.mrb[0].mxu0
        %v5478 = vadd.f32 %v5381, %v5477
        %v5479 = vpop.f32.mrb[0].mxu0
        %v5480 = vpop.f32.mrb[0].mxu0
        %v5481 = vadd.f32 %v5384, %v5480
        %v5482 = vpop.f32.mrb[0].mxu0
        %5483 = vmatprep.mubr.bf16.mxu0 0
        %5484 = vmatmul.mubr.bf16.gmra.mrb[0].mxu0 %v4967
        %v5485 = vpop.f32.mrb[0].mxu0
        %v5486 = vadd.f32 %v5389, %v5485
        %v5487 = vpop.f32.mrb[0].mxu0
        %v5488 = vpop.f32.mrb[0].mxu0
        %v5489 = vadd.f32 %v5392, %v5488
        %v5490 = vpop.f32.mrb[0].mxu0
        %5491 = vmatprep.mubr.bf16.mxu0 0
        %5492 = vmatmul.mubr.bf16.gmra.mrb[0].mxu0 %v4970
        %v5493 = vpop.f32.mrb[0].mxu0
        %v5494 = vadd.f32 %v5397, %v5493
        %v5495 = vpop.f32.mrb[0].mxu0
        %v5496 = vpop.f32.mrb[0].mxu0
        %v5497 = vadd.f32 %v5400, %v5496
        %v5498 = vpop.f32.mrb[0].mxu0
        %5499 = vmatprep.mubr.bf16.mxu0 0
        %5500 = vmatmul.mubr.bf16.gmra.mrb[0].mxu0 %v4973
        %v5501 = vpop.f32.mrb[0].mxu0
        %v5502 = vadd.f32 %v5405, %v5501
        %v5503 = vpop.f32.mrb[0].mxu0
        %v5504 = vpop.f32.mrb[0].mxu0
        %v5505 = vadd.f32 %v5408, %v5504
        %v5506 = vpop.f32.mrb[0].mxu0
        %5507 = vmatprep.mubr.bf16.mxu0 0
        %5508 = vmatmul.mubr.bf16.gmra.mrb[0].mxu0 %v4976
        %v5509 = vpop.f32.mrb[0].mxu0
        %v5510 = vadd.f32 %v5413, %v5509
        %v5511 = vpop.f32.mrb[0].mxu0
        %v5512 = vpop.f32.mrb[0].mxu0
        %v5513 = vadd.f32 %v5416, %v5512
        %v5514 = vpop.f32.mrb[0].mxu0
        %5515 = vmatprep.mubr.bf16.mxu0 0
        %5516 = vmatmul.mubr.bf16.gmra.mrb[0].mxu0 %v4979
        %v5517 = vpop.f32.mrb[0].mxu0
        %v5518 = vadd.f32 %v5421, %v5517
        %v5519 = vpop.f32.mrb[0].mxu0
        %v5520 = vpop.f32.mrb[0].mxu0
        %v5521 = vadd.f32 %v5424, %v5520
        %v5522 = vpop.f32.mrb[0].mxu0
        %5523 = vmatprep.mubr.bf16.mxu0 0
        %5524 = vmatmul.mubr.bf16.gmra.mrb[0].mxu0 %v4982
        %v5525 = vpop.f32.mrb[0].mxu0
        %v5526 = vadd.f32 %v5429, %v5525
        %v5527 = vpop.f32.mrb[0].mxu0
        %v5528 = vpop.f32.mrb[0].mxu0
        %v5529 = vadd.f32 %v5432, %v5528
        %v5530 = vpop.f32.mrb[0].mxu0
        %5531 = vdwg.mxu0
        %v5532 = vlaneseq
        %v5533 = vshrl.u32 %v5532, 7
        %v5534 = vsub.s32 3, %v5533
        %v5535 = vrot.slane %v395, %v5534
        %v5536 = vmul.f32 %v5470, %v5535
        %v5537 = vmul.f32 %v5473, %v5535
        %v5538 = vmul.f32 %v5478, %v5535
        %v5539 = vmul.f32 %v5481, %v5535
        %v5540 = vmul.f32 %v5486, %v5535
        %v5541 = vmul.f32 %v5489, %v5535
        %v5542 = vmul.f32 %v5494, %v5535
        %v5543 = vmul.f32 %v5497, %v5535
        %v5544 = vmul.f32 %v5502, %v5535
        %v5545 = vmul.f32 %v5505, %v5535
        %v5546 = vmul.f32 %v5510, %v5535
        %v5547 = vmul.f32 %v5513, %v5535
        %v5548 = vmul.f32 %v5518, %v5535
        %v5549 = vmul.f32 %v5521, %v5535
        %v5550 = vmul.f32 %v5526, %v5535
        %v5551 = vmul.f32 %v5529, %v5535
        %v5552 = vlaneseq
        %v5553 = vshrl.u32 %v5552, 7
        %v5554 = vsub.s32 4, %v5553
        %v5555 = vrot.slane %v395, %v5554
        %v5556 = vadd.f32 %v5536, %v5555
        %v5557 = vadd.f32 %v5537, %v5555
        %v5558 = vadd.f32 %v5538, %v5555
        %v5559 = vadd.f32 %v5539, %v5555
        %v5560 = vadd.f32 %v5540, %v5555
        %v5561 = vadd.f32 %v5541, %v5555
        %v5562 = vadd.f32 %v5542, %v5555
        %v5563 = vadd.f32 %v5543, %v5555
        %v5564 = vadd.f32 %v5544, %v5555
        %v5565 = vadd.f32 %v5545, %v5555
        %v5566 = vadd.f32 %v5546, %v5555
        %v5567 = vadd.f32 %v5547, %v5555
        %v5568 = vadd.f32 %v5548, %v5555
        %v5569 = vadd.f32 %v5549, %v5555
        %v5570 = vadd.f32 %v5550, %v5555
        %v5571 = vadd.f32 %v5551, %v5555
        %v5572 = vmax.f32 %v5556, 0.0
        %v5573 = vmax.f32 %v5557, 0.0
        %v5574 = vmax.f32 %v5558, 0.0
        %v5575 = vmax.f32 %v5559, 0.0
        %v5576 = vmax.f32 %v5560, 0.0
        %v5577 = vmax.f32 %v5561, 0.0
        %v5578 = vmax.f32 %v5562, 0.0
        %v5579 = vmax.f32 %v5563, 0.0
        %v5580 = vmax.f32 %v5564, 0.0
        %v5581 = vmax.f32 %v5565, 0.0
        %v5582 = vmax.f32 %v5566, 0.0
        %v5583 = vmax.f32 %v5567, 0.0
        %v5584 = vmax.f32 %v5568, 0.0
        %v5585 = vmax.f32 %v5569, 0.0
        %v5586 = vmax.f32 %v5570, 0.0
        %v5587 = vmax.f32 %v5571, 0.0
        %v5588 = vld [vmem:[%s8] sm:$0xff]
        %v5589 = vld [vmem:[%s8 + $0x8] sm:$0xff]
        %v5590 = vld [vmem:[%s8 + $0x10] sm:$0xff]
        %v5591 = vld [vmem:[%s8 + $0x18] sm:$0xff]
        %v5592 = vld [vmem:[%s8 + $0x20] sm:$0xff]
        %v5593 = vld [vmem:[%s8 + $0x28] sm:$0xff]
        %v5594 = vld [vmem:[%s8 + $0x30] sm:$0xff]
        %v5595 = vld [vmem:[%s8 + $0x38] sm:$0xff]
        %v5596 = vld [vmem:[%s9] sm:$0xff]
        %v5597 = vld [vmem:[%s9 + $0x8] sm:$0xff]
        %v5598 = vld [vmem:[%s9 + $0x10] sm:$0xff]
        %v5599 = vld [vmem:[%s9 + $0x18] sm:$0xff]
        %v5600 = vld [vmem:[%s9 + $0x20] sm:$0xff]
        %v5601 = vld [vmem:[%s9 + $0x28] sm:$0xff]
        %v5602 = vld [vmem:[%s9 + $0x30] sm:$0xff]
        %v5603 = vld [vmem:[%s9 + $0x38] sm:$0xff]
        %5604 = vmatprep.subr.mxu0 0.0
        %5605 = vmatpush1.msra.mxu0 %v5572
        %5606 = vmatprep.subr.mxu0 0.0
        %5607 = vmatpush1.msra.mxu0 %v5573
        %5608 = vmatprep.subr.mxu0 0.0
        %5609 = vmatpush1.msra.mxu0 %v5574
        %5610 = vmatprep.subr.mxu0 0.0
        %5611 = vmatpush1.msra.mxu0 %v5575
        %5612 = vmatprep.subr.mxu0 0.0
        %5613 = vmatpush1.msra.mxu0 %v5576
        %5614 = vmatprep.subr.mxu0 0.0
        %5615 = vmatpush1.msra.mxu0 %v5577
        %5616 = vmatprep.subr.mxu0 0.0
        %5617 = vmatpush1.msra.mxu0 %v5578
        %5618 = vmatprep.subr.mxu0 0.0
        %5619 = vmatpush1.msra.mxu0 %v5579
        %5620 = vmatprep.subr.mxu0 0.0
        %5621 = vmatpush1.msra.mxu0 %v5580
        %5622 = vmatprep.subr.mxu0 0.0
        %5623 = vmatpush1.msra.mxu0 %v5581
        %5624 = vmatprep.subr.mxu0 0.0
        %5625 = vmatpush1.msra.mxu0 %v5582
        %5626 = vmatprep.subr.mxu0 0.0
        %5627 = vmatpush1.msra.mxu0 %v5583
        %5628 = vmatprep.subr.mxu0 0.0
        %5629 = vmatpush1.msra.mxu0 %v5584
        %5630 = vmatprep.subr.mxu0 0.0
        %5631 = vmatpush1.msra.mxu0 %v5585
        %5632 = vmatprep.subr.mxu0 0.0
        %5633 = vmatpush1.msra.mxu0 %v5586
        %5634 = vmatprep.subr.mxu0 0.0
        %5635 = vmatpush1.msra.mxu0 %v5587
        %5636 = vmatprep.subr.mxu0 0.0
        %5637 = vmatpush1.msra.mxu0 0.0
        %5638 = vmatprep.subr.mxu0 0.0
        %5639 = vmatpush1.msra.mxu0 0.0
        %5640 = vmatprep.subr.mxu0 0.0
        %5641 = vmatpush1.msra.mxu0 0.0
        %5642 = vmatprep.subr.mxu0 0.0
        %5643 = vmatpush1.msra.mxu0 0.0
        %5644 = vmatprep.subr.mxu0 0.0
        %5645 = vmatpush1.msra.mxu0 0.0
        %5646 = vmatprep.subr.mxu0 0.0
        %5647 = vmatpush1.msra.mxu0 0.0
        %5648 = vmatprep.subr.mxu0 0.0
        %5649 = vmatpush1.msra.mxu0 0.0
        %5650 = vmatprep.subr.mxu0 0.0
        %5651 = vmatpush1.msra.mxu0 0.0
        %5652 = vmatprep.subr.mxu0 0.0
        %5653 = vmatpush1.msra.mxu0 0.0
        %5654 = vmatprep.subr.mxu0 0.0
        %5655 = vmatpush1.msra.mxu0 0.0
        %5656 = vmatprep.subr.mxu0 0.0
        %5657 = vmatpush1.msra.mxu0 0.0
        %5658 = vmatprep.subr.mxu0 0.0
        %5659 = vmatpush1.msra.mxu0 0.0
        %5660 = vmatprep.subr.mxu0 0.0
        %5661 = vmatpush1.msra.mxu0 0.0
        %5662 = vmatprep.subr.mxu0 0.0
        %5663 = vmatpush1.msra.mxu0 0.0
        %5664 = vmatprep.subr.mxu0 0.0
        %5665 = vmatpush1.msra.mxu0 0.0
        %5666 = vmatprep.subr.mxu0 0.0
        %5667 = vmatpush1.msra.mxu0 0.0
        %5668 = vmatprep.mubr.f32.mxu0 0.0
        %5669 = vmatmul.mubr.f32.gmra.mrb[0].mxu0 %v5588
        %v5670 = vpop.f32.mrb[0].mxu0
        %v5671 = vadd.f32 0.0, %v5670
        %v5672 = vpop.f32.mrb[0].mxu0
        %5673 = vmatprep.mubr.f32.mxu0 0.0
        %5674 = vmatmul.mubr.f32.gmra.mrb[0].mxu0 %v5589
        %v5675 = vpop.f32.mrb[0].mxu0
        %v5676 = vadd.f32 0.0, %v5675
        %v5677 = vpop.f32.mrb[0].mxu0
        %5678 = vmatprep.mubr.f32.mxu0 0.0
        %5679 = vmatmul.mubr.f32.gmra.mrb[0].mxu0 %v5590
        %v5680 = vpop.f32.mrb[0].mxu0
        %v5681 = vadd.f32 0.0, %v5680
        %v5682 = vpop.f32.mrb[0].mxu0
        %5683 = vmatprep.mubr.f32.mxu0 0.0
        %5684 = vmatmul.mubr.f32.gmra.mrb[0].mxu0 %v5591
        %v5685 = vpop.f32.mrb[0].mxu0
        %v5686 = vadd.f32 0.0, %v5685
        %v5687 = vpop.f32.mrb[0].mxu0
        %5688 = vmatprep.mubr.f32.mxu0 0.0
        %5689 = vmatmul.mubr.f32.gmra.mrb[0].mxu0 %v5592
        %v5690 = vpop.f32.mrb[0].mxu0
        %v5691 = vadd.f32 0.0, %v5690
        %v5692 = vpop.f32.mrb[0].mxu0
        %5693 = vmatprep.mubr.f32.mxu0 0.0
        %5694 = vmatmul.mubr.f32.gmra.mrb[0].mxu0 %v5593
        %v5695 = vpop.f32.mrb[0].mxu0
        %v5696 = vadd.f32 0.0, %v5695
        %v5697 = vpop.f32.mrb[0].mxu0
        %5698 = vmatprep.mubr.f32.mxu0 0.0
        %5699 = vmatmul.mubr.f32.gmra.mrb[0].mxu0 %v5594
        %v5700 = vpop.f32.mrb[0].mxu0
        %v5701 = vadd.f32 0.0, %v5700
        %v5702 = vpop.f32.mrb[0].mxu0
        %5703 = vmatprep.mubr.f32.mxu0 0.0
        %5704 = vmatmul.mubr.f32.gmra.mrb[0].mxu0 %v5595
        %v5705 = vpop.f32.mrb[0].mxu0
        %v5706 = vadd.f32 0.0, %v5705
        %v5707 = vpop.f32.mrb[0].mxu0
        %5708 = vdwg.mxu0
        %5709 = vmatprep.subr.mxu0 0.0
        %5710 = vmatpush1.msra.mxu0 %v5572
        %5711 = vmatprep.subr.mxu0 0.0
        %5712 = vmatpush1.msra.mxu0 %v5573
        %5713 = vmatprep.subr.mxu0 0.0
        %5714 = vmatpush1.msra.mxu0 %v5574
        %5715 = vmatprep.subr.mxu0 0.0
        %5716 = vmatpush1.msra.mxu0 %v5575
        %5717 = vmatprep.subr.mxu0 0.0
        %5718 = vmatpush1.msra.mxu0 %v5576
        %5719 = vmatprep.subr.mxu0 0.0
        %5720 = vmatpush1.msra.mxu0 %v5577
        %5721 = vmatprep.subr.mxu0 0.0
        %5722 = vmatpush1.msra.mxu0 %v5578
        %5723 = vmatprep.subr.mxu0 0.0
        %5724 = vmatpush1.msra.mxu0 %v5579
        %5725 = vmatprep.subr.mxu0 0.0
        %5726 = vmatpush1.msra.mxu0 %v5580
        %5727 = vmatprep.subr.mxu0 0.0
        %5728 = vmatpush1.msra.mxu0 %v5581
        %5729 = vmatprep.subr.mxu0 0.0
        %5730 = vmatpush1.msra.mxu0 %v5582
        %5731 = vmatprep.subr.mxu0 0.0
        %5732 = vmatpush1.msra.mxu0 %v5583
        %5733 = vmatprep.subr.mxu0 0.0
        %5734 = vmatpush1.msra.mxu0 %v5584
        %5735 = vmatprep.subr.mxu0 0.0
        %5736 = vmatpush1.msra.mxu0 %v5585
        %5737 = vmatprep.subr.mxu0 0.0
        %5738 = vmatpush1.msra.mxu0 %v5586
        %5739 = vmatprep.subr.mxu0 0.0
        %5740 = vmatpush1.msra.mxu0 %v5587
        %5741 = vmatprep.subr.mxu0 0.0
        %5742 = vmatpush1.msra.mxu0 0.0
        %5743 = vmatprep.subr.mxu0 0.0
        %5744 = vmatpush1.msra.mxu0 0.0
        %5745 = vmatprep.subr.mxu0 0.0
        %5746 = vmatpush1.msra.mxu0 0.0
        %5747 = vmatprep.subr.mxu0 0.0
        %5748 = vmatpush1.msra.mxu0 0.0
        %5749 = vmatprep.subr.mxu0 0.0
        %5750 = vmatpush1.msra.mxu0 0.0
        %5751 = vmatprep.subr.mxu0 0.0
        %5752 = vmatpush1.msra.mxu0 0.0
        %5753 = vmatprep.subr.mxu0 0.0
        %5754 = vmatpush1.msra.mxu0 0.0
        %5755 = vmatprep.subr.mxu0 0.0
        %5756 = vmatpush1.msra.mxu0 0.0
        %5757 = vmatprep.subr.mxu0 0.0
        %5758 = vmatpush1.msra.mxu0 0.0
        %5759 = vmatprep.subr.mxu0 0.0
        %5760 = vmatpush1.msra.mxu0 0.0
        %5761 = vmatprep.subr.mxu0 0.0
        %5762 = vmatpush1.msra.mxu0 0.0
        %5763 = vmatprep.subr.mxu0 0.0
        %5764 = vmatpush1.msra.mxu0 0.0
        %5765 = vmatprep.subr.mxu0 0.0
        %5766 = vmatpush1.msra.mxu0 0.0
        %5767 = vmatprep.subr.mxu0 0.0
        %5768 = vmatpush1.msra.mxu0 0.0
        %5769 = vmatprep.subr.mxu0 0.0
        %5770 = vmatpush1.msra.mxu0 0.0
        %5771 = vmatprep.subr.mxu0 0.0
        %5772 = vmatpush1.msra.mxu0 0.0
        %5773 = vmatprep.mubr.f32.mxu0 0.0
        %5774 = vmatmul.mubr.f32.gmra.mrb[0].mxu0 %v5596
        %v5775 = vpop.f32.mrb[0].mxu0
        %v5776 = vadd.f32 0.0, %v5775
        %v5777 = vpop.f32.mrb[0].mxu0
        %5778 = vmatprep.mubr.f32.mxu0 0.0
        %5779 = vmatmul.mubr.f32.gmra.mrb[0].mxu0 %v5597
        %v5780 = vpop.f32.mrb[0].mxu0
        %v5781 = vadd.f32 0.0, %v5780
        %v5782 = vpop.f32.mrb[0].mxu0
        %5783 = vmatprep.mubr.f32.mxu0 0.0
        %5784 = vmatmul.mubr.f32.gmra.mrb[0].mxu0 %v5598
        %v5785 = vpop.f32.mrb[0].mxu0
        %v5786 = vadd.f32 0.0, %v5785
        %v5787 = vpop.f32.mrb[0].mxu0
        %5788 = vmatprep.mubr.f32.mxu0 0.0
        %5789 = vmatmul.mubr.f32.gmra.mrb[0].mxu0 %v5599
        %v5790 = vpop.f32.mrb[0].mxu0
        %v5791 = vadd.f32 0.0, %v5790
        %v5792 = vpop.f32.mrb[0].mxu0
        %5793 = vmatprep.mubr.f32.mxu0 0.0
        %5794 = vmatmul.mubr.f32.gmra.mrb[0].mxu0 %v5600
        %v5795 = vpop.f32.mrb[0].mxu0
        %v5796 = vadd.f32 0.0, %v5795
        %v5797 = vpop.f32.mrb[0].mxu0
        %5798 = vmatprep.mubr.f32.mxu0 0.0
        %5799 = vmatmul.mubr.f32.gmra.mrb[0].mxu0 %v5601
        %v5800 = vpop.f32.mrb[0].mxu0
        %v5801 = vadd.f32 0.0, %v5800
        %v5802 = vpop.f32.mrb[0].mxu0
        %5803 = vmatprep.mubr.f32.mxu0 0.0
        %5804 = vmatmul.mubr.f32.gmra.mrb[0].mxu0 %v5602
        %v5805 = vpop.f32.mrb[0].mxu0
        %v5806 = vadd.f32 0.0, %v5805
        %v5807 = vpop.f32.mrb[0].mxu0
        %5808 = vmatprep.mubr.f32.mxu0 0.0
        %5809 = vmatmul.mubr.f32.gmra.mrb[0].mxu0 %v5603
        %v5810 = vpop.f32.mrb[0].mxu0
        %v5811 = vadd.f32 0.0, %v5810
        %v5812 = vpop.f32.mrb[0].mxu0
        %5813 = vdwg.mxu0
        %v5814 = vrot.slane %v5776, 7
        %v5815 = vrot.slane %v5781, 7
        %v5816 = vrot.slane %v5786, 7
        %v5817 = vrot.slane %v5791, 7
        %v5818 = vrot.slane %v5796, 7
        %v5819 = vrot.slane %v5801, 7
        %v5820 = vrot.slane %v5806, 7
        %v5821 = vrot.slane %v5811, 7
        %v5822 = vsel %vm695, %v5820, %v5821
        %v5823 = vsel %vm695, %v5819, %v5820
        %v5824 = vsel %vm695, %v5818, %v5819
        %v5825 = vsel %vm695, %v5817, %v5818
        %v5826 = vsel %vm695, %v5816, %v5817
        %v5827 = vsel %vm695, %v5815, %v5816
        %v5828 = vsel %vm695, %v5814, %v5815
        %v5829 = vsel %vm695, %v5821, %v5814
        %vm5830 = vcmp.lt.s32.totalorder %v694, 0
        %v5831 = vsub.s32 0, %v694
        %v5832 = vsel %vm5830, %v5831, %v694
        %v5833 = vshrl.u32 %v5832, 3
        %v5834 = vand.u32 %v5832, 7
        %v5835 = vsub.s32 0, %v5834
        %v5836 = vsel %vm5830, %v5835, %v5834
        %vm5837 = vcmp.lt.s32.totalorder %v728, 0
        %v5838 = vsub.s32 0, %v728
        %v5839 = vsel %vm5837, %v5838, %v728
        %v5840 = vshrl.u32 %v5839, 3
        %v5841 = vand.u32 %v5839, 7
        %v5842 = vsub.s32 0, %v5841
        %v5843 = vsel %vm5837, %v5842, %v5841
        %vm5844 = vcmp.lt.s32.totalorder %v729, 0
        %v5845 = vsub.s32 0, %v729
        %v5846 = vsel %vm5844, %v5845, %v729
        %v5847 = vshrl.u32 %v5846, 3
        %v5848 = vand.u32 %v5846, 7
        %v5849 = vsub.s32 0, %v5848
        %v5850 = vsel %vm5844, %v5849, %v5848
        %vm5851 = vcmp.lt.s32.totalorder %v730, 0
        %v5852 = vsub.s32 0, %v730
        %v5853 = vsel %vm5851, %v5852, %v730
        %v5854 = vshrl.u32 %v5853, 3
        %v5855 = vand.u32 %v5853, 7
        %v5856 = vsub.s32 0, %v5855
        %v5857 = vsel %vm5851, %v5856, %v5855
        %vm5858 = vcmp.lt.s32.totalorder %v731, 0
        %v5859 = vsub.s32 0, %v731
        %v5860 = vsel %vm5858, %v5859, %v731
        %v5861 = vshrl.u32 %v5860, 3
        %v5862 = vand.u32 %v5860, 7
        %v5863 = vsub.s32 0, %v5862
        %v5864 = vsel %vm5858, %v5863, %v5862
        %vm5865 = vcmp.lt.s32.totalorder %v732, 0
        %v5866 = vsub.s32 0, %v732
        %v5867 = vsel %vm5865, %v5866, %v732
        %v5868 = vshrl.u32 %v5867, 3
        %v5869 = vand.u32 %v5867, 7
        %v5870 = vsub.s32 0, %v5869
        %v5871 = vsel %vm5865, %v5870, %v5869
        %vm5872 = vcmp.lt.s32.totalorder %v733, 0
        %v5873 = vsub.s32 0, %v733
        %v5874 = vsel %vm5872, %v5873, %v733
        %v5875 = vshrl.u32 %v5874, 3
        %v5876 = vand.u32 %v5874, 7
        %v5877 = vsub.s32 0, %v5876
        %v5878 = vsel %vm5872, %v5877, %v5876
        %vm5879 = vcmp.lt.s32.totalorder %v734, 0
        %v5880 = vsub.s32 0, %v734
        %v5881 = vsel %vm5879, %v5880, %v734
        %v5882 = vshrl.u32 %v5881, 3
        %v5883 = vand.u32 %v5881, 7
        %v5884 = vsub.s32 0, %v5883
        %v5885 = vsel %vm5879, %v5884, %v5883
        %vm5886 = vcmp.ne.s32.totalorder %v5836, 0
        %vm5887 = vcmp.ne.s32.totalorder %v5843, 0
        %vm5888 = vcmp.ne.s32.totalorder %v5850, 0
        %vm5889 = vcmp.ne.s32.totalorder %v5857, 0
        %vm5890 = vcmp.ne.s32.totalorder %v5864, 0
        %vm5891 = vcmp.ne.s32.totalorder %v5871, 0
        %vm5892 = vcmp.ne.s32.totalorder %v5878, 0
        %vm5893 = vcmp.ne.s32.totalorder %v5885, 0
        %vm5894 = vcmp.lt.s32.totalorder %v5836, 0
        %vm5895 = vcmp.lt.s32.totalorder %v5843, 0
        %vm5896 = vcmp.lt.s32.totalorder %v5850, 0
        %vm5897 = vcmp.lt.s32.totalorder %v5857, 0
        %vm5898 = vcmp.lt.s32.totalorder %v5864, 0
        %vm5899 = vcmp.lt.s32.totalorder %v5871, 0
        %vm5900 = vcmp.lt.s32.totalorder %v5878, 0
        %vm5901 = vcmp.lt.s32.totalorder %v5885, 0
        %vm5902 = vmand %vm5894, %vm5886
        %vm5903 = vmand %vm5895, %vm5887
        %vm5904 = vmand %vm5896, %vm5888
        %vm5905 = vmand %vm5897, %vm5889
        %vm5906 = vmand %vm5898, %vm5890
        %vm5907 = vmand %vm5899, %vm5891
        %vm5908 = vmand %vm5900, %vm5892
        %vm5909 = vmand %vm5901, %vm5893
        %v5910 = vadd.s32 %v5836, 8
        %v5911 = vadd.s32 %v5843, 8
        %v5912 = vadd.s32 %v5850, 8
        %v5913 = vadd.s32 %v5857, 8
        %v5914 = vadd.s32 %v5864, 8
        %v5915 = vadd.s32 %v5871, 8
        %v5916 = vadd.s32 %v5878, 8
        %v5917 = vadd.s32 %v5885, 8
        %v5918 = vsel %vm5902, %v5910, %v5836
        %v5919 = vsel %vm5903, %v5911, %v5843
        %v5920 = vsel %vm5904, %v5912, %v5850
        %v5921 = vsel %vm5905, %v5913, %v5857
        %v5922 = vsel %vm5906, %v5914, %v5864
        %v5923 = vsel %vm5907, %v5915, %v5871
        %v5924 = vsel %vm5908, %v5916, %v5878
        %v5925 = vsel %vm5909, %v5917, %v5885
        %vm5926 = vcmp.eq.s32.totalorder %v5918, 0
        %vm5927 = vcmp.eq.s32.totalorder %v5919, 0
        %vm5928 = vcmp.eq.s32.totalorder %v5920, 0
        %vm5929 = vcmp.eq.s32.totalorder %v5921, 0
        %vm5930 = vcmp.eq.s32.totalorder %v5922, 0
        %vm5931 = vcmp.eq.s32.totalorder %v5923, 0
        %vm5932 = vcmp.eq.s32.totalorder %v5924, 0
        %vm5933 = vcmp.eq.s32.totalorder %v5925, 0
        %vm5934 = vmxor %vm5926, 1
        %vm5935 = vmxor %vm5927, 1
        %vm5936 = vmxor %vm5928, 1
        %vm5937 = vmxor %vm5929, 1
        %vm5938 = vmxor %vm5930, 1
        %vm5939 = vmxor %vm5931, 1
        %vm5940 = vmxor %vm5932, 1
        %vm5941 = vmxor %vm5933, 1
        %v5942 = vsel %vm5934, 1, 0
        %v5943 = vsel %vm5935, 1, 0
        %v5944 = vsel %vm5936, 1, 0
        %v5945 = vsel %vm5937, 1, 0
        %v5946 = vsel %vm5938, 1, 0
        %v5947 = vsel %vm5939, 1, 0
        %v5948 = vsel %vm5940, 1, 0
        %v5949 = vsel %vm5941, 1, 0
        %v5950 = vcvt.s32.f32 %v5942
        %v5951 = vcvt.s32.f32 %v5943
        %v5952 = vcvt.s32.f32 %v5944
        %v5953 = vcvt.s32.f32 %v5945
        %v5954 = vcvt.s32.f32 %v5946
        %v5955 = vcvt.s32.f32 %v5947
        %v5956 = vcvt.s32.f32 %v5948
        %v5957 = vcvt.s32.f32 %v5949
        %v5958 = vmul.f32 %v5829, %v5950
        %v5959 = vmul.f32 %v5828, %v5951
        %v5960 = vmul.f32 %v5827, %v5952
        %v5961 = vmul.f32 %v5826, %v5953
        %v5962 = vmul.f32 %v5825, %v5954
        %v5963 = vmul.f32 %v5824, %v5955
        %v5964 = vmul.f32 %v5823, %v5956
        %v5965 = vmul.f32 %v5822, %v5957
        %v5966 = vpack.c.bf16 %v5959, %v5958
        %v5967 = vpack.c.bf16 %v5676, %v5671
        %v5968 = vpack.c.bf16 %v5781, %v5776
        %v5969 = vpack.c.bf16 %v5961, %v5960
        %v5970 = vpack.c.bf16 %v5686, %v5681
        %v5971 = vpack.c.bf16 %v5791, %v5786
        %v5972 = vpack.c.bf16 %v5963, %v5962
        %v5973 = vpack.c.bf16 %v5696, %v5691
        %v5974 = vpack.c.bf16 %v5801, %v5796
        %v5975 = vpack.c.bf16 %v5965, %v5964
        %v5976 = vpack.c.bf16 %v5706, %v5701
        %v5977 = vpack.c.bf16 %v5811, %v5806
        %s5978 = scalar_lea.vmem %s2, 768
        %v5979 = vld [vmem:[%s5978] sm:$0xf]
        %v5980 = vld [vmem:[%s5978 + $0x4] sm:$0xf]
        %v5981 = vld [vmem:[%s5978 + $0x8] sm:$0xf]
        %v5982 = vld [vmem:[%s5978 + $0xc] sm:$0xf]
        %v5983 = vld [vmem:[%s5978 + $0x10] sm:$0xf]
        %v5984 = vld [vmem:[%s5978 + $0x14] sm:$0xf]
        %v5985 = vld [vmem:[%s5978 + $0x18] sm:$0xf]
        %v5986 = vld [vmem:[%s5978 + $0x1c] sm:$0xf]
        %v5987 = vld [vmem:[%s5978 + $0x20] sm:$0xf]
        %v5988 = vld [vmem:[%s5978 + $0x24] sm:$0xf]
        %v5989 = vld [vmem:[%s5978 + $0x28] sm:$0xf]
        %v5990 = vld [vmem:[%s5978 + $0x2c] sm:$0xf]
        %v5991 = vld [vmem:[%s5978 + $0x30] sm:$0xf]
        %v5992 = vld [vmem:[%s5978 + $0x34] sm:$0xf]
        %v5993 = vld [vmem:[%s5978 + $0x38] sm:$0xf]
        %v5994 = vld [vmem:[%s5978 + $0x3c] sm:$0xf]
        %v5995 = vld [vmem:[%s5978 + $0x40] sm:$0xf]
        %v5996 = vld [vmem:[%s5978 + $0x44] sm:$0xf]
        %v5997 = vld [vmem:[%s5978 + $0x48] sm:$0xf]
        %v5998 = vld [vmem:[%s5978 + $0x4c] sm:$0xf]
        %v5999 = vld [vmem:[%s5978 + $0x50] sm:$0xf]
        %v6000 = vld [vmem:[%s5978 + $0x54] sm:$0xf]
        %v6001 = vld [vmem:[%s5978 + $0x58] sm:$0xf]
        %v6002 = vld [vmem:[%s5978 + $0x5c] sm:$0xf]
        %v6003 = vld [vmem:[%s5978 + $0x60] sm:$0xf]
        %v6004 = vld [vmem:[%s5978 + $0x64] sm:$0xf]
        %v6005 = vld [vmem:[%s5978 + $0x68] sm:$0xf]
        %v6006 = vld [vmem:[%s5978 + $0x6c] sm:$0xf]
        %v6007 = vld [vmem:[%s5978 + $0x70] sm:$0xf]
        %v6008 = vld [vmem:[%s5978 + $0x74] sm:$0xf]
        %v6009 = vld [vmem:[%s5978 + $0x78] sm:$0xf]
        %v6010 = vld [vmem:[%s5978 + $0x7c] sm:$0xf]
        %v6011 = vld [vmem:[%s5978 + $0x80] sm:$0xf]
        %v6012 = vld [vmem:[%s5978 + $0x84] sm:$0xf]
        %v6013 = vld [vmem:[%s5978 + $0x88] sm:$0xf]
        %v6014 = vld [vmem:[%s5978 + $0x8c] sm:$0xf]
        %v6015 = vld [vmem:[%s5978 + $0x90] sm:$0xf]
        %v6016 = vld [vmem:[%s5978 + $0x94] sm:$0xf]
        %v6017 = vld [vmem:[%s5978 + $0x98] sm:$0xf]
        %v6018 = vld [vmem:[%s5978 + $0x9c] sm:$0xf]
        %v6019 = vld [vmem:[%s5978 + $0xa0] sm:$0xf]
        %v6020 = vld [vmem:[%s5978 + $0xa4] sm:$0xf]
        %v6021 = vld [vmem:[%s5978 + $0xa8] sm:$0xf]
        %v6022 = vld [vmem:[%s5978 + $0xac] sm:$0xf]
        %v6023 = vld [vmem:[%s5978 + $0xb0] sm:$0xf]
        %v6024 = vld [vmem:[%s5978 + $0xb4] sm:$0xf]
        %v6025 = vld [vmem:[%s5978 + $0xb8] sm:$0xf]
        %v6026 = vld [vmem:[%s5978 + $0xbc] sm:$0xf]
        %v6075 = vunpack.c.l.b16 %v5979
        %v6076 = vunpack.c.l.b16 %v5980
        %v6077 = vunpack.c.l.b16 %v5981
        %v6078 = vunpack.c.l.b16 %v5982
        %v6079 = vunpack.c.l.b16 %v5983
        %v6080 = vunpack.c.l.b16 %v5984
        %v6081 = vunpack.c.l.b16 %v5985
        %v6082 = vunpack.c.l.b16 %v5986
        %v6083 = vunpack.c.l.b16 %v5987
        %v6084 = vunpack.c.l.b16 %v5988
        %v6085 = vunpack.c.l.b16 %v5989
        %v6086 = vunpack.c.l.b16 %v5990
        %v6087 = vunpack.c.l.b16 %v5991
        %v6088 = vunpack.c.l.b16 %v5992
        %v6089 = vunpack.c.l.b16 %v5993
        %v6090 = vunpack.c.l.b16 %v5994
        %v6091 = vunpack.c.l.b16 %v5995
        %v6092 = vunpack.c.l.b16 %v5996
        %v6093 = vunpack.c.l.b16 %v5997
        %v6094 = vunpack.c.l.b16 %v5998
        %v6095 = vunpack.c.l.b16 %v5999
        %v6096 = vunpack.c.l.b16 %v6000
        %v6097 = vunpack.c.l.b16 %v6001
        %v6098 = vunpack.c.l.b16 %v6002
        %v6099 = vunpack.c.l.b16 %v6003
        %v6100 = vunpack.c.l.b16 %v6004
        %v6101 = vunpack.c.l.b16 %v6005
        %v6102 = vunpack.c.l.b16 %v6006
        %v6103 = vunpack.c.l.b16 %v6007
        %v6104 = vunpack.c.l.b16 %v6008
        %v6105 = vunpack.c.l.b16 %v6009
        %v6106 = vunpack.c.l.b16 %v6010
        %v6107 = vunpack.c.l.b16 %v6011
        %v6108 = vunpack.c.l.b16 %v6012
        %v6109 = vunpack.c.l.b16 %v6013
        %v6110 = vunpack.c.l.b16 %v6014
        %v6111 = vunpack.c.l.b16 %v6015
        %v6112 = vunpack.c.l.b16 %v6016
        %v6113 = vunpack.c.l.b16 %v6017
        %v6114 = vunpack.c.l.b16 %v6018
        %v6115 = vunpack.c.l.b16 %v6019
        %v6116 = vunpack.c.l.b16 %v6020
        %v6117 = vunpack.c.l.b16 %v6021
        %v6118 = vunpack.c.l.b16 %v6022
        %v6119 = vunpack.c.l.b16 %v6023
        %v6120 = vunpack.c.l.b16 %v6024
        %v6121 = vunpack.c.l.b16 %v6025
        %v6122 = vunpack.c.l.b16 %v6026
        %v6123 = vpack.c.b16 %v6076, %v6075
        %v6124 = vpack.c.b16 %v6078, %v6077
        %v6125 = vpack.c.b16 %v6080, %v6079
        %v6126 = vpack.c.b16 %v6082, %v6081
        %v6127 = vpack.c.b16 %v6084, %v6083
        %v6128 = vpack.c.b16 %v6086, %v6085
        %v6129 = vpack.c.b16 %v6088, %v6087
        %v6130 = vpack.c.b16 %v6090, %v6089
        %v6131 = vpack.c.b16 %v6092, %v6091
        %v6132 = vpack.c.b16 %v6094, %v6093
        %v6133 = vpack.c.b16 %v6096, %v6095
        %v6134 = vpack.c.b16 %v6098, %v6097
        %v6135 = vpack.c.b16 %v6100, %v6099
        %v6136 = vpack.c.b16 %v6102, %v6101
        %v6137 = vpack.c.b16 %v6104, %v6103
        %v6138 = vpack.c.b16 %v6106, %v6105
        %v6139 = vpack.c.b16 %v6108, %v6107
        %v6140 = vpack.c.b16 %v6110, %v6109
        %v6141 = vpack.c.b16 %v6112, %v6111
        %v6142 = vpack.c.b16 %v6114, %v6113
        %v6143 = vpack.c.b16 %v6116, %v6115
        %v6144 = vpack.c.b16 %v6118, %v6117
        %v6145 = vpack.c.b16 %v6120, %v6119
        %v6146 = vpack.c.b16 %v6122, %v6121
        %6171 = vmatprep.subr.bf16.mxu0 0
        %6172 = vmatpush1.bf16.msra.mxu0 %v6123
        %6173 = vmatprep.subr.bf16.mxu0 0
        %6174 = vmatpush1.bf16.msra.mxu0 %v6124
        %6175 = vmatprep.subr.bf16.mxu0 0
        %6176 = vmatpush1.bf16.msra.mxu0 %v6125
        %6177 = vmatprep.subr.bf16.mxu0 0
        %6178 = vmatpush1.bf16.msra.mxu0 %v6126
        %6179 = vmatprep.subr.bf16.mxu0 0
        %6180 = vmatpush1.bf16.msra.mxu0 %v6127
        %6181 = vmatprep.subr.bf16.mxu0 0
        %6182 = vmatpush1.bf16.msra.mxu0 %v6128
        %6183 = vmatprep.subr.bf16.mxu0 0
        %6184 = vmatpush1.bf16.msra.mxu0 %v6129
        %6185 = vmatprep.subr.bf16.mxu0 0
        %6186 = vmatpush1.bf16.msra.mxu0 %v6130
        %6187 = vmatprep.subr.bf16.mxu0 0
        %6188 = vmatpush1.bf16.msra.mxu0 %v6131
        %6189 = vmatprep.subr.bf16.mxu0 0
        %6190 = vmatpush1.bf16.msra.mxu0 %v6132
        %6191 = vmatprep.subr.bf16.mxu0 0
        %6192 = vmatpush1.bf16.msra.mxu0 %v6133
        %6193 = vmatprep.subr.bf16.mxu0 0
        %6194 = vmatpush1.bf16.msra.mxu0 %v6134
        %6195 = vmatprep.subr.bf16.mxu0 0
        %6196 = vmatpush1.bf16.msra.mxu0 %v6135
        %6197 = vmatprep.subr.bf16.mxu0 0
        %6198 = vmatpush1.bf16.msra.mxu0 %v6136
        %6199 = vmatprep.subr.bf16.mxu0 0
        %6200 = vmatpush1.bf16.msra.mxu0 %v6137
        %6201 = vmatprep.subr.bf16.mxu0 0
        %6202 = vmatpush1.bf16.msra.mxu0 %v6138
        %6203 = vmatprep.mubr.bf16.mxu0 %v5967
        %6204 = vmatmul.mubr.bf16.gmra.mrb[0].mxu0 %v5966
        %v6205 = vpop.f32.mrb[0].mxu0
        %v6206 = vadd.f32 0.0, %v6205
        %v6207 = vpop.f32.mrb[0].mxu0
        %v6208 = vpop.f32.mrb[0].mxu0
        %v6209 = vadd.f32 0.0, %v6208
        %v6210 = vpop.f32.mrb[0].mxu0
        %6211 = vmatprep.mubr.bf16.mxu0 %v5970
        %6212 = vmatmul.mubr.bf16.gmra.mrb[0].mxu0 %v5969
        %v6213 = vpop.f32.mrb[0].mxu0
        %v6214 = vadd.f32 0.0, %v6213
        %v6215 = vpop.f32.mrb[0].mxu0
        %v6216 = vpop.f32.mrb[0].mxu0
        %v6217 = vadd.f32 0.0, %v6216
        %v6218 = vpop.f32.mrb[0].mxu0
        %6219 = vmatprep.mubr.bf16.mxu0 %v5973
        %6220 = vmatmul.mubr.bf16.gmra.mrb[0].mxu0 %v5972
        %v6221 = vpop.f32.mrb[0].mxu0
        %v6222 = vadd.f32 0.0, %v6221
        %v6223 = vpop.f32.mrb[0].mxu0
        %v6224 = vpop.f32.mrb[0].mxu0
        %v6225 = vadd.f32 0.0, %v6224
        %v6226 = vpop.f32.mrb[0].mxu0
        %6227 = vmatprep.mubr.bf16.mxu0 %v5976
        %6228 = vmatmul.mubr.bf16.gmra.mrb[0].mxu0 %v5975
        %v6229 = vpop.f32.mrb[0].mxu0
        %v6230 = vadd.f32 0.0, %v6229
        %v6231 = vpop.f32.mrb[0].mxu0
        %v6232 = vpop.f32.mrb[0].mxu0
        %v6233 = vadd.f32 0.0, %v6232
        %v6234 = vpop.f32.mrb[0].mxu0
        %6235 = vdwg.mxu0
        %6236 = vmatprep.subr.bf16.mxu0 0
        %6237 = vmatpush1.bf16.msra.mxu0 %v6139
        %6238 = vmatprep.subr.bf16.mxu0 0
        %6239 = vmatpush1.bf16.msra.mxu0 %v6140
        %6240 = vmatprep.subr.bf16.mxu0 0
        %6241 = vmatpush1.bf16.msra.mxu0 %v6141
        %6242 = vmatprep.subr.bf16.mxu0 0
        %6243 = vmatpush1.bf16.msra.mxu0 %v6142
        %6244 = vmatprep.subr.bf16.mxu0 0
        %6245 = vmatpush1.bf16.msra.mxu0 %v6143
        %6246 = vmatprep.subr.bf16.mxu0 0
        %6247 = vmatpush1.bf16.msra.mxu0 %v6144
        %6248 = vmatprep.subr.bf16.mxu0 0
        %6249 = vmatpush1.bf16.msra.mxu0 %v6145
        %6250 = vmatprep.subr.bf16.mxu0 0
        %6251 = vmatpush1.bf16.msra.mxu0 %v6146
        %6252 = vmatprep.subr.bf16.mxu0 0
        %6253 = vmatpush1.bf16.msra.mxu0 0
        %6254 = vmatprep.subr.bf16.mxu0 0
        %6255 = vmatpush1.bf16.msra.mxu0 0
        %6256 = vmatprep.subr.bf16.mxu0 0
        %6257 = vmatpush1.bf16.msra.mxu0 0
        %6258 = vmatprep.subr.bf16.mxu0 0
        %6259 = vmatpush1.bf16.msra.mxu0 0
        %6260 = vmatprep.subr.bf16.mxu0 0
        %6261 = vmatpush1.bf16.msra.mxu0 0
        %6262 = vmatprep.subr.bf16.mxu0 0
        %6263 = vmatpush1.bf16.msra.mxu0 0
        %6264 = vmatprep.subr.bf16.mxu0 0
        %6265 = vmatpush1.bf16.msra.mxu0 0
        %6266 = vmatprep.subr.bf16.mxu0 0
        %6267 = vmatpush1.bf16.msra.mxu0 0
        %6268 = vmatprep.mubr.bf16.mxu0 0
        %6269 = vmatmul.mubr.bf16.gmra.mrb[0].mxu0 %v5968
        %v6270 = vpop.f32.mrb[0].mxu0
        %v6271 = vadd.f32 %v6206, %v6270
        %v6272 = vpop.f32.mrb[0].mxu0
        %v6273 = vpop.f32.mrb[0].mxu0
        %v6274 = vadd.f32 %v6209, %v6273
        %v6275 = vpop.f32.mrb[0].mxu0
        %6276 = vmatprep.mubr.bf16.mxu0 0
        %6277 = vmatmul.mubr.bf16.gmra.mrb[0].mxu0 %v5971
        %v6278 = vpop.f32.mrb[0].mxu0
        %v6279 = vadd.f32 %v6214, %v6278
        %v6280 = vpop.f32.mrb[0].mxu0
        %v6281 = vpop.f32.mrb[0].mxu0
        %v6282 = vadd.f32 %v6217, %v6281
        %v6283 = vpop.f32.mrb[0].mxu0
        %6284 = vmatprep.mubr.bf16.mxu0 0
        %6285 = vmatmul.mubr.bf16.gmra.mrb[0].mxu0 %v5974
        %v6286 = vpop.f32.mrb[0].mxu0
        %v6287 = vadd.f32 %v6222, %v6286
        %v6288 = vpop.f32.mrb[0].mxu0
        %v6289 = vpop.f32.mrb[0].mxu0
        %v6290 = vadd.f32 %v6225, %v6289
        %v6291 = vpop.f32.mrb[0].mxu0
        %6292 = vmatprep.mubr.bf16.mxu0 0
        %6293 = vmatmul.mubr.bf16.gmra.mrb[0].mxu0 %v5977
        %v6294 = vpop.f32.mrb[0].mxu0
        %v6295 = vadd.f32 %v6230, %v6294
        %v6296 = vpop.f32.mrb[0].mxu0
        %v6297 = vpop.f32.mrb[0].mxu0
        %v6298 = vadd.f32 %v6233, %v6297
        %v6299 = vpop.f32.mrb[0].mxu0
        %6300 = vdwg.mxu0
        %v6301 = vlaneseq
        %v6302 = vshrl.u32 %v6301, 7
        %v6303 = vsub.s32 5, %v6302
        %v6304 = vrot.slane %v395, %v6303
        %v6305 = vmul.f32 %v6271, %v6304
        %v6306 = vmul.f32 %v6274, %v6304
        %v6307 = vmul.f32 %v6279, %v6304
        %v6308 = vmul.f32 %v6282, %v6304
        %v6309 = vmul.f32 %v6287, %v6304
        %v6310 = vmul.f32 %v6290, %v6304
        %v6311 = vmul.f32 %v6295, %v6304
        %v6312 = vmul.f32 %v6298, %v6304
        %v6313 = vlaneseq
        %v6314 = vshrl.u32 %v6313, 7
        %v6315 = vsub.s32 6, %v6314
        %v6316 = vrot.slane %v395, %v6315
        %v6317 = vadd.f32 %v6305, %v6316
        %v6318 = vadd.f32 %v6306, %v6316
        %v6319 = vadd.f32 %v6307, %v6316
        %v6320 = vadd.f32 %v6308, %v6316
        %v6321 = vadd.f32 %v6309, %v6316
        %v6322 = vadd.f32 %v6310, %v6316
        %v6323 = vadd.f32 %v6311, %v6316
        %v6324 = vadd.f32 %v6312, %v6316
        %v6325 = vmax.f32 %v6317, 0.0
        %v6326 = vmax.f32 %v6318, 0.0
        %v6327 = vmax.f32 %v6319, 0.0
        %v6328 = vmax.f32 %v6320, 0.0
        %v6329 = vmax.f32 %v6321, 0.0
        %v6330 = vmax.f32 %v6322, 0.0
        %v6331 = vmax.f32 %v6323, 0.0
        %v6332 = vmax.f32 %v6324, 0.0
        %v6333 = vrot.slane %v6325, 7
        %v6334 = vrot.slane %v6326, 7
        %v6335 = vrot.slane %v6327, 7
        %v6336 = vrot.slane %v6328, 7
        %v6337 = vrot.slane %v6329, 7
        %v6338 = vrot.slane %v6330, 7
        %v6339 = vrot.slane %v6331, 7
        %v6340 = vrot.slane %v6332, 7
        %v6341 = vsel %vm695, %v6339, %v6340
        %v6342 = vsel %vm695, %v6338, %v6339
        %v6343 = vsel %vm695, %v6337, %v6338
        %v6344 = vsel %vm695, %v6336, %v6337
        %v6345 = vsel %vm695, %v6335, %v6336
        %v6346 = vsel %vm695, %v6334, %v6335
        %v6347 = vsel %vm695, %v6333, %v6334
        %v6348 = vsel %vm695, %v6340, %v6333
        %v6349 = vmul.f32 %v6348, %v5950
        %v6350 = vmul.f32 %v6347, %v5951
        %v6351 = vmul.f32 %v6346, %v5952
        %v6352 = vmul.f32 %v6345, %v5953
        %v6353 = vmul.f32 %v6344, %v5954
        %v6354 = vmul.f32 %v6343, %v5955
        %v6355 = vmul.f32 %v6342, %v5956
        %v6356 = vmul.f32 %v6341, %v5957
        %v6357 = vrot.slane %v6325, 1
        %v6358 = vrot.slane %v6326, 1
        %v6359 = vrot.slane %v6327, 1
        %v6360 = vrot.slane %v6328, 1
        %v6361 = vrot.slane %v6329, 1
        %v6362 = vrot.slane %v6330, 1
        %v6363 = vrot.slane %v6331, 1
        %v6364 = vrot.slane %v6332, 1
        %v6365 = vsel %vm1403, %v6363, %v6364
        %v6366 = vsel %vm1403, %v6362, %v6363
        %v6367 = vsel %vm1403, %v6361, %v6362
        %v6368 = vsel %vm1403, %v6360, %v6361
        %v6369 = vsel %vm1403, %v6359, %v6360
        %v6370 = vsel %vm1403, %v6358, %v6359
        %v6371 = vsel %vm1403, %v6357, %v6358
        %v6372 = vsel %vm1403, %v6364, %v6357
        %vm6373 = vcmp.eq.s32.totalorder %v5918, 7
        %vm6374 = vcmp.eq.s32.totalorder %v5919, 7
        %vm6375 = vcmp.eq.s32.totalorder %v5920, 7
        %vm6376 = vcmp.eq.s32.totalorder %v5921, 7
        %vm6377 = vcmp.eq.s32.totalorder %v5922, 7
        %vm6378 = vcmp.eq.s32.totalorder %v5923, 7
        %vm6379 = vcmp.eq.s32.totalorder %v5924, 7
        %vm6380 = vcmp.eq.s32.totalorder %v5925, 7
        %vm6381 = vmxor %vm6373, 1
        %vm6382 = vmxor %vm6374, 1
        %vm6383 = vmxor %vm6375, 1
        %vm6384 = vmxor %vm6376, 1
        %vm6385 = vmxor %vm6377, 1
        %vm6386 = vmxor %vm6378, 1
        %vm6387 = vmxor %vm6379, 1
        %vm6388 = vmxor %vm6380, 1
        %v6389 = vsel %vm6381, 1, 0
        %v6390 = vsel %vm6382, 1, 0
        %v6391 = vsel %vm6383, 1, 0
        %v6392 = vsel %vm6384, 1, 0
        %v6393 = vsel %vm6385, 1, 0
        %v6394 = vsel %vm6386, 1, 0
        %v6395 = vsel %vm6387, 1, 0
        %v6396 = vsel %vm6388, 1, 0
        %v6397 = vcvt.s32.f32 %v6389
        %v6398 = vcvt.s32.f32 %v6390
        %v6399 = vcvt.s32.f32 %v6391
        %v6400 = vcvt.s32.f32 %v6392
        %v6401 = vcvt.s32.f32 %v6393
        %v6402 = vcvt.s32.f32 %v6394
        %v6403 = vcvt.s32.f32 %v6395
        %v6404 = vcvt.s32.f32 %v6396
        %v6405 = vmul.f32 %v6371, %v6397
        %v6406 = vmul.f32 %v6370, %v6398
        %v6407 = vmul.f32 %v6369, %v6399
        %v6408 = vmul.f32 %v6368, %v6400
        %v6409 = vmul.f32 %v6367, %v6401
        %v6410 = vmul.f32 %v6366, %v6402
        %v6411 = vmul.f32 %v6365, %v6403
        %v6412 = vmul.f32 %v6372, %v6404
        %v6413 = vpack.c.bf16 %v6350, %v6349
        %v6414 = vpack.c.bf16 %v6326, %v6325
        %v6415 = vpack.c.bf16 %v6406, %v6405
        %v6416 = vpack.c.bf16 %v6352, %v6351
        %v6417 = vpack.c.bf16 %v6328, %v6327
        %v6418 = vpack.c.bf16 %v6408, %v6407
        %v6419 = vpack.c.bf16 %v6354, %v6353
        %v6420 = vpack.c.bf16 %v6330, %v6329
        %v6421 = vpack.c.bf16 %v6410, %v6409
        %v6422 = vpack.c.bf16 %v6356, %v6355
        %v6423 = vpack.c.bf16 %v6332, %v6331
        %v6424 = vpack.c.bf16 %v6412, %v6411
        %s6425 = scalar_lea.vmem %s2, 960
        %v6426 = vld [vmem:[%s6425] sm:$0xf]
        %v6427 = vld [vmem:[%s6425 + $0x4] sm:$0xf]
        %v6428 = vld [vmem:[%s6425 + $0x8] sm:$0xf]
        %v6429 = vld [vmem:[%s6425 + $0xc] sm:$0xf]
        %v6430 = vld [vmem:[%s6425 + $0x10] sm:$0xf]
        %v6431 = vld [vmem:[%s6425 + $0x14] sm:$0xf]
        %v6432 = vld [vmem:[%s6425 + $0x18] sm:$0xf]
        %v6433 = vld [vmem:[%s6425 + $0x1c] sm:$0xf]
        %v6434 = vld [vmem:[%s6425 + $0x20] sm:$0xf]
        %v6435 = vld [vmem:[%s6425 + $0x24] sm:$0xf]
        %v6436 = vld [vmem:[%s6425 + $0x28] sm:$0xf]
        %v6437 = vld [vmem:[%s6425 + $0x2c] sm:$0xf]
        %v6438 = vld [vmem:[%s6425 + $0x30] sm:$0xf]
        %v6439 = vld [vmem:[%s6425 + $0x34] sm:$0xf]
        %v6440 = vld [vmem:[%s6425 + $0x38] sm:$0xf]
        %v6441 = vld [vmem:[%s6425 + $0x3c] sm:$0xf]
        %v6442 = vld [vmem:[%s6425 + $0x40] sm:$0xf]
        %v6443 = vld [vmem:[%s6425 + $0x44] sm:$0xf]
        %v6444 = vld [vmem:[%s6425 + $0x48] sm:$0xf]
        %v6445 = vld [vmem:[%s6425 + $0x4c] sm:$0xf]
        %v6446 = vld [vmem:[%s6425 + $0x50] sm:$0xf]
        %v6447 = vld [vmem:[%s6425 + $0x54] sm:$0xf]
        %v6448 = vld [vmem:[%s6425 + $0x58] sm:$0xf]
        %v6449 = vld [vmem:[%s6425 + $0x5c] sm:$0xf]
        %v6450 = vld [vmem:[%s6425 + $0x60] sm:$0xf]
        %v6451 = vld [vmem:[%s6425 + $0x64] sm:$0xf]
        %v6452 = vld [vmem:[%s6425 + $0x68] sm:$0xf]
        %v6453 = vld [vmem:[%s6425 + $0x6c] sm:$0xf]
        %v6454 = vld [vmem:[%s6425 + $0x70] sm:$0xf]
        %v6455 = vld [vmem:[%s6425 + $0x74] sm:$0xf]
        %v6456 = vld [vmem:[%s6425 + $0x78] sm:$0xf]
        %v6457 = vld [vmem:[%s6425 + $0x7c] sm:$0xf]
        %v6458 = vld [vmem:[%s6425 + $0x80] sm:$0xf]
        %v6459 = vld [vmem:[%s6425 + $0x84] sm:$0xf]
        %v6460 = vld [vmem:[%s6425 + $0x88] sm:$0xf]
        %v6461 = vld [vmem:[%s6425 + $0x8c] sm:$0xf]
        %v6462 = vld [vmem:[%s6425 + $0x90] sm:$0xf]
        %v6463 = vld [vmem:[%s6425 + $0x94] sm:$0xf]
        %v6464 = vld [vmem:[%s6425 + $0x98] sm:$0xf]
        %v6465 = vld [vmem:[%s6425 + $0x9c] sm:$0xf]
        %v6466 = vld [vmem:[%s6425 + $0xa0] sm:$0xf]
        %v6467 = vld [vmem:[%s6425 + $0xa4] sm:$0xf]
        %v6468 = vld [vmem:[%s6425 + $0xa8] sm:$0xf]
        %v6469 = vld [vmem:[%s6425 + $0xac] sm:$0xf]
        %v6470 = vld [vmem:[%s6425 + $0xb0] sm:$0xf]
        %v6471 = vld [vmem:[%s6425 + $0xb4] sm:$0xf]
        %v6472 = vld [vmem:[%s6425 + $0xb8] sm:$0xf]
        %v6473 = vld [vmem:[%s6425 + $0xbc] sm:$0xf]
        %s6474 = scalar_lea.vmem [#allocation5], 128
        %v6475 = vld [vmem:[%s6474] sm:$0xf]
        %v6476 = vld [vmem:[%s6474 + $0x4] sm:$0xf]
        %v6477 = vld [vmem:[%s6474 + $0x8] sm:$0xf]
        %v6478 = vld [vmem:[%s6474 + $0xc] sm:$0xf]
        %v6479 = vld [vmem:[%s6474 + $0x10] sm:$0xf]
        %v6480 = vld [vmem:[%s6474 + $0x14] sm:$0xf]
        %v6481 = vld [vmem:[%s6474 + $0x18] sm:$0xf]
        %v6482 = vld [vmem:[%s6474 + $0x1c] sm:$0xf]
        %v6483 = vld [vmem:[%s6474 + $0x20] sm:$0xf]
        %v6484 = vld [vmem:[%s6474 + $0x24] sm:$0xf]
        %v6485 = vld [vmem:[%s6474 + $0x28] sm:$0xf]
        %v6486 = vld [vmem:[%s6474 + $0x2c] sm:$0xf]
        %v6487 = vld [vmem:[%s6474 + $0x30] sm:$0xf]
        %v6488 = vld [vmem:[%s6474 + $0x34] sm:$0xf]
        %v6489 = vld [vmem:[%s6474 + $0x38] sm:$0xf]
        %v6490 = vld [vmem:[%s6474 + $0x3c] sm:$0xf]
        %v6507 = vunpack.c.l.b16 %v6475
        %v6508 = vunpack.c.l.b16 %v6476
        %v6509 = vunpack.c.l.b16 %v6477
        %v6510 = vunpack.c.l.b16 %v6478
        %v6511 = vunpack.c.l.b16 %v6479
        %v6512 = vunpack.c.l.b16 %v6480
        %v6513 = vunpack.c.l.b16 %v6481
        %v6514 = vunpack.c.l.b16 %v6482
        %v6515 = vunpack.c.l.b16 %v6483
        %v6516 = vunpack.c.l.b16 %v6484
        %v6517 = vunpack.c.l.b16 %v6485
        %v6518 = vunpack.c.l.b16 %v6486
        %v6519 = vunpack.c.l.b16 %v6487
        %v6520 = vunpack.c.l.b16 %v6488
        %v6521 = vunpack.c.l.b16 %v6489
        %v6522 = vunpack.c.l.b16 %v6490
        %v6523 = vpack.c.b16 %v6508, %v6507
        %v6524 = vpack.c.b16 %v6510, %v6509
        %v6525 = vpack.c.b16 %v6512, %v6511
        %v6526 = vpack.c.b16 %v6514, %v6513
        %v6527 = vpack.c.b16 %v6516, %v6515
        %v6528 = vpack.c.b16 %v6518, %v6517
        %v6529 = vpack.c.b16 %v6520, %v6519
        %v6530 = vpack.c.b16 %v6522, %v6521
        %6539 = vmatprep.subr.bf16.mxu0 0
        %6540 = vmatpush1.bf16.msra.mxu0 %v6523
        %6541 = vmatprep.subr.bf16.mxu0 0
        %6542 = vmatpush1.bf16.msra.mxu0 %v6524
        %6543 = vmatprep.subr.bf16.mxu0 0
        %6544 = vmatpush1.bf16.msra.mxu0 %v6525
        %6545 = vmatprep.subr.bf16.mxu0 0
        %6546 = vmatpush1.bf16.msra.mxu0 %v6526
        %6547 = vmatprep.subr.bf16.mxu0 0
        %6548 = vmatpush1.bf16.msra.mxu0 %v6527
        %6549 = vmatprep.subr.bf16.mxu0 0
        %6550 = vmatpush1.bf16.msra.mxu0 %v6528
        %6551 = vmatprep.subr.bf16.mxu0 0
        %6552 = vmatpush1.bf16.msra.mxu0 %v6529
        %6553 = vmatprep.subr.bf16.mxu0 0
        %6554 = vmatpush1.bf16.msra.mxu0 %v6530
        %6555 = vmatprep.subr.bf16.mxu0 0
        %6556 = vmatpush1.bf16.msra.mxu0 0
        %6557 = vmatprep.subr.bf16.mxu0 0
        %6558 = vmatpush1.bf16.msra.mxu0 0
        %6559 = vmatprep.subr.bf16.mxu0 0
        %6560 = vmatpush1.bf16.msra.mxu0 0
        %6561 = vmatprep.subr.bf16.mxu0 0
        %6562 = vmatpush1.bf16.msra.mxu0 0
        %6563 = vmatprep.subr.bf16.mxu0 0
        %6564 = vmatpush1.bf16.msra.mxu0 0
        %6565 = vmatprep.subr.bf16.mxu0 0
        %6566 = vmatpush1.bf16.msra.mxu0 0
        %6567 = vmatprep.subr.bf16.mxu0 0
        %6568 = vmatpush1.bf16.msra.mxu0 0
        %6569 = vmatprep.subr.bf16.mxu0 0
        %6570 = vmatpush1.bf16.msra.mxu0 0
        %6571 = vmatprep.mubr.bf16.mxu0 0
        %6572 = vmatmul.mubr.bf16.gmra.mrb[0].mxu0 %v5967
        %v6573 = vpop.f32.mrb[0].mxu0
        %v6574 = vadd.f32 0.0, %v6573
        %v6575 = vpop.f32.mrb[0].mxu0
        %v6576 = vpop.f32.mrb[0].mxu0
        %v6577 = vadd.f32 0.0, %v6576
        %v6578 = vpop.f32.mrb[0].mxu0
        %6579 = vmatprep.mubr.bf16.mxu0 0
        %6580 = vmatmul.mubr.bf16.gmra.mrb[0].mxu0 %v5970
        %v6581 = vpop.f32.mrb[0].mxu0
        %v6582 = vadd.f32 0.0, %v6581
        %v6583 = vpop.f32.mrb[0].mxu0
        %v6584 = vpop.f32.mrb[0].mxu0
        %v6585 = vadd.f32 0.0, %v6584
        %v6586 = vpop.f32.mrb[0].mxu0
        %6587 = vmatprep.mubr.bf16.mxu0 0
        %6588 = vmatmul.mubr.bf16.gmra.mrb[0].mxu0 %v5973
        %v6589 = vpop.f32.mrb[0].mxu0
        %v6590 = vadd.f32 0.0, %v6589
        %v6591 = vpop.f32.mrb[0].mxu0
        %v6592 = vpop.f32.mrb[0].mxu0
        %v6593 = vadd.f32 0.0, %v6592
        %v6594 = vpop.f32.mrb[0].mxu0
        %6595 = vmatprep.mubr.bf16.mxu0 0
        %6596 = vmatmul.mubr.bf16.gmra.mrb[0].mxu0 %v5976
        %v6597 = vpop.f32.mrb[0].mxu0
        %v6598 = vadd.f32 0.0, %v6597
        %v6599 = vpop.f32.mrb[0].mxu0
        %v6600 = vpop.f32.mrb[0].mxu0
        %v6601 = vadd.f32 0.0, %v6600
        %v6602 = vpop.f32.mrb[0].mxu0
        %6603 = vdwg.mxu0
        %v6652 = vunpack.c.l.b16 %v6426
        %v6653 = vunpack.c.l.b16 %v6427
        %v6654 = vunpack.c.l.b16 %v6428
        %v6655 = vunpack.c.l.b16 %v6429
        %v6656 = vunpack.c.l.b16 %v6430
        %v6657 = vunpack.c.l.b16 %v6431
        %v6658 = vunpack.c.l.b16 %v6432
        %v6659 = vunpack.c.l.b16 %v6433
        %v6660 = vunpack.c.l.b16 %v6434
        %v6661 = vunpack.c.l.b16 %v6435
        %v6662 = vunpack.c.l.b16 %v6436
        %v6663 = vunpack.c.l.b16 %v6437
        %v6664 = vunpack.c.l.b16 %v6438
        %v6665 = vunpack.c.l.b16 %v6439
        %v6666 = vunpack.c.l.b16 %v6440
        %v6667 = vunpack.c.l.b16 %v6441
        %v6668 = vunpack.c.l.b16 %v6442
        %v6669 = vunpack.c.l.b16 %v6443
        %v6670 = vunpack.c.l.b16 %v6444
        %v6671 = vunpack.c.l.b16 %v6445
        %v6672 = vunpack.c.l.b16 %v6446
        %v6673 = vunpack.c.l.b16 %v6447
        %v6674 = vunpack.c.l.b16 %v6448
        %v6675 = vunpack.c.l.b16 %v6449
        %v6676 = vunpack.c.l.b16 %v6450
        %v6677 = vunpack.c.l.b16 %v6451
        %v6678 = vunpack.c.l.b16 %v6452
        %v6679 = vunpack.c.l.b16 %v6453
        %v6680 = vunpack.c.l.b16 %v6454
        %v6681 = vunpack.c.l.b16 %v6455
        %v6682 = vunpack.c.l.b16 %v6456
        %v6683 = vunpack.c.l.b16 %v6457
        %v6684 = vunpack.c.l.b16 %v6458
        %v6685 = vunpack.c.l.b16 %v6459
        %v6686 = vunpack.c.l.b16 %v6460
        %v6687 = vunpack.c.l.b16 %v6461
        %v6688 = vunpack.c.l.b16 %v6462
        %v6689 = vunpack.c.l.b16 %v6463
        %v6690 = vunpack.c.l.b16 %v6464
        %v6691 = vunpack.c.l.b16 %v6465
        %v6692 = vunpack.c.l.b16 %v6466
        %v6693 = vunpack.c.l.b16 %v6467
        %v6694 = vunpack.c.l.b16 %v6468
        %v6695 = vunpack.c.l.b16 %v6469
        %v6696 = vunpack.c.l.b16 %v6470
        %v6697 = vunpack.c.l.b16 %v6471
        %v6698 = vunpack.c.l.b16 %v6472
        %v6699 = vunpack.c.l.b16 %v6473
        %v6700 = vpack.c.b16 %v6653, %v6652
        %v6701 = vpack.c.b16 %v6655, %v6654
        %v6702 = vpack.c.b16 %v6657, %v6656
        %v6703 = vpack.c.b16 %v6659, %v6658
        %v6704 = vpack.c.b16 %v6661, %v6660
        %v6705 = vpack.c.b16 %v6663, %v6662
        %v6706 = vpack.c.b16 %v6665, %v6664
        %v6707 = vpack.c.b16 %v6667, %v6666
        %v6708 = vpack.c.b16 %v6669, %v6668
        %v6709 = vpack.c.b16 %v6671, %v6670
        %v6710 = vpack.c.b16 %v6673, %v6672
        %v6711 = vpack.c.b16 %v6675, %v6674
        %v6712 = vpack.c.b16 %v6677, %v6676
        %v6713 = vpack.c.b16 %v6679, %v6678
        %v6714 = vpack.c.b16 %v6681, %v6680
        %v6715 = vpack.c.b16 %v6683, %v6682
        %v6716 = vpack.c.b16 %v6685, %v6684
        %v6717 = vpack.c.b16 %v6687, %v6686
        %v6718 = vpack.c.b16 %v6689, %v6688
        %v6719 = vpack.c.b16 %v6691, %v6690
        %v6720 = vpack.c.b16 %v6693, %v6692
        %v6721 = vpack.c.b16 %v6695, %v6694
        %v6722 = vpack.c.b16 %v6697, %v6696
        %v6723 = vpack.c.b16 %v6699, %v6698
        %6748 = vmatprep.subr.bf16.mxu0 0
        %6749 = vmatpush1.bf16.msra.mxu0 %v6700
        %6750 = vmatprep.subr.bf16.mxu0 0
        %6751 = vmatpush1.bf16.msra.mxu0 %v6701
        %6752 = vmatprep.subr.bf16.mxu0 0
        %6753 = vmatpush1.bf16.msra.mxu0 %v6702
        %6754 = vmatprep.subr.bf16.mxu0 0
        %6755 = vmatpush1.bf16.msra.mxu0 %v6703
        %6756 = vmatprep.subr.bf16.mxu0 0
        %6757 = vmatpush1.bf16.msra.mxu0 %v6704
        %6758 = vmatprep.subr.bf16.mxu0 0
        %6759 = vmatpush1.bf16.msra.mxu0 %v6705
        %6760 = vmatprep.subr.bf16.mxu0 0
        %6761 = vmatpush1.bf16.msra.mxu0 %v6706
        %6762 = vmatprep.subr.bf16.mxu0 0
        %6763 = vmatpush1.bf16.msra.mxu0 %v6707
        %6764 = vmatprep.subr.bf16.mxu0 0
        %6765 = vmatpush1.bf16.msra.mxu0 %v6708
        %6766 = vmatprep.subr.bf16.mxu0 0
        %6767 = vmatpush1.bf16.msra.mxu0 %v6709
        %6768 = vmatprep.subr.bf16.mxu0 0
        %6769 = vmatpush1.bf16.msra.mxu0 %v6710
        %6770 = vmatprep.subr.bf16.mxu0 0
        %6771 = vmatpush1.bf16.msra.mxu0 %v6711
        %6772 = vmatprep.subr.bf16.mxu0 0
        %6773 = vmatpush1.bf16.msra.mxu0 %v6712
        %6774 = vmatprep.subr.bf16.mxu0 0
        %6775 = vmatpush1.bf16.msra.mxu0 %v6713
        %6776 = vmatprep.subr.bf16.mxu0 0
        %6777 = vmatpush1.bf16.msra.mxu0 %v6714
        %6778 = vmatprep.subr.bf16.mxu0 0
        %6779 = vmatpush1.bf16.msra.mxu0 %v6715
        %6780 = vmatprep.mubr.bf16.mxu0 %v6414
        %6781 = vmatmul.mubr.bf16.gmra.mrb[0].mxu0 %v6413
        %v6782 = vpop.f32.mrb[0].mxu0
        %v6783 = vadd.f32 %v6574, %v6782
        %v6784 = vpop.f32.mrb[0].mxu0
        %v6785 = vpop.f32.mrb[0].mxu0
        %v6786 = vadd.f32 %v6577, %v6785
        %v6787 = vpop.f32.mrb[0].mxu0
        %6788 = vmatprep.mubr.bf16.mxu0 %v6417
        %6789 = vmatmul.mubr.bf16.gmra.mrb[0].mxu0 %v6416
        %v6790 = vpop.f32.mrb[0].mxu0
        %v6791 = vadd.f32 %v6582, %v6790
        %v6792 = vpop.f32.mrb[0].mxu0
        %v6793 = vpop.f32.mrb[0].mxu0
        %v6794 = vadd.f32 %v6585, %v6793
        %v6795 = vpop.f32.mrb[0].mxu0
        %6796 = vmatprep.mubr.bf16.mxu0 %v6420
        %6797 = vmatmul.mubr.bf16.gmra.mrb[0].mxu0 %v6419
        %v6798 = vpop.f32.mrb[0].mxu0
        %v6799 = vadd.f32 %v6590, %v6798
        %v6800 = vpop.f32.mrb[0].mxu0
        %v6801 = vpop.f32.mrb[0].mxu0
        %v6802 = vadd.f32 %v6593, %v6801
        %v6803 = vpop.f32.mrb[0].mxu0
        %6804 = vmatprep.mubr.bf16.mxu0 %v6423
        %6805 = vmatmul.mubr.bf16.gmra.mrb[0].mxu0 %v6422
        %v6806 = vpop.f32.mrb[0].mxu0
        %v6807 = vadd.f32 %v6598, %v6806
        %v6808 = vpop.f32.mrb[0].mxu0
        %v6809 = vpop.f32.mrb[0].mxu0
        %v6810 = vadd.f32 %v6601, %v6809
        %v6811 = vpop.f32.mrb[0].mxu0
        %6812 = vdwg.mxu0
        %6813 = vmatprep.subr.bf16.mxu0 0
        %6814 = vmatpush1.bf16.msra.mxu0 %v6716
        %6815 = vmatprep.subr.bf16.mxu0 0
        %6816 = vmatpush1.bf16.msra.mxu0 %v6717
        %6817 = vmatprep.subr.bf16.mxu0 0
        %6818 = vmatpush1.bf16.msra.mxu0 %v6718
        %6819 = vmatprep.subr.bf16.mxu0 0
        %6820 = vmatpush1.bf16.msra.mxu0 %v6719
        %6821 = vmatprep.subr.bf16.mxu0 0
        %6822 = vmatpush1.bf16.msra.mxu0 %v6720
        %6823 = vmatprep.subr.bf16.mxu0 0
        %6824 = vmatpush1.bf16.msra.mxu0 %v6721
        %6825 = vmatprep.subr.bf16.mxu0 0
        %6826 = vmatpush1.bf16.msra.mxu0 %v6722
        %6827 = vmatprep.subr.bf16.mxu0 0
        %6828 = vmatpush1.bf16.msra.mxu0 %v6723
        %6829 = vmatprep.subr.bf16.mxu0 0
        %6830 = vmatpush1.bf16.msra.mxu0 0
        %6831 = vmatprep.subr.bf16.mxu0 0
        %6832 = vmatpush1.bf16.msra.mxu0 0
        %6833 = vmatprep.subr.bf16.mxu0 0
        %6834 = vmatpush1.bf16.msra.mxu0 0
        %6835 = vmatprep.subr.bf16.mxu0 0
        %6836 = vmatpush1.bf16.msra.mxu0 0
        %6837 = vmatprep.subr.bf16.mxu0 0
        %6838 = vmatpush1.bf16.msra.mxu0 0
        %6839 = vmatprep.subr.bf16.mxu0 0
        %6840 = vmatpush1.bf16.msra.mxu0 0
        %6841 = vmatprep.subr.bf16.mxu0 0
        %6842 = vmatpush1.bf16.msra.mxu0 0
        %6843 = vmatprep.subr.bf16.mxu0 0
        %6844 = vmatpush1.bf16.msra.mxu0 0
        %6845 = vmatprep.mubr.bf16.mxu0 0
        %6846 = vmatmul.mubr.bf16.gmra.mrb[0].mxu0 %v6415
        %v6847 = vpop.f32.mrb[0].mxu0
        %v6848 = vadd.f32 %v6783, %v6847
        %v6849 = vpop.f32.mrb[0].mxu0
        %v6850 = vpop.f32.mrb[0].mxu0
        %v6851 = vadd.f32 %v6786, %v6850
        %v6852 = vpop.f32.mrb[0].mxu0
        %6853 = vmatprep.mubr.bf16.mxu0 0
        %6854 = vmatmul.mubr.bf16.gmra.mrb[0].mxu0 %v6418
        %v6855 = vpop.f32.mrb[0].mxu0
        %v6856 = vadd.f32 %v6791, %v6855
        %v6857 = vpop.f32.mrb[0].mxu0
        %v6858 = vpop.f32.mrb[0].mxu0
        %v6859 = vadd.f32 %v6794, %v6858
        %v6860 = vpop.f32.mrb[0].mxu0
        %6861 = vmatprep.mubr.bf16.mxu0 0
        %6862 = vmatmul.mubr.bf16.gmra.mrb[0].mxu0 %v6421
        %v6863 = vpop.f32.mrb[0].mxu0
        %v6864 = vadd.f32 %v6799, %v6863
        %v6865 = vpop.f32.mrb[0].mxu0
        %v6866 = vpop.f32.mrb[0].mxu0
        %v6867 = vadd.f32 %v6802, %v6866
        %v6868 = vpop.f32.mrb[0].mxu0
        %6869 = vmatprep.mubr.bf16.mxu0 0
        %6870 = vmatmul.mubr.bf16.gmra.mrb[0].mxu0 %v6424
        %v6871 = vpop.f32.mrb[0].mxu0
        %v6872 = vadd.f32 %v6807, %v6871
        %v6873 = vpop.f32.mrb[0].mxu0
        %v6874 = vpop.f32.mrb[0].mxu0
        %v6875 = vadd.f32 %v6810, %v6874
        %v6876 = vpop.f32.mrb[0].mxu0
        %6877 = vdwg.mxu0
        %v6878 = vlaneseq
        %v6879 = vshrl.u32 %v6878, 7
        %v6880 = vsub.s32 7, %v6879
        %v6881 = vrot.slane %v395, %v6880
        %v6882 = vmul.f32 %v6848, %v6881
        %v6883 = vmul.f32 %v6851, %v6881
        %v6884 = vmul.f32 %v6856, %v6881
        %v6885 = vmul.f32 %v6859, %v6881
        %v6886 = vmul.f32 %v6864, %v6881
        %v6887 = vmul.f32 %v6867, %v6881
        %v6888 = vmul.f32 %v6872, %v6881
        %v6889 = vmul.f32 %v6875, %v6881
        %v6890 = vlaneseq
        %v6891 = vshrl.u32 %v6890, 7
        %v6892 = vsub.s32 0, %v6891
        %v6893 = vrot.slane %v396, %v6892
        %v6894 = vadd.f32 %v6882, %v6893
        %v6895 = vadd.f32 %v6883, %v6893
        %v6896 = vadd.f32 %v6884, %v6893
        %v6897 = vadd.f32 %v6885, %v6893
        %v6898 = vadd.f32 %v6886, %v6893
        %v6899 = vadd.f32 %v6887, %v6893
        %v6900 = vadd.f32 %v6888, %v6893
        %v6901 = vadd.f32 %v6889, %v6893
        %v6902 = vmax.f32 %v6894, 0.0
        %v6903 = vmax.f32 %v6895, 0.0
        %v6904 = vmax.f32 %v6896, 0.0
        %v6905 = vmax.f32 %v6897, 0.0
        %v6906 = vmax.f32 %v6898, 0.0
        %v6907 = vmax.f32 %v6899, 0.0
        %v6908 = vmax.f32 %v6900, 0.0
        %v6909 = vmax.f32 %v6901, 0.0
        %v6910 = vld [vmem:[%s5] sm:$0xff]
        %vm6911 = vcmask 523264
        %v6913 = vsel %vm6911, %v6910, 0
        %6915 = vmatprep.subr.mxu0 0.0
        %6916 = vmatpush1.msra.mxu0 %v6902
        %6917 = vmatprep.subr.mxu0 0.0
        %6918 = vmatpush1.msra.mxu0 %v6903
        %6919 = vmatprep.subr.mxu0 0.0
        %6920 = vmatpush1.msra.mxu0 %v6904
        %6921 = vmatprep.subr.mxu0 0.0
        %6922 = vmatpush1.msra.mxu0 %v6905
        %6923 = vmatprep.subr.mxu0 0.0
        %6924 = vmatpush1.msra.mxu0 %v6906
        %6925 = vmatprep.subr.mxu0 0.0
        %6926 = vmatpush1.msra.mxu0 %v6907
        %6927 = vmatprep.subr.mxu0 0.0
        %6928 = vmatpush1.msra.mxu0 %v6908
        %6929 = vmatprep.subr.mxu0 0.0
        %6930 = vmatpush1.msra.mxu0 %v6909
        %6931 = vmatprep.subr.mxu0 0.0
        %6932 = vmatpush1.msra.mxu0 0.0
        %6933 = vmatprep.subr.mxu0 0.0
        %6934 = vmatpush1.msra.mxu0 0.0
        %6935 = vmatprep.subr.mxu0 0.0
        %6936 = vmatpush1.msra.mxu0 0.0
        %6937 = vmatprep.subr.mxu0 0.0
        %6938 = vmatpush1.msra.mxu0 0.0
        %6939 = vmatprep.subr.mxu0 0.0
        %6940 = vmatpush1.msra.mxu0 0.0
        %6941 = vmatprep.subr.mxu0 0.0
        %6942 = vmatpush1.msra.mxu0 0.0
        %6943 = vmatprep.subr.mxu0 0.0
        %6944 = vmatpush1.msra.mxu0 0.0
        %6945 = vmatprep.subr.mxu0 0.0
        %6946 = vmatpush1.msra.mxu0 0.0
        %6947 = vmatprep.subr.mxu0 0.0
        %6948 = vmatpush1.msra.mxu0 0.0
        %6949 = vmatprep.subr.mxu0 0.0
        %6950 = vmatpush1.msra.mxu0 0.0
        %6951 = vmatprep.subr.mxu0 0.0
        %6952 = vmatpush1.msra.mxu0 0.0
        %6953 = vmatprep.subr.mxu0 0.0
        %6954 = vmatpush1.msra.mxu0 0.0
        %6955 = vmatprep.subr.mxu0 0.0
        %6956 = vmatpush1.msra.mxu0 0.0
        %6957 = vmatprep.subr.mxu0 0.0
        %6958 = vmatpush1.msra.mxu0 0.0
        %6959 = vmatprep.subr.mxu0 0.0
        %6960 = vmatpush1.msra.mxu0 0.0
        %6961 = vmatprep.subr.mxu0 0.0
        %6962 = vmatpush1.msra.mxu0 0.0
        %6963 = vmatprep.subr.mxu0 0.0
        %6964 = vmatpush1.msra.mxu0 0.0
        %6965 = vmatprep.subr.mxu0 0.0
        %6966 = vmatpush1.msra.mxu0 0.0
        %6967 = vmatprep.subr.mxu0 0.0
        %6968 = vmatpush1.msra.mxu0 0.0
        %6969 = vmatprep.subr.mxu0 0.0
        %6970 = vmatpush1.msra.mxu0 0.0
        %6971 = vmatprep.subr.mxu0 0.0
        %6972 = vmatpush1.msra.mxu0 0.0
        %6973 = vmatprep.subr.mxu0 0.0
        %6974 = vmatpush1.msra.mxu0 0.0
        %6975 = vmatprep.subr.mxu0 0.0
        %6976 = vmatpush1.msra.mxu0 0.0
        %6977 = vmatprep.subr.mxu0 0.0
        %6978 = vmatpush1.msra.mxu0 0.0
        %6979 = vmatprep.mubr.f32.mxu0 0.0
        %6980 = vmatmul.mubr.f32.gmra.mrb[0].mxu0 %v6913
        %v6981 = vpop.f32.mrb[0].mxu0
        %v6982 = vadd.f32 0.0, %v6981
        %v6983 = vpop.f32.mrb[0].mxu0
        %6984 = vdwg.mxu0
        %v6985 = vpack.c.bf16 %v6982, %v6982
        %v6986 = vld [vmem:[%s4] sm:$0xf]
        %v6987 = vld [vmem:[%s4 + $0x4] sm:$0xf]
        %v6988 = vld [vmem:[%s4 + $0x8] sm:$0xf]
        %v6989 = vld [vmem:[%s4 + $0xc] sm:$0xf]
        %v6990 = vld [vmem:[%s4 + $0x10] sm:$0xf]
        %v6991 = vld [vmem:[%s4 + $0x14] sm:$0xf]
        %v6992 = vld [vmem:[%s4 + $0x18] sm:$0xf]
        %v6993 = vld [vmem:[%s4 + $0x1c] sm:$0xf]
        %v6994 = vld [vmem:[%s4 + $0x20] sm:$0xf]
        %v6995 = vld [vmem:[%s4 + $0x24] sm:$0xf]
        %v6996 = vld [vmem:[%s4 + $0x28] sm:$0xf]
        %v6997 = vld [vmem:[%s4 + $0x2c] sm:$0xf]
        %v6998 = vld [vmem:[%s4 + $0x30] sm:$0xf]
        %v6999 = vld [vmem:[%s4 + $0x34] sm:$0xf]
        %v7000 = vld [vmem:[%s4 + $0x38] sm:$0xf]
        %v7001 = vld [vmem:[%s4 + $0x3c] sm:$0xf]
        %v7002 = vlaneseq
        %v7003 = vshrl.u32 %v7002, 7
        %v7004 = vsub.s32 1, %v7003
        %v7005 = vrot.slane %v396, %v7004
        %v7022 = vunpack.c.l.b16 %v6986
        %v7023 = vunpack.c.l.b16 %v6987
        %v7024 = vunpack.c.l.b16 %v6988
        %v7025 = vunpack.c.l.b16 %v6989
        %v7026 = vunpack.c.l.b16 %v6990
        %v7027 = vunpack.c.l.b16 %v6991
        %v7028 = vunpack.c.l.b16 %v6992
        %v7029 = vunpack.c.l.b16 %v6993
        %v7030 = vunpack.c.l.b16 %v6994
        %v7031 = vunpack.c.l.b16 %v6995
        %v7032 = vunpack.c.l.b16 %v6996
        %v7033 = vunpack.c.l.b16 %v6997
        %v7034 = vunpack.c.l.b16 %v6998
        %v7035 = vunpack.c.l.b16 %v6999
        %v7036 = vunpack.c.l.b16 %v7000
        %v7037 = vunpack.c.l.b16 %v7001
        %v7038 = vpack.c.b16 %v7023, %v7022
        %v7039 = vpack.c.b16 %v7025, %v7024
        %v7040 = vpack.c.b16 %v7027, %v7026
        %v7041 = vpack.c.b16 %v7029, %v7028
        %v7042 = vpack.c.b16 %v7031, %v7030
        %v7043 = vpack.c.b16 %v7033, %v7032
        %v7044 = vpack.c.b16 %v7035, %v7034
        %v7045 = vpack.c.b16 %v7037, %v7036
        %7054 = vmatprep.subr.bf16.mxu0 0
        %7055 = vmatpush1.bf16.msra.mxu0 %v7038
        %7056 = vmatprep.subr.bf16.mxu0 0
        %7057 = vmatpush1.bf16.msra.mxu0 %v7039
        %7058 = vmatprep.subr.bf16.mxu0 0
        %7059 = vmatpush1.bf16.msra.mxu0 %v7040
        %7060 = vmatprep.subr.bf16.mxu0 0
        %7061 = vmatpush1.bf16.msra.mxu0 %v7041
        %7062 = vmatprep.subr.bf16.mxu0 0
        %7063 = vmatpush1.bf16.msra.mxu0 %v7042
        %7064 = vmatprep.subr.bf16.mxu0 0
        %7065 = vmatpush1.bf16.msra.mxu0 %v7043
        %7066 = vmatprep.subr.bf16.mxu0 0
        %7067 = vmatpush1.bf16.msra.mxu0 %v7044
        %7068 = vmatprep.subr.bf16.mxu0 0
        %7069 = vmatpush1.bf16.msra.mxu0 %v7045
        %7070 = vmatprep.subr.bf16.mxu0 0
        %7071 = vmatpush1.bf16.msra.mxu0 0
        %7072 = vmatprep.subr.bf16.mxu0 0
        %7073 = vmatpush1.bf16.msra.mxu0 0
        %7074 = vmatprep.subr.bf16.mxu0 0
        %7075 = vmatpush1.bf16.msra.mxu0 0
        %7076 = vmatprep.subr.bf16.mxu0 0
        %7077 = vmatpush1.bf16.msra.mxu0 0
        %7078 = vmatprep.subr.bf16.mxu0 0
        %7079 = vmatpush1.bf16.msra.mxu0 0
        %7080 = vmatprep.subr.bf16.mxu0 0
        %7081 = vmatpush1.bf16.msra.mxu0 0
        %7082 = vmatprep.subr.bf16.mxu0 0
        %7083 = vmatpush1.bf16.msra.mxu0 0
        %7084 = vmatprep.subr.bf16.mxu0 0
        %7085 = vmatpush1.bf16.msra.mxu0 0
        %7086 = vmatprep.mubr.bf16.mxu0 0
        %7087 = vmatmul.mubr.bf16.gmra.mrb[0].mxu0 %v6985
        %v7088 = vpop.f32.mrb[0].mxu0
        %v7089 = vadd.f32 %v7005, %v7088
        %v7090 = vpop.f32.mrb[0].mxu0
        %v7091 = vpop.f32.mrb[0].mxu0
        %v7092 = vpop.f32.mrb[0].mxu0
        %7093 = vdwg.mxu0
        %7094 = vst [vmem:[%s385] sm:$0xff] %v7089
        %s7095 = sand.u32 %s249, 1
        %s7096 = scalar_lea.sflag [#allocation4], %s7095
        %s7097 = sand.u32 %s249, 1
        %s7098 = smul.addr %s7097, 8
        %s7099 = scalar_lea.vmem [#allocation7], %s7098
        // Predicated region
        $region69: #{wideresnet_forward.1} parent=59 // pred_check
          %p7100 = pneg %p259
        $region70: #{wideresnet_forward.1} parent=59 // pred_check_branch
          %7102 = sbr.rel (%p7100) target = $region72
        $region71: #{wideresnet_forward.1} parent=59 // pred_region
          %s7104 = ssub.s32 128, 128
          %7105 = vsyncadd %s7096, %s7104
          %s7106 = smul.addr %s26, 128
          %s7107 = scalar_lea.hbm %s10, %s7106
          %s7109 = sshll.u32 %s7099, 4
          %s7110 = int_to_ptr.vmem [resolvable:$true] %s7109
          %7112 = dma.vmem_to_hbm [thread:$0]  %s7110, 128, %s7107, %s7096
        $region72: #{wideresnet_forward.1} parent=59 // pred_fallthru
          _
      $region60: #{wideresnet_forward.1} parent=5 // pred_fallthru
        _
      %p7113 = scmp.le.s32.totalorder 2, %s21
      // Predicated region
      $region73: #{wideresnet_forward.1} parent=5 // pred_check
        %p7114 = pneg %p7113
      $region74: #{wideresnet_forward.1} parent=5 // pred_check_branch
        %7116 = sbr.rel (%p7114) target = $region76
      $region75: #{wideresnet_forward.1} parent=5 // pred_region
        %s7117 = ssub.s32 %s21, 2
        // Predicated region
        $region77: #{wideresnet_forward.1} parent=75 // pred_check
          %p7118 = pneg %p265
        $region78: #{wideresnet_forward.1} parent=75 // pred_check_branch
          %7120 = sbr.rel (%p7118) target = $region80
        $region79: #{wideresnet_forward.1} parent=75 // pred_region
          %s7121 = sand.u32 %s250, 1
          %s7122 = scalar_lea.sflag [#allocation4], %s7121
          %s7123 = sand.u32 %s250, 1
          %s7124 = smul.addr %s7123, 8
          %s7125 = scalar_lea.vmem [#allocation7], %s7124
          %7126 = dma.done %s7122, 128
        $region80: #{wideresnet_forward.1} parent=75 // pred_fallthru
          _
      $region76: #{wideresnet_forward.1} parent=5 // pred_fallthru
        _
    $region6: #{wideresnet_forward.1} parent=1 // loop_footer
      %s25 = sadd.s32 1, %s21
    $region7: #{wideresnet_forward.1} parent=1 // loop_footer_branch
      %20 = sbr.rel target = $region3
    $region8: #{wideresnet_forward.1} parent=1 // loop_exit
      _
    %7127 = vsyncpa [#allocation3], 1
    %s7128 = scalar_lea.sflag [#allocation3], 1
    %7129 = vsyncpa %s7128, 1
    %7130 = vsyncpa [#allocation6], 1
    %7131 = vsyncpa [#allocation4], 1
    %s7132 = scalar_lea.sflag [#allocation4], 1
    %7133 = vsyncpa %s7132, 1

</llo_original>
